<compile_context>
chip_gen: v7x
topology: tpu7x:2x2x1
jax: 0.10.0
libtpu: 0.0.40
codegen_flags: <defaults>
</compile_context>

<pallas_src>
import functools

import jax
import jax.numpy as jnp
from jax.experimental import pallas as pl
from jax.experimental.pallas import tpu as pltpu

LANE = 128                              # Cin (K) tile; minimum Cout (N) tile
VMEM_LIMIT = 48 * 1024 * 1024           # scoped VMEM request (safe on v5e/v6e/v7x)
VMEM_BUDGET = 36 * 1024 * 1024          # planning budget when picking tile sizes


def _round_up(v, m):
    return (v + m - 1) // m * m


def _pad_channels(a, cp):
    c = a.shape[-1]
    if c == cp:
        return a
    return jnp.pad(a, [(0, 0)] * (a.ndim - 1) + [(0, cp - c)])


# ---------------------------------------------------------------------------
# Tile-size heuristics
# ---------------------------------------------------------------------------

def _pick_nb(b, rows):
    """Fold batch images into the matmul M dim until ~256 rows (weights re-DMA'd /nb)."""
    nb = 1
    while nb * 2 <= b and b % (nb * 2) == 0 and nb * rows < 256:
        nb *= 2
    return nb


def _pick_tn(coutp, tk, m, nb, n_phase, hq, wq, n_acc, n_res):
    """Largest Cout tile (ideally all of coutp -> x streamed once) that fits VMEM."""
    cands = sorted({c for c in (coutp, 256, 128) if coutp % c == 0}, reverse=True)
    for tn in cands:
        x_blk = nb * n_phase * hq * wq * tk * 2          # bf16 input block
        w_blk = 10 * tk * tn * 2                         # 3x3 (+1x1 shortcut) weights
        o_blk = m * tn * 4 * n_acc                       # worst-case f32 outputs
        r_blk = m * tn * 2 * n_res                       # bf16 residual input
        v_blk = 4 * tn * 4                               # scale / bias vectors
        acc = m * tn * 4 * n_acc                         # f32 accumulators
        xcol = m * 9 * tk * 2                            # local im2col temp
        total = 2 * (x_blk + w_blk + o_blk + r_blk + v_blk) + acc + xcol
        if total <= VMEM_BUDGET:
            return tn
    return 128


# ---------------------------------------------------------------------------
# In-kernel helper
# ---------------------------------------------------------------------------

def _im2col_dot(x_ref, w_ref, *, stride, ho, wo, m):
    """One fused K = 9*tk matmul over the 3x3 taps of the phase-layout input.

    x_ref: (nb, n_phase, hq, wq, tk) bf16 block.  w_ref: (9, tk, tn) bf16.
    Returns (f32 (m, tn) partial conv, bf16 (m, tk) centre-tap window).
    """
    taps = []
    for t in range(9):
        kh, kw = divmod(t, 3)
        ph, pw = kh % stride, kw % stride        # phase (space-to-depth) index
        dh, dw = kh // stride, kw // stride      # static shift inside the phase image
        xs = x_ref[:, ph * stride + pw, dh:dh + ho, dw:dw + wo, :]  # (nb,ho,wo,tk) bf16
        taps.append(xs.reshape(m, xs.shape[-1]))
    xcol = jnp.concatenate(taps, axis=-1)                            # (m, 9*tk) bf16
    wmat = w_ref[...].reshape(9 * w_ref.shape[1], w_ref.shape[2])    # (9*tk, tn)
    acc = jnp.dot(xcol, wmat, preferred_element_type=jnp.float32)
    return acc, taps[4]


# ---------------------------------------------------------------------------
# Pallas kernels
# ---------------------------------------------------------------------------

def _conv_bn_kernel(x_ref, w_ref, scale_ref, bias_ref, out_ref, acc_ref,
                    *, stride, ho, wo, apply_relu):
    k = pl.program_id(2)

    @pl.when(k == 0)
    def _():
        acc_ref[...] = jnp.zeros_like(acc_ref)

    contrib, _ = _im2col_dot(x_ref, w_ref, stride=stride, ho=ho, wo=wo,
                             m=acc_ref.shape[0])
    acc_ref[...] += contrib

    @pl.when(k == pl.num_programs(2) - 1)
    def _():
        y = acc_ref[...] * scale_ref[...] + bias_ref[...]
        if apply_relu:
            y = jnp.maximum(y, 0.0)
        out_ref[...] = y.reshape(out_ref.shape).astype(out_ref.dtype)


def _conv_bn_relu_shortcut_kernel(x_ref, w_ref, ws_ref, scale_ref, bias_ref,
                                  sscale_ref, sbias_ref,
                                  out_ref, res_ref, acc_ref, accs_ref,
                                  *, stride, ho, wo):
    """conv3x3+BN+ReLU fused with the 1x1 shortcut conv+BN (reuses the centre tap)."""
    k = pl.program_id(2)

    @pl.when(k == 0)
    def _():
        acc_ref[...] = jnp.zeros_like(acc_ref)
        accs_ref[...] = jnp.zeros_like(accs_ref)

    contrib, center = _im2col_dot(x_ref, w_ref, stride=stride, ho=ho, wo=wo,
                                  m=acc_ref.shape[0])
    acc_ref[...] += contrib
    accs_ref[...] += jnp.dot(center, ws_ref[...],
                             preferred_element_type=jnp.float32)

    @pl.when(k == pl.num_programs(2) - 1)
    def _():
        y = jnp.maximum(acc_ref[...] * scale_ref[...] + bias_ref[...], 0.0)
        out_ref[...] = y.reshape(out_ref.shape).astype(out_ref.dtype)
        r = accs_ref[...] * sscale_ref[...] + sbias_ref[...]
        res_ref[...] = r.reshape(res_ref.shape).astype(res_ref.dtype)


def _conv_bn_add_kernel(x_ref, w_ref, scale_ref, bias_ref, res_ref,
                        out_ref, acc_ref, *, stride, ho, wo):
    """conv3x3 + BN + residual add fused into the epilogue (no activation after)."""
    k = pl.program_id(2)

    @pl.when(k == 0)
    def _():
        acc_ref[...] = jnp.zeros_like(acc_ref)

    contrib, _ = _im2col_dot(x_ref, w_ref, stride=stride, ho=ho, wo=wo,
                             m=acc_ref.shape[0])
    acc_ref[...] += contrib

    @pl.when(k == pl.num_programs(2) - 1)
    def _():
        y = acc_ref[...] * scale_ref[...] + bias_ref[...]
        y = y.reshape(out_ref.shape) + res_ref[...].astype(jnp.float32)
        out_ref[...] = y.astype(out_ref.dtype)


# ---------------------------------------------------------------------------
# Host-side wrapper
# ---------------------------------------------------------------------------

def _prep_conv_input(x, cinp, stride):
    """NHWC -> bf16 (B, stride^2, Hq, Wq, cinp) padded, phase-rearranged input."""
    b, h, w, _ = x.shape
    x = _pad_channels(x.astype(jnp.bfloat16), cinp)
    xp = jnp.pad(x, ((0, 0), (1, 1), (1, 1), (0, 0)))
    if stride == 1:
        hq, wq = h + 2, w + 2
        xr = xp.reshape(b, 1, hq, wq, cinp)
    else:
        assert stride == 2 and h % 2 == 0 and w % 2 == 0
        hq, wq = (h + 2) // 2, (w + 2) // 2
        xr = xp.reshape(b, hq, 2, wq, 2, cinp).transpose(0, 2, 4, 1, 3, 5)
        xr = xr.reshape(b, 4, hq, wq, cinp)
    return xr, hq, wq, stride * stride


def conv3x3_bn(x, w, scale, bias, *, stride=1, apply_relu=False,
               shortcut=None, residual=None, out_dtype=jnp.bfloat16, tk=LANE):
    """Fused conv3x3(pad=1,no bias) + BN affine (+ReLU | +1x1 shortcut | +residual).

    x: (B,H,W,Cx) NHWC with Cx >= w.shape[2] (extra channels must be zeros).
    w: (3,3,Cin,Cout) HWIO.  scale/bias: (Cout,) folded eval-mode BN.
    shortcut: (ws (Cin,Cout), sscale, sbias) -> also returns the BN'd 1x1-conv
              residual (bf16) computed in the same kernel.
    residual: (B,Ho,Wo,>=Cout) tensor added after BN in the epilogue.
    Returns channel-padded output(s) (B, Ho, Wo, round_up(Cout, 128)).
    """
    b, h, wdim, cx = x.shape
    cin, cout = w.shape[2], w.shape[3]
    ho = (h - 1) // stride + 1
    wo = (wdim - 1) // stride + 1
    cinp = _round_up(max(cin, cx), tk)
    coutp = _round_up(cout, LANE)

    xr, hq, wq, n_phase = _prep_conv_input(x, cinp, stride)

    nb = _pick_nb(b, ho * wo)
    m = nb * ho * wo
    n_acc = 2 if shortcut is not None else 1
    n_res = 1 if residual is not None else 0
    tn = _pick_tn(coutp, tk, m, nb, n_phase, hq, wq, n_acc, n_res)

    wp = jnp.pad(w, ((0, 0), (0, 0), (0, cinp - cin), (0, coutp - cout)))
    wp = wp.reshape(9, cinp, coutp).astype(jnp.bfloat16)

    def vec(v):
        return jnp.pad(v.astype(jnp.float32), (0, coutp - cout)).reshape(1, coutp)

    grid = (b // nb, coutp // tn, cinp // tk)

    x_spec = pl.BlockSpec((nb, n_phase, hq, wq, tk),
                          lambda bb, j, k: (bb, 0, 0, 0, k))
    w_spec = pl.BlockSpec((9, tk, tn), lambda bb, j, k: (0, k, j))
    v_spec = pl.BlockSpec((1, tn), lambda bb, j, k: (0, j))
    o_spec = pl.BlockSpec((nb, ho, wo, tn), lambda bb, j, k: (bb, 0, 0, j))

    cparams = pltpu.CompilerParams(
        dimension_semantics=("parallel", "parallel", "arbitrary"),
        vmem_limit_bytes=VMEM_LIMIT)

    if shortcut is not None:
        ws, sscale, sbias = shortcut
        wsp = jnp.pad(ws, ((0, cinp - cin), (0, coutp - cout))).astype(jnp.bfloat16)
        ws_spec = pl.BlockSpec((tk, tn), lambda bb, j, k: (k, j))
        kernel = functools.partial(_conv_bn_relu_shortcut_kernel,
                                   stride=stride, ho=ho, wo=wo)
        return pl.pallas_call(
            kernel,
            out_shape=(jax.ShapeDtypeStruct((b, ho, wo, coutp), out_dtype),
                       jax.ShapeDtypeStruct((b, ho, wo, coutp), jnp.bfloat16)),
            grid_spec=pltpu.PrefetchScalarGridSpec(
                num_scalar_prefetch=0, grid=grid,
                in_specs=[x_spec, w_spec, ws_spec, v_spec, v_spec, v_spec, v_spec],
                out_specs=(o_spec, o_spec),
                scratch_shapes=[pltpu.VMEM((m, tn), jnp.float32),
                                pltpu.VMEM((m, tn), jnp.float32)]),
            compiler_params=cparams,
        )(xr, wp, wsp, vec(scale), vec(bias), vec(sscale), vec(sbias))

    if residual is not None:
        resp = _pad_channels(residual.astype(jnp.bfloat16), coutp)
        kernel = functools.partial(_conv_bn_add_kernel, stride=stride, ho=ho, wo=wo)
        return pl.pallas_call(
            kernel,
            out_shape=jax.ShapeDtypeStruct((b, ho, wo, coutp), out_dtype),
            grid_spec=pltpu.PrefetchScalarGridSpec(
                num_scalar_prefetch=0, grid=grid,
                in_specs=[x_spec, w_spec, v_spec, v_spec, o_spec],
                out_specs=o_spec,
                scratch_shapes=[pltpu.VMEM((m, tn), jnp.float32)]),
            compiler_params=cparams,
        )(xr, wp, vec(scale), vec(bias), resp)

    kernel = functools.partial(_conv_bn_kernel, stride=stride, ho=ho, wo=wo,
                               apply_relu=apply_relu)
    return pl.pallas_call(
        kernel,
        out_shape=jax.ShapeDtypeStruct((b, ho, wo, coutp), out_dtype),
        grid_spec=pltpu.PrefetchScalarGridSpec(
            num_scalar_prefetch=0, grid=grid,
            in_specs=[x_spec, w_spec, v_spec, v_spec],
            out_specs=o_spec,
            scratch_shapes=[pltpu.VMEM((m, tn), jnp.float32)]),
        compiler_params=cparams,
    )(xr, wp, vec(scale), vec(bias))


# ---------------------------------------------------------------------------
# ResNetBasicBlock / ResNetLayer forward (expansion = 1)
# ---------------------------------------------------------------------------

def resnet_basic_block(x, p, downsampling, *, out_dtype=jnp.bfloat16):
    """x: (B,H,W,Cx) NHWC; Cx may carry zero lane padding beyond the logical Cin."""
    cin, cout = p["w1"].shape[2], p["w1"].shape[3]
    if cin != cout:   # ResidualBlock.should_apply_shortcut (expansion == 1)
        h1, res = conv3x3_bn(x, p["w1"], p["s1"], p["b1"], stride=downsampling,
                             apply_relu=True,
                             shortcut=(p["ws"], p["ss"], p["bs"]),
                             out_dtype=jnp.bfloat16)
    else:
        assert downsampling == 1
        h1 = conv3x3_bn(x, p["w1"], p["s1"], p["b1"], stride=1,
                        apply_relu=True, out_dtype=jnp.bfloat16)
        res = x   # identity residual
    # second conv3x3 + BN with the residual add fused into the epilogue
    return conv3x3_bn(h1, p["w2"], p["s2"], p["b2"], stride=1,
                      residual=res, out_dtype=out_dtype)


def resnet_layer(x, params_list, in_channels, out_channels):
    """ResNetLayer.forward (NHWC): first block downsamples iff in != out."""
    downsampling = 2 if in_channels != out_channels else 1
    n = len(params_list)
    for i, p in enumerate(params_list):
        d = downsampling if i == 0 else 1
        out_dtype = jnp.float32 if i == n - 1 else jnp.bfloat16
        x = resnet_basic_block(x, p, d, out_dtype=out_dtype)
    return x[..., :out_channels]   # strip lane padding only at the layer boundary


# ---------------------------------------------------------------------------
# Deterministic parameter construction (eval-mode BN folded to scale/bias)
# ---------------------------------------------------------------------------

def fold_bn(gamma, beta, mean, var, eps=1e-5):
    scale = gamma / jnp.sqrt(var + eps)
    return scale, beta - mean * scale


def make_block_params(key, cin, cout):
    ks = jax.random.split(key, 9)
    s = 0.1
    w1 = s * jax.random.normal(ks[0], (3, 3, cin, cout), jnp.float32)   # HWIO
    w2 = s * jax.random.normal(ks[1], (3, 3, cout, cout), jnp.float32)  # HWIO
    zeros = jnp.zeros((cout,), jnp.float32)
    ones = jnp.ones((cout,), jnp.float32)
    s1, b1 = fold_bn(1.0 + 0.1 * jax.random.normal(ks[2], (cout,)),
                     0.1 * jax.random.normal(ks[3], (cout,)), zeros, ones)
    s2, b2 = fold_bn(1.0 + 0.1 * jax.random.normal(ks[4], (cout,)),
                     0.1 * jax.random.normal(ks[5], (cout,)), zeros, ones)
    p = {"w1": w1, "s1": s1, "b1": b1, "w2": w2, "s2": s2, "b2": b2}
    if cin != cout:
        ws = s * jax.random.normal(ks[6], (cin, cout), jnp.float32)     # 1x1 conv
        ss, bs = fold_bn(1.0 + 0.1 * jax.random.normal(ks[7], (cout,)),
                         0.1 * jax.random.normal(ks[8], (cout,)), zeros, ones)
        p.update({"ws": ws, "ss": ss, "bs": bs})
    return p


def make_layer_params(key, in_channels, out_channels, n=1):
    keys = jax.random.split(key, n)
    params = [make_block_params(keys[0], in_channels, out_channels)]
    for i in range(1, n):
        params.append(make_block_params(keys[i], out_channels, out_channels))
    return params


# ---------------------------------------------------------------------------
# Plain-JAX reference (for numerical check)
# ---------------------------------------------------------------------------

def _conv3x3_ref(x, w, stride):
    return jax.lax.conv_general_dilated(
        x, w, window_strides=(stride, stride), padding=((1, 1), (1, 1)),
        dimension_numbers=("NHWC", "HWIO", "NHWC"))


def resnet_layer_ref(x, params_list, in_channels, out_channels):
    downsampling = 2 if in_channels != out_channels else 1
    for i, p in enumerate(params_list):
        d = downsampling if i == 0 else 1
        cin, cout = p["w1"].shape[2], p["w1"].shape[3]
        h1 = jnp.maximum(_conv3x3_ref(x, p["w1"], d) * p["s1"] + p["b1"], 0.0)
        if cin != cout:
            res = (x[:, ::d, ::d, :] @ p["ws"]) * p["ss"] + p["bs"]
        else:
            res = x
        x = _conv3x3_ref(h1, p["w2"], 1) * p["s2"] + p["b2"] + res
    return x


# ---------------------------------------------------------------------------
# Demo
# ---------------------------------------------------------------------------

if __name__ == "__main__":
    key = jax.random.PRNGKey(0)
    k_x, k_p = jax.random.split(key)

    N, H, W = 2, 16, 16
    in_channels, out_channels, n_blocks = 4, 8, 2  # Cin != Cout -> downsampling = 2

    x = jax.random.normal(k_x, (N, H, W, in_channels), jnp.float32)  # NHWC
    params = make_layer_params(k_p, in_channels, out_channels, n=n_blocks)

    fwd = jax.jit(functools.partial(resnet_layer, in_channels=in_channels,
                                    out_channels=out_channels))
    out = jax.block_until_ready(fwd(x, params))

    expected_shape = (N, H // 2, W // 2, out_channels)
    assert out.shape == expected_shape, (out.shape, expected_shape)
    assert bool(jnp.all(jnp.isfinite(out)))

    ref = resnet_layer_ref(x, params, in_channels, out_channels)
    err = float(jnp.max(jnp.abs(out - ref)))
    tol = 5e-2 * (float(jnp.max(jnp.abs(ref))) + 1.0)   # bf16-MXU / bf16-stream tolerance
    assert err < tol, (err, tol)

    print("KERNEL_OK")
</pallas_src>

<mosaic_0001>
module attributes {stable_mosaic.version = 11 : i64} {
  func.func @_conv_bn_relu_shortcut_kernel(%arg0: i32, %arg1: i32, %arg2: i32, %arg3: memref<2x4x9x9x128xbf16, #tpu.memory_space<vmem>>, %arg4: memref<9x128x128xbf16, #tpu.memory_space<vmem>>, %arg5: memref<128x128xbf16, #tpu.memory_space<vmem>>, %arg6: memref<1x128xf32, #tpu.memory_space<vmem>>, %arg7: memref<1x128xf32, #tpu.memory_space<vmem>>, %arg8: memref<1x128xf32, #tpu.memory_space<vmem>>, %arg9: memref<1x128xf32, #tpu.memory_space<vmem>>, %arg10: memref<2x8x8x128xbf16, #tpu.memory_space<vmem>>, %arg11: memref<2x8x8x128xbf16, #tpu.memory_space<vmem>>, %arg12: memref<128x128xf32, #tpu.memory_space<vmem>>, %arg13: memref<128x128xf32, #tpu.memory_space<vmem>>) attributes {dimension_semantics = [#tpu.dimension_semantics<parallel>, #tpu.dimension_semantics<parallel>, #tpu.dimension_semantics<arbitrary>], iteration_bounds = array<i64: 1, 1, 1>, scalar_prefetch = 0 : i64, scratch_operands = 2 : i64, tpu.core_type = #tpu.core_type<tc>, window_params = [{transform_indices = @transform_0, window_bounds = array<i64: 2, 4, 9, 9, 128>}, {transform_indices = @transform_1, window_bounds = array<i64: 9, 128, 128>}, {transform_indices = @transform_2, window_bounds = array<i64: 128, 128>}, {transform_indices = @transform_3, window_bounds = array<i64: 1, 128>}, {transform_indices = @transform_4, window_bounds = array<i64: 1, 128>}, {transform_indices = @transform_5, window_bounds = array<i64: 1, 128>}, {transform_indices = @transform_6, window_bounds = array<i64: 1, 128>}, {transform_indices = @transform_7, window_bounds = array<i64: 2, 8, 8, 128>}, {transform_indices = @transform_8, window_bounds = array<i64: 2, 8, 8, 128>}]} {
    %c0_i32 = arith.constant 0 : i32
    %0 = arith.cmpi eq, %arg2, %c0_i32 : i32
    %1 = arith.extui %0 : i1 to i32
    %c0_i32_0 = arith.constant 0 : i32
    %2 = arith.cmpi ne, %1, %c0_i32_0 : i32
    scf.if %2 {
      %cst_58 = arith.constant 0.000000e+00 : f32
      %45 = vector.broadcast %cst_58 : f32 to vector<128x128xf32>
      %c0_59 = arith.constant 0 : index
      %c0_60 = arith.constant 0 : index
      %46 = vector.load %arg12[%c0_59, %c0_60] : memref<128x128xf32, #tpu.memory_space<vmem>>, vector<128x128xf32>
      tpu.vector_store %arg12[%c0_59, %c0_60], %45 {strides = array<i32>} : memref<128x128xf32, #tpu.memory_space<vmem>>, vector<128x128xf32>,
      %cst_61 = arith.constant 0.000000e+00 : f32
      %47 = vector.broadcast %cst_61 : f32 to vector<128x128xf32>
      %c0_62 = arith.constant 0 : index
      %c0_63 = arith.constant 0 : index
      %48 = vector.load %arg13[%c0_62, %c0_63] : memref<128x128xf32, #tpu.memory_space<vmem>>, vector<128x128xf32>
      tpu.vector_store %arg13[%c0_62, %c0_63], %47 {strides = array<i32>} : memref<128x128xf32, #tpu.memory_space<vmem>>, vector<128x128xf32>,
    } else {
    }
    %c0 = arith.constant 0 : index
    %c0_1 = arith.constant 0 : index
    %c0_2 = arith.constant 0 : index
    %c0_3 = arith.constant 0 : index
    %c0_4 = arith.constant 0 : index
    %3 = vector.load %arg3[%c0, %c0_1, %c0_2, %c0_3, %c0_4] : memref<2x4x9x9x128xbf16, #tpu.memory_space<vmem>>, vector<2x1x8x8x128xbf16>
    %4 = vector.shape_cast %3 : vector<2x1x8x8x128xbf16> to vector<2x8x8x128xbf16>
    %5 = vector.shape_cast %4 : vector<2x8x8x128xbf16> to vector<128x128xbf16>
    %c0_5 = arith.constant 0 : index
    %c1 = arith.constant 1 : index
    %c0_6 = arith.constant 0 : index
    %c0_7 = arith.constant 0 : index
    %c0_8 = arith.constant 0 : index
    %6 = vector.load %arg3[%c0_5, %c1, %c0_6, %c0_7, %c0_8] : memref<2x4x9x9x128xbf16, #tpu.memory_space<vmem>>, vector<2x1x8x8x128xbf16>
    %7 = vector.shape_cast %6 : vector<2x1x8x8x128xbf16> to vector<2x8x8x128xbf16>
    %8 = vector.shape_cast %7 : vector<2x8x8x128xbf16> to vector<128x128xbf16>
    %c0_9 = arith.constant 0 : index
    %c0_10 = arith.constant 0 : index
    %c0_11 = arith.constant 0 : index
    %c1_12 = arith.constant 1 : index
    %c0_13 = arith.constant 0 : index
    %9 = vector.load %arg3[%c0_9, %c0_10, %c0_11, %c1_12, %c0_13] : memref<2x4x9x9x128xbf16, #tpu.memory_space<vmem>>, vector<2x1x8x8x128xbf16>
    %10 = vector.shape_cast %9 : vector<2x1x8x8x128xbf16> to vector<2x8x8x128xbf16>
    %11 = vector.shape_cast %10 : vector<2x8x8x128xbf16> to vector<128x128xbf16>
    %c0_14 = arith.constant 0 : index
    %c2 = arith.constant 2 : index
    %c0_15 = arith.constant 0 : index
    %c0_16 = arith.constant 0 : index
    %c0_17 = arith.constant 0 : index
    %12 = vector.load %arg3[%c0_14, %c2, %c0_15, %c0_16, %c0_17] : memref<2x4x9x9x128xbf16, #tpu.memory_space<vmem>>, vector<2x1x8x8x128xbf16>
    %13 = vector.shape_cast %12 : vector<2x1x8x8x128xbf16> to vector<2x8x8x128xbf16>
    %14 = vector.shape_cast %13 : vector<2x8x8x128xbf16> to vector<128x128xbf16>
    %c0_18 = arith.constant 0 : index
    %c3 = arith.constant 3 : index
    %c0_19 = arith.constant 0 : index
    %c0_20 = arith.constant 0 : index
    %c0_21 = arith.constant 0 : index
    %15 = vector.load %arg3[%c0_18, %c3, %c0_19, %c0_20, %c0_21] : memref<2x4x9x9x128xbf16, #tpu.memory_space<vmem>>, vector<2x1x8x8x128xbf16>
    %16 = vector.shape_cast %15 : vector<2x1x8x8x128xbf16> to vector<2x8x8x128xbf16>
    %17 = vector.shape_cast %16 : vector<2x8x8x128xbf16> to vector<128x128xbf16>
    %c0_22 = arith.constant 0 : index
    %c2_23 = arith.constant 2 : index
    %c0_24 = arith.constant 0 : index
    %c1_25 = arith.constant 1 : index
    %c0_26 = arith.constant 0 : index
    %18 = vector.load %arg3[%c0_22, %c2_23, %c0_24, %c1_25, %c0_26] : memref<2x4x9x9x128xbf16, #tpu.memory_space<vmem>>, vector<2x1x8x8x128xbf16>
    %19 = vector.shape_cast %18 : vector<2x1x8x8x128xbf16> to vector<2x8x8x128xbf16>
    %20 = vector.shape_cast %19 : vector<2x8x8x128xbf16> to vector<128x128xbf16>
    %c0_27 = arith.constant 0 : index
    %c0_28 = arith.constant 0 : index
    %c1_29 = arith.constant 1 : index
    %c0_30 = arith.constant 0 : index
    %c0_31 = arith.constant 0 : index
    %21 = vector.load %arg3[%c0_27, %c0_28, %c1_29, %c0_30, %c0_31] : memref<2x4x9x9x128xbf16, #tpu.memory_space<vmem>>, vector<2x1x8x8x128xbf16>
    %22 = vector.shape_cast %21 : vector<2x1x8x8x128xbf16> to vector<2x8x8x128xbf16>
    %23 = vector.shape_cast %22 : vector<2x8x8x128xbf16> to vector<128x128xbf16>
    %c0_32 = arith.constant 0 : index
    %c1_33 = arith.constant 1 : index
    %c1_34 = arith.constant 1 : index
    %c0_35 = arith.constant 0 : index
    %c0_36 = arith.constant 0 : index
    %24 = vector.load %arg3[%c0_32, %c1_33, %c1_34, %c0_35, %c0_36] : memref<2x4x9x9x128xbf16, #tpu.memory_space<vmem>>, vector<2x1x8x8x128xbf16>
    %25 = vector.shape_cast %24 : vector<2x1x8x8x128xbf16> to vector<2x8x8x128xbf16>
    %26 = vector.shape_cast %25 : vector<2x8x8x128xbf16> to vector<128x128xbf16>
    %c0_37 = arith.constant 0 : index
    %c0_38 = arith.constant 0 : index
    %c1_39 = arith.constant 1 : index
    %c1_40 = arith.constant 1 : index
    %c0_41 = arith.constant 0 : index
    %27 = vector.load %arg3[%c0_37, %c0_38, %c1_39, %c1_40, %c0_41] : memref<2x4x9x9x128xbf16, #tpu.memory_space<vmem>>, vector<2x1x8x8x128xbf16>
    %28 = vector.shape_cast %27 : vector<2x1x8x8x128xbf16> to vector<2x8x8x128xbf16>
    %29 = vector.shape_cast %28 : vector<2x8x8x128xbf16> to vector<128x128xbf16>
    %30 = tpu.concatenate %5, %8, %11, %14, %17, %20, %23, %26, %29 in 1 : vector<128x128xbf16>, vector<128x128xbf16>, vector<128x128xbf16>, vector<128x128xbf16>, vector<128x128xbf16>, vector<128x128xbf16>, vector<128x128xbf16>, vector<128x128xbf16>, vector<128x128xbf16> -> vector<128x1152xbf16>
    %c0_42 = arith.constant 0 : index
    %c0_43 = arith.constant 0 : index
    %c0_44 = arith.constant 0 : index
    %31 = vector.load %arg4[%c0_42, %c0_43, %c0_44] : memref<9x128x128xbf16, #tpu.memory_space<vmem>>, vector<9x128x128xbf16>
    %32 = vector.shape_cast %31 : vector<9x128x128xbf16> to vector<1152x128xbf16>
    %cst = arith.constant dense<0.000000e+00> : vector<128x128xf32>
    %33 = tpu.matmul %30, %32, %cst {dimension_numbers = #tpu.dot_dimension_numbers<[1], [0], [0], [1], [0, 0, 1, 1], [], []>} : vector<128x1152xbf16>, vector<1152x128xbf16>, vector<128x128xf32> -> vector<128x128xf32>
    %c0_45 = arith.constant 0 : index
    %c0_46 = arith.constant 0 : index
    %34 = vector.load %arg12[%c0_45, %c0_46] : memref<128x128xf32, #tpu.memory_space<vmem>>, vector<128x128xf32>
    %35 = arith.addf %34, %33 : vector<128x128xf32>
    %c0_47 = arith.constant 0 : index
    %c0_48 = arith.constant 0 : index
    %36 = vector.load %arg12[%c0_47, %c0_48] : memref<128x128xf32, #tpu.memory_space<vmem>>, vector<128x128xf32>
    tpu.vector_store %arg12[%c0_47, %c0_48], %35 {strides = array<i32>} : memref<128x128xf32, #tpu.memory_space<vmem>>, vector<128x128xf32>,
    %c0_49 = arith.constant 0 : index
    %c0_50 = arith.constant 0 : index
    %37 = vector.load %arg13[%c0_49, %c0_50] : memref<128x128xf32, #tpu.memory_space<vmem>>, vector<128x128xf32>
    %c0_51 = arith.constant 0 : index
    %c0_52 = arith.constant 0 : index
    %38 = vector.load %arg5[%c0_51, %c0_52] : memref<128x128xbf16, #tpu.memory_space<vmem>>, vector<128x128xbf16>
    %cst_53 = arith.constant dense<0.000000e+00> : vector<128x128xf32>
    %39 = tpu.matmul %17, %38, %cst_53 {dimension_numbers = #tpu.dot_dimension_numbers<[1], [0], [0], [1], [0, 0, 1, 1], [], []>} : vector<128x128xbf16>, vector<128x128xbf16>, vector<128x128xf32> -> vector<128x128xf32>
    %40 = arith.addf %37, %39 : vector<128x128xf32>
    %c0_54 = arith.constant 0 : index
    %c0_55 = arith.constant 0 : index
    %41 = vector.load %arg13[%c0_54, %c0_55] : memref<128x128xf32, #tpu.memory_space<vmem>>, vector<128x128xf32>
    tpu.vector_store %arg13[%c0_54, %c0_55], %40 {strides = array<i32>} : memref<128x128xf32, #tpu.memory_space<vmem>>, vector<128x128xf32>,
    %c0_i32_56 = arith.constant 0 : i32
    %42 = arith.cmpi eq, %arg2, %c0_i32_56 : i32
    %43 = arith.extui %42 : i1 to i32
    %c0_i32_57 = arith.constant 0 : i32
    %44 = arith.cmpi ne, %43, %c0_i32_57 : i32
    scf.if %44 {
      %c0_58 = arith.constant 0 : index
      %c0_59 = arith.constant 0 : index
      %45 = vector.load %arg12[%c0_58, %c0_59] : memref<128x128xf32, #tpu.memory_space<vmem>>, vector<128x128xf32>
      %c0_60 = arith.constant 0 : index
      %c0_61 = arith.constant 0 : index
      %46 = vector.load %arg6[%c0_60, %c0_61] : memref<1x128xf32, #tpu.memory_space<vmem>>, vector<1x128xf32>
      %47 = vector.broadcast %46 : vector<1x128xf32> to vector<128x128xf32>
      %48 = arith.mulf %45, %47 : vector<128x128xf32>
      %c0_62 = arith.constant 0 : index
      %c0_63 = arith.constant 0 : index
      %49 = vector.load %arg7[%c0_62, %c0_63] : memref<1x128xf32, #tpu.memory_space<vmem>>, vector<1x128xf32>
      %50 = vector.broadcast %49 : vector<1x128xf32> to vector<128x128xf32>
      %51 = arith.addf %48, %50 : vector<128x128xf32>
      %cst_64 = arith.constant 0.000000e+00 : f32
      %52 = vector.broadcast %cst_64 : f32 to vector<128x128xf32>
      %53 = arith.maximumf %51, %52 : vector<128x128xf32>
      %54 = vector.shape_cast %53 : vector<128x128xf32> to vector<2x8x8x128xf32>
      %55 = arith.truncf %54 : vector<2x8x8x128xf32> to vector<2x8x8x128xbf16>
      %c0_65 = arith.constant 0 : index
      %c0_66 = arith.constant 0 : index
      %c0_67 = arith.constant 0 : index
      %c0_68 = arith.constant 0 : index
      %56 = vector.load %arg10[%c0_65, %c0_66, %c0_67, %c0_68] : memref<2x8x8x128xbf16, #tpu.memory_space<vmem>>, vector<2x8x8x128xbf16>
      tpu.vector_store %arg10[%c0_65, %c0_66, %c0_67, %c0_68], %55 {strides = array<i32>} : memref<2x8x8x128xbf16, #tpu.memory_space<vmem>>, vector<2x8x8x128xbf16>,
      %c0_69 = arith.constant 0 : index
      %c0_70 = arith.constant 0 : index
      %57 = vector.load %arg13[%c0_69, %c0_70] : memref<128x128xf32, #tpu.memory_space<vmem>>, vector<128x128xf32>
      %c0_71 = arith.constant 0 : index
      %c0_72 = arith.constant 0 : index
      %58 = vector.load %arg8[%c0_71, %c0_72] : memref<1x128xf32, #tpu.memory_space<vmem>>, vector<1x128xf32>
      %59 = vector.broadcast %58 : vector<1x128xf32> to vector<128x128xf32>
      %60 = arith.mulf %57, %59 : vector<128x128xf32>
      %c0_73 = arith.constant 0 : index
      %c0_74 = arith.constant 0 : index
      %61 = vector.load %arg9[%c0_73, %c0_74] : memref<1x128xf32, #tpu.memory_space<vmem>>, vector<1x128xf32>
      %62 = vector.broadcast %61 : vector<1x128xf32> to vector<128x128xf32>
      %63 = arith.addf %60, %62 : vector<128x128xf32>
      %64 = vector.shape_cast %63 : vector<128x128xf32> to vector<2x8x8x128xf32>
      %65 = arith.truncf %64 : vector<2x8x8x128xf32> to vector<2x8x8x128xbf16>
      %c0_75 = arith.constant 0 : index
      %c0_76 = arith.constant 0 : index
      %c0_77 = arith.constant 0 : index
      %c0_78 = arith.constant 0 : index
      %66 = vector.load %arg11[%c0_75, %c0_76, %c0_77, %c0_78] : memref<2x8x8x128xbf16, #tpu.memory_space<vmem>>, vector<2x8x8x128xbf16>
      tpu.vector_store %arg11[%c0_75, %c0_76, %c0_77, %c0_78], %65 {strides = array<i32>} : memref<2x8x8x128xbf16, #tpu.memory_space<vmem>>, vector<2x8x8x128xbf16>,
    } else {
    }
    return
  }
  func.func @transform_0(%arg0: i32, %arg1: i32, %arg2: i32) -> (i32, i32, i32, i32, i32) {
    %c0_i32 = arith.constant 0 : i32
    %c0_i32_0 = arith.constant 0 : i32
    %c0_i32_1 = arith.constant 0 : i32
    %c0_i32_2 = arith.constant 0 : i32
    return %arg0, %c0_i32, %c0_i32_0, %c0_i32_1, %arg2 : i32, i32, i32, i32, i32
  }
  func.func @transform_1(%arg0: i32, %arg1: i32, %arg2: i32) -> (i32, i32, i32) {
    %c0_i32 = arith.constant 0 : i32
    %c0_i32_0 = arith.constant 0 : i32
    return %c0_i32, %arg2, %arg1 : i32, i32, i32
  }
  func.func @transform_2(%arg0: i32, %arg1: i32, %arg2: i32) -> (i32, i32) {
    %c0_i32 = arith.constant 0 : i32
    return %arg2, %arg1 : i32, i32
  }
  func.func @transform_3(%arg0: i32, %arg1: i32, %arg2: i32) -> (i32, i32) {
    %c0_i32 = arith.constant 0 : i32
    %c0_i32_0 = arith.constant 0 : i32
    return %c0_i32, %arg1 : i32, i32
  }
  func.func @transform_4(%arg0: i32, %arg1: i32, %arg2: i32) -> (i32, i32) {
    %c0_i32 = arith.constant 0 : i32
    %c0_i32_0 = arith.constant 0 : i32
    return %c0_i32, %arg1 : i32, i32
  }
  func.func @transform_5(%arg0: i32, %arg1: i32, %arg2: i32) -> (i32, i32) {
    %c0_i32 = arith.constant 0 : i32
    %c0_i32_0 = arith.constant 0 : i32
    return %c0_i32, %arg1 : i32, i32
  }
  func.func @transform_6(%arg0: i32, %arg1: i32, %arg2: i32) -> (i32, i32) {
    %c0_i32 = arith.constant 0 : i32
    %c0_i32_0 = arith.constant 0 : i32
    return %c0_i32, %arg1 : i32, i32
  }
  func.func @transform_7(%arg0: i32, %arg1: i32, %arg2: i32) -> (i32, i32, i32, i32) {
    %c0_i32 = arith.constant 0 : i32
    %c0_i32_0 = arith.constant 0 : i32
    %c0_i32_1 = arith.constant 0 : i32
    return %arg0, %c0_i32, %c0_i32_0, %arg1 : i32, i32, i32, i32
  }
  func.func @transform_8(%arg0: i32, %arg1: i32, %arg2: i32) -> (i32, i32, i32, i32) {
    %c0_i32 = arith.constant 0 : i32
    %c0_i32_0 = arith.constant 0 : i32
    %c0_i32_1 = arith.constant 0 : i32
    return %arg0, %c0_i32, %c0_i32_0, %arg1 : i32, i32, i32, i32
  }
}

module attributes {stable_mosaic.version = 11 : i64} {
  func.func @_conv_bn_kernel(%arg0: i32, %arg1: i32, %arg2: i32, %arg3: memref<2x1x10x10x128xbf16, #tpu.memory_space<vmem>>, %arg4: memref<9x128x128xbf16, #tpu.memory_space<vmem>>, %arg5: memref<1x128xf32, #tpu.memory_space<vmem>>, %arg6: memref<1x128xf32, #tpu.memory_space<vmem>>, %arg7: memref<2x8x8x128xbf16, #tpu.memory_space<vmem>>, %arg8: memref<128x128xf32, #tpu.memory_space<vmem>>) attributes {dimension_semantics = [#tpu.dimension_semantics<parallel>, #tpu.dimension_semantics<parallel>, #tpu.dimension_semantics<arbitrary>], iteration_bounds = array<i64: 1, 1, 1>, scalar_prefetch = 0 : i64, scratch_operands = 1 : i64, tpu.core_type = #tpu.core_type<tc>, window_params = [{transform_indices = @transform_0, window_bounds = array<i64: 2, 1, 10, 10, 128>}, {transform_indices = @transform_1, window_bounds = array<i64: 9, 128, 128>}, {transform_indices = @transform_2, window_bounds = array<i64: 1, 128>}, {transform_indices = @transform_3, window_bounds = array<i64: 1, 128>}, {transform_indices = @transform_4, window_bounds = array<i64: 2, 8, 8, 128>}]} {
    %c0_i32 = arith.constant 0 : i32
    %0 = arith.cmpi eq, %arg2, %c0_i32 : i32
    %1 = arith.extui %0 : i1 to i32
    %c0_i32_0 = arith.constant 0 : i32
    %2 = arith.cmpi ne, %1, %c0_i32_0 : i32
    scf.if %2 {
      %cst_52 = arith.constant 0.000000e+00 : f32
      %40 = vector.broadcast %cst_52 : f32 to vector<128x128xf32>
      %c0_53 = arith.constant 0 : index
      %c0_54 = arith.constant 0 : index
      %41 = vector.load %arg8[%c0_53, %c0_54] : memref<128x128xf32, #tpu.memory_space<vmem>>, vector<128x128xf32>
      tpu.vector_store %arg8[%c0_53, %c0_54], %40 {strides = array<i32>} : memref<128x128xf32, #tpu.memory_space<vmem>>, vector<128x128xf32>,
    } else {
    }
    %c0 = arith.constant 0 : index
    %c0_1 = arith.constant 0 : index
    %c0_2 = arith.constant 0 : index
    %c0_3 = arith.constant 0 : index
    %c0_4 = arith.constant 0 : index
    %3 = vector.load %arg3[%c0, %c0_1, %c0_2, %c0_3, %c0_4] : memref<2x1x10x10x128xbf16, #tpu.memory_space<vmem>>, vector<2x1x8x8x128xbf16>
    %4 = vector.shape_cast %3 : vector<2x1x8x8x128xbf16> to vector<2x8x8x128xbf16>
    %5 = vector.shape_cast %4 : vector<2x8x8x128xbf16> to vector<128x128xbf16>
    %c0_5 = arith.constant 0 : index
    %c0_6 = arith.constant 0 : index
    %c0_7 = arith.constant 0 : index
    %c1 = arith.constant 1 : index
    %c0_8 = arith.constant 0 : index
    %6 = vector.load %arg3[%c0_5, %c0_6, %c0_7, %c1, %c0_8] : memref<2x1x10x10x128xbf16, #tpu.memory_space<vmem>>, vector<2x1x8x8x128xbf16>
    %7 = vector.shape_cast %6 : vector<2x1x8x8x128xbf16> to vector<2x8x8x128xbf16>
    %8 = vector.shape_cast %7 : vector<2x8x8x128xbf16> to vector<128x128xbf16>
    %c0_9 = arith.constant 0 : index
    %c0_10 = arith.constant 0 : index
    %c0_11 = arith.constant 0 : index
    %c2 = arith.constant 2 : index
    %c0_12 = arith.constant 0 : index
    %9 = vector.load %arg3[%c0_9, %c0_10, %c0_11, %c2, %c0_12] : memref<2x1x10x10x128xbf16, #tpu.memory_space<vmem>>, vector<2x1x8x8x128xbf16>
    %10 = vector.shape_cast %9 : vector<2x1x8x8x128xbf16> to vector<2x8x8x128xbf16>
    %11 = vector.shape_cast %10 : vector<2x8x8x128xbf16> to vector<128x128xbf16>
    %c0_13 = arith.constant 0 : index
    %c0_14 = arith.constant 0 : index
    %c1_15 = arith.constant 1 : index
    %c0_16 = arith.constant 0 : index
    %c0_17 = arith.constant 0 : index
    %12 = vector.load %arg3[%c0_13, %c0_14, %c1_15, %c0_16, %c0_17] : memref<2x1x10x10x128xbf16, #tpu.memory_space<vmem>>, vector<2x1x8x8x128xbf16>
    %13 = vector.shape_cast %12 : vector<2x1x8x8x128xbf16> to vector<2x8x8x128xbf16>
    %14 = vector.shape_cast %13 : vector<2x8x8x128xbf16> to vector<128x128xbf16>
    %c0_18 = arith.constant 0 : index
    %c0_19 = arith.constant 0 : index
    %c1_20 = arith.constant 1 : index
    %c1_21 = arith.constant 1 : index
    %c0_22 = arith.constant 0 : index
    %15 = vector.load %arg3[%c0_18, %c0_19, %c1_20, %c1_21, %c0_22] : memref<2x1x10x10x128xbf16, #tpu.memory_space<vmem>>, vector<2x1x8x8x128xbf16>
    %16 = vector.shape_cast %15 : vector<2x1x8x8x128xbf16> to vector<2x8x8x128xbf16>
    %17 = vector.shape_cast %16 : vector<2x8x8x128xbf16> to vector<128x128xbf16>
    %c0_23 = arith.constant 0 : index
    %c0_24 = arith.constant 0 : index
    %c1_25 = arith.constant 1 : index
    %c2_26 = arith.constant 2 : index
    %c0_27 = arith.constant 0 : index
    %18 = vector.load %arg3[%c0_23, %c0_24, %c1_25, %c2_26, %c0_27] : memref<2x1x10x10x128xbf16, #tpu.memory_space<vmem>>, vector<2x1x8x8x128xbf16>
    %19 = vector.shape_cast %18 : vector<2x1x8x8x128xbf16> to vector<2x8x8x128xbf16>
    %20 = vector.shape_cast %19 : vector<2x8x8x128xbf16> to vector<128x128xbf16>
    %c0_28 = arith.constant 0 : index
    %c0_29 = arith.constant 0 : index
    %c2_30 = arith.constant 2 : index
    %c0_31 = arith.constant 0 : index
    %c0_32 = arith.constant 0 : index
    %21 = vector.load %arg3[%c0_28, %c0_29, %c2_30, %c0_31, %c0_32] : memref<2x1x10x10x128xbf16, #tpu.memory_space<vmem>>, vector<2x1x8x8x128xbf16>
    %22 = vector.shape_cast %21 : vector<2x1x8x8x128xbf16> to vector<2x8x8x128xbf16>
    %23 = vector.shape_cast %22 : vector<2x8x8x128xbf16> to vector<128x128xbf16>
    %c0_33 = arith.constant 0 : index
    %c0_34 = arith.constant 0 : index
    %c2_35 = arith.constant 2 : index
    %c1_36 = arith.constant 1 : index
    %c0_37 = arith.constant 0 : index
    %24 = vector.load %arg3[%c0_33, %c0_34, %c2_35, %c1_36, %c0_37] : memref<2x1x10x10x128xbf16, #tpu.memory_space<vmem>>, vector<2x1x8x8x128xbf16>
    %25 = vector.shape_cast %24 : vector<2x1x8x8x128xbf16> to vector<2x8x8x128xbf16>
    %26 = vector.shape_cast %25 : vector<2x8x8x128xbf16> to vector<128x128xbf16>
    %c0_38 = arith.constant 0 : index
    %c0_39 = arith.constant 0 : index
    %c2_40 = arith.constant 2 : index
    %c2_41 = arith.constant 2 : index
    %c0_42 = arith.constant 0 : index
    %27 = vector.load %arg3[%c0_38, %c0_39, %c2_40, %c2_41, %c0_42] : memref<2x1x10x10x128xbf16, #tpu.memory_space<vmem>>, vector<2x1x8x8x128xbf16>
    %28 = vector.shape_cast %27 : vector<2x1x8x8x128xbf16> to vector<2x8x8x128xbf16>
    %29 = vector.shape_cast %28 : vector<2x8x8x128xbf16> to vector<128x128xbf16>
    %30 = tpu.concatenate %5, %8, %11, %14, %17, %20, %23, %26, %29 in 1 : vector<128x128xbf16>, vector<128x128xbf16>, vector<128x128xbf16>, vector<128x128xbf16>, vector<128x128xbf16>, vector<128x128xbf16>, vector<128x128xbf16>, vector<128x128xbf16>, vector<128x128xbf16> -> vector<128x1152xbf16>
    %c0_43 = arith.constant 0 : index
    %c0_44 = arith.constant 0 : index
    %c0_45 = arith.constant 0 : index
    %31 = vector.load %arg4[%c0_43, %c0_44, %c0_45] : memref<9x128x128xbf16, #tpu.memory_space<vmem>>, vector<9x128x128xbf16>
    %32 = vector.shape_cast %31 : vector<9x128x128xbf16> to vector<1152x128xbf16>
    %cst = arith.constant dense<0.000000e+00> : vector<128x128xf32>
    %33 = tpu.matmul %30, %32, %cst {dimension_numbers = #tpu.dot_dimension_numbers<[1], [0], [0], [1], [0, 0, 1, 1], [], []>} : vector<128x1152xbf16>, vector<1152x128xbf16>, vector<128x128xf32> -> vector<128x128xf32>
    %c0_46 = arith.constant 0 : index
    %c0_47 = arith.constant 0 : index
    %34 = vector.load %arg8[%c0_46, %c0_47] : memref<128x128xf32, #tpu.memory_space<vmem>>, vector<128x128xf32>
    %35 = arith.addf %34, %33 : vector<128x128xf32>
    %c0_48 = arith.constant 0 : index
    %c0_49 = arith.constant 0 : index
    %36 = vector.load %arg8[%c0_48, %c0_49] : memref<128x128xf32, #tpu.memory_space<vmem>>, vector<128x128xf32>
    tpu.vector_store %arg8[%c0_48, %c0_49], %35 {strides = array<i32>} : memref<128x128xf32, #tpu.memory_space<vmem>>, vector<128x128xf32>,
    %c0_i32_50 = arith.constant 0 : i32
    %37 = arith.cmpi eq, %arg2, %c0_i32_50 : i32
    %38 = arith.extui %37 : i1 to i32
    %c0_i32_51 = arith.constant 0 : i32
    %39 = arith.cmpi ne, %38, %c0_i32_51 : i32
    scf.if %39 {
      %c0_52 = arith.constant 0 : index
      %c0_53 = arith.constant 0 : index
      %40 = vector.load %arg8[%c0_52, %c0_53] : memref<128x128xf32, #tpu.memory_space<vmem>>, vector<128x128xf32>
      %c0_54 = arith.constant 0 : index
      %c0_55 = arith.constant 0 : index
      %41 = vector.load %arg5[%c0_54, %c0_55] : memref<1x128xf32, #tpu.memory_space<vmem>>, vector<1x128xf32>
      %42 = vector.broadcast %41 : vector<1x128xf32> to vector<128x128xf32>
      %43 = arith.mulf %40, %42 : vector<128x128xf32>
      %c0_56 = arith.constant 0 : index
      %c0_57 = arith.constant 0 : index
      %44 = vector.load %arg6[%c0_56, %c0_57] : memref<1x128xf32, #tpu.memory_space<vmem>>, vector<1x128xf32>
      %45 = vector.broadcast %44 : vector<1x128xf32> to vector<128x128xf32>
      %46 = arith.addf %43, %45 : vector<128x128xf32>
      %cst_58 = arith.constant 0.000000e+00 : f32
      %47 = vector.broadcast %cst_58 : f32 to vector<128x128xf32>
      %48 = arith.maximumf %46, %47 : vector<128x128xf32>
      %49 = vector.shape_cast %48 : vector<128x128xf32> to vector<2x8x8x128xf32>
      %50 = arith.truncf %49 : vector<2x8x8x128xf32> to vector<2x8x8x128xbf16>
      %c0_59 = arith.constant 0 : index
      %c0_60 = arith.constant 0 : index
      %c0_61 = arith.constant 0 : index
      %c0_62 = arith.constant 0 : index
      %51 = vector.load %arg7[%c0_59, %c0_60, %c0_61, %c0_62] : memref<2x8x8x128xbf16, #tpu.memory_space<vmem>>, vector<2x8x8x128xbf16>
      tpu.vector_store %arg7[%c0_59, %c0_60, %c0_61, %c0_62], %50 {strides = array<i32>} : memref<2x8x8x128xbf16, #tpu.memory_space<vmem>>, vector<2x8x8x128xbf16>,
    } else {
    }
    return
  }
  func.func @transform_0(%arg0: i32, %arg1: i32, %arg2: i32) -> (i32, i32, i32, i32, i32) {
    %c0_i32 = arith.constant 0 : i32
    %c0_i32_0 = arith.constant 0 : i32
    %c0_i32_1 = arith.constant 0 : i32
    %c0_i32_2 = arith.constant 0 : i32
    return %arg0, %c0_i32, %c0_i32_0, %c0_i32_1, %arg2 : i32, i32, i32, i32, i32
  }
  func.func @transform_1(%arg0: i32, %arg1: i32, %arg2: i32) -> (i32, i32, i32) {
    %c0_i32 = arith.constant 0 : i32
    %c0_i32_0 = arith.constant 0 : i32
    return %c0_i32, %arg2, %arg1 : i32, i32, i32
  }
  func.func @transform_2(%arg0: i32, %arg1: i32, %arg2: i32) -> (i32, i32) {
    %c0_i32 = arith.constant 0 : i32
    %c0_i32_0 = arith.constant 0 : i32
    return %c0_i32, %arg1 : i32, i32
  }
  func.func @transform_3(%arg0: i32, %arg1: i32, %arg2: i32) -> (i32, i32) {
    %c0_i32 = arith.constant 0 : i32
    %c0_i32_0 = arith.constant 0 : i32
    return %c0_i32, %arg1 : i32, i32
  }
  func.func @transform_4(%arg0: i32, %arg1: i32, %arg2: i32) -> (i32, i32, i32, i32) {
    %c0_i32 = arith.constant 0 : i32
    %c0_i32_0 = arith.constant 0 : i32
    %c0_i32_1 = arith.constant 0 : i32
    return %arg0, %c0_i32, %c0_i32_0, %arg1 : i32, i32, i32, i32
  }
}

module attributes {stable_mosaic.version = 11 : i64} {
  func.func @_conv_bn_add_kernel(%arg0: i32, %arg1: i32, %arg2: i32, %arg3: memref<2x1x10x10x128xbf16, #tpu.memory_space<vmem>>, %arg4: memref<9x128x128xbf16, #tpu.memory_space<vmem>>, %arg5: memref<1x128xf32, #tpu.memory_space<vmem>>, %arg6: memref<1x128xf32, #tpu.memory_space<vmem>>, %arg7: memref<2x8x8x128xbf16, #tpu.memory_space<vmem>>, %arg8: memref<2x8x8x128xbf16, #tpu.memory_space<vmem>>, %arg9: memref<128x128xf32, #tpu.memory_space<vmem>>) attributes {dimension_semantics = [#tpu.dimension_semantics<parallel>, #tpu.dimension_semantics<parallel>, #tpu.dimension_semantics<arbitrary>], iteration_bounds = array<i64: 1, 1, 1>, scalar_prefetch = 0 : i64, scratch_operands = 1 : i64, tpu.core_type = #tpu.core_type<tc>, window_params = [{transform_indices = @transform_0, window_bounds = array<i64: 2, 1, 10, 10, 128>}, {transform_indices = @transform_1, window_bounds = array<i64: 9, 128, 128>}, {transform_indices = @transform_2, window_bounds = array<i64: 1, 128>}, {transform_indices = @transform_3, window_bounds = array<i64: 1, 128>}, {transform_indices = @transform_4, window_bounds = array<i64: 2, 8, 8, 128>}, {transform_indices = @transform_5, window_bounds = array<i64: 2, 8, 8, 128>}]} {
    %c0_i32 = arith.constant 0 : i32
    %0 = arith.cmpi eq, %arg2, %c0_i32 : i32
    %1 = arith.extui %0 : i1 to i32
    %c0_i32_0 = arith.constant 0 : i32
    %2 = arith.cmpi ne, %1, %c0_i32_0 : i32
    scf.if %2 {
      %cst_52 = arith.constant 0.000000e+00 : f32
      %40 = vector.broadcast %cst_52 : f32 to vector<128x128xf32>
      %c0_53 = arith.constant 0 : index
      %c0_54 = arith.constant 0 : index
      %41 = vector.load %arg9[%c0_53, %c0_54] : memref<128x128xf32, #tpu.memory_space<vmem>>, vector<128x128xf32>
      tpu.vector_store %arg9[%c0_53, %c0_54], %40 {strides = array<i32>} : memref<128x128xf32, #tpu.memory_space<vmem>>, vector<128x128xf32>,
    } else {
    }
    %c0 = arith.constant 0 : index
    %c0_1 = arith.constant 0 : index
    %c0_2 = arith.constant 0 : index
    %c0_3 = arith.constant 0 : index
    %c0_4 = arith.constant 0 : index
    %3 = vector.load %arg3[%c0, %c0_1, %c0_2, %c0_3, %c0_4] : memref<2x1x10x10x128xbf16, #tpu.memory_space<vmem>>, vector<2x1x8x8x128xbf16>
    %4 = vector.shape_cast %3 : vector<2x1x8x8x128xbf16> to vector<2x8x8x128xbf16>
    %5 = vector.shape_cast %4 : vector<2x8x8x128xbf16> to vector<128x128xbf16>
    %c0_5 = arith.constant 0 : index
    %c0_6 = arith.constant 0 : index
    %c0_7 = arith.constant 0 : index
    %c1 = arith.constant 1 : index
    %c0_8 = arith.constant 0 : index
    %6 = vector.load %arg3[%c0_5, %c0_6, %c0_7, %c1, %c0_8] : memref<2x1x10x10x128xbf16, #tpu.memory_space<vmem>>, vector<2x1x8x8x128xbf16>
    %7 = vector.shape_cast %6 : vector<2x1x8x8x128xbf16> to vector<2x8x8x128xbf16>
    %8 = vector.shape_cast %7 : vector<2x8x8x128xbf16> to vector<128x128xbf16>
    %c0_9 = arith.constant 0 : index
    %c0_10 = arith.constant 0 : index
    %c0_11 = arith.constant 0 : index
    %c2 = arith.constant 2 : index
    %c0_12 = arith.constant 0 : index
    %9 = vector.load %arg3[%c0_9, %c0_10, %c0_11, %c2, %c0_12] : memref<2x1x10x10x128xbf16, #tpu.memory_space<vmem>>, vector<2x1x8x8x128xbf16>
    %10 = vector.shape_cast %9 : vector<2x1x8x8x128xbf16> to vector<2x8x8x128xbf16>
    %11 = vector.shape_cast %10 : vector<2x8x8x128xbf16> to vector<128x128xbf16>
    %c0_13 = arith.constant 0 : index
    %c0_14 = arith.constant 0 : index
    %c1_15 = arith.constant 1 : index
    %c0_16 = arith.constant 0 : index
    %c0_17 = arith.constant 0 : index
    %12 = vector.load %arg3[%c0_13, %c0_14, %c1_15, %c0_16, %c0_17] : memref<2x1x10x10x128xbf16, #tpu.memory_space<vmem>>, vector<2x1x8x8x128xbf16>
    %13 = vector.shape_cast %12 : vector<2x1x8x8x128xbf16> to vector<2x8x8x128xbf16>
    %14 = vector.shape_cast %13 : vector<2x8x8x128xbf16> to vector<128x128xbf16>
    %c0_18 = arith.constant 0 : index
    %c0_19 = arith.constant 0 : index
    %c1_20 = arith.constant 1 : index
    %c1_21 = arith.constant 1 : index
    %c0_22 = arith.constant 0 : index
    %15 = vector.load %arg3[%c0_18, %c0_19, %c1_20, %c1_21, %c0_22] : memref<2x1x10x10x128xbf16, #tpu.memory_space<vmem>>, vector<2x1x8x8x128xbf16>
    %16 = vector.shape_cast %15 : vector<2x1x8x8x128xbf16> to vector<2x8x8x128xbf16>
    %17 = vector.shape_cast %16 : vector<2x8x8x128xbf16> to vector<128x128xbf16>
    %c0_23 = arith.constant 0 : index
    %c0_24 = arith.constant 0 : index
    %c1_25 = arith.constant 1 : index
    %c2_26 = arith.constant 2 : index
    %c0_27 = arith.constant 0 : index
    %18 = vector.load %arg3[%c0_23, %c0_24, %c1_25, %c2_26, %c0_27] : memref<2x1x10x10x128xbf16, #tpu.memory_space<vmem>>, vector<2x1x8x8x128xbf16>
    %19 = vector.shape_cast %18 : vector<2x1x8x8x128xbf16> to vector<2x8x8x128xbf16>
    %20 = vector.shape_cast %19 : vector<2x8x8x128xbf16> to vector<128x128xbf16>
    %c0_28 = arith.constant 0 : index
    %c0_29 = arith.constant 0 : index
    %c2_30 = arith.constant 2 : index
    %c0_31 = arith.constant 0 : index
    %c0_32 = arith.constant 0 : index
    %21 = vector.load %arg3[%c0_28, %c0_29, %c2_30, %c0_31, %c0_32] : memref<2x1x10x10x128xbf16, #tpu.memory_space<vmem>>, vector<2x1x8x8x128xbf16>
    %22 = vector.shape_cast %21 : vector<2x1x8x8x128xbf16> to vector<2x8x8x128xbf16>
    %23 = vector.shape_cast %22 : vector<2x8x8x128xbf16> to vector<128x128xbf16>
    %c0_33 = arith.constant 0 : index
    %c0_34 = arith.constant 0 : index
    %c2_35 = arith.constant 2 : index
    %c1_36 = arith.constant 1 : index
    %c0_37 = arith.constant 0 : index
    %24 = vector.load %arg3[%c0_33, %c0_34, %c2_35, %c1_36, %c0_37] : memref<2x1x10x10x128xbf16, #tpu.memory_space<vmem>>, vector<2x1x8x8x128xbf16>
    %25 = vector.shape_cast %24 : vector<2x1x8x8x128xbf16> to vector<2x8x8x128xbf16>
    %26 = vector.shape_cast %25 : vector<2x8x8x128xbf16> to vector<128x128xbf16>
    %c0_38 = arith.constant 0 : index
    %c0_39 = arith.constant 0 : index
    %c2_40 = arith.constant 2 : index
    %c2_41 = arith.constant 2 : index
    %c0_42 = arith.constant 0 : index
    %27 = vector.load %arg3[%c0_38, %c0_39, %c2_40, %c2_41, %c0_42] : memref<2x1x10x10x128xbf16, #tpu.memory_space<vmem>>, vector<2x1x8x8x128xbf16>
    %28 = vector.shape_cast %27 : vector<2x1x8x8x128xbf16> to vector<2x8x8x128xbf16>
    %29 = vector.shape_cast %28 : vector<2x8x8x128xbf16> to vector<128x128xbf16>
    %30 = tpu.concatenate %5, %8, %11, %14, %17, %20, %23, %26, %29 in 1 : vector<128x128xbf16>, vector<128x128xbf16>, vector<128x128xbf16>, vector<128x128xbf16>, vector<128x128xbf16>, vector<128x128xbf16>, vector<128x128xbf16>, vector<128x128xbf16>, vector<128x128xbf16> -> vector<128x1152xbf16>
    %c0_43 = arith.constant 0 : index
    %c0_44 = arith.constant 0 : index
    %c0_45 = arith.constant 0 : index
    %31 = vector.load %arg4[%c0_43, %c0_44, %c0_45] : memref<9x128x128xbf16, #tpu.memory_space<vmem>>, vector<9x128x128xbf16>
    %32 = vector.shape_cast %31 : vector<9x128x128xbf16> to vector<1152x128xbf16>
    %cst = arith.constant dense<0.000000e+00> : vector<128x128xf32>
    %33 = tpu.matmul %30, %32, %cst {dimension_numbers = #tpu.dot_dimension_numbers<[1], [0], [0], [1], [0, 0, 1, 1], [], []>} : vector<128x1152xbf16>, vector<1152x128xbf16>, vector<128x128xf32> -> vector<128x128xf32>
    %c0_46 = arith.constant 0 : index
    %c0_47 = arith.constant 0 : index
    %34 = vector.load %arg9[%c0_46, %c0_47] : memref<128x128xf32, #tpu.memory_space<vmem>>, vector<128x128xf32>
    %35 = arith.addf %34, %33 : vector<128x128xf32>
    %c0_48 = arith.constant 0 : index
    %c0_49 = arith.constant 0 : index
    %36 = vector.load %arg9[%c0_48, %c0_49] : memref<128x128xf32, #tpu.memory_space<vmem>>, vector<128x128xf32>
    tpu.vector_store %arg9[%c0_48, %c0_49], %35 {strides = array<i32>} : memref<128x128xf32, #tpu.memory_space<vmem>>, vector<128x128xf32>,
    %c0_i32_50 = arith.constant 0 : i32
    %37 = arith.cmpi eq, %arg2, %c0_i32_50 : i32
    %38 = arith.extui %37 : i1 to i32
    %c0_i32_51 = arith.constant 0 : i32
    %39 = arith.cmpi ne, %38, %c0_i32_51 : i32
    scf.if %39 {
      %c0_52 = arith.constant 0 : index
      %c0_53 = arith.constant 0 : index
      %40 = vector.load %arg9[%c0_52, %c0_53] : memref<128x128xf32, #tpu.memory_space<vmem>>, vector<128x128xf32>
      %c0_54 = arith.constant 0 : index
      %c0_55 = arith.constant 0 : index
      %41 = vector.load %arg5[%c0_54, %c0_55] : memref<1x128xf32, #tpu.memory_space<vmem>>, vector<1x128xf32>
      %42 = vector.broadcast %41 : vector<1x128xf32> to vector<128x128xf32>
      %43 = arith.mulf %40, %42 : vector<128x128xf32>
      %c0_56 = arith.constant 0 : index
      %c0_57 = arith.constant 0 : index
      %44 = vector.load %arg6[%c0_56, %c0_57] : memref<1x128xf32, #tpu.memory_space<vmem>>, vector<1x128xf32>
      %45 = vector.broadcast %44 : vector<1x128xf32> to vector<128x128xf32>
      %46 = arith.addf %43, %45 : vector<128x128xf32>
      %47 = vector.shape_cast %46 : vector<128x128xf32> to vector<2x8x8x128xf32>
      %c0_58 = arith.constant 0 : index
      %c0_59 = arith.constant 0 : index
      %c0_60 = arith.constant 0 : index
      %c0_61 = arith.constant 0 : index
      %48 = vector.load %arg7[%c0_58, %c0_59, %c0_60, %c0_61] : memref<2x8x8x128xbf16, #tpu.memory_space<vmem>>, vector<2x8x8x128xbf16>
      %49 = arith.extf %48 : vector<2x8x8x128xbf16> to vector<2x8x8x128xf32>
      %50 = arith.addf %47, %49 : vector<2x8x8x128xf32>
      %51 = arith.truncf %50 : vector<2x8x8x128xf32> to vector<2x8x8x128xbf16>
      %c0_62 = arith.constant 0 : index
      %c0_63 = arith.constant 0 : index
      %c0_64 = arith.constant 0 : index
      %c0_65 = arith.constant 0 : index
      %52 = vector.load %arg8[%c0_62, %c0_63, %c0_64, %c0_65] : memref<2x8x8x128xbf16, #tpu.memory_space<vmem>>, vector<2x8x8x128xbf16>
      tpu.vector_store %arg8[%c0_62, %c0_63, %c0_64, %c0_65], %51 {strides = array<i32>} : memref<2x8x8x128xbf16, #tpu.memory_space<vmem>>, vector<2x8x8x128xbf16>,
    } else {
    }
    return
  }
  func.func @transform_0(%arg0: i32, %arg1: i32, %arg2: i32) -> (i32, i32, i32, i32, i32) {
    %c0_i32 = arith.constant 0 : i32
    %c0_i32_0 = arith.constant 0 : i32
    %c0_i32_1 = arith.constant 0 : i32
    %c0_i32_2 = arith.constant 0 : i32
    return %arg0, %c0_i32, %c0_i32_0, %c0_i32_1, %arg2 : i32, i32, i32, i32, i32
  }
  func.func @transform_1(%arg0: i32, %arg1: i32, %arg2: i32) -> (i32, i32, i32) {
    %c0_i32 = arith.constant 0 : i32
    %c0_i32_0 = arith.constant 0 : i32
    return %c0_i32, %arg2, %arg1 : i32, i32, i32
  }
  func.func @transform_2(%arg0: i32, %arg1: i32, %arg2: i32) -> (i32, i32) {
    %c0_i32 = arith.constant 0 : i32
    %c0_i32_0 = arith.constant 0 : i32
    return %c0_i32, %arg1 : i32, i32
  }
  func.func @transform_3(%arg0: i32, %arg1: i32, %arg2: i32) -> (i32, i32) {
    %c0_i32 = arith.constant 0 : i32
    %c0_i32_0 = arith.constant 0 : i32
    return %c0_i32, %arg1 : i32, i32
  }
  func.func @transform_4(%arg0: i32, %arg1: i32, %arg2: i32) -> (i32, i32, i32, i32) {
    %c0_i32 = arith.constant 0 : i32
    %c0_i32_0 = arith.constant 0 : i32
    %c0_i32_1 = arith.constant 0 : i32
    return %arg0, %c0_i32, %c0_i32_0, %arg1 : i32, i32, i32, i32
  }
  func.func @transform_5(%arg0: i32, %arg1: i32, %arg2: i32) -> (i32, i32, i32, i32) {
    %c0_i32 = arith.constant 0 : i32
    %c0_i32_0 = arith.constant 0 : i32
    %c0_i32_1 = arith.constant 0 : i32
    return %arg0, %c0_i32, %c0_i32_0, %arg1 : i32, i32, i32, i32
  }
}

module attributes {stable_mosaic.version = 11 : i64} {
  func.func @_conv_bn_add_kernel(%arg0: i32, %arg1: i32, %arg2: i32, %arg3: memref<2x1x10x10x128xbf16, #tpu.memory_space<vmem>>, %arg4: memref<9x128x128xbf16, #tpu.memory_space<vmem>>, %arg5: memref<1x128xf32, #tpu.memory_space<vmem>>, %arg6: memref<1x128xf32, #tpu.memory_space<vmem>>, %arg7: memref<2x8x8x128xbf16, #tpu.memory_space<vmem>>, %arg8: memref<2x8x8x128xf32, #tpu.memory_space<vmem>>, %arg9: memref<128x128xf32, #tpu.memory_space<vmem>>) attributes {dimension_semantics = [#tpu.dimension_semantics<parallel>, #tpu.dimension_semantics<parallel>, #tpu.dimension_semantics<arbitrary>], iteration_bounds = array<i64: 1, 1, 1>, scalar_prefetch = 0 : i64, scratch_operands = 1 : i64, tpu.core_type = #tpu.core_type<tc>, window_params = [{transform_indices = @transform_0, window_bounds = array<i64: 2, 1, 10, 10, 128>}, {transform_indices = @transform_1, window_bounds = array<i64: 9, 128, 128>}, {transform_indices = @transform_2, window_bounds = array<i64: 1, 128>}, {transform_indices = @transform_3, window_bounds = array<i64: 1, 128>}, {transform_indices = @transform_4, window_bounds = array<i64: 2, 8, 8, 128>}, {transform_indices = @transform_5, window_bounds = array<i64: 2, 8, 8, 128>}]} {
    %c0_i32 = arith.constant 0 : i32
    %0 = arith.cmpi eq, %arg2, %c0_i32 : i32
    %1 = arith.extui %0 : i1 to i32
    %c0_i32_0 = arith.constant 0 : i32
    %2 = arith.cmpi ne, %1, %c0_i32_0 : i32
    scf.if %2 {
      %cst_52 = arith.constant 0.000000e+00 : f32
      %40 = vector.broadcast %cst_52 : f32 to vector<128x128xf32>
      %c0_53 = arith.constant 0 : index
      %c0_54 = arith.constant 0 : index
      %41 = vector.load %arg9[%c0_53, %c0_54] : memref<128x128xf32, #tpu.memory_space<vmem>>, vector<128x128xf32>
      tpu.vector_store %arg9[%c0_53, %c0_54], %40 {strides = array<i32>} : memref<128x128xf32, #tpu.memory_space<vmem>>, vector<128x128xf32>,
    } else {
    }
    %c0 = arith.constant 0 : index
    %c0_1 = arith.constant 0 : index
    %c0_2 = arith.constant 0 : index
    %c0_3 = arith.constant 0 : index
    %c0_4 = arith.constant 0 : index
    %3 = vector.load %arg3[%c0, %c0_1, %c0_2, %c0_3, %c0_4] : memref<2x1x10x10x128xbf16, #tpu.memory_space<vmem>>, vector<2x1x8x8x128xbf16>
    %4 = vector.shape_cast %3 : vector<2x1x8x8x128xbf16> to vector<2x8x8x128xbf16>
    %5 = vector.shape_cast %4 : vector<2x8x8x128xbf16> to vector<128x128xbf16>
    %c0_5 = arith.constant 0 : index
    %c0_6 = arith.constant 0 : index
    %c0_7 = arith.constant 0 : index
    %c1 = arith.constant 1 : index
    %c0_8 = arith.constant 0 : index
    %6 = vector.load %arg3[%c0_5, %c0_6, %c0_7, %c1, %c0_8] : memref<2x1x10x10x128xbf16, #tpu.memory_space<vmem>>, vector<2x1x8x8x128xbf16>
    %7 = vector.shape_cast %6 : vector<2x1x8x8x128xbf16> to vector<2x8x8x128xbf16>
    %8 = vector.shape_cast %7 : vector<2x8x8x128xbf16> to vector<128x128xbf16>
    %c0_9 = arith.constant 0 : index
    %c0_10 = arith.constant 0 : index
    %c0_11 = arith.constant 0 : index
    %c2 = arith.constant 2 : index
    %c0_12 = arith.constant 0 : index
    %9 = vector.load %arg3[%c0_9, %c0_10, %c0_11, %c2, %c0_12] : memref<2x1x10x10x128xbf16, #tpu.memory_space<vmem>>, vector<2x1x8x8x128xbf16>
    %10 = vector.shape_cast %9 : vector<2x1x8x8x128xbf16> to vector<2x8x8x128xbf16>
    %11 = vector.shape_cast %10 : vector<2x8x8x128xbf16> to vector<128x128xbf16>
    %c0_13 = arith.constant 0 : index
    %c0_14 = arith.constant 0 : index
    %c1_15 = arith.constant 1 : index
    %c0_16 = arith.constant 0 : index
    %c0_17 = arith.constant 0 : index
    %12 = vector.load %arg3[%c0_13, %c0_14, %c1_15, %c0_16, %c0_17] : memref<2x1x10x10x128xbf16, #tpu.memory_space<vmem>>, vector<2x1x8x8x128xbf16>
    %13 = vector.shape_cast %12 : vector<2x1x8x8x128xbf16> to vector<2x8x8x128xbf16>
    %14 = vector.shape_cast %13 : vector<2x8x8x128xbf16> to vector<128x128xbf16>
    %c0_18 = arith.constant 0 : index
    %c0_19 = arith.constant 0 : index
    %c1_20 = arith.constant 1 : index
    %c1_21 = arith.constant 1 : index
    %c0_22 = arith.constant 0 : index
    %15 = vector.load %arg3[%c0_18, %c0_19, %c1_20, %c1_21, %c0_22] : memref<2x1x10x10x128xbf16, #tpu.memory_space<vmem>>, vector<2x1x8x8x128xbf16>
    %16 = vector.shape_cast %15 : vector<2x1x8x8x128xbf16> to vector<2x8x8x128xbf16>
    %17 = vector.shape_cast %16 : vector<2x8x8x128xbf16> to vector<128x128xbf16>
    %c0_23 = arith.constant 0 : index
    %c0_24 = arith.constant 0 : index
    %c1_25 = arith.constant 1 : index
    %c2_26 = arith.constant 2 : index
    %c0_27 = arith.constant 0 : index
    %18 = vector.load %arg3[%c0_23, %c0_24, %c1_25, %c2_26, %c0_27] : memref<2x1x10x10x128xbf16, #tpu.memory_space<vmem>>, vector<2x1x8x8x128xbf16>
    %19 = vector.shape_cast %18 : vector<2x1x8x8x128xbf16> to vector<2x8x8x128xbf16>
    %20 = vector.shape_cast %19 : vector<2x8x8x128xbf16> to vector<128x128xbf16>
    %c0_28 = arith.constant 0 : index
    %c0_29 = arith.constant 0 : index
    %c2_30 = arith.constant 2 : index
    %c0_31 = arith.constant 0 : index
    %c0_32 = arith.constant 0 : index
    %21 = vector.load %arg3[%c0_28, %c0_29, %c2_30, %c0_31, %c0_32] : memref<2x1x10x10x128xbf16, #tpu.memory_space<vmem>>, vector<2x1x8x8x128xbf16>
    %22 = vector.shape_cast %21 : vector<2x1x8x8x128xbf16> to vector<2x8x8x128xbf16>
    %23 = vector.shape_cast %22 : vector<2x8x8x128xbf16> to vector<128x128xbf16>
    %c0_33 = arith.constant 0 : index
    %c0_34 = arith.constant 0 : index
    %c2_35 = arith.constant 2 : index
    %c1_36 = arith.constant 1 : index
    %c0_37 = arith.constant 0 : index
    %24 = vector.load %arg3[%c0_33, %c0_34, %c2_35, %c1_36, %c0_37] : memref<2x1x10x10x128xbf16, #tpu.memory_space<vmem>>, vector<2x1x8x8x128xbf16>
    %25 = vector.shape_cast %24 : vector<2x1x8x8x128xbf16> to vector<2x8x8x128xbf16>
    %26 = vector.shape_cast %25 : vector<2x8x8x128xbf16> to vector<128x128xbf16>
    %c0_38 = arith.constant 0 : index
    %c0_39 = arith.constant 0 : index
    %c2_40 = arith.constant 2 : index
    %c2_41 = arith.constant 2 : index
    %c0_42 = arith.constant 0 : index
    %27 = vector.load %arg3[%c0_38, %c0_39, %c2_40, %c2_41, %c0_42] : memref<2x1x10x10x128xbf16, #tpu.memory_space<vmem>>, vector<2x1x8x8x128xbf16>
    %28 = vector.shape_cast %27 : vector<2x1x8x8x128xbf16> to vector<2x8x8x128xbf16>
    %29 = vector.shape_cast %28 : vector<2x8x8x128xbf16> to vector<128x128xbf16>
    %30 = tpu.concatenate %5, %8, %11, %14, %17, %20, %23, %26, %29 in 1 : vector<128x128xbf16>, vector<128x128xbf16>, vector<128x128xbf16>, vector<128x128xbf16>, vector<128x128xbf16>, vector<128x128xbf16>, vector<128x128xbf16>, vector<128x128xbf16>, vector<128x128xbf16> -> vector<128x1152xbf16>
    %c0_43 = arith.constant 0 : index
    %c0_44 = arith.constant 0 : index
    %c0_45 = arith.constant 0 : index
    %31 = vector.load %arg4[%c0_43, %c0_44, %c0_45] : memref<9x128x128xbf16, #tpu.memory_space<vmem>>, vector<9x128x128xbf16>
    %32 = vector.shape_cast %31 : vector<9x128x128xbf16> to vector<1152x128xbf16>
    %cst = arith.constant dense<0.000000e+00> : vector<128x128xf32>
    %33 = tpu.matmul %30, %32, %cst {dimension_numbers = #tpu.dot_dimension_numbers<[1], [0], [0], [1], [0, 0, 1, 1], [], []>} : vector<128x1152xbf16>, vector<1152x128xbf16>, vector<128x128xf32> -> vector<128x128xf32>
    %c0_46 = arith.constant 0 : index
    %c0_47 = arith.constant 0 : index
    %34 = vector.load %arg9[%c0_46, %c0_47] : memref<128x128xf32, #tpu.memory_space<vmem>>, vector<128x128xf32>
    %35 = arith.addf %34, %33 : vector<128x128xf32>
    %c0_48 = arith.constant 0 : index
    %c0_49 = arith.constant 0 : index
    %36 = vector.load %arg9[%c0_48, %c0_49] : memref<128x128xf32, #tpu.memory_space<vmem>>, vector<128x128xf32>
    tpu.vector_store %arg9[%c0_48, %c0_49], %35 {strides = array<i32>} : memref<128x128xf32, #tpu.memory_space<vmem>>, vector<128x128xf32>,
    %c0_i32_50 = arith.constant 0 : i32
    %37 = arith.cmpi eq, %arg2, %c0_i32_50 : i32
    %38 = arith.extui %37 : i1 to i32
    %c0_i32_51 = arith.constant 0 : i32
    %39 = arith.cmpi ne, %38, %c0_i32_51 : i32
    scf.if %39 {
      %c0_52 = arith.constant 0 : index
      %c0_53 = arith.constant 0 : index
      %40 = vector.load %arg9[%c0_52, %c0_53] : memref<128x128xf32, #tpu.memory_space<vmem>>, vector<128x128xf32>
      %c0_54 = arith.constant 0 : index
      %c0_55 = arith.constant 0 : index
      %41 = vector.load %arg5[%c0_54, %c0_55] : memref<1x128xf32, #tpu.memory_space<vmem>>, vector<1x128xf32>
      %42 = vector.broadcast %41 : vector<1x128xf32> to vector<128x128xf32>
      %43 = arith.mulf %40, %42 : vector<128x128xf32>
      %c0_56 = arith.constant 0 : index
      %c0_57 = arith.constant 0 : index
      %44 = vector.load %arg6[%c0_56, %c0_57] : memref<1x128xf32, #tpu.memory_space<vmem>>, vector<1x128xf32>
      %45 = vector.broadcast %44 : vector<1x128xf32> to vector<128x128xf32>
      %46 = arith.addf %43, %45 : vector<128x128xf32>
      %47 = vector.shape_cast %46 : vector<128x128xf32> to vector<2x8x8x128xf32>
      %c0_58 = arith.constant 0 : index
      %c0_59 = arith.constant 0 : index
      %c0_60 = arith.constant 0 : index
      %c0_61 = arith.constant 0 : index
      %48 = vector.load %arg7[%c0_58, %c0_59, %c0_60, %c0_61] : memref<2x8x8x128xbf16, #tpu.memory_space<vmem>>, vector<2x8x8x128xbf16>
      %49 = arith.extf %48 : vector<2x8x8x128xbf16> to vector<2x8x8x128xf32>
      %50 = arith.addf %47, %49 : vector<2x8x8x128xf32>
      %c0_62 = arith.constant 0 : index
      %c0_63 = arith.constant 0 : index
      %c0_64 = arith.constant 0 : index
      %c0_65 = arith.constant 0 : index
      %51 = vector.load %arg8[%c0_62, %c0_63, %c0_64, %c0_65] : memref<2x8x8x128xf32, #tpu.memory_space<vmem>>, vector<2x8x8x128xf32>
      tpu.vector_store %arg8[%c0_62, %c0_63, %c0_64, %c0_65], %50 {strides = array<i32>} : memref<2x8x8x128xf32, #tpu.memory_space<vmem>>, vector<2x8x8x128xf32>,
    } else {
    }
    return
  }
  func.func @transform_0(%arg0: i32, %arg1: i32, %arg2: i32) -> (i32, i32, i32, i32, i32) {
    %c0_i32 = arith.constant 0 : i32
    %c0_i32_0 = arith.constant 0 : i32
    %c0_i32_1 = arith.constant 0 : i32
    %c0_i32_2 = arith.constant 0 : i32
    return %arg0, %c0_i32, %c0_i32_0, %c0_i32_1, %arg2 : i32, i32, i32, i32, i32
  }
  func.func @transform_1(%arg0: i32, %arg1: i32, %arg2: i32) -> (i32, i32, i32) {
    %c0_i32 = arith.constant 0 : i32
    %c0_i32_0 = arith.constant 0 : i32
    return %c0_i32, %arg2, %arg1 : i32, i32, i32
  }
  func.func @transform_2(%arg0: i32, %arg1: i32, %arg2: i32) -> (i32, i32) {
    %c0_i32 = arith.constant 0 : i32
    %c0_i32_0 = arith.constant 0 : i32
    return %c0_i32, %arg1 : i32, i32
  }
  func.func @transform_3(%arg0: i32, %arg1: i32, %arg2: i32) -> (i32, i32) {
    %c0_i32 = arith.constant 0 : i32
    %c0_i32_0 = arith.constant 0 : i32
    return %c0_i32, %arg1 : i32, i32
  }
  func.func @transform_4(%arg0: i32, %arg1: i32, %arg2: i32) -> (i32, i32, i32, i32) {
    %c0_i32 = arith.constant 0 : i32
    %c0_i32_0 = arith.constant 0 : i32
    %c0_i32_1 = arith.constant 0 : i32
    return %arg0, %c0_i32, %c0_i32_0, %arg1 : i32, i32, i32, i32
  }
  func.func @transform_5(%arg0: i32, %arg1: i32, %arg2: i32) -> (i32, i32, i32, i32) {
    %c0_i32 = arith.constant 0 : i32
    %c0_i32_0 = arith.constant 0 : i32
    %c0_i32_1 = arith.constant 0 : i32
    return %arg0, %c0_i32, %c0_i32_0, %arg1 : i32, i32, i32, i32
  }
}

</mosaic_0001>

<llo_original>
// kernel: resnet_layer.5
$region0: #{resnet_layer.5}
  #allocation0 [shape = 'u32[]', space=smem, size = 0x4, offset = 0x4, fixed_abs, tag = 'smem constant byte address 0x4 - core index']
  #allocation1 [shape = 'u32[144,128]{1,0:T(1,128)}', space=vmem, size = 0x12000, scoped, tag = 'internal scratch']
  #allocation2 [shape = 'f32[128,128]{1,0:T(8,128)}', space=vmem, size = 0x10000, scoped, tag = 'scratch operand']
  %s0 = inlined_call_operand.vmem [shape: bf16[2,1,10,10,128], index: 0, kind: input, shape index: {}]
  %s1 = inlined_call_operand.vmem [shape: bf16[9,128,128], index: 1, kind: input, shape index: {}]
  %s2 = inlined_call_operand.vmem [shape: f32[1,128], index: 2, kind: input, shape index: {}]
  %s3 = inlined_call_operand.vmem [shape: f32[1,128], index: 3, kind: input, shape index: {}]
  %s4 = inlined_call_operand.vmem [shape: bf16[2,8,8,128], index: 4, kind: input, shape index: {}]
  %s5 = inlined_call_operand.vmem [shape: bf16[2,8,8,128], index: 5, kind: output, shape index: {}]
  %s6 = sld [smem:[#allocation0]]
  $region38: #{resnet_layer.5} parent=0
    _
  %s8 = ssub.s32 1, %s6
  %s9 = scalar_select 0, %s8, %s6
  // Predicated region
  $region2: #{resnet_layer.5} parent=0 // pred_check
    _
  $region3: #{resnet_layer.5} parent=0 // pred_check_branch
    %11 = sbr.rel (0) target = $region5
  $region4: #{resnet_layer.5} parent=0 // pred_region
    _
  $region5: #{resnet_layer.5} parent=0 // pred_fallthru
    _
  // Predicated region
  $region6: #{resnet_layer.5} parent=0 // pred_check
    _
  $region7: #{resnet_layer.5} parent=0 // pred_check_branch
    %13 = sbr.rel (0) target = $region9
  $region8: #{resnet_layer.5} parent=0 // pred_region
    _
  $region9: #{resnet_layer.5} parent=0 // pred_fallthru
    _
  // Predicated region
  $region10: #{resnet_layer.5} parent=0 // pred_check
    _
  $region11: #{resnet_layer.5} parent=0 // pred_check_branch
    %15 = sbr.rel (0) target = $region13
  $region12: #{resnet_layer.5} parent=0 // pred_region
    _
  $region13: #{resnet_layer.5} parent=0 // pred_fallthru
    _
  // Predicated region
  $region14: #{resnet_layer.5} parent=0 // pred_check
    _
  $region15: #{resnet_layer.5} parent=0 // pred_check_branch
    %17 = sbr.rel (0) target = $region17
  $region16: #{resnet_layer.5} parent=0 // pred_region
    _
  $region17: #{resnet_layer.5} parent=0 // pred_fallthru
    _
  // Predicated region
  $region18: #{resnet_layer.5} parent=0 // pred_check
    _
  $region19: #{resnet_layer.5} parent=0 // pred_check_branch
    %19 = sbr.rel (0) target = $region21
  $region20: #{resnet_layer.5} parent=0 // pred_region
    _
  $region21: #{resnet_layer.5} parent=0 // pred_fallthru
    _
  %p21 = scmp.eq.s32.totalorder 0, 0
  // Predicated region
  $region22: #{resnet_layer.5} parent=0 // pred_check
    %p22 = pneg %p21
  $region23: #{resnet_layer.5} parent=0 // pred_check_branch
    %24 = sbr.rel (%p22) target = $region25
  $region24: #{resnet_layer.5} parent=0 // pred_region
    %25 = vst [vmem:[#allocation2] sm:$0xff] 0.0
    %26 = vst [vmem:[#allocation2 + $0x8] sm:$0xff] 0.0
    %27 = vst [vmem:[#allocation2 + $0x10] sm:$0xff] 0.0
    %28 = vst [vmem:[#allocation2 + $0x18] sm:$0xff] 0.0
    %29 = vst [vmem:[#allocation2 + $0x20] sm:$0xff] 0.0
    %30 = vst [vmem:[#allocation2 + $0x28] sm:$0xff] 0.0
    %31 = vst [vmem:[#allocation2 + $0x30] sm:$0xff] 0.0
    %32 = vst [vmem:[#allocation2 + $0x38] sm:$0xff] 0.0
    %33 = vst [vmem:[#allocation2 + $0x40] sm:$0xff] 0.0
    %34 = vst [vmem:[#allocation2 + $0x48] sm:$0xff] 0.0
    %35 = vst [vmem:[#allocation2 + $0x50] sm:$0xff] 0.0
    %36 = vst [vmem:[#allocation2 + $0x58] sm:$0xff] 0.0
    %37 = vst [vmem:[#allocation2 + $0x60] sm:$0xff] 0.0
    %38 = vst [vmem:[#allocation2 + $0x68] sm:$0xff] 0.0
    %39 = vst [vmem:[#allocation2 + $0x70] sm:$0xff] 0.0
    %40 = vst [vmem:[#allocation2 + $0x78] sm:$0xff] 0.0
  $region25: #{resnet_layer.5} parent=0 // pred_fallthru
    _
  %v41 = vld [vmem:[%s0] sm:$0xf]
  %v42 = vld [vmem:[%s0 + $0x8] sm:$0xf]
  %v43 = vld [vmem:[%s0 + $0x10] sm:$0xf]
  %v44 = vld [vmem:[%s0 + $0x18] sm:$0xf]
  %v45 = vld [vmem:[%s0 + $0x20] sm:$0xf]
  %v46 = vld [vmem:[%s0 + $0x28] sm:$0xf]
  %v47 = vld [vmem:[%s0 + $0x30] sm:$0xf]
  %v48 = vld [vmem:[%s0 + $0x38] sm:$0xf]
  %v49 = vld [vmem:[%s0 + $0x50] sm:$0xf]
  %v50 = vld [vmem:[%s0 + $0x58] sm:$0xf]
  %v51 = vld [vmem:[%s0 + $0x60] sm:$0xf]
  %v52 = vld [vmem:[%s0 + $0x68] sm:$0xf]
  %v53 = vld [vmem:[%s0 + $0x70] sm:$0xf]
  %v54 = vld [vmem:[%s0 + $0x78] sm:$0xf]
  %v55 = vld [vmem:[%s0 + $0x80] sm:$0xf]
  %v56 = vld [vmem:[%s0 + $0x88] sm:$0xf]
  %v57 = vld [vmem:[%s0 + $0x4] sm:$0x1]
  %v58 = vld [vmem:[%s0 + $0xc] sm:$0x1]
  %v59 = vld [vmem:[%s0 + $0x14] sm:$0x1]
  %v60 = vld [vmem:[%s0 + $0x1c] sm:$0x1]
  %v61 = vld [vmem:[%s0 + $0x24] sm:$0x1]
  %v62 = vld [vmem:[%s0 + $0x2c] sm:$0x1]
  %v63 = vld [vmem:[%s0 + $0x34] sm:$0x1]
  %v64 = vld [vmem:[%s0 + $0x3c] sm:$0x1]
  %v65 = vld [vmem:[%s0 + $0x54] sm:$0x1]
  %v66 = vld [vmem:[%s0 + $0x5c] sm:$0x1]
  %v67 = vld [vmem:[%s0 + $0x64] sm:$0x1]
  %v68 = vld [vmem:[%s0 + $0x6c] sm:$0x1]
  %v69 = vld [vmem:[%s0 + $0x74] sm:$0x1]
  %v70 = vld [vmem:[%s0 + $0x7c] sm:$0x1]
  %v71 = vld [vmem:[%s0 + $0x84] sm:$0x1]
  %v72 = vld [vmem:[%s0 + $0x8c] sm:$0x1]
  %vm73 = vsmask.f32 3328
  %vm74 = vsmask.f32 7440
  %vm75 = vmor %vm73, %vm74
  %v77 = vshrl.u32 %v41, 16
  %v79 = vrot.slane %v77, 4
  %v80 = vshll.u32 %v41, 16
  %v82 = vrot.slane %v80, 5
  %v83 = vor.u32 %v79, %v82
  %v84 = vrot.slane %v83, 4
  %v86 = vshll.u32 %v57, 16
  %v88 = vrot.slane %v86, 5
  %v89 = vsel %vm75, %v84, %v88
  %v91 = vshrl.u32 %v42, 16
  %v93 = vrot.slane %v91, 4
  %v94 = vshll.u32 %v42, 16
  %v96 = vrot.slane %v94, 5
  %v97 = vor.u32 %v93, %v96
  %v98 = vrot.slane %v97, 4
  %v100 = vshll.u32 %v58, 16
  %v102 = vrot.slane %v100, 5
  %v103 = vsel %vm75, %v98, %v102
  %v105 = vshrl.u32 %v43, 16
  %v107 = vrot.slane %v105, 4
  %v108 = vshll.u32 %v43, 16
  %v110 = vrot.slane %v108, 5
  %v111 = vor.u32 %v107, %v110
  %v112 = vrot.slane %v111, 4
  %v114 = vshll.u32 %v59, 16
  %v116 = vrot.slane %v114, 5
  %v117 = vsel %vm75, %v112, %v116
  %v119 = vshrl.u32 %v44, 16
  %v121 = vrot.slane %v119, 4
  %v122 = vshll.u32 %v44, 16
  %v124 = vrot.slane %v122, 5
  %v125 = vor.u32 %v121, %v124
  %v126 = vrot.slane %v125, 4
  %v128 = vshll.u32 %v60, 16
  %v130 = vrot.slane %v128, 5
  %v131 = vsel %vm75, %v126, %v130
  %v133 = vshrl.u32 %v45, 16
  %v135 = vrot.slane %v133, 4
  %v136 = vshll.u32 %v45, 16
  %v138 = vrot.slane %v136, 5
  %v139 = vor.u32 %v135, %v138
  %v140 = vrot.slane %v139, 4
  %v142 = vshll.u32 %v61, 16
  %v144 = vrot.slane %v142, 5
  %v145 = vsel %vm75, %v140, %v144
  %v147 = vshrl.u32 %v46, 16
  %v149 = vrot.slane %v147, 4
  %v150 = vshll.u32 %v46, 16
  %v152 = vrot.slane %v150, 5
  %v153 = vor.u32 %v149, %v152
  %v154 = vrot.slane %v153, 4
  %v156 = vshll.u32 %v62, 16
  %v158 = vrot.slane %v156, 5
  %v159 = vsel %vm75, %v154, %v158
  %v161 = vshrl.u32 %v47, 16
  %v163 = vrot.slane %v161, 4
  %v164 = vshll.u32 %v47, 16
  %v166 = vrot.slane %v164, 5
  %v167 = vor.u32 %v163, %v166
  %v168 = vrot.slane %v167, 4
  %v170 = vshll.u32 %v63, 16
  %v172 = vrot.slane %v170, 5
  %v173 = vsel %vm75, %v168, %v172
  %v175 = vshrl.u32 %v48, 16
  %v177 = vrot.slane %v175, 4
  %v178 = vshll.u32 %v48, 16
  %v180 = vrot.slane %v178, 5
  %v181 = vor.u32 %v177, %v180
  %v182 = vrot.slane %v181, 4
  %v184 = vshll.u32 %v64, 16
  %v186 = vrot.slane %v184, 5
  %v187 = vsel %vm75, %v182, %v186
  %v189 = vshrl.u32 %v49, 16
  %v191 = vrot.slane %v189, 4
  %v192 = vshll.u32 %v49, 16
  %v194 = vrot.slane %v192, 5
  %v195 = vor.u32 %v191, %v194
  %v196 = vrot.slane %v195, 4
  %v198 = vshll.u32 %v65, 16
  %v200 = vrot.slane %v198, 5
  %v201 = vsel %vm75, %v196, %v200
  %v203 = vshrl.u32 %v50, 16
  %v205 = vrot.slane %v203, 4
  %v206 = vshll.u32 %v50, 16
  %v208 = vrot.slane %v206, 5
  %v209 = vor.u32 %v205, %v208
  %v210 = vrot.slane %v209, 4
  %v212 = vshll.u32 %v66, 16
  %v214 = vrot.slane %v212, 5
  %v215 = vsel %vm75, %v210, %v214
  %v217 = vshrl.u32 %v51, 16
  %v219 = vrot.slane %v217, 4
  %v220 = vshll.u32 %v51, 16
  %v222 = vrot.slane %v220, 5
  %v223 = vor.u32 %v219, %v222
  %v224 = vrot.slane %v223, 4
  %v226 = vshll.u32 %v67, 16
  %v228 = vrot.slane %v226, 5
  %v229 = vsel %vm75, %v224, %v228
  %v231 = vshrl.u32 %v52, 16
  %v233 = vrot.slane %v231, 4
  %v234 = vshll.u32 %v52, 16
  %v236 = vrot.slane %v234, 5
  %v237 = vor.u32 %v233, %v236
  %v238 = vrot.slane %v237, 4
  %v240 = vshll.u32 %v68, 16
  %v242 = vrot.slane %v240, 5
  %v243 = vsel %vm75, %v238, %v242
  %v245 = vshrl.u32 %v53, 16
  %v247 = vrot.slane %v245, 4
  %v248 = vshll.u32 %v53, 16
  %v250 = vrot.slane %v248, 5
  %v251 = vor.u32 %v247, %v250
  %v252 = vrot.slane %v251, 4
  %v254 = vshll.u32 %v69, 16
  %v256 = vrot.slane %v254, 5
  %v257 = vsel %vm75, %v252, %v256
  %v259 = vshrl.u32 %v54, 16
  %v261 = vrot.slane %v259, 4
  %v262 = vshll.u32 %v54, 16
  %v264 = vrot.slane %v262, 5
  %v265 = vor.u32 %v261, %v264
  %v266 = vrot.slane %v265, 4
  %v268 = vshll.u32 %v70, 16
  %v270 = vrot.slane %v268, 5
  %v271 = vsel %vm75, %v266, %v270
  %v273 = vshrl.u32 %v55, 16
  %v275 = vrot.slane %v273, 4
  %v276 = vshll.u32 %v55, 16
  %v278 = vrot.slane %v276, 5
  %v279 = vor.u32 %v275, %v278
  %v280 = vrot.slane %v279, 4
  %v282 = vshll.u32 %v71, 16
  %v284 = vrot.slane %v282, 5
  %v285 = vsel %vm75, %v280, %v284
  %v287 = vshrl.u32 %v56, 16
  %v289 = vrot.slane %v287, 4
  %v290 = vshll.u32 %v56, 16
  %v292 = vrot.slane %v290, 5
  %v293 = vor.u32 %v289, %v292
  %v294 = vrot.slane %v293, 4
  %v296 = vshll.u32 %v72, 16
  %v298 = vrot.slane %v296, 5
  %v299 = vsel %vm75, %v294, %v298
  %v300 = vld [vmem:[%s0] sm:$0xe]
  %v301 = vld [vmem:[%s0 + $0x8] sm:$0xe]
  %v302 = vld [vmem:[%s0 + $0x10] sm:$0xe]
  %v303 = vld [vmem:[%s0 + $0x18] sm:$0xe]
  %v304 = vld [vmem:[%s0 + $0x20] sm:$0xe]
  %v305 = vld [vmem:[%s0 + $0x28] sm:$0xe]
  %v306 = vld [vmem:[%s0 + $0x30] sm:$0xe]
  %v307 = vld [vmem:[%s0 + $0x38] sm:$0xe]
  %v308 = vld [vmem:[%s0 + $0x50] sm:$0xe]
  %v309 = vld [vmem:[%s0 + $0x58] sm:$0xe]
  %v310 = vld [vmem:[%s0 + $0x60] sm:$0xe]
  %v311 = vld [vmem:[%s0 + $0x68] sm:$0xe]
  %v312 = vld [vmem:[%s0 + $0x70] sm:$0xe]
  %v313 = vld [vmem:[%s0 + $0x78] sm:$0xe]
  %v314 = vld [vmem:[%s0 + $0x80] sm:$0xe]
  %v315 = vld [vmem:[%s0 + $0x88] sm:$0xe]
  %vm348 = vcmask 1042432
  %vm349 = vcmask 1046532
  %vm350 = vmor %vm348, %vm349
  %v351 = vrot.slane %v300, 5
  %v352 = vrot.slane %v351, 4
  %v353 = vrot.slane %v57, 5
  %v354 = vsel %vm350, %v352, %v353
  %v355 = vrot.slane %v301, 5
  %v356 = vrot.slane %v355, 4
  %v357 = vrot.slane %v58, 5
  %v358 = vsel %vm350, %v356, %v357
  %v359 = vrot.slane %v302, 5
  %v360 = vrot.slane %v359, 4
  %v361 = vrot.slane %v59, 5
  %v362 = vsel %vm350, %v360, %v361
  %v363 = vrot.slane %v303, 5
  %v364 = vrot.slane %v363, 4
  %v365 = vrot.slane %v60, 5
  %v366 = vsel %vm350, %v364, %v365
  %v367 = vrot.slane %v304, 5
  %v368 = vrot.slane %v367, 4
  %v369 = vrot.slane %v61, 5
  %v370 = vsel %vm350, %v368, %v369
  %v371 = vrot.slane %v305, 5
  %v372 = vrot.slane %v371, 4
  %v373 = vrot.slane %v62, 5
  %v374 = vsel %vm350, %v372, %v373
  %v375 = vrot.slane %v306, 5
  %v376 = vrot.slane %v375, 4
  %v377 = vrot.slane %v63, 5
  %v378 = vsel %vm350, %v376, %v377
  %v379 = vrot.slane %v307, 5
  %v380 = vrot.slane %v379, 4
  %v381 = vrot.slane %v64, 5
  %v382 = vsel %vm350, %v380, %v381
  %v383 = vrot.slane %v308, 5
  %v384 = vrot.slane %v383, 4
  %v385 = vrot.slane %v65, 5
  %v386 = vsel %vm350, %v384, %v385
  %v387 = vrot.slane %v309, 5
  %v388 = vrot.slane %v387, 4
  %v389 = vrot.slane %v66, 5
  %v390 = vsel %vm350, %v388, %v389
  %v391 = vrot.slane %v310, 5
  %v392 = vrot.slane %v391, 4
  %v393 = vrot.slane %v67, 5
  %v394 = vsel %vm350, %v392, %v393
  %v395 = vrot.slane %v311, 5
  %v396 = vrot.slane %v395, 4
  %v397 = vrot.slane %v68, 5
  %v398 = vsel %vm350, %v396, %v397
  %v399 = vrot.slane %v312, 5
  %v400 = vrot.slane %v399, 4
  %v401 = vrot.slane %v69, 5
  %v402 = vsel %vm350, %v400, %v401
  %v403 = vrot.slane %v313, 5
  %v404 = vrot.slane %v403, 4
  %v405 = vrot.slane %v70, 5
  %v406 = vsel %vm350, %v404, %v405
  %v407 = vrot.slane %v314, 5
  %v408 = vrot.slane %v407, 4
  %v409 = vrot.slane %v71, 5
  %v410 = vsel %vm350, %v408, %v409
  %v411 = vrot.slane %v315, 5
  %v412 = vrot.slane %v411, 4
  %v413 = vrot.slane %v72, 5
  %v414 = vsel %vm350, %v412, %v413
  %s415 = scalar_lea.vmem %s0, 8
  %v416 = vld [vmem:[%s415] sm:$0xf]
  %v417 = vld [vmem:[%s415 + $0x8] sm:$0xf]
  %v418 = vld [vmem:[%s415 + $0x10] sm:$0xf]
  %v419 = vld [vmem:[%s415 + $0x18] sm:$0xf]
  %v420 = vld [vmem:[%s415 + $0x20] sm:$0xf]
  %v421 = vld [vmem:[%s415 + $0x28] sm:$0xf]
  %v422 = vld [vmem:[%s415 + $0x30] sm:$0xf]
  %v423 = vld [vmem:[%s415 + $0x38] sm:$0xf]
  %v424 = vld [vmem:[%s415 + $0x50] sm:$0xf]
  %v425 = vld [vmem:[%s415 + $0x58] sm:$0xf]
  %v426 = vld [vmem:[%s415 + $0x60] sm:$0xf]
  %v427 = vld [vmem:[%s415 + $0x68] sm:$0xf]
  %v428 = vld [vmem:[%s415 + $0x70] sm:$0xf]
  %v429 = vld [vmem:[%s415 + $0x78] sm:$0xf]
  %v430 = vld [vmem:[%s415 + $0x80] sm:$0xf]
  %v431 = vld [vmem:[%s415 + $0x88] sm:$0xf]
  %v432 = vld [vmem:[%s415 + $0x4] sm:$0x1]
  %v433 = vld [vmem:[%s415 + $0xc] sm:$0x1]
  %v434 = vld [vmem:[%s415 + $0x14] sm:$0x1]
  %v435 = vld [vmem:[%s415 + $0x1c] sm:$0x1]
  %v436 = vld [vmem:[%s415 + $0x24] sm:$0x1]
  %v437 = vld [vmem:[%s415 + $0x2c] sm:$0x1]
  %v438 = vld [vmem:[%s415 + $0x34] sm:$0x1]
  %v439 = vld [vmem:[%s415 + $0x3c] sm:$0x1]
  %v440 = vld [vmem:[%s415 + $0x54] sm:$0x1]
  %v441 = vld [vmem:[%s415 + $0x5c] sm:$0x1]
  %v442 = vld [vmem:[%s415 + $0x64] sm:$0x1]
  %v443 = vld [vmem:[%s415 + $0x6c] sm:$0x1]
  %v444 = vld [vmem:[%s415 + $0x74] sm:$0x1]
  %v445 = vld [vmem:[%s415 + $0x7c] sm:$0x1]
  %v446 = vld [vmem:[%s415 + $0x84] sm:$0x1]
  %v447 = vld [vmem:[%s415 + $0x8c] sm:$0x1]
  %v449 = vshrl.u32 %v416, 16
  %v451 = vrot.slane %v449, 4
  %v452 = vshll.u32 %v416, 16
  %v454 = vrot.slane %v452, 5
  %v455 = vor.u32 %v451, %v454
  %v456 = vrot.slane %v455, 4
  %v458 = vshll.u32 %v432, 16
  %v460 = vrot.slane %v458, 5
  %v461 = vsel %vm75, %v456, %v460
  %v463 = vshrl.u32 %v417, 16
  %v465 = vrot.slane %v463, 4
  %v466 = vshll.u32 %v417, 16
  %v468 = vrot.slane %v466, 5
  %v469 = vor.u32 %v465, %v468
  %v470 = vrot.slane %v469, 4
  %v472 = vshll.u32 %v433, 16
  %v474 = vrot.slane %v472, 5
  %v475 = vsel %vm75, %v470, %v474
  %v477 = vshrl.u32 %v418, 16
  %v479 = vrot.slane %v477, 4
  %v480 = vshll.u32 %v418, 16
  %v482 = vrot.slane %v480, 5
  %v483 = vor.u32 %v479, %v482
  %v484 = vrot.slane %v483, 4
  %v486 = vshll.u32 %v434, 16
  %v488 = vrot.slane %v486, 5
  %v489 = vsel %vm75, %v484, %v488
  %v491 = vshrl.u32 %v419, 16
  %v493 = vrot.slane %v491, 4
  %v494 = vshll.u32 %v419, 16
  %v496 = vrot.slane %v494, 5
  %v497 = vor.u32 %v493, %v496
  %v498 = vrot.slane %v497, 4
  %v500 = vshll.u32 %v435, 16
  %v502 = vrot.slane %v500, 5
  %v503 = vsel %vm75, %v498, %v502
  %v505 = vshrl.u32 %v420, 16
  %v507 = vrot.slane %v505, 4
  %v508 = vshll.u32 %v420, 16
  %v510 = vrot.slane %v508, 5
  %v511 = vor.u32 %v507, %v510
  %v512 = vrot.slane %v511, 4
  %v514 = vshll.u32 %v436, 16
  %v516 = vrot.slane %v514, 5
  %v517 = vsel %vm75, %v512, %v516
  %v519 = vshrl.u32 %v421, 16
  %v521 = vrot.slane %v519, 4
  %v522 = vshll.u32 %v421, 16
  %v524 = vrot.slane %v522, 5
  %v525 = vor.u32 %v521, %v524
  %v526 = vrot.slane %v525, 4
  %v528 = vshll.u32 %v437, 16
  %v530 = vrot.slane %v528, 5
  %v531 = vsel %vm75, %v526, %v530
  %v533 = vshrl.u32 %v422, 16
  %v535 = vrot.slane %v533, 4
  %v536 = vshll.u32 %v422, 16
  %v538 = vrot.slane %v536, 5
  %v539 = vor.u32 %v535, %v538
  %v540 = vrot.slane %v539, 4
  %v542 = vshll.u32 %v438, 16
  %v544 = vrot.slane %v542, 5
  %v545 = vsel %vm75, %v540, %v544
  %v547 = vshrl.u32 %v423, 16
  %v549 = vrot.slane %v547, 4
  %v550 = vshll.u32 %v423, 16
  %v552 = vrot.slane %v550, 5
  %v553 = vor.u32 %v549, %v552
  %v554 = vrot.slane %v553, 4
  %v556 = vshll.u32 %v439, 16
  %v558 = vrot.slane %v556, 5
  %v559 = vsel %vm75, %v554, %v558
  %v561 = vshrl.u32 %v424, 16
  %v563 = vrot.slane %v561, 4
  %v564 = vshll.u32 %v424, 16
  %v566 = vrot.slane %v564, 5
  %v567 = vor.u32 %v563, %v566
  %v568 = vrot.slane %v567, 4
  %v570 = vshll.u32 %v440, 16
  %v572 = vrot.slane %v570, 5
  %v573 = vsel %vm75, %v568, %v572
  %v575 = vshrl.u32 %v425, 16
  %v577 = vrot.slane %v575, 4
  %v578 = vshll.u32 %v425, 16
  %v580 = vrot.slane %v578, 5
  %v581 = vor.u32 %v577, %v580
  %v582 = vrot.slane %v581, 4
  %v584 = vshll.u32 %v441, 16
  %v586 = vrot.slane %v584, 5
  %v587 = vsel %vm75, %v582, %v586
  %v589 = vshrl.u32 %v426, 16
  %v591 = vrot.slane %v589, 4
  %v592 = vshll.u32 %v426, 16
  %v594 = vrot.slane %v592, 5
  %v595 = vor.u32 %v591, %v594
  %v596 = vrot.slane %v595, 4
  %v598 = vshll.u32 %v442, 16
  %v600 = vrot.slane %v598, 5
  %v601 = vsel %vm75, %v596, %v600
  %v603 = vshrl.u32 %v427, 16
  %v605 = vrot.slane %v603, 4
  %v606 = vshll.u32 %v427, 16
  %v608 = vrot.slane %v606, 5
  %v609 = vor.u32 %v605, %v608
  %v610 = vrot.slane %v609, 4
  %v612 = vshll.u32 %v443, 16
  %v614 = vrot.slane %v612, 5
  %v615 = vsel %vm75, %v610, %v614
  %v617 = vshrl.u32 %v428, 16
  %v619 = vrot.slane %v617, 4
  %v620 = vshll.u32 %v428, 16
  %v622 = vrot.slane %v620, 5
  %v623 = vor.u32 %v619, %v622
  %v624 = vrot.slane %v623, 4
  %v626 = vshll.u32 %v444, 16
  %v628 = vrot.slane %v626, 5
  %v629 = vsel %vm75, %v624, %v628
  %v631 = vshrl.u32 %v429, 16
  %v633 = vrot.slane %v631, 4
  %v634 = vshll.u32 %v429, 16
  %v636 = vrot.slane %v634, 5
  %v637 = vor.u32 %v633, %v636
  %v638 = vrot.slane %v637, 4
  %v640 = vshll.u32 %v445, 16
  %v642 = vrot.slane %v640, 5
  %v643 = vsel %vm75, %v638, %v642
  %v645 = vshrl.u32 %v430, 16
  %v647 = vrot.slane %v645, 4
  %v648 = vshll.u32 %v430, 16
  %v650 = vrot.slane %v648, 5
  %v651 = vor.u32 %v647, %v650
  %v652 = vrot.slane %v651, 4
  %v654 = vshll.u32 %v446, 16
  %v656 = vrot.slane %v654, 5
  %v657 = vsel %vm75, %v652, %v656
  %v659 = vshrl.u32 %v431, 16
  %v661 = vrot.slane %v659, 4
  %v662 = vshll.u32 %v431, 16
  %v664 = vrot.slane %v662, 5
  %v665 = vor.u32 %v661, %v664
  %v666 = vrot.slane %v665, 4
  %v668 = vshll.u32 %v447, 16
  %v670 = vrot.slane %v668, 5
  %v671 = vsel %vm75, %v666, %v670
  %v672 = vld [vmem:[%s415] sm:$0xe]
  %v673 = vld [vmem:[%s415 + $0x8] sm:$0xe]
  %v674 = vld [vmem:[%s415 + $0x10] sm:$0xe]
  %v675 = vld [vmem:[%s415 + $0x18] sm:$0xe]
  %v676 = vld [vmem:[%s415 + $0x20] sm:$0xe]
  %v677 = vld [vmem:[%s415 + $0x28] sm:$0xe]
  %v678 = vld [vmem:[%s415 + $0x30] sm:$0xe]
  %v679 = vld [vmem:[%s415 + $0x38] sm:$0xe]
  %v680 = vld [vmem:[%s415 + $0x50] sm:$0xe]
  %v681 = vld [vmem:[%s415 + $0x58] sm:$0xe]
  %v682 = vld [vmem:[%s415 + $0x60] sm:$0xe]
  %v683 = vld [vmem:[%s415 + $0x68] sm:$0xe]
  %v684 = vld [vmem:[%s415 + $0x70] sm:$0xe]
  %v685 = vld [vmem:[%s415 + $0x78] sm:$0xe]
  %v686 = vld [vmem:[%s415 + $0x80] sm:$0xe]
  %v687 = vld [vmem:[%s415 + $0x88] sm:$0xe]
  %v720 = vrot.slane %v672, 5
  %v721 = vrot.slane %v720, 4
  %v722 = vrot.slane %v432, 5
  %v723 = vsel %vm350, %v721, %v722
  %v724 = vrot.slane %v673, 5
  %v725 = vrot.slane %v724, 4
  %v726 = vrot.slane %v433, 5
  %v727 = vsel %vm350, %v725, %v726
  %v728 = vrot.slane %v674, 5
  %v729 = vrot.slane %v728, 4
  %v730 = vrot.slane %v434, 5
  %v731 = vsel %vm350, %v729, %v730
  %v732 = vrot.slane %v675, 5
  %v733 = vrot.slane %v732, 4
  %v734 = vrot.slane %v435, 5
  %v735 = vsel %vm350, %v733, %v734
  %v736 = vrot.slane %v676, 5
  %v737 = vrot.slane %v736, 4
  %v738 = vrot.slane %v436, 5
  %v739 = vsel %vm350, %v737, %v738
  %v740 = vrot.slane %v677, 5
  %v741 = vrot.slane %v740, 4
  %v742 = vrot.slane %v437, 5
  %v743 = vsel %vm350, %v741, %v742
  %v744 = vrot.slane %v678, 5
  %v745 = vrot.slane %v744, 4
  %v746 = vrot.slane %v438, 5
  %v747 = vsel %vm350, %v745, %v746
  %v748 = vrot.slane %v679, 5
  %v749 = vrot.slane %v748, 4
  %v750 = vrot.slane %v439, 5
  %v751 = vsel %vm350, %v749, %v750
  %v752 = vrot.slane %v680, 5
  %v753 = vrot.slane %v752, 4
  %v754 = vrot.slane %v440, 5
  %v755 = vsel %vm350, %v753, %v754
  %v756 = vrot.slane %v681, 5
  %v757 = vrot.slane %v756, 4
  %v758 = vrot.slane %v441, 5
  %v759 = vsel %vm350, %v757, %v758
  %v760 = vrot.slane %v682, 5
  %v761 = vrot.slane %v760, 4
  %v762 = vrot.slane %v442, 5
  %v763 = vsel %vm350, %v761, %v762
  %v764 = vrot.slane %v683, 5
  %v765 = vrot.slane %v764, 4
  %v766 = vrot.slane %v443, 5
  %v767 = vsel %vm350, %v765, %v766
  %v768 = vrot.slane %v684, 5
  %v769 = vrot.slane %v768, 4
  %v770 = vrot.slane %v444, 5
  %v771 = vsel %vm350, %v769, %v770
  %v772 = vrot.slane %v685, 5
  %v773 = vrot.slane %v772, 4
  %v774 = vrot.slane %v445, 5
  %v775 = vsel %vm350, %v773, %v774
  %v776 = vrot.slane %v686, 5
  %v777 = vrot.slane %v776, 4
  %v778 = vrot.slane %v446, 5
  %v779 = vsel %vm350, %v777, %v778
  %v780 = vrot.slane %v687, 5
  %v781 = vrot.slane %v780, 4
  %v782 = vrot.slane %v447, 5
  %v783 = vsel %vm350, %v781, %v782
  %s784 = scalar_lea.vmem %s0, 16
  %v785 = vld [vmem:[%s784] sm:$0xf]
  %v786 = vld [vmem:[%s784 + $0x8] sm:$0xf]
  %v787 = vld [vmem:[%s784 + $0x10] sm:$0xf]
  %v788 = vld [vmem:[%s784 + $0x18] sm:$0xf]
  %v789 = vld [vmem:[%s784 + $0x20] sm:$0xf]
  %v790 = vld [vmem:[%s784 + $0x28] sm:$0xf]
  %v791 = vld [vmem:[%s784 + $0x30] sm:$0xf]
  %v792 = vld [vmem:[%s784 + $0x38] sm:$0xf]
  %v793 = vld [vmem:[%s784 + $0x50] sm:$0xf]
  %v794 = vld [vmem:[%s784 + $0x58] sm:$0xf]
  %v795 = vld [vmem:[%s784 + $0x60] sm:$0xf]
  %v796 = vld [vmem:[%s784 + $0x68] sm:$0xf]
  %v797 = vld [vmem:[%s784 + $0x70] sm:$0xf]
  %v798 = vld [vmem:[%s784 + $0x78] sm:$0xf]
  %v799 = vld [vmem:[%s784 + $0x80] sm:$0xf]
  %v800 = vld [vmem:[%s784 + $0x88] sm:$0xf]
  %v801 = vld [vmem:[%s784 + $0x4] sm:$0x1]
  %v802 = vld [vmem:[%s784 + $0xc] sm:$0x1]
  %v803 = vld [vmem:[%s784 + $0x14] sm:$0x1]
  %v804 = vld [vmem:[%s784 + $0x1c] sm:$0x1]
  %v805 = vld [vmem:[%s784 + $0x24] sm:$0x1]
  %v806 = vld [vmem:[%s784 + $0x2c] sm:$0x1]
  %v807 = vld [vmem:[%s784 + $0x34] sm:$0x1]
  %v808 = vld [vmem:[%s784 + $0x3c] sm:$0x1]
  %v809 = vld [vmem:[%s784 + $0x54] sm:$0x1]
  %v810 = vld [vmem:[%s784 + $0x5c] sm:$0x1]
  %v811 = vld [vmem:[%s784 + $0x64] sm:$0x1]
  %v812 = vld [vmem:[%s784 + $0x6c] sm:$0x1]
  %v813 = vld [vmem:[%s784 + $0x74] sm:$0x1]
  %v814 = vld [vmem:[%s784 + $0x7c] sm:$0x1]
  %v815 = vld [vmem:[%s784 + $0x84] sm:$0x1]
  %v816 = vld [vmem:[%s784 + $0x8c] sm:$0x1]
  %v818 = vshrl.u32 %v785, 16
  %v820 = vrot.slane %v818, 4
  %v821 = vshll.u32 %v785, 16
  %v823 = vrot.slane %v821, 5
  %v824 = vor.u32 %v820, %v823
  %v825 = vrot.slane %v824, 4
  %v827 = vshll.u32 %v801, 16
  %v829 = vrot.slane %v827, 5
  %v830 = vsel %vm75, %v825, %v829
  %v832 = vshrl.u32 %v786, 16
  %v834 = vrot.slane %v832, 4
  %v835 = vshll.u32 %v786, 16
  %v837 = vrot.slane %v835, 5
  %v838 = vor.u32 %v834, %v837
  %v839 = vrot.slane %v838, 4
  %v841 = vshll.u32 %v802, 16
  %v843 = vrot.slane %v841, 5
  %v844 = vsel %vm75, %v839, %v843
  %v846 = vshrl.u32 %v787, 16
  %v848 = vrot.slane %v846, 4
  %v849 = vshll.u32 %v787, 16
  %v851 = vrot.slane %v849, 5
  %v852 = vor.u32 %v848, %v851
  %v853 = vrot.slane %v852, 4
  %v855 = vshll.u32 %v803, 16
  %v857 = vrot.slane %v855, 5
  %v858 = vsel %vm75, %v853, %v857
  %v860 = vshrl.u32 %v788, 16
  %v862 = vrot.slane %v860, 4
  %v863 = vshll.u32 %v788, 16
  %v865 = vrot.slane %v863, 5
  %v866 = vor.u32 %v862, %v865
  %v867 = vrot.slane %v866, 4
  %v869 = vshll.u32 %v804, 16
  %v871 = vrot.slane %v869, 5
  %v872 = vsel %vm75, %v867, %v871
  %v874 = vshrl.u32 %v789, 16
  %v876 = vrot.slane %v874, 4
  %v877 = vshll.u32 %v789, 16
  %v879 = vrot.slane %v877, 5
  %v880 = vor.u32 %v876, %v879
  %v881 = vrot.slane %v880, 4
  %v883 = vshll.u32 %v805, 16
  %v885 = vrot.slane %v883, 5
  %v886 = vsel %vm75, %v881, %v885
  %v888 = vshrl.u32 %v790, 16
  %v890 = vrot.slane %v888, 4
  %v891 = vshll.u32 %v790, 16
  %v893 = vrot.slane %v891, 5
  %v894 = vor.u32 %v890, %v893
  %v895 = vrot.slane %v894, 4
  %v897 = vshll.u32 %v806, 16
  %v899 = vrot.slane %v897, 5
  %v900 = vsel %vm75, %v895, %v899
  %v902 = vshrl.u32 %v791, 16
  %v904 = vrot.slane %v902, 4
  %v905 = vshll.u32 %v791, 16
  %v907 = vrot.slane %v905, 5
  %v908 = vor.u32 %v904, %v907
  %v909 = vrot.slane %v908, 4
  %v911 = vshll.u32 %v807, 16
  %v913 = vrot.slane %v911, 5
  %v914 = vsel %vm75, %v909, %v913
  %v916 = vshrl.u32 %v792, 16
  %v918 = vrot.slane %v916, 4
  %v919 = vshll.u32 %v792, 16
  %v921 = vrot.slane %v919, 5
  %v922 = vor.u32 %v918, %v921
  %v923 = vrot.slane %v922, 4
  %v925 = vshll.u32 %v808, 16
  %v927 = vrot.slane %v925, 5
  %v928 = vsel %vm75, %v923, %v927
  %v930 = vshrl.u32 %v793, 16
  %v932 = vrot.slane %v930, 4
  %v933 = vshll.u32 %v793, 16
  %v935 = vrot.slane %v933, 5
  %v936 = vor.u32 %v932, %v935
  %v937 = vrot.slane %v936, 4
  %v939 = vshll.u32 %v809, 16
  %v941 = vrot.slane %v939, 5
  %v942 = vsel %vm75, %v937, %v941
  %v944 = vshrl.u32 %v794, 16
  %v946 = vrot.slane %v944, 4
  %v947 = vshll.u32 %v794, 16
  %v949 = vrot.slane %v947, 5
  %v950 = vor.u32 %v946, %v949
  %v951 = vrot.slane %v950, 4
  %v953 = vshll.u32 %v810, 16
  %v955 = vrot.slane %v953, 5
  %v956 = vsel %vm75, %v951, %v955
  %v958 = vshrl.u32 %v795, 16
  %v960 = vrot.slane %v958, 4
  %v961 = vshll.u32 %v795, 16
  %v963 = vrot.slane %v961, 5
  %v964 = vor.u32 %v960, %v963
  %v965 = vrot.slane %v964, 4
  %v967 = vshll.u32 %v811, 16
  %v969 = vrot.slane %v967, 5
  %v970 = vsel %vm75, %v965, %v969
  %v972 = vshrl.u32 %v796, 16
  %v974 = vrot.slane %v972, 4
  %v975 = vshll.u32 %v796, 16
  %v977 = vrot.slane %v975, 5
  %v978 = vor.u32 %v974, %v977
  %v979 = vrot.slane %v978, 4
  %v981 = vshll.u32 %v812, 16
  %v983 = vrot.slane %v981, 5
  %v984 = vsel %vm75, %v979, %v983
  %v986 = vshrl.u32 %v797, 16
  %v988 = vrot.slane %v986, 4
  %v989 = vshll.u32 %v797, 16
  %v991 = vrot.slane %v989, 5
  %v992 = vor.u32 %v988, %v991
  %v993 = vrot.slane %v992, 4
  %v995 = vshll.u32 %v813, 16
  %v997 = vrot.slane %v995, 5
  %v998 = vsel %vm75, %v993, %v997
  %v1000 = vshrl.u32 %v798, 16
  %v1002 = vrot.slane %v1000, 4
  %v1003 = vshll.u32 %v798, 16
  %v1005 = vrot.slane %v1003, 5
  %v1006 = vor.u32 %v1002, %v1005
  %v1007 = vrot.slane %v1006, 4
  %v1009 = vshll.u32 %v814, 16
  %v1011 = vrot.slane %v1009, 5
  %v1012 = vsel %vm75, %v1007, %v1011
  %v1014 = vshrl.u32 %v799, 16
  %v1016 = vrot.slane %v1014, 4
  %v1017 = vshll.u32 %v799, 16
  %v1019 = vrot.slane %v1017, 5
  %v1020 = vor.u32 %v1016, %v1019
  %v1021 = vrot.slane %v1020, 4
  %v1023 = vshll.u32 %v815, 16
  %v1025 = vrot.slane %v1023, 5
  %v1026 = vsel %vm75, %v1021, %v1025
  %v1028 = vshrl.u32 %v800, 16
  %v1030 = vrot.slane %v1028, 4
  %v1031 = vshll.u32 %v800, 16
  %v1033 = vrot.slane %v1031, 5
  %v1034 = vor.u32 %v1030, %v1033
  %v1035 = vrot.slane %v1034, 4
  %v1037 = vshll.u32 %v816, 16
  %v1039 = vrot.slane %v1037, 5
  %v1040 = vsel %vm75, %v1035, %v1039
  %v1041 = vld [vmem:[%s784] sm:$0xe]
  %v1042 = vld [vmem:[%s784 + $0x8] sm:$0xe]
  %v1043 = vld [vmem:[%s784 + $0x10] sm:$0xe]
  %v1044 = vld [vmem:[%s784 + $0x18] sm:$0xe]
  %v1045 = vld [vmem:[%s784 + $0x20] sm:$0xe]
  %v1046 = vld [vmem:[%s784 + $0x28] sm:$0xe]
  %v1047 = vld [vmem:[%s784 + $0x30] sm:$0xe]
  %v1048 = vld [vmem:[%s784 + $0x38] sm:$0xe]
  %v1049 = vld [vmem:[%s784 + $0x50] sm:$0xe]
  %v1050 = vld [vmem:[%s784 + $0x58] sm:$0xe]
  %v1051 = vld [vmem:[%s784 + $0x60] sm:$0xe]
  %v1052 = vld [vmem:[%s784 + $0x68] sm:$0xe]
  %v1053 = vld [vmem:[%s784 + $0x70] sm:$0xe]
  %v1054 = vld [vmem:[%s784 + $0x78] sm:$0xe]
  %v1055 = vld [vmem:[%s784 + $0x80] sm:$0xe]
  %v1056 = vld [vmem:[%s784 + $0x88] sm:$0xe]
  %v1089 = vrot.slane %v1041, 5
  %v1090 = vrot.slane %v1089, 4
  %v1091 = vrot.slane %v801, 5
  %v1092 = vsel %vm350, %v1090, %v1091
  %v1093 = vrot.slane %v1042, 5
  %v1094 = vrot.slane %v1093, 4
  %v1095 = vrot.slane %v802, 5
  %v1096 = vsel %vm350, %v1094, %v1095
  %v1097 = vrot.slane %v1043, 5
  %v1098 = vrot.slane %v1097, 4
  %v1099 = vrot.slane %v803, 5
  %v1100 = vsel %vm350, %v1098, %v1099
  %v1101 = vrot.slane %v1044, 5
  %v1102 = vrot.slane %v1101, 4
  %v1103 = vrot.slane %v804, 5
  %v1104 = vsel %vm350, %v1102, %v1103
  %v1105 = vrot.slane %v1045, 5
  %v1106 = vrot.slane %v1105, 4
  %v1107 = vrot.slane %v805, 5
  %v1108 = vsel %vm350, %v1106, %v1107
  %v1109 = vrot.slane %v1046, 5
  %v1110 = vrot.slane %v1109, 4
  %v1111 = vrot.slane %v806, 5
  %v1112 = vsel %vm350, %v1110, %v1111
  %v1113 = vrot.slane %v1047, 5
  %v1114 = vrot.slane %v1113, 4
  %v1115 = vrot.slane %v807, 5
  %v1116 = vsel %vm350, %v1114, %v1115
  %v1117 = vrot.slane %v1048, 5
  %v1118 = vrot.slane %v1117, 4
  %v1119 = vrot.slane %v808, 5
  %v1120 = vsel %vm350, %v1118, %v1119
  %v1121 = vrot.slane %v1049, 5
  %v1122 = vrot.slane %v1121, 4
  %v1123 = vrot.slane %v809, 5
  %v1124 = vsel %vm350, %v1122, %v1123
  %v1125 = vrot.slane %v1050, 5
  %v1126 = vrot.slane %v1125, 4
  %v1127 = vrot.slane %v810, 5
  %v1128 = vsel %vm350, %v1126, %v1127
  %v1129 = vrot.slane %v1051, 5
  %v1130 = vrot.slane %v1129, 4
  %v1131 = vrot.slane %v811, 5
  %v1132 = vsel %vm350, %v1130, %v1131
  %v1133 = vrot.slane %v1052, 5
  %v1134 = vrot.slane %v1133, 4
  %v1135 = vrot.slane %v812, 5
  %v1136 = vsel %vm350, %v1134, %v1135
  %v1137 = vrot.slane %v1053, 5
  %v1138 = vrot.slane %v1137, 4
  %v1139 = vrot.slane %v813, 5
  %v1140 = vsel %vm350, %v1138, %v1139
  %v1141 = vrot.slane %v1054, 5
  %v1142 = vrot.slane %v1141, 4
  %v1143 = vrot.slane %v814, 5
  %v1144 = vsel %vm350, %v1142, %v1143
  %v1145 = vrot.slane %v1055, 5
  %v1146 = vrot.slane %v1145, 4
  %v1147 = vrot.slane %v815, 5
  %v1148 = vsel %vm350, %v1146, %v1147
  %v1149 = vrot.slane %v1056, 5
  %v1150 = vrot.slane %v1149, 4
  %v1151 = vrot.slane %v816, 5
  %v1152 = vsel %vm350, %v1150, %v1151
  %v1169 = vunpack.c.l.b16 %v41
  %v1170 = vunpack.c.l.b16 %v42
  %v1171 = vunpack.c.l.b16 %v43
  %v1172 = vunpack.c.l.b16 %v44
  %v1173 = vunpack.c.l.b16 %v45
  %v1174 = vunpack.c.l.b16 %v46
  %v1175 = vunpack.c.l.b16 %v47
  %v1176 = vunpack.c.l.b16 %v48
  %v1177 = vunpack.c.l.b16 %v49
  %v1178 = vunpack.c.l.b16 %v50
  %v1179 = vunpack.c.l.b16 %v51
  %v1180 = vunpack.c.l.b16 %v52
  %v1181 = vunpack.c.l.b16 %v53
  %v1182 = vunpack.c.l.b16 %v54
  %v1183 = vunpack.c.l.b16 %v55
  %v1184 = vunpack.c.l.b16 %v56
  %v1185 = vpack.c.b16 %v1170, %v1169
  %v1186 = vpack.c.b16 %v1172, %v1171
  %v1187 = vpack.c.b16 %v1174, %v1173
  %v1188 = vpack.c.b16 %v1176, %v1175
  %v1189 = vpack.c.b16 %v1178, %v1177
  %v1190 = vpack.c.b16 %v1180, %v1179
  %v1191 = vpack.c.b16 %v1182, %v1181
  %v1192 = vpack.c.b16 %v1184, %v1183
  %v1201 = vunpack.c.l.b16 %v89
  %v1202 = vunpack.c.l.b16 %v103
  %v1203 = vunpack.c.l.b16 %v117
  %v1204 = vunpack.c.l.b16 %v131
  %v1205 = vunpack.c.l.b16 %v145
  %v1206 = vunpack.c.l.b16 %v159
  %v1207 = vunpack.c.l.b16 %v173
  %v1208 = vunpack.c.l.b16 %v187
  %v1209 = vunpack.c.l.b16 %v201
  %v1210 = vunpack.c.l.b16 %v215
  %v1211 = vunpack.c.l.b16 %v229
  %v1212 = vunpack.c.l.b16 %v243
  %v1213 = vunpack.c.l.b16 %v257
  %v1214 = vunpack.c.l.b16 %v271
  %v1215 = vunpack.c.l.b16 %v285
  %v1216 = vunpack.c.l.b16 %v299
  %v1217 = vpack.c.b16 %v1202, %v1201
  %v1218 = vpack.c.b16 %v1204, %v1203
  %v1219 = vpack.c.b16 %v1206, %v1205
  %v1220 = vpack.c.b16 %v1208, %v1207
  %v1221 = vpack.c.b16 %v1210, %v1209
  %v1222 = vpack.c.b16 %v1212, %v1211
  %v1223 = vpack.c.b16 %v1214, %v1213
  %v1224 = vpack.c.b16 %v1216, %v1215
  %v1233 = vunpack.c.l.b16 %v354
  %v1234 = vunpack.c.l.b16 %v358
  %v1235 = vunpack.c.l.b16 %v362
  %v1236 = vunpack.c.l.b16 %v366
  %v1237 = vunpack.c.l.b16 %v370
  %v1238 = vunpack.c.l.b16 %v374
  %v1239 = vunpack.c.l.b16 %v378
  %v1240 = vunpack.c.l.b16 %v382
  %v1241 = vunpack.c.l.b16 %v386
  %v1242 = vunpack.c.l.b16 %v390
  %v1243 = vunpack.c.l.b16 %v394
  %v1244 = vunpack.c.l.b16 %v398
  %v1245 = vunpack.c.l.b16 %v402
  %v1246 = vunpack.c.l.b16 %v406
  %v1247 = vunpack.c.l.b16 %v410
  %v1248 = vunpack.c.l.b16 %v414
  %v1249 = vpack.c.b16 %v1234, %v1233
  %v1250 = vpack.c.b16 %v1236, %v1235
  %v1251 = vpack.c.b16 %v1238, %v1237
  %v1252 = vpack.c.b16 %v1240, %v1239
  %v1253 = vpack.c.b16 %v1242, %v1241
  %v1254 = vpack.c.b16 %v1244, %v1243
  %v1255 = vpack.c.b16 %v1246, %v1245
  %v1256 = vpack.c.b16 %v1248, %v1247
  %v1281 = vunpack.c.l.b16 %v416
  %v1282 = vunpack.c.l.b16 %v417
  %v1283 = vunpack.c.l.b16 %v418
  %v1284 = vunpack.c.l.b16 %v419
  %v1285 = vunpack.c.l.b16 %v420
  %v1286 = vunpack.c.l.b16 %v421
  %v1287 = vunpack.c.l.b16 %v422
  %v1288 = vunpack.c.l.b16 %v423
  %v1289 = vunpack.c.l.b16 %v424
  %v1290 = vunpack.c.l.b16 %v425
  %v1291 = vunpack.c.l.b16 %v426
  %v1292 = vunpack.c.l.b16 %v427
  %v1293 = vunpack.c.l.b16 %v428
  %v1294 = vunpack.c.l.b16 %v429
  %v1295 = vunpack.c.l.b16 %v430
  %v1296 = vunpack.c.l.b16 %v431
  %v1297 = vpack.c.b16 %v1282, %v1281
  %v1298 = vpack.c.b16 %v1284, %v1283
  %v1299 = vpack.c.b16 %v1286, %v1285
  %v1300 = vpack.c.b16 %v1288, %v1287
  %v1301 = vpack.c.b16 %v1290, %v1289
  %v1302 = vpack.c.b16 %v1292, %v1291
  %v1303 = vpack.c.b16 %v1294, %v1293
  %v1304 = vpack.c.b16 %v1296, %v1295
  %v1313 = vunpack.c.l.b16 %v461
  %v1314 = vunpack.c.l.b16 %v475
  %v1315 = vunpack.c.l.b16 %v489
  %v1316 = vunpack.c.l.b16 %v503
  %v1317 = vunpack.c.l.b16 %v517
  %v1318 = vunpack.c.l.b16 %v531
  %v1319 = vunpack.c.l.b16 %v545
  %v1320 = vunpack.c.l.b16 %v559
  %v1321 = vunpack.c.l.b16 %v573
  %v1322 = vunpack.c.l.b16 %v587
  %v1323 = vunpack.c.l.b16 %v601
  %v1324 = vunpack.c.l.b16 %v615
  %v1325 = vunpack.c.l.b16 %v629
  %v1326 = vunpack.c.l.b16 %v643
  %v1327 = vunpack.c.l.b16 %v657
  %v1328 = vunpack.c.l.b16 %v671
  %v1329 = vpack.c.b16 %v1314, %v1313
  %v1330 = vpack.c.b16 %v1316, %v1315
  %v1331 = vpack.c.b16 %v1318, %v1317
  %v1332 = vpack.c.b16 %v1320, %v1319
  %v1333 = vpack.c.b16 %v1322, %v1321
  %v1334 = vpack.c.b16 %v1324, %v1323
  %v1335 = vpack.c.b16 %v1326, %v1325
  %v1336 = vpack.c.b16 %v1328, %v1327
  %v1345 = vunpack.c.l.b16 %v723
  %v1346 = vunpack.c.l.b16 %v727
  %v1347 = vunpack.c.l.b16 %v731
  %v1348 = vunpack.c.l.b16 %v735
  %v1349 = vunpack.c.l.b16 %v739
  %v1350 = vunpack.c.l.b16 %v743
  %v1351 = vunpack.c.l.b16 %v747
  %v1352 = vunpack.c.l.b16 %v751
  %v1353 = vunpack.c.l.b16 %v755
  %v1354 = vunpack.c.l.b16 %v759
  %v1355 = vunpack.c.l.b16 %v763
  %v1356 = vunpack.c.l.b16 %v767
  %v1357 = vunpack.c.l.b16 %v771
  %v1358 = vunpack.c.l.b16 %v775
  %v1359 = vunpack.c.l.b16 %v779
  %v1360 = vunpack.c.l.b16 %v783
  %v1361 = vpack.c.b16 %v1346, %v1345
  %v1362 = vpack.c.b16 %v1348, %v1347
  %v1363 = vpack.c.b16 %v1350, %v1349
  %v1364 = vpack.c.b16 %v1352, %v1351
  %v1365 = vpack.c.b16 %v1354, %v1353
  %v1366 = vpack.c.b16 %v1356, %v1355
  %v1367 = vpack.c.b16 %v1358, %v1357
  %v1368 = vpack.c.b16 %v1360, %v1359
  %v1393 = vunpack.c.l.b16 %v785
  %v1394 = vunpack.c.l.b16 %v786
  %v1395 = vunpack.c.l.b16 %v787
  %v1396 = vunpack.c.l.b16 %v788
  %v1397 = vunpack.c.l.b16 %v789
  %v1398 = vunpack.c.l.b16 %v790
  %v1399 = vunpack.c.l.b16 %v791
  %v1400 = vunpack.c.l.b16 %v792
  %v1401 = vunpack.c.l.b16 %v793
  %v1402 = vunpack.c.l.b16 %v794
  %v1403 = vunpack.c.l.b16 %v795
  %v1404 = vunpack.c.l.b16 %v796
  %v1405 = vunpack.c.l.b16 %v797
  %v1406 = vunpack.c.l.b16 %v798
  %v1407 = vunpack.c.l.b16 %v799
  %v1408 = vunpack.c.l.b16 %v800
  %v1409 = vpack.c.b16 %v1394, %v1393
  %v1410 = vpack.c.b16 %v1396, %v1395
  %v1411 = vpack.c.b16 %v1398, %v1397
  %v1412 = vpack.c.b16 %v1400, %v1399
  %v1413 = vpack.c.b16 %v1402, %v1401
  %v1414 = vpack.c.b16 %v1404, %v1403
  %v1415 = vpack.c.b16 %v1406, %v1405
  %v1416 = vpack.c.b16 %v1408, %v1407
  %v1425 = vunpack.c.l.b16 %v830
  %v1426 = vunpack.c.l.b16 %v844
  %v1427 = vunpack.c.l.b16 %v858
  %v1428 = vunpack.c.l.b16 %v872
  %v1429 = vunpack.c.l.b16 %v886
  %v1430 = vunpack.c.l.b16 %v900
  %v1431 = vunpack.c.l.b16 %v914
  %v1432 = vunpack.c.l.b16 %v928
  %v1433 = vunpack.c.l.b16 %v942
  %v1434 = vunpack.c.l.b16 %v956
  %v1435 = vunpack.c.l.b16 %v970
  %v1436 = vunpack.c.l.b16 %v984
  %v1437 = vunpack.c.l.b16 %v998
  %v1438 = vunpack.c.l.b16 %v1012
  %v1439 = vunpack.c.l.b16 %v1026
  %v1440 = vunpack.c.l.b16 %v1040
  %v1441 = vpack.c.b16 %v1426, %v1425
  %v1442 = vpack.c.b16 %v1428, %v1427
  %v1443 = vpack.c.b16 %v1430, %v1429
  %v1444 = vpack.c.b16 %v1432, %v1431
  %v1445 = vpack.c.b16 %v1434, %v1433
  %v1446 = vpack.c.b16 %v1436, %v1435
  %v1447 = vpack.c.b16 %v1438, %v1437
  %v1448 = vpack.c.b16 %v1440, %v1439
  %v1457 = vunpack.c.l.b16 %v1092
  %v1458 = vunpack.c.l.b16 %v1096
  %v1459 = vunpack.c.l.b16 %v1100
  %v1460 = vunpack.c.l.b16 %v1104
  %v1461 = vunpack.c.l.b16 %v1108
  %v1462 = vunpack.c.l.b16 %v1112
  %v1463 = vunpack.c.l.b16 %v1116
  %v1464 = vunpack.c.l.b16 %v1120
  %v1465 = vunpack.c.l.b16 %v1124
  %v1466 = vunpack.c.l.b16 %v1128
  %v1467 = vunpack.c.l.b16 %v1132
  %v1468 = vunpack.c.l.b16 %v1136
  %v1469 = vunpack.c.l.b16 %v1140
  %v1470 = vunpack.c.l.b16 %v1144
  %v1471 = vunpack.c.l.b16 %v1148
  %v1472 = vunpack.c.l.b16 %v1152
  %v1473 = vpack.c.b16 %v1458, %v1457
  %v1474 = vpack.c.b16 %v1460, %v1459
  %v1475 = vpack.c.b16 %v1462, %v1461
  %v1476 = vpack.c.b16 %v1464, %v1463
  %v1477 = vpack.c.b16 %v1466, %v1465
  %v1478 = vpack.c.b16 %v1468, %v1467
  %v1479 = vpack.c.b16 %v1470, %v1469
  %v1480 = vpack.c.b16 %v1472, %v1471
  %v1489 = vld [vmem:[%s1] sm:$0xf]
  %v1490 = vld [vmem:[%s1 + $0x4] sm:$0xf]
  %v1491 = vld [vmem:[%s1 + $0x8] sm:$0xf]
  %v1492 = vld [vmem:[%s1 + $0xc] sm:$0xf]
  %v1493 = vld [vmem:[%s1 + $0x10] sm:$0xf]
  %v1494 = vld [vmem:[%s1 + $0x14] sm:$0xf]
  %v1495 = vld [vmem:[%s1 + $0x18] sm:$0xf]
  %v1496 = vld [vmem:[%s1 + $0x1c] sm:$0xf]
  %v1497 = vld [vmem:[%s1 + $0x20] sm:$0xf]
  %v1498 = vld [vmem:[%s1 + $0x24] sm:$0xf]
  %v1499 = vld [vmem:[%s1 + $0x28] sm:$0xf]
  %v1500 = vld [vmem:[%s1 + $0x2c] sm:$0xf]
  %v1501 = vld [vmem:[%s1 + $0x30] sm:$0xf]
  %v1502 = vld [vmem:[%s1 + $0x34] sm:$0xf]
  %v1503 = vld [vmem:[%s1 + $0x38] sm:$0xf]
  %v1504 = vld [vmem:[%s1 + $0x3c] sm:$0xf]
  %v1505 = vld [vmem:[%s1 + $0x40] sm:$0xf]
  %v1506 = vld [vmem:[%s1 + $0x44] sm:$0xf]
  %v1507 = vld [vmem:[%s1 + $0x48] sm:$0xf]
  %v1508 = vld [vmem:[%s1 + $0x4c] sm:$0xf]
  %v1509 = vld [vmem:[%s1 + $0x50] sm:$0xf]
  %v1510 = vld [vmem:[%s1 + $0x54] sm:$0xf]
  %v1511 = vld [vmem:[%s1 + $0x58] sm:$0xf]
  %v1512 = vld [vmem:[%s1 + $0x5c] sm:$0xf]
  %v1513 = vld [vmem:[%s1 + $0x60] sm:$0xf]
  %v1514 = vld [vmem:[%s1 + $0x64] sm:$0xf]
  %v1515 = vld [vmem:[%s1 + $0x68] sm:$0xf]
  %v1516 = vld [vmem:[%s1 + $0x6c] sm:$0xf]
  %v1517 = vld [vmem:[%s1 + $0x70] sm:$0xf]
  %v1518 = vld [vmem:[%s1 + $0x74] sm:$0xf]
  %v1519 = vld [vmem:[%s1 + $0x78] sm:$0xf]
  %v1520 = vld [vmem:[%s1 + $0x7c] sm:$0xf]
  %v1521 = vld [vmem:[%s1 + $0x80] sm:$0xf]
  %v1522 = vld [vmem:[%s1 + $0x84] sm:$0xf]
  %v1523 = vld [vmem:[%s1 + $0x88] sm:$0xf]
  %v1524 = vld [vmem:[%s1 + $0x8c] sm:$0xf]
  %v1525 = vld [vmem:[%s1 + $0x90] sm:$0xf]
  %v1526 = vld [vmem:[%s1 + $0x94] sm:$0xf]
  %v1527 = vld [vmem:[%s1 + $0x98] sm:$0xf]
  %v1528 = vld [vmem:[%s1 + $0x9c] sm:$0xf]
  %v1529 = vld [vmem:[%s1 + $0xa0] sm:$0xf]
  %v1530 = vld [vmem:[%s1 + $0xa4] sm:$0xf]
  %v1531 = vld [vmem:[%s1 + $0xa8] sm:$0xf]
  %v1532 = vld [vmem:[%s1 + $0xac] sm:$0xf]
  %v1533 = vld [vmem:[%s1 + $0xb0] sm:$0xf]
  %v1534 = vld [vmem:[%s1 + $0xb4] sm:$0xf]
  %v1535 = vld [vmem:[%s1 + $0xb8] sm:$0xf]
  %v1536 = vld [vmem:[%s1 + $0xbc] sm:$0xf]
  %v1537 = vld [vmem:[%s1 + $0xc0] sm:$0xf]
  %v1538 = vld [vmem:[%s1 + $0xc4] sm:$0xf]
  %v1539 = vld [vmem:[%s1 + $0xc8] sm:$0xf]
  %v1540 = vld [vmem:[%s1 + $0xcc] sm:$0xf]
  %v1541 = vld [vmem:[%s1 + $0xd0] sm:$0xf]
  %v1542 = vld [vmem:[%s1 + $0xd4] sm:$0xf]
  %v1543 = vld [vmem:[%s1 + $0xd8] sm:$0xf]
  %v1544 = vld [vmem:[%s1 + $0xdc] sm:$0xf]
  %v1545 = vld [vmem:[%s1 + $0xe0] sm:$0xf]
  %v1546 = vld [vmem:[%s1 + $0xe4] sm:$0xf]
  %v1547 = vld [vmem:[%s1 + $0xe8] sm:$0xf]
  %v1548 = vld [vmem:[%s1 + $0xec] sm:$0xf]
  %v1549 = vld [vmem:[%s1 + $0xf0] sm:$0xf]
  %v1550 = vld [vmem:[%s1 + $0xf4] sm:$0xf]
  %v1551 = vld [vmem:[%s1 + $0xf8] sm:$0xf]
  %v1552 = vld [vmem:[%s1 + $0xfc] sm:$0xf]
  %v1553 = vld [vmem:[%s1 + $0x100] sm:$0xf]
  %v1554 = vld [vmem:[%s1 + $0x104] sm:$0xf]
  %v1555 = vld [vmem:[%s1 + $0x108] sm:$0xf]
  %v1556 = vld [vmem:[%s1 + $0x10c] sm:$0xf]
  %v1557 = vld [vmem:[%s1 + $0x110] sm:$0xf]
  %v1558 = vld [vmem:[%s1 + $0x114] sm:$0xf]
  %v1559 = vld [vmem:[%s1 + $0x118] sm:$0xf]
  %v1560 = vld [vmem:[%s1 + $0x11c] sm:$0xf]
  %v1561 = vld [vmem:[%s1 + $0x120] sm:$0xf]
  %v1562 = vld [vmem:[%s1 + $0x124] sm:$0xf]
  %v1563 = vld [vmem:[%s1 + $0x128] sm:$0xf]
  %v1564 = vld [vmem:[%s1 + $0x12c] sm:$0xf]
  %v1565 = vld [vmem:[%s1 + $0x130] sm:$0xf]
  %v1566 = vld [vmem:[%s1 + $0x134] sm:$0xf]
  %v1567 = vld [vmem:[%s1 + $0x138] sm:$0xf]
  %v1568 = vld [vmem:[%s1 + $0x13c] sm:$0xf]
  %v1569 = vld [vmem:[%s1 + $0x140] sm:$0xf]
  %v1570 = vld [vmem:[%s1 + $0x144] sm:$0xf]
  %v1571 = vld [vmem:[%s1 + $0x148] sm:$0xf]
  %v1572 = vld [vmem:[%s1 + $0x14c] sm:$0xf]
  %v1573 = vld [vmem:[%s1 + $0x150] sm:$0xf]
  %v1574 = vld [vmem:[%s1 + $0x154] sm:$0xf]
  %v1575 = vld [vmem:[%s1 + $0x158] sm:$0xf]
  %v1576 = vld [vmem:[%s1 + $0x15c] sm:$0xf]
  %v1577 = vld [vmem:[%s1 + $0x160] sm:$0xf]
  %v1578 = vld [vmem:[%s1 + $0x164] sm:$0xf]
  %v1579 = vld [vmem:[%s1 + $0x168] sm:$0xf]
  %v1580 = vld [vmem:[%s1 + $0x16c] sm:$0xf]
  %v1581 = vld [vmem:[%s1 + $0x170] sm:$0xf]
  %v1582 = vld [vmem:[%s1 + $0x174] sm:$0xf]
  %v1583 = vld [vmem:[%s1 + $0x178] sm:$0xf]
  %v1584 = vld [vmem:[%s1 + $0x17c] sm:$0xf]
  %v1585 = vld [vmem:[%s1 + $0x180] sm:$0xf]
  %v1586 = vld [vmem:[%s1 + $0x184] sm:$0xf]
  %v1587 = vld [vmem:[%s1 + $0x188] sm:$0xf]
  %v1588 = vld [vmem:[%s1 + $0x18c] sm:$0xf]
  %v1589 = vld [vmem:[%s1 + $0x190] sm:$0xf]
  %v1590 = vld [vmem:[%s1 + $0x194] sm:$0xf]
  %v1591 = vld [vmem:[%s1 + $0x198] sm:$0xf]
  %v1592 = vld [vmem:[%s1 + $0x19c] sm:$0xf]
  %v1593 = vld [vmem:[%s1 + $0x1a0] sm:$0xf]
  %v1594 = vld [vmem:[%s1 + $0x1a4] sm:$0xf]
  %v1595 = vld [vmem:[%s1 + $0x1a8] sm:$0xf]
  %v1596 = vld [vmem:[%s1 + $0x1ac] sm:$0xf]
  %v1597 = vld [vmem:[%s1 + $0x1b0] sm:$0xf]
  %v1598 = vld [vmem:[%s1 + $0x1b4] sm:$0xf]
  %v1599 = vld [vmem:[%s1 + $0x1b8] sm:$0xf]
  %v1600 = vld [vmem:[%s1 + $0x1bc] sm:$0xf]
  %v1601 = vld [vmem:[%s1 + $0x1c0] sm:$0xf]
  %v1602 = vld [vmem:[%s1 + $0x1c4] sm:$0xf]
  %v1603 = vld [vmem:[%s1 + $0x1c8] sm:$0xf]
  %v1604 = vld [vmem:[%s1 + $0x1cc] sm:$0xf]
  %v1605 = vld [vmem:[%s1 + $0x1d0] sm:$0xf]
  %v1606 = vld [vmem:[%s1 + $0x1d4] sm:$0xf]
  %v1607 = vld [vmem:[%s1 + $0x1d8] sm:$0xf]
  %v1608 = vld [vmem:[%s1 + $0x1dc] sm:$0xf]
  %v1609 = vld [vmem:[%s1 + $0x1e0] sm:$0xf]
  %v1610 = vld [vmem:[%s1 + $0x1e4] sm:$0xf]
  %v1611 = vld [vmem:[%s1 + $0x1e8] sm:$0xf]
  %v1612 = vld [vmem:[%s1 + $0x1ec] sm:$0xf]
  %v1613 = vld [vmem:[%s1 + $0x1f0] sm:$0xf]
  %v1614 = vld [vmem:[%s1 + $0x1f4] sm:$0xf]
  %v1615 = vld [vmem:[%s1 + $0x1f8] sm:$0xf]
  %v1616 = vld [vmem:[%s1 + $0x1fc] sm:$0xf]
  %v1617 = vld [vmem:[%s1 + $0x200] sm:$0xf]
  %v1618 = vld [vmem:[%s1 + $0x204] sm:$0xf]
  %v1619 = vld [vmem:[%s1 + $0x208] sm:$0xf]
  %v1620 = vld [vmem:[%s1 + $0x20c] sm:$0xf]
  %v1621 = vld [vmem:[%s1 + $0x210] sm:$0xf]
  %v1622 = vld [vmem:[%s1 + $0x214] sm:$0xf]
  %v1623 = vld [vmem:[%s1 + $0x218] sm:$0xf]
  %v1624 = vld [vmem:[%s1 + $0x21c] sm:$0xf]
  %v1625 = vld [vmem:[%s1 + $0x220] sm:$0xf]
  %v1626 = vld [vmem:[%s1 + $0x224] sm:$0xf]
  %v1627 = vld [vmem:[%s1 + $0x228] sm:$0xf]
  %v1628 = vld [vmem:[%s1 + $0x22c] sm:$0xf]
  %v1629 = vld [vmem:[%s1 + $0x230] sm:$0xf]
  %v1630 = vld [vmem:[%s1 + $0x234] sm:$0xf]
  %v1631 = vld [vmem:[%s1 + $0x238] sm:$0xf]
  %v1632 = vld [vmem:[%s1 + $0x23c] sm:$0xf]
  %v1777 = vunpack.c.l.b16 %v1489
  %v1778 = vunpack.c.l.b16 %v1490
  %v1779 = vunpack.c.l.b16 %v1491
  %v1780 = vunpack.c.l.b16 %v1492
  %v1781 = vunpack.c.l.b16 %v1493
  %v1782 = vunpack.c.l.b16 %v1494
  %v1783 = vunpack.c.l.b16 %v1495
  %v1784 = vunpack.c.l.b16 %v1496
  %v1785 = vunpack.c.l.b16 %v1497
  %v1786 = vunpack.c.l.b16 %v1498
  %v1787 = vunpack.c.l.b16 %v1499
  %v1788 = vunpack.c.l.b16 %v1500
  %v1789 = vunpack.c.l.b16 %v1501
  %v1790 = vunpack.c.l.b16 %v1502
  %v1791 = vunpack.c.l.b16 %v1503
  %v1792 = vunpack.c.l.b16 %v1504
  %v1793 = vunpack.c.l.b16 %v1505
  %v1794 = vunpack.c.l.b16 %v1506
  %v1795 = vunpack.c.l.b16 %v1507
  %v1796 = vunpack.c.l.b16 %v1508
  %v1797 = vunpack.c.l.b16 %v1509
  %v1798 = vunpack.c.l.b16 %v1510
  %v1799 = vunpack.c.l.b16 %v1511
  %v1800 = vunpack.c.l.b16 %v1512
  %v1801 = vunpack.c.l.b16 %v1513
  %v1802 = vunpack.c.l.b16 %v1514
  %v1803 = vunpack.c.l.b16 %v1515
  %v1804 = vunpack.c.l.b16 %v1516
  %v1805 = vunpack.c.l.b16 %v1517
  %v1806 = vunpack.c.l.b16 %v1518
  %v1807 = vunpack.c.l.b16 %v1519
  %v1808 = vunpack.c.l.b16 %v1520
  %v1809 = vunpack.c.l.b16 %v1521
  %v1810 = vunpack.c.l.b16 %v1522
  %v1811 = vunpack.c.l.b16 %v1523
  %v1812 = vunpack.c.l.b16 %v1524
  %v1813 = vunpack.c.l.b16 %v1525
  %v1814 = vunpack.c.l.b16 %v1526
  %v1815 = vunpack.c.l.b16 %v1527
  %v1816 = vunpack.c.l.b16 %v1528
  %v1817 = vunpack.c.l.b16 %v1529
  %v1818 = vunpack.c.l.b16 %v1530
  %v1819 = vunpack.c.l.b16 %v1531
  %v1820 = vunpack.c.l.b16 %v1532
  %v1821 = vunpack.c.l.b16 %v1533
  %v1822 = vunpack.c.l.b16 %v1534
  %v1823 = vunpack.c.l.b16 %v1535
  %v1824 = vunpack.c.l.b16 %v1536
  %v1825 = vunpack.c.l.b16 %v1537
  %v1826 = vunpack.c.l.b16 %v1538
  %v1827 = vunpack.c.l.b16 %v1539
  %v1828 = vunpack.c.l.b16 %v1540
  %v1829 = vunpack.c.l.b16 %v1541
  %v1830 = vunpack.c.l.b16 %v1542
  %v1831 = vunpack.c.l.b16 %v1543
  %v1832 = vunpack.c.l.b16 %v1544
  %v1833 = vunpack.c.l.b16 %v1545
  %v1834 = vunpack.c.l.b16 %v1546
  %v1835 = vunpack.c.l.b16 %v1547
  %v1836 = vunpack.c.l.b16 %v1548
  %v1837 = vunpack.c.l.b16 %v1549
  %v1838 = vunpack.c.l.b16 %v1550
  %v1839 = vunpack.c.l.b16 %v1551
  %v1840 = vunpack.c.l.b16 %v1552
  %v1841 = vunpack.c.l.b16 %v1553
  %v1842 = vunpack.c.l.b16 %v1554
  %v1843 = vunpack.c.l.b16 %v1555
  %v1844 = vunpack.c.l.b16 %v1556
  %v1845 = vunpack.c.l.b16 %v1557
  %v1846 = vunpack.c.l.b16 %v1558
  %v1847 = vunpack.c.l.b16 %v1559
  %v1848 = vunpack.c.l.b16 %v1560
  %v1849 = vunpack.c.l.b16 %v1561
  %v1850 = vunpack.c.l.b16 %v1562
  %v1851 = vunpack.c.l.b16 %v1563
  %v1852 = vunpack.c.l.b16 %v1564
  %v1853 = vunpack.c.l.b16 %v1565
  %v1854 = vunpack.c.l.b16 %v1566
  %v1855 = vunpack.c.l.b16 %v1567
  %v1856 = vunpack.c.l.b16 %v1568
  %v1857 = vunpack.c.l.b16 %v1569
  %v1858 = vunpack.c.l.b16 %v1570
  %v1859 = vunpack.c.l.b16 %v1571
  %v1860 = vunpack.c.l.b16 %v1572
  %v1861 = vunpack.c.l.b16 %v1573
  %v1862 = vunpack.c.l.b16 %v1574
  %v1863 = vunpack.c.l.b16 %v1575
  %v1864 = vunpack.c.l.b16 %v1576
  %v1865 = vunpack.c.l.b16 %v1577
  %v1866 = vunpack.c.l.b16 %v1578
  %v1867 = vunpack.c.l.b16 %v1579
  %v1868 = vunpack.c.l.b16 %v1580
  %v1869 = vunpack.c.l.b16 %v1581
  %v1870 = vunpack.c.l.b16 %v1582
  %v1871 = vunpack.c.l.b16 %v1583
  %v1872 = vunpack.c.l.b16 %v1584
  %v1873 = vunpack.c.l.b16 %v1585
  %v1874 = vunpack.c.l.b16 %v1586
  %v1875 = vunpack.c.l.b16 %v1587
  %v1876 = vunpack.c.l.b16 %v1588
  %v1877 = vunpack.c.l.b16 %v1589
  %v1878 = vunpack.c.l.b16 %v1590
  %v1879 = vunpack.c.l.b16 %v1591
  %v1880 = vunpack.c.l.b16 %v1592
  %v1881 = vunpack.c.l.b16 %v1593
  %v1882 = vunpack.c.l.b16 %v1594
  %v1883 = vunpack.c.l.b16 %v1595
  %v1884 = vunpack.c.l.b16 %v1596
  %v1885 = vunpack.c.l.b16 %v1597
  %v1886 = vunpack.c.l.b16 %v1598
  %v1887 = vunpack.c.l.b16 %v1599
  %v1888 = vunpack.c.l.b16 %v1600
  %v1889 = vunpack.c.l.b16 %v1601
  %v1890 = vunpack.c.l.b16 %v1602
  %v1891 = vunpack.c.l.b16 %v1603
  %v1892 = vunpack.c.l.b16 %v1604
  %v1893 = vunpack.c.l.b16 %v1605
  %v1894 = vunpack.c.l.b16 %v1606
  %v1895 = vunpack.c.l.b16 %v1607
  %v1896 = vunpack.c.l.b16 %v1608
  %v1897 = vunpack.c.l.b16 %v1609
  %v1898 = vunpack.c.l.b16 %v1610
  %v1899 = vunpack.c.l.b16 %v1611
  %v1900 = vunpack.c.l.b16 %v1612
  %v1901 = vunpack.c.l.b16 %v1613
  %v1902 = vunpack.c.l.b16 %v1614
  %v1903 = vunpack.c.l.b16 %v1615
  %v1904 = vunpack.c.l.b16 %v1616
  %v1905 = vunpack.c.l.b16 %v1617
  %v1906 = vunpack.c.l.b16 %v1618
  %v1907 = vunpack.c.l.b16 %v1619
  %v1908 = vunpack.c.l.b16 %v1620
  %v1909 = vunpack.c.l.b16 %v1621
  %v1910 = vunpack.c.l.b16 %v1622
  %v1911 = vunpack.c.l.b16 %v1623
  %v1912 = vunpack.c.l.b16 %v1624
  %v1913 = vunpack.c.l.b16 %v1625
  %v1914 = vunpack.c.l.b16 %v1626
  %v1915 = vunpack.c.l.b16 %v1627
  %v1916 = vunpack.c.l.b16 %v1628
  %v1917 = vunpack.c.l.b16 %v1629
  %v1918 = vunpack.c.l.b16 %v1630
  %v1919 = vunpack.c.l.b16 %v1631
  %v1920 = vunpack.c.l.b16 %v1632
  %v1921 = vpack.c.b16 %v1778, %v1777
  %v1922 = vpack.c.b16 %v1780, %v1779
  %v1923 = vpack.c.b16 %v1782, %v1781
  %v1924 = vpack.c.b16 %v1784, %v1783
  %v1925 = vpack.c.b16 %v1786, %v1785
  %v1926 = vpack.c.b16 %v1788, %v1787
  %v1927 = vpack.c.b16 %v1790, %v1789
  %v1928 = vpack.c.b16 %v1792, %v1791
  %v1929 = vpack.c.b16 %v1794, %v1793
  %v1930 = vpack.c.b16 %v1796, %v1795
  %v1931 = vpack.c.b16 %v1798, %v1797
  %v1932 = vpack.c.b16 %v1800, %v1799
  %v1933 = vpack.c.b16 %v1802, %v1801
  %v1934 = vpack.c.b16 %v1804, %v1803
  %v1935 = vpack.c.b16 %v1806, %v1805
  %v1936 = vpack.c.b16 %v1808, %v1807
  %v1937 = vpack.c.b16 %v1810, %v1809
  %v1938 = vpack.c.b16 %v1812, %v1811
  %v1939 = vpack.c.b16 %v1814, %v1813
  %v1940 = vpack.c.b16 %v1816, %v1815
  %v1941 = vpack.c.b16 %v1818, %v1817
  %v1942 = vpack.c.b16 %v1820, %v1819
  %v1943 = vpack.c.b16 %v1822, %v1821
  %v1944 = vpack.c.b16 %v1824, %v1823
  %v1945 = vpack.c.b16 %v1826, %v1825
  %v1946 = vpack.c.b16 %v1828, %v1827
  %v1947 = vpack.c.b16 %v1830, %v1829
  %v1948 = vpack.c.b16 %v1832, %v1831
  %v1949 = vpack.c.b16 %v1834, %v1833
  %v1950 = vpack.c.b16 %v1836, %v1835
  %v1951 = vpack.c.b16 %v1838, %v1837
  %v1952 = vpack.c.b16 %v1840, %v1839
  %v1953 = vpack.c.b16 %v1842, %v1841
  %v1954 = vpack.c.b16 %v1844, %v1843
  %v1955 = vpack.c.b16 %v1846, %v1845
  %v1956 = vpack.c.b16 %v1848, %v1847
  %v1957 = vpack.c.b16 %v1850, %v1849
  %v1958 = vpack.c.b16 %v1852, %v1851
  %v1959 = vpack.c.b16 %v1854, %v1853
  %v1960 = vpack.c.b16 %v1856, %v1855
  %v1961 = vpack.c.b16 %v1858, %v1857
  %v1962 = vpack.c.b16 %v1860, %v1859
  %v1963 = vpack.c.b16 %v1862, %v1861
  %v1964 = vpack.c.b16 %v1864, %v1863
  %v1965 = vpack.c.b16 %v1866, %v1865
  %v1966 = vpack.c.b16 %v1868, %v1867
  %v1967 = vpack.c.b16 %v1870, %v1869
  %v1968 = vpack.c.b16 %v1872, %v1871
  %v1969 = vpack.c.b16 %v1874, %v1873
  %v1970 = vpack.c.b16 %v1876, %v1875
  %v1971 = vpack.c.b16 %v1878, %v1877
  %v1972 = vpack.c.b16 %v1880, %v1879
  %v1973 = vpack.c.b16 %v1882, %v1881
  %v1974 = vpack.c.b16 %v1884, %v1883
  %v1975 = vpack.c.b16 %v1886, %v1885
  %v1976 = vpack.c.b16 %v1888, %v1887
  %v1977 = vpack.c.b16 %v1890, %v1889
  %v1978 = vpack.c.b16 %v1892, %v1891
  %v1979 = vpack.c.b16 %v1894, %v1893
  %v1980 = vpack.c.b16 %v1896, %v1895
  %v1981 = vpack.c.b16 %v1898, %v1897
  %v1982 = vpack.c.b16 %v1900, %v1899
  %v1983 = vpack.c.b16 %v1902, %v1901
  %v1984 = vpack.c.b16 %v1904, %v1903
  %v1985 = vpack.c.b16 %v1906, %v1905
  %v1986 = vpack.c.b16 %v1908, %v1907
  %v1987 = vpack.c.b16 %v1910, %v1909
  %v1988 = vpack.c.b16 %v1912, %v1911
  %v1989 = vpack.c.b16 %v1914, %v1913
  %v1990 = vpack.c.b16 %v1916, %v1915
  %v1991 = vpack.c.b16 %v1918, %v1917
  %v1992 = vpack.c.b16 %v1920, %v1919
  %2065 = vmatprep.subr.bf16.mxu0 0
  %2066 = vmatpush1.bf16.msra.mxu0 %v1921
  %2067 = vmatprep.subr.bf16.mxu0 0
  %2068 = vmatpush1.bf16.msra.mxu0 %v1922
  %2069 = vmatprep.subr.bf16.mxu0 0
  %2070 = vmatpush1.bf16.msra.mxu0 %v1923
  %2071 = vmatprep.subr.bf16.mxu0 0
  %2072 = vmatpush1.bf16.msra.mxu0 %v1924
  %2073 = vmatprep.subr.bf16.mxu0 0
  %2074 = vmatpush1.bf16.msra.mxu0 %v1925
  %2075 = vmatprep.subr.bf16.mxu0 0
  %2076 = vmatpush1.bf16.msra.mxu0 %v1926
  %2077 = vmatprep.subr.bf16.mxu0 0
  %2078 = vmatpush1.bf16.msra.mxu0 %v1927
  %2079 = vmatprep.subr.bf16.mxu0 0
  %2080 = vmatpush1.bf16.msra.mxu0 %v1928
  %2081 = vmatprep.subr.bf16.mxu0 0
  %2082 = vmatpush1.bf16.msra.mxu0 %v1929
  %2083 = vmatprep.subr.bf16.mxu0 0
  %2084 = vmatpush1.bf16.msra.mxu0 %v1930
  %2085 = vmatprep.subr.bf16.mxu0 0
  %2086 = vmatpush1.bf16.msra.mxu0 %v1931
  %2087 = vmatprep.subr.bf16.mxu0 0
  %2088 = vmatpush1.bf16.msra.mxu0 %v1932
  %2089 = vmatprep.subr.bf16.mxu0 0
  %2090 = vmatpush1.bf16.msra.mxu0 %v1933
  %2091 = vmatprep.subr.bf16.mxu0 0
  %2092 = vmatpush1.bf16.msra.mxu0 %v1934
  %2093 = vmatprep.subr.bf16.mxu0 0
  %2094 = vmatpush1.bf16.msra.mxu0 %v1935
  %2095 = vmatprep.subr.bf16.mxu0 0
  %2096 = vmatpush1.bf16.msra.mxu0 %v1936
  %2097 = vmatprep.mubr.bf16.mxu0 %v1217
  %2098 = vmatmul.mubr.bf16.gmra.mrb[0].mxu0 %v1185
  %v2099 = vpop.f32.mrb[0].mxu0
  %v2100 = vadd.f32 0.0, %v2099
  %v2101 = vpop.f32.mrb[0].mxu0
  %v2102 = vpop.f32.mrb[0].mxu0
  %v2103 = vadd.f32 0.0, %v2102
  %v2104 = vpop.f32.mrb[0].mxu0
  %2105 = vmatprep.mubr.bf16.mxu0 %v1218
  %2106 = vmatmul.mubr.bf16.gmra.mrb[0].mxu0 %v1186
  %v2107 = vpop.f32.mrb[0].mxu0
  %v2108 = vadd.f32 0.0, %v2107
  %v2109 = vpop.f32.mrb[0].mxu0
  %v2110 = vpop.f32.mrb[0].mxu0
  %v2111 = vadd.f32 0.0, %v2110
  %v2112 = vpop.f32.mrb[0].mxu0
  %2113 = vmatprep.mubr.bf16.mxu0 %v1219
  %2114 = vmatmul.mubr.bf16.gmra.mrb[0].mxu0 %v1187
  %v2115 = vpop.f32.mrb[0].mxu0
  %v2116 = vadd.f32 0.0, %v2115
  %v2117 = vpop.f32.mrb[0].mxu0
  %v2118 = vpop.f32.mrb[0].mxu0
  %v2119 = vadd.f32 0.0, %v2118
  %v2120 = vpop.f32.mrb[0].mxu0
  %2121 = vmatprep.mubr.bf16.mxu0 %v1220
  %2122 = vmatmul.mubr.bf16.gmra.mrb[0].mxu0 %v1188
  %v2123 = vpop.f32.mrb[0].mxu0
  %v2124 = vadd.f32 0.0, %v2123
  %v2125 = vpop.f32.mrb[0].mxu0
  %v2126 = vpop.f32.mrb[0].mxu0
  %v2127 = vadd.f32 0.0, %v2126
  %v2128 = vpop.f32.mrb[0].mxu0
  %2129 = vmatprep.mubr.bf16.mxu0 %v1221
  %2130 = vmatmul.mubr.bf16.gmra.mrb[0].mxu0 %v1189
  %v2131 = vpop.f32.mrb[0].mxu0
  %v2132 = vadd.f32 0.0, %v2131
  %v2133 = vpop.f32.mrb[0].mxu0
  %v2134 = vpop.f32.mrb[0].mxu0
  %v2135 = vadd.f32 0.0, %v2134
  %v2136 = vpop.f32.mrb[0].mxu0
  %2137 = vmatprep.mubr.bf16.mxu0 %v1222
  %2138 = vmatmul.mubr.bf16.gmra.mrb[0].mxu0 %v1190
  %v2139 = vpop.f32.mrb[0].mxu0
  %v2140 = vadd.f32 0.0, %v2139
  %v2141 = vpop.f32.mrb[0].mxu0
  %v2142 = vpop.f32.mrb[0].mxu0
  %v2143 = vadd.f32 0.0, %v2142
  %v2144 = vpop.f32.mrb[0].mxu0
  %2145 = vmatprep.mubr.bf16.mxu0 %v1223
  %2146 = vmatmul.mubr.bf16.gmra.mrb[0].mxu0 %v1191
  %v2147 = vpop.f32.mrb[0].mxu0
  %v2148 = vadd.f32 0.0, %v2147
  %v2149 = vpop.f32.mrb[0].mxu0
  %v2150 = vpop.f32.mrb[0].mxu0
  %v2151 = vadd.f32 0.0, %v2150
  %v2152 = vpop.f32.mrb[0].mxu0
  %2153 = vmatprep.mubr.bf16.mxu0 %v1224
  %2154 = vmatmul.mubr.bf16.gmra.mrb[0].mxu0 %v1192
  %v2155 = vpop.f32.mrb[0].mxu0
  %v2156 = vadd.f32 0.0, %v2155
  %v2157 = vpop.f32.mrb[0].mxu0
  %v2158 = vpop.f32.mrb[0].mxu0
  %v2159 = vadd.f32 0.0, %v2158
  %v2160 = vpop.f32.mrb[0].mxu0
  %2161 = vdwg.mxu0
  %2162 = vmatprep.subr.bf16.mxu0 0
  %2163 = vmatpush1.bf16.msra.mxu0 %v1937
  %2164 = vmatprep.subr.bf16.mxu0 0
  %2165 = vmatpush1.bf16.msra.mxu0 %v1938
  %2166 = vmatprep.subr.bf16.mxu0 0
  %2167 = vmatpush1.bf16.msra.mxu0 %v1939
  %2168 = vmatprep.subr.bf16.mxu0 0
  %2169 = vmatpush1.bf16.msra.mxu0 %v1940
  %2170 = vmatprep.subr.bf16.mxu0 0
  %2171 = vmatpush1.bf16.msra.mxu0 %v1941
  %2172 = vmatprep.subr.bf16.mxu0 0
  %2173 = vmatpush1.bf16.msra.mxu0 %v1942
  %2174 = vmatprep.subr.bf16.mxu0 0
  %2175 = vmatpush1.bf16.msra.mxu0 %v1943
  %2176 = vmatprep.subr.bf16.mxu0 0
  %2177 = vmatpush1.bf16.msra.mxu0 %v1944
  %2178 = vmatprep.subr.bf16.mxu0 0
  %2179 = vmatpush1.bf16.msra.mxu0 %v1945
  %2180 = vmatprep.subr.bf16.mxu0 0
  %2181 = vmatpush1.bf16.msra.mxu0 %v1946
  %2182 = vmatprep.subr.bf16.mxu0 0
  %2183 = vmatpush1.bf16.msra.mxu0 %v1947
  %2184 = vmatprep.subr.bf16.mxu0 0
  %2185 = vmatpush1.bf16.msra.mxu0 %v1948
  %2186 = vmatprep.subr.bf16.mxu0 0
  %2187 = vmatpush1.bf16.msra.mxu0 %v1949
  %2188 = vmatprep.subr.bf16.mxu0 0
  %2189 = vmatpush1.bf16.msra.mxu0 %v1950
  %2190 = vmatprep.subr.bf16.mxu0 0
  %2191 = vmatpush1.bf16.msra.mxu0 %v1951
  %2192 = vmatprep.subr.bf16.mxu0 0
  %2193 = vmatpush1.bf16.msra.mxu0 %v1952
  %2194 = vmatprep.mubr.bf16.mxu0 %v1297
  %2195 = vmatmul.mubr.bf16.gmra.mrb[0].mxu0 %v1249
  %v2196 = vpop.f32.mrb[0].mxu0
  %v2197 = vadd.f32 %v2100, %v2196
  %v2198 = vpop.f32.mrb[0].mxu0
  %v2199 = vpop.f32.mrb[0].mxu0
  %v2200 = vadd.f32 %v2103, %v2199
  %v2201 = vpop.f32.mrb[0].mxu0
  %2202 = vmatprep.mubr.bf16.mxu0 %v1298
  %2203 = vmatmul.mubr.bf16.gmra.mrb[0].mxu0 %v1250
  %v2204 = vpop.f32.mrb[0].mxu0
  %v2205 = vadd.f32 %v2108, %v2204
  %v2206 = vpop.f32.mrb[0].mxu0
  %v2207 = vpop.f32.mrb[0].mxu0
  %v2208 = vadd.f32 %v2111, %v2207
  %v2209 = vpop.f32.mrb[0].mxu0
  %2210 = vmatprep.mubr.bf16.mxu0 %v1299
  %2211 = vmatmul.mubr.bf16.gmra.mrb[0].mxu0 %v1251
  %v2212 = vpop.f32.mrb[0].mxu0
  %v2213 = vadd.f32 %v2116, %v2212
  %v2214 = vpop.f32.mrb[0].mxu0
  %v2215 = vpop.f32.mrb[0].mxu0
  %v2216 = vadd.f32 %v2119, %v2215
  %v2217 = vpop.f32.mrb[0].mxu0
  %2218 = vmatprep.mubr.bf16.mxu0 %v1300
  %2219 = vmatmul.mubr.bf16.gmra.mrb[0].mxu0 %v1252
  %v2220 = vpop.f32.mrb[0].mxu0
  %v2221 = vadd.f32 %v2124, %v2220
  %v2222 = vpop.f32.mrb[0].mxu0
  %v2223 = vpop.f32.mrb[0].mxu0
  %v2224 = vadd.f32 %v2127, %v2223
  %v2225 = vpop.f32.mrb[0].mxu0
  %2226 = vmatprep.mubr.bf16.mxu0 %v1301
  %2227 = vmatmul.mubr.bf16.gmra.mrb[0].mxu0 %v1253
  %v2228 = vpop.f32.mrb[0].mxu0
  %v2229 = vadd.f32 %v2132, %v2228
  %v2230 = vpop.f32.mrb[0].mxu0
  %v2231 = vpop.f32.mrb[0].mxu0
  %v2232 = vadd.f32 %v2135, %v2231
  %v2233 = vpop.f32.mrb[0].mxu0
  %2234 = vmatprep.mubr.bf16.mxu0 %v1302
  %2235 = vmatmul.mubr.bf16.gmra.mrb[0].mxu0 %v1254
  %v2236 = vpop.f32.mrb[0].mxu0
  %v2237 = vadd.f32 %v2140, %v2236
  %v2238 = vpop.f32.mrb[0].mxu0
  %v2239 = vpop.f32.mrb[0].mxu0
  %v2240 = vadd.f32 %v2143, %v2239
  %v2241 = vpop.f32.mrb[0].mxu0
  %2242 = vmatprep.mubr.bf16.mxu0 %v1303
  %2243 = vmatmul.mubr.bf16.gmra.mrb[0].mxu0 %v1255
  %v2244 = vpop.f32.mrb[0].mxu0
  %v2245 = vadd.f32 %v2148, %v2244
  %v2246 = vpop.f32.mrb[0].mxu0
  %v2247 = vpop.f32.mrb[0].mxu0
  %v2248 = vadd.f32 %v2151, %v2247
  %v2249 = vpop.f32.mrb[0].mxu0
  %2250 = vmatprep.mubr.bf16.mxu0 %v1304
  %2251 = vmatmul.mubr.bf16.gmra.mrb[0].mxu0 %v1256
  %v2252 = vpop.f32.mrb[0].mxu0
  %v2253 = vadd.f32 %v2156, %v2252
  %v2254 = vpop.f32.mrb[0].mxu0
  %v2255 = vpop.f32.mrb[0].mxu0
  %v2256 = vadd.f32 %v2159, %v2255
  %v2257 = vpop.f32.mrb[0].mxu0
  %2258 = vdwg.mxu0
  %2259 = vmatprep.subr.bf16.mxu0 0
  %2260 = vmatpush1.bf16.msra.mxu0 %v1953
  %2261 = vmatprep.subr.bf16.mxu0 0
  %2262 = vmatpush1.bf16.msra.mxu0 %v1954
  %2263 = vmatprep.subr.bf16.mxu0 0
  %2264 = vmatpush1.bf16.msra.mxu0 %v1955
  %2265 = vmatprep.subr.bf16.mxu0 0
  %2266 = vmatpush1.bf16.msra.mxu0 %v1956
  %2267 = vmatprep.subr.bf16.mxu0 0
  %2268 = vmatpush1.bf16.msra.mxu0 %v1957
  %2269 = vmatprep.subr.bf16.mxu0 0
  %2270 = vmatpush1.bf16.msra.mxu0 %v1958
  %2271 = vmatprep.subr.bf16.mxu0 0
  %2272 = vmatpush1.bf16.msra.mxu0 %v1959
  %2273 = vmatprep.subr.bf16.mxu0 0
  %2274 = vmatpush1.bf16.msra.mxu0 %v1960
  %2275 = vmatprep.subr.bf16.mxu0 0
  %2276 = vmatpush1.bf16.msra.mxu0 %v1961
  %2277 = vmatprep.subr.bf16.mxu0 0
  %2278 = vmatpush1.bf16.msra.mxu0 %v1962
  %2279 = vmatprep.subr.bf16.mxu0 0
  %2280 = vmatpush1.bf16.msra.mxu0 %v1963
  %2281 = vmatprep.subr.bf16.mxu0 0
  %2282 = vmatpush1.bf16.msra.mxu0 %v1964
  %2283 = vmatprep.subr.bf16.mxu0 0
  %2284 = vmatpush1.bf16.msra.mxu0 %v1965
  %2285 = vmatprep.subr.bf16.mxu0 0
  %2286 = vmatpush1.bf16.msra.mxu0 %v1966
  %2287 = vmatprep.subr.bf16.mxu0 0
  %2288 = vmatpush1.bf16.msra.mxu0 %v1967
  %2289 = vmatprep.subr.bf16.mxu0 0
  %2290 = vmatpush1.bf16.msra.mxu0 %v1968
  %2291 = vmatprep.mubr.bf16.mxu0 %v1361
  %2292 = vmatmul.mubr.bf16.gmra.mrb[0].mxu0 %v1329
  %v2293 = vpop.f32.mrb[0].mxu0
  %v2294 = vadd.f32 %v2197, %v2293
  %v2295 = vpop.f32.mrb[0].mxu0
  %v2296 = vpop.f32.mrb[0].mxu0
  %v2297 = vadd.f32 %v2200, %v2296
  %v2298 = vpop.f32.mrb[0].mxu0
  %2299 = vmatprep.mubr.bf16.mxu0 %v1362
  %2300 = vmatmul.mubr.bf16.gmra.mrb[0].mxu0 %v1330
  %v2301 = vpop.f32.mrb[0].mxu0
  %v2302 = vadd.f32 %v2205, %v2301
  %v2303 = vpop.f32.mrb[0].mxu0
  %v2304 = vpop.f32.mrb[0].mxu0
  %v2305 = vadd.f32 %v2208, %v2304
  %v2306 = vpop.f32.mrb[0].mxu0
  %2307 = vmatprep.mubr.bf16.mxu0 %v1363
  %2308 = vmatmul.mubr.bf16.gmra.mrb[0].mxu0 %v1331
  %v2309 = vpop.f32.mrb[0].mxu0
  %v2310 = vadd.f32 %v2213, %v2309
  %v2311 = vpop.f32.mrb[0].mxu0
  %v2312 = vpop.f32.mrb[0].mxu0
  %v2313 = vadd.f32 %v2216, %v2312
  %v2314 = vpop.f32.mrb[0].mxu0
  %2315 = vmatprep.mubr.bf16.mxu0 %v1364
  %2316 = vmatmul.mubr.bf16.gmra.mrb[0].mxu0 %v1332
  %v2317 = vpop.f32.mrb[0].mxu0
  %v2318 = vadd.f32 %v2221, %v2317
  %v2319 = vpop.f32.mrb[0].mxu0
  %v2320 = vpop.f32.mrb[0].mxu0
  %v2321 = vadd.f32 %v2224, %v2320
  %v2322 = vpop.f32.mrb[0].mxu0
  %2323 = vmatprep.mubr.bf16.mxu0 %v1365
  %2324 = vmatmul.mubr.bf16.gmra.mrb[0].mxu0 %v1333
  %v2325 = vpop.f32.mrb[0].mxu0
  %v2326 = vadd.f32 %v2229, %v2325
  %v2327 = vpop.f32.mrb[0].mxu0
  %v2328 = vpop.f32.mrb[0].mxu0
  %v2329 = vadd.f32 %v2232, %v2328
  %v2330 = vpop.f32.mrb[0].mxu0
  %2331 = vmatprep.mubr.bf16.mxu0 %v1366
  %2332 = vmatmul.mubr.bf16.gmra.mrb[0].mxu0 %v1334
  %v2333 = vpop.f32.mrb[0].mxu0
  %v2334 = vadd.f32 %v2237, %v2333
  %v2335 = vpop.f32.mrb[0].mxu0
  %v2336 = vpop.f32.mrb[0].mxu0
  %v2337 = vadd.f32 %v2240, %v2336
  %v2338 = vpop.f32.mrb[0].mxu0
  %2339 = vmatprep.mubr.bf16.mxu0 %v1367
  %2340 = vmatmul.mubr.bf16.gmra.mrb[0].mxu0 %v1335
  %v2341 = vpop.f32.mrb[0].mxu0
  %v2342 = vadd.f32 %v2245, %v2341
  %v2343 = vpop.f32.mrb[0].mxu0
  %v2344 = vpop.f32.mrb[0].mxu0
  %v2345 = vadd.f32 %v2248, %v2344
  %v2346 = vpop.f32.mrb[0].mxu0
  %2347 = vmatprep.mubr.bf16.mxu0 %v1368
  %2348 = vmatmul.mubr.bf16.gmra.mrb[0].mxu0 %v1336
  %v2349 = vpop.f32.mrb[0].mxu0
  %v2350 = vadd.f32 %v2253, %v2349
  %v2351 = vpop.f32.mrb[0].mxu0
  %v2352 = vpop.f32.mrb[0].mxu0
  %v2353 = vadd.f32 %v2256, %v2352
  %v2354 = vpop.f32.mrb[0].mxu0
  %2355 = vdwg.mxu0
  %2356 = vmatprep.subr.bf16.mxu0 0
  %2357 = vmatpush1.bf16.msra.mxu0 %v1969
  %2358 = vmatprep.subr.bf16.mxu0 0
  %2359 = vmatpush1.bf16.msra.mxu0 %v1970
  %2360 = vmatprep.subr.bf16.mxu0 0
  %2361 = vmatpush1.bf16.msra.mxu0 %v1971
  %2362 = vmatprep.subr.bf16.mxu0 0
  %2363 = vmatpush1.bf16.msra.mxu0 %v1972
  %2364 = vmatprep.subr.bf16.mxu0 0
  %2365 = vmatpush1.bf16.msra.mxu0 %v1973
  %2366 = vmatprep.subr.bf16.mxu0 0
  %2367 = vmatpush1.bf16.msra.mxu0 %v1974
  %2368 = vmatprep.subr.bf16.mxu0 0
  %2369 = vmatpush1.bf16.msra.mxu0 %v1975
  %2370 = vmatprep.subr.bf16.mxu0 0
  %2371 = vmatpush1.bf16.msra.mxu0 %v1976
  %2372 = vmatprep.subr.bf16.mxu0 0
  %2373 = vmatpush1.bf16.msra.mxu0 %v1977
  %2374 = vmatprep.subr.bf16.mxu0 0
  %2375 = vmatpush1.bf16.msra.mxu0 %v1978
  %2376 = vmatprep.subr.bf16.mxu0 0
  %2377 = vmatpush1.bf16.msra.mxu0 %v1979
  %2378 = vmatprep.subr.bf16.mxu0 0
  %2379 = vmatpush1.bf16.msra.mxu0 %v1980
  %2380 = vmatprep.subr.bf16.mxu0 0
  %2381 = vmatpush1.bf16.msra.mxu0 %v1981
  %2382 = vmatprep.subr.bf16.mxu0 0
  %2383 = vmatpush1.bf16.msra.mxu0 %v1982
  %2384 = vmatprep.subr.bf16.mxu0 0
  %2385 = vmatpush1.bf16.msra.mxu0 %v1983
  %2386 = vmatprep.subr.bf16.mxu0 0
  %2387 = vmatpush1.bf16.msra.mxu0 %v1984
  %2388 = vmatprep.mubr.bf16.mxu0 %v1441
  %2389 = vmatmul.mubr.bf16.gmra.mrb[0].mxu0 %v1409
  %v2390 = vpop.f32.mrb[0].mxu0
  %v2391 = vadd.f32 %v2294, %v2390
  %v2392 = vpop.f32.mrb[0].mxu0
  %v2393 = vpop.f32.mrb[0].mxu0
  %v2394 = vadd.f32 %v2297, %v2393
  %v2395 = vpop.f32.mrb[0].mxu0
  %2396 = vmatprep.mubr.bf16.mxu0 %v1442
  %2397 = vmatmul.mubr.bf16.gmra.mrb[0].mxu0 %v1410
  %v2398 = vpop.f32.mrb[0].mxu0
  %v2399 = vadd.f32 %v2302, %v2398
  %v2400 = vpop.f32.mrb[0].mxu0
  %v2401 = vpop.f32.mrb[0].mxu0
  %v2402 = vadd.f32 %v2305, %v2401
  %v2403 = vpop.f32.mrb[0].mxu0
  %2404 = vmatprep.mubr.bf16.mxu0 %v1443
  %2405 = vmatmul.mubr.bf16.gmra.mrb[0].mxu0 %v1411
  %v2406 = vpop.f32.mrb[0].mxu0
  %v2407 = vadd.f32 %v2310, %v2406
  %v2408 = vpop.f32.mrb[0].mxu0
  %v2409 = vpop.f32.mrb[0].mxu0
  %v2410 = vadd.f32 %v2313, %v2409
  %v2411 = vpop.f32.mrb[0].mxu0
  %2412 = vmatprep.mubr.bf16.mxu0 %v1444
  %2413 = vmatmul.mubr.bf16.gmra.mrb[0].mxu0 %v1412
  %v2414 = vpop.f32.mrb[0].mxu0
  %v2415 = vadd.f32 %v2318, %v2414
  %v2416 = vpop.f32.mrb[0].mxu0
  %v2417 = vpop.f32.mrb[0].mxu0
  %v2418 = vadd.f32 %v2321, %v2417
  %v2419 = vpop.f32.mrb[0].mxu0
  %2420 = vmatprep.mubr.bf16.mxu0 %v1445
  %2421 = vmatmul.mubr.bf16.gmra.mrb[0].mxu0 %v1413
  %v2422 = vpop.f32.mrb[0].mxu0
  %v2423 = vadd.f32 %v2326, %v2422
  %v2424 = vpop.f32.mrb[0].mxu0
  %v2425 = vpop.f32.mrb[0].mxu0
  %v2426 = vadd.f32 %v2329, %v2425
  %v2427 = vpop.f32.mrb[0].mxu0
  %2428 = vmatprep.mubr.bf16.mxu0 %v1446
  %2429 = vmatmul.mubr.bf16.gmra.mrb[0].mxu0 %v1414
  %v2430 = vpop.f32.mrb[0].mxu0
  %v2431 = vadd.f32 %v2334, %v2430
  %v2432 = vpop.f32.mrb[0].mxu0
  %v2433 = vpop.f32.mrb[0].mxu0
  %v2434 = vadd.f32 %v2337, %v2433
  %v2435 = vpop.f32.mrb[0].mxu0
  %2436 = vmatprep.mubr.bf16.mxu0 %v1447
  %2437 = vmatmul.mubr.bf16.gmra.mrb[0].mxu0 %v1415
  %v2438 = vpop.f32.mrb[0].mxu0
  %v2439 = vadd.f32 %v2342, %v2438
  %v2440 = vpop.f32.mrb[0].mxu0
  %v2441 = vpop.f32.mrb[0].mxu0
  %v2442 = vadd.f32 %v2345, %v2441
  %v2443 = vpop.f32.mrb[0].mxu0
  %2444 = vmatprep.mubr.bf16.mxu0 %v1448
  %2445 = vmatmul.mubr.bf16.gmra.mrb[0].mxu0 %v1416
  %v2446 = vpop.f32.mrb[0].mxu0
  %v2447 = vadd.f32 %v2350, %v2446
  %v2448 = vpop.f32.mrb[0].mxu0
  %v2449 = vpop.f32.mrb[0].mxu0
  %v2450 = vadd.f32 %v2353, %v2449
  %v2451 = vpop.f32.mrb[0].mxu0
  %2452 = vdwg.mxu0
  %2453 = vmatprep.subr.bf16.mxu0 0
  %2454 = vmatpush1.bf16.msra.mxu0 %v1985
  %2455 = vmatprep.subr.bf16.mxu0 0
  %2456 = vmatpush1.bf16.msra.mxu0 %v1986
  %2457 = vmatprep.subr.bf16.mxu0 0
  %2458 = vmatpush1.bf16.msra.mxu0 %v1987
  %2459 = vmatprep.subr.bf16.mxu0 0
  %2460 = vmatpush1.bf16.msra.mxu0 %v1988
  %2461 = vmatprep.subr.bf16.mxu0 0
  %2462 = vmatpush1.bf16.msra.mxu0 %v1989
  %2463 = vmatprep.subr.bf16.mxu0 0
  %2464 = vmatpush1.bf16.msra.mxu0 %v1990
  %2465 = vmatprep.subr.bf16.mxu0 0
  %2466 = vmatpush1.bf16.msra.mxu0 %v1991
  %2467 = vmatprep.subr.bf16.mxu0 0
  %2468 = vmatpush1.bf16.msra.mxu0 %v1992
  %2469 = vmatprep.subr.bf16.mxu0 0
  %2470 = vmatpush1.bf16.msra.mxu0 0
  %2471 = vmatprep.subr.bf16.mxu0 0
  %2472 = vmatpush1.bf16.msra.mxu0 0
  %2473 = vmatprep.subr.bf16.mxu0 0
  %2474 = vmatpush1.bf16.msra.mxu0 0
  %2475 = vmatprep.subr.bf16.mxu0 0
  %2476 = vmatpush1.bf16.msra.mxu0 0
  %2477 = vmatprep.subr.bf16.mxu0 0
  %2478 = vmatpush1.bf16.msra.mxu0 0
  %2479 = vmatprep.subr.bf16.mxu0 0
  %2480 = vmatpush1.bf16.msra.mxu0 0
  %2481 = vmatprep.subr.bf16.mxu0 0
  %2482 = vmatpush1.bf16.msra.mxu0 0
  %2483 = vmatprep.subr.bf16.mxu0 0
  %2484 = vmatpush1.bf16.msra.mxu0 0
  %2485 = vmatprep.mubr.bf16.mxu0 0
  %2486 = vmatmul.mubr.bf16.gmra.mrb[0].mxu0 %v1473
  %v2487 = vpop.f32.mrb[0].mxu0
  %v2488 = vadd.f32 %v2391, %v2487
  %v2489 = vpop.f32.mrb[0].mxu0
  %v2490 = vpop.f32.mrb[0].mxu0
  %v2491 = vadd.f32 %v2394, %v2490
  %v2492 = vpop.f32.mrb[0].mxu0
  %2493 = vmatprep.mubr.bf16.mxu0 0
  %2494 = vmatmul.mubr.bf16.gmra.mrb[0].mxu0 %v1474
  %v2495 = vpop.f32.mrb[0].mxu0
  %v2496 = vadd.f32 %v2399, %v2495
  %v2497 = vpop.f32.mrb[0].mxu0
  %v2498 = vpop.f32.mrb[0].mxu0
  %v2499 = vadd.f32 %v2402, %v2498
  %v2500 = vpop.f32.mrb[0].mxu0
  %2501 = vmatprep.mubr.bf16.mxu0 0
  %2502 = vmatmul.mubr.bf16.gmra.mrb[0].mxu0 %v1475
  %v2503 = vpop.f32.mrb[0].mxu0
  %v2504 = vadd.f32 %v2407, %v2503
  %v2505 = vpop.f32.mrb[0].mxu0
  %v2506 = vpop.f32.mrb[0].mxu0
  %v2507 = vadd.f32 %v2410, %v2506
  %v2508 = vpop.f32.mrb[0].mxu0
  %2509 = vmatprep.mubr.bf16.mxu0 0
  %2510 = vmatmul.mubr.bf16.gmra.mrb[0].mxu0 %v1476
  %v2511 = vpop.f32.mrb[0].mxu0
  %v2512 = vadd.f32 %v2415, %v2511
  %v2513 = vpop.f32.mrb[0].mxu0
  %v2514 = vpop.f32.mrb[0].mxu0
  %v2515 = vadd.f32 %v2418, %v2514
  %v2516 = vpop.f32.mrb[0].mxu0
  %2517 = vmatprep.mubr.bf16.mxu0 0
  %2518 = vmatmul.mubr.bf16.gmra.mrb[0].mxu0 %v1477
  %v2519 = vpop.f32.mrb[0].mxu0
  %v2520 = vadd.f32 %v2423, %v2519
  %v2521 = vpop.f32.mrb[0].mxu0
  %v2522 = vpop.f32.mrb[0].mxu0
  %v2523 = vadd.f32 %v2426, %v2522
  %v2524 = vpop.f32.mrb[0].mxu0
  %2525 = vmatprep.mubr.bf16.mxu0 0
  %2526 = vmatmul.mubr.bf16.gmra.mrb[0].mxu0 %v1478
  %v2527 = vpop.f32.mrb[0].mxu0
  %v2528 = vadd.f32 %v2431, %v2527
  %v2529 = vpop.f32.mrb[0].mxu0
  %v2530 = vpop.f32.mrb[0].mxu0
  %v2531 = vadd.f32 %v2434, %v2530
  %v2532 = vpop.f32.mrb[0].mxu0
  %2533 = vmatprep.mubr.bf16.mxu0 0
  %2534 = vmatmul.mubr.bf16.gmra.mrb[0].mxu0 %v1479
  %v2535 = vpop.f32.mrb[0].mxu0
  %v2536 = vadd.f32 %v2439, %v2535
  %v2537 = vpop.f32.mrb[0].mxu0
  %v2538 = vpop.f32.mrb[0].mxu0
  %v2539 = vadd.f32 %v2442, %v2538
  %v2540 = vpop.f32.mrb[0].mxu0
  %2541 = vmatprep.mubr.bf16.mxu0 0
  %2542 = vmatmul.mubr.bf16.gmra.mrb[0].mxu0 %v1480
  %v2543 = vpop.f32.mrb[0].mxu0
  %v2544 = vadd.f32 %v2447, %v2543
  %v2545 = vpop.f32.mrb[0].mxu0
  %v2546 = vpop.f32.mrb[0].mxu0
  %v2547 = vadd.f32 %v2450, %v2546
  %v2548 = vpop.f32.mrb[0].mxu0
  %2549 = vdwg.mxu0
  %v2550 = vld [vmem:[#allocation2] sm:$0xff]
  %v2551 = vld [vmem:[#allocation2 + $0x8] sm:$0xff]
  %v2552 = vld [vmem:[#allocation2 + $0x10] sm:$0xff]
  %v2553 = vld [vmem:[#allocation2 + $0x18] sm:$0xff]
  %v2554 = vld [vmem:[#allocation2 + $0x20] sm:$0xff]
  %v2555 = vld [vmem:[#allocation2 + $0x28] sm:$0xff]
  %v2556 = vld [vmem:[#allocation2 + $0x30] sm:$0xff]
  %v2557 = vld [vmem:[#allocation2 + $0x38] sm:$0xff]
  %v2558 = vld [vmem:[#allocation2 + $0x40] sm:$0xff]
  %v2559 = vld [vmem:[#allocation2 + $0x48] sm:$0xff]
  %v2560 = vld [vmem:[#allocation2 + $0x50] sm:$0xff]
  %v2561 = vld [vmem:[#allocation2 + $0x58] sm:$0xff]
  %v2562 = vld [vmem:[#allocation2 + $0x60] sm:$0xff]
  %v2563 = vld [vmem:[#allocation2 + $0x68] sm:$0xff]
  %v2564 = vld [vmem:[#allocation2 + $0x70] sm:$0xff]
  %v2565 = vld [vmem:[#allocation2 + $0x78] sm:$0xff]
  %v2566 = vadd.f32 %v2550, %v2488
  %v2567 = vadd.f32 %v2551, %v2491
  %v2568 = vadd.f32 %v2552, %v2496
  %v2569 = vadd.f32 %v2553, %v2499
  %v2570 = vadd.f32 %v2554, %v2504
  %v2571 = vadd.f32 %v2555, %v2507
  %v2572 = vadd.f32 %v2556, %v2512
  %v2573 = vadd.f32 %v2557, %v2515
  %v2574 = vadd.f32 %v2558, %v2520
  %v2575 = vadd.f32 %v2559, %v2523
  %v2576 = vadd.f32 %v2560, %v2528
  %v2577 = vadd.f32 %v2561, %v2531
  %v2578 = vadd.f32 %v2562, %v2536
  %v2579 = vadd.f32 %v2563, %v2539
  %v2580 = vadd.f32 %v2564, %v2544
  %v2581 = vadd.f32 %v2565, %v2547
  %2582 = vst [vmem:[#allocation2] sm:$0xff] %v2566
  %2583 = vst [vmem:[#allocation2 + $0x8] sm:$0xff] %v2567
  %2584 = vst [vmem:[#allocation2 + $0x10] sm:$0xff] %v2568
  %2585 = vst [vmem:[#allocation2 + $0x18] sm:$0xff] %v2569
  %2586 = vst [vmem:[#allocation2 + $0x20] sm:$0xff] %v2570
  %2587 = vst [vmem:[#allocation2 + $0x28] sm:$0xff] %v2571
  %2588 = vst [vmem:[#allocation2 + $0x30] sm:$0xff] %v2572
  %2589 = vst [vmem:[#allocation2 + $0x38] sm:$0xff] %v2573
  %2590 = vst [vmem:[#allocation2 + $0x40] sm:$0xff] %v2574
  %2591 = vst [vmem:[#allocation2 + $0x48] sm:$0xff] %v2575
  %2592 = vst [vmem:[#allocation2 + $0x50] sm:$0xff] %v2576
  %2593 = vst [vmem:[#allocation2 + $0x58] sm:$0xff] %v2577
  %2594 = vst [vmem:[#allocation2 + $0x60] sm:$0xff] %v2578
  %2595 = vst [vmem:[#allocation2 + $0x68] sm:$0xff] %v2579
  %2596 = vst [vmem:[#allocation2 + $0x70] sm:$0xff] %v2580
  %2597 = vst [vmem:[#allocation2 + $0x78] sm:$0xff] %v2581
  // Predicated region
  $region26: #{resnet_layer.5} parent=0 // pred_check
    %p2598 = pneg %p21
  $region27: #{resnet_layer.5} parent=0 // pred_check_branch
    %2600 = sbr.rel (%p2598) target = $region29
  $region28: #{resnet_layer.5} parent=0 // pred_region
    %v2601 = vld [vmem:[#allocation2] sm:$0xff]
    %v2602 = vld [vmem:[#allocation2 + $0x8] sm:$0xff]
    %v2603 = vld [vmem:[#allocation2 + $0x10] sm:$0xff]
    %v2604 = vld [vmem:[#allocation2 + $0x18] sm:$0xff]
    %v2605 = vld [vmem:[#allocation2 + $0x20] sm:$0xff]
    %v2606 = vld [vmem:[#allocation2 + $0x28] sm:$0xff]
    %v2607 = vld [vmem:[#allocation2 + $0x30] sm:$0xff]
    %v2608 = vld [vmem:[#allocation2 + $0x38] sm:$0xff]
    %v2609 = vld [vmem:[#allocation2 + $0x40] sm:$0xff]
    %v2610 = vld [vmem:[#allocation2 + $0x48] sm:$0xff]
    %v2611 = vld [vmem:[#allocation2 + $0x50] sm:$0xff]
    %v2612 = vld [vmem:[#allocation2 + $0x58] sm:$0xff]
    %v2613 = vld [vmem:[#allocation2 + $0x60] sm:$0xff]
    %v2614 = vld [vmem:[#allocation2 + $0x68] sm:$0xff]
    %v2615 = vld [vmem:[#allocation2 + $0x70] sm:$0xff]
    %v2616 = vld [vmem:[#allocation2 + $0x78] sm:$0xff]
    %v2617 = vld [vmem:[%s2] sm:$0x1]
    %v2619 = vlaneseq
    %v2620 = vshrl.u32 %v2619, 7
    %v2621 = vsub.s32 0, %v2620
    %v2622 = vrot.slane %v2617, %v2621
    %v2624 = vmul.f32 %v2601, %v2622
    %v2625 = vmul.f32 %v2602, %v2622
    %v2626 = vmul.f32 %v2603, %v2622
    %v2627 = vmul.f32 %v2604, %v2622
    %v2628 = vmul.f32 %v2605, %v2622
    %v2629 = vmul.f32 %v2606, %v2622
    %v2630 = vmul.f32 %v2607, %v2622
    %v2631 = vmul.f32 %v2608, %v2622
    %v2632 = vmul.f32 %v2609, %v2622
    %v2633 = vmul.f32 %v2610, %v2622
    %v2634 = vmul.f32 %v2611, %v2622
    %v2635 = vmul.f32 %v2612, %v2622
    %v2636 = vmul.f32 %v2613, %v2622
    %v2637 = vmul.f32 %v2614, %v2622
    %v2638 = vmul.f32 %v2615, %v2622
    %v2639 = vmul.f32 %v2616, %v2622
    %v2640 = vld [vmem:[%s3] sm:$0x1]
    %v2642 = vlaneseq
    %v2643 = vshrl.u32 %v2642, 7
    %v2644 = vsub.s32 0, %v2643
    %v2645 = vrot.slane %v2640, %v2644
    %v2647 = vadd.f32 %v2624, %v2645
    %v2648 = vadd.f32 %v2625, %v2645
    %v2649 = vadd.f32 %v2626, %v2645
    %v2650 = vadd.f32 %v2627, %v2645
    %v2651 = vadd.f32 %v2628, %v2645
    %v2652 = vadd.f32 %v2629, %v2645
    %v2653 = vadd.f32 %v2630, %v2645
    %v2654 = vadd.f32 %v2631, %v2645
    %v2655 = vadd.f32 %v2632, %v2645
    %v2656 = vadd.f32 %v2633, %v2645
    %v2657 = vadd.f32 %v2634, %v2645
    %v2658 = vadd.f32 %v2635, %v2645
    %v2659 = vadd.f32 %v2636, %v2645
    %v2660 = vadd.f32 %v2637, %v2645
    %v2661 = vadd.f32 %v2638, %v2645
    %v2662 = vadd.f32 %v2639, %v2645
    %v2663 = vld [vmem:[%s4] sm:$0xf]
    %v2664 = vld [vmem:[%s4 + $0x4] sm:$0xf]
    %v2665 = vld [vmem:[%s4 + $0x8] sm:$0xf]
    %v2666 = vld [vmem:[%s4 + $0xc] sm:$0xf]
    %v2667 = vld [vmem:[%s4 + $0x10] sm:$0xf]
    %v2668 = vld [vmem:[%s4 + $0x14] sm:$0xf]
    %v2669 = vld [vmem:[%s4 + $0x18] sm:$0xf]
    %v2670 = vld [vmem:[%s4 + $0x1c] sm:$0xf]
    %v2671 = vld [vmem:[%s4 + $0x20] sm:$0xf]
    %v2672 = vld [vmem:[%s4 + $0x24] sm:$0xf]
    %v2673 = vld [vmem:[%s4 + $0x28] sm:$0xf]
    %v2674 = vld [vmem:[%s4 + $0x2c] sm:$0xf]
    %v2675 = vld [vmem:[%s4 + $0x30] sm:$0xf]
    %v2676 = vld [vmem:[%s4 + $0x34] sm:$0xf]
    %v2677 = vld [vmem:[%s4 + $0x38] sm:$0xf]
    %v2678 = vld [vmem:[%s4 + $0x3c] sm:$0xf]
    %v2679 = vunpack.c.l.bf16 %v2663
    %v2680 = vunpack.c.l.bf16 %v2664
    %v2681 = vunpack.c.l.bf16 %v2665
    %v2682 = vunpack.c.l.bf16 %v2666
    %v2683 = vunpack.c.l.bf16 %v2667
    %v2684 = vunpack.c.l.bf16 %v2668
    %v2685 = vunpack.c.l.bf16 %v2669
    %v2686 = vunpack.c.l.bf16 %v2670
    %v2687 = vunpack.c.l.bf16 %v2671
    %v2688 = vunpack.c.l.bf16 %v2672
    %v2689 = vunpack.c.l.bf16 %v2673
    %v2690 = vunpack.c.l.bf16 %v2674
    %v2691 = vunpack.c.l.bf16 %v2675
    %v2692 = vunpack.c.l.bf16 %v2676
    %v2693 = vunpack.c.l.bf16 %v2677
    %v2694 = vunpack.c.l.bf16 %v2678
    %v2695 = vadd.f32 %v2647, %v2679
    %v2696 = vadd.f32 %v2648, %v2680
    %v2697 = vadd.f32 %v2649, %v2681
    %v2698 = vadd.f32 %v2650, %v2682
    %v2699 = vadd.f32 %v2651, %v2683
    %v2700 = vadd.f32 %v2652, %v2684
    %v2701 = vadd.f32 %v2653, %v2685
    %v2702 = vadd.f32 %v2654, %v2686
    %v2703 = vadd.f32 %v2655, %v2687
    %v2704 = vadd.f32 %v2656, %v2688
    %v2705 = vadd.f32 %v2657, %v2689
    %v2706 = vadd.f32 %v2658, %v2690
    %v2707 = vadd.f32 %v2659, %v2691
    %v2708 = vadd.f32 %v2660, %v2692
    %v2709 = vadd.f32 %v2661, %v2693
    %v2710 = vadd.f32 %v2662, %v2694
    %v2711 = vpack.c.bf16 %v2695, %v2695
    %v2712 = vpack.c.bf16 %v2696, %v2696
    %v2713 = vpack.c.bf16 %v2697, %v2697
    %v2714 = vpack.c.bf16 %v2698, %v2698
    %v2715 = vpack.c.bf16 %v2699, %v2699
    %v2716 = vpack.c.bf16 %v2700, %v2700
    %v2717 = vpack.c.bf16 %v2701, %v2701
    %v2718 = vpack.c.bf16 %v2702, %v2702
    %v2719 = vpack.c.bf16 %v2703, %v2703
    %v2720 = vpack.c.bf16 %v2704, %v2704
    %v2721 = vpack.c.bf16 %v2705, %v2705
    %v2722 = vpack.c.bf16 %v2706, %v2706
    %v2723 = vpack.c.bf16 %v2707, %v2707
    %v2724 = vpack.c.bf16 %v2708, %v2708
    %v2725 = vpack.c.bf16 %v2709, %v2709
    %v2726 = vpack.c.bf16 %v2710, %v2710
    %2727 = vst [vmem:[%s5] sm:$0xf] %v2711
    %2728 = vst [vmem:[%s5 + $0x4] sm:$0xf] %v2712
    %2729 = vst [vmem:[%s5 + $0x8] sm:$0xf] %v2713
    %2730 = vst [vmem:[%s5 + $0xc] sm:$0xf] %v2714
    %2731 = vst [vmem:[%s5 + $0x10] sm:$0xf] %v2715
    %2732 = vst [vmem:[%s5 + $0x14] sm:$0xf] %v2716
    %2733 = vst [vmem:[%s5 + $0x18] sm:$0xf] %v2717
    %2734 = vst [vmem:[%s5 + $0x1c] sm:$0xf] %v2718
    %2735 = vst [vmem:[%s5 + $0x20] sm:$0xf] %v2719
    %2736 = vst [vmem:[%s5 + $0x24] sm:$0xf] %v2720
    %2737 = vst [vmem:[%s5 + $0x28] sm:$0xf] %v2721
    %2738 = vst [vmem:[%s5 + $0x2c] sm:$0xf] %v2722
    %2739 = vst [vmem:[%s5 + $0x30] sm:$0xf] %v2723
    %2740 = vst [vmem:[%s5 + $0x34] sm:$0xf] %v2724
    %2741 = vst [vmem:[%s5 + $0x38] sm:$0xf] %v2725
    %2742 = vst [vmem:[%s5 + $0x3c] sm:$0xf] %v2726
  $region29: #{resnet_layer.5} parent=0 // pred_fallthru
    _
  // Predicated region
  $region30: #{resnet_layer.5} parent=0 // pred_check
    _
  $region31: #{resnet_layer.5} parent=0 // pred_check_branch
    %2744 = sbr.rel (0) target = $region33
  $region32: #{resnet_layer.5} parent=0 // pred_region
    _
  $region33: #{resnet_layer.5} parent=0 // pred_fallthru
    _
  // Predicated region
  $region34: #{resnet_layer.5} parent=0 // pred_check
    _
  $region35: #{resnet_layer.5} parent=0 // pred_check_branch
    %2746 = sbr.rel (0) target = $region37
  $region36: #{resnet_layer.5} parent=0 // pred_region
    _
  $region37: #{resnet_layer.5} parent=0 // pred_fallthru
    _

// kernel: resnet_layer.6
$region0: #{resnet_layer.6}
  #allocation0 [shape = 'u32[]', space=smem, size = 0x4, offset = 0x4, fixed_abs, tag = 'smem constant byte address 0x4 - core index']
  #allocation1 [shape = 'u32[144,128]{1,0:T(1,128)}', space=vmem, size = 0x12000, scoped, tag = 'internal scratch']
  #allocation2 [shape = 'f32[128,128]{1,0:T(8,128)}', space=vmem, size = 0x10000, scoped, tag = 'scratch operand']
  %s0 = inlined_call_operand.vmem [shape: bf16[2,1,10,10,128], index: 0, kind: input, shape index: {}]
  %s1 = inlined_call_operand.vmem [shape: bf16[9,128,128], index: 1, kind: input, shape index: {}]
  %s2 = inlined_call_operand.vmem [shape: f32[1,128], index: 2, kind: input, shape index: {}]
  %s3 = inlined_call_operand.vmem [shape: f32[1,128], index: 3, kind: input, shape index: {}]
  %s4 = inlined_call_operand.vmem [shape: bf16[2,8,8,128], index: 4, kind: output, shape index: {}]
  %s5 = sld [smem:[#allocation0]]
  $region34: #{resnet_layer.6} parent=0
    _
  %s7 = ssub.s32 1, %s5
  %s8 = scalar_select 0, %s7, %s5
  // Predicated region
  $region2: #{resnet_layer.6} parent=0 // pred_check
    _
  $region3: #{resnet_layer.6} parent=0 // pred_check_branch
    %10 = sbr.rel (0) target = $region5
  $region4: #{resnet_layer.6} parent=0 // pred_region
    _
  $region5: #{resnet_layer.6} parent=0 // pred_fallthru
    _
  // Predicated region
  $region6: #{resnet_layer.6} parent=0 // pred_check
    _
  $region7: #{resnet_layer.6} parent=0 // pred_check_branch
    %12 = sbr.rel (0) target = $region9
  $region8: #{resnet_layer.6} parent=0 // pred_region
    _
  $region9: #{resnet_layer.6} parent=0 // pred_fallthru
    _
  // Predicated region
  $region10: #{resnet_layer.6} parent=0 // pred_check
    _
  $region11: #{resnet_layer.6} parent=0 // pred_check_branch
    %14 = sbr.rel (0) target = $region13
  $region12: #{resnet_layer.6} parent=0 // pred_region
    _
  $region13: #{resnet_layer.6} parent=0 // pred_fallthru
    _
  // Predicated region
  $region14: #{resnet_layer.6} parent=0 // pred_check
    _
  $region15: #{resnet_layer.6} parent=0 // pred_check_branch
    %16 = sbr.rel (0) target = $region17
  $region16: #{resnet_layer.6} parent=0 // pred_region
    _
  $region17: #{resnet_layer.6} parent=0 // pred_fallthru
    _
  %p18 = scmp.eq.s32.totalorder 0, 0
  // Predicated region
  $region18: #{resnet_layer.6} parent=0 // pred_check
    %p19 = pneg %p18
  $region19: #{resnet_layer.6} parent=0 // pred_check_branch
    %21 = sbr.rel (%p19) target = $region21
  $region20: #{resnet_layer.6} parent=0 // pred_region
    %22 = vst [vmem:[#allocation2] sm:$0xff] 0.0
    %23 = vst [vmem:[#allocation2 + $0x8] sm:$0xff] 0.0
    %24 = vst [vmem:[#allocation2 + $0x10] sm:$0xff] 0.0
    %25 = vst [vmem:[#allocation2 + $0x18] sm:$0xff] 0.0
    %26 = vst [vmem:[#allocation2 + $0x20] sm:$0xff] 0.0
    %27 = vst [vmem:[#allocation2 + $0x28] sm:$0xff] 0.0
    %28 = vst [vmem:[#allocation2 + $0x30] sm:$0xff] 0.0
    %29 = vst [vmem:[#allocation2 + $0x38] sm:$0xff] 0.0
    %30 = vst [vmem:[#allocation2 + $0x40] sm:$0xff] 0.0
    %31 = vst [vmem:[#allocation2 + $0x48] sm:$0xff] 0.0
    %32 = vst [vmem:[#allocation2 + $0x50] sm:$0xff] 0.0
    %33 = vst [vmem:[#allocation2 + $0x58] sm:$0xff] 0.0
    %34 = vst [vmem:[#allocation2 + $0x60] sm:$0xff] 0.0
    %35 = vst [vmem:[#allocation2 + $0x68] sm:$0xff] 0.0
    %36 = vst [vmem:[#allocation2 + $0x70] sm:$0xff] 0.0
    %37 = vst [vmem:[#allocation2 + $0x78] sm:$0xff] 0.0
  $region21: #{resnet_layer.6} parent=0 // pred_fallthru
    _
  %v38 = vld [vmem:[%s0] sm:$0xf]
  %v39 = vld [vmem:[%s0 + $0x8] sm:$0xf]
  %v40 = vld [vmem:[%s0 + $0x10] sm:$0xf]
  %v41 = vld [vmem:[%s0 + $0x18] sm:$0xf]
  %v42 = vld [vmem:[%s0 + $0x20] sm:$0xf]
  %v43 = vld [vmem:[%s0 + $0x28] sm:$0xf]
  %v44 = vld [vmem:[%s0 + $0x30] sm:$0xf]
  %v45 = vld [vmem:[%s0 + $0x38] sm:$0xf]
  %v46 = vld [vmem:[%s0 + $0x50] sm:$0xf]
  %v47 = vld [vmem:[%s0 + $0x58] sm:$0xf]
  %v48 = vld [vmem:[%s0 + $0x60] sm:$0xf]
  %v49 = vld [vmem:[%s0 + $0x68] sm:$0xf]
  %v50 = vld [vmem:[%s0 + $0x70] sm:$0xf]
  %v51 = vld [vmem:[%s0 + $0x78] sm:$0xf]
  %v52 = vld [vmem:[%s0 + $0x80] sm:$0xf]
  %v53 = vld [vmem:[%s0 + $0x88] sm:$0xf]
  %v54 = vld [vmem:[%s0 + $0x4] sm:$0x1]
  %v55 = vld [vmem:[%s0 + $0xc] sm:$0x1]
  %v56 = vld [vmem:[%s0 + $0x14] sm:$0x1]
  %v57 = vld [vmem:[%s0 + $0x1c] sm:$0x1]
  %v58 = vld [vmem:[%s0 + $0x24] sm:$0x1]
  %v59 = vld [vmem:[%s0 + $0x2c] sm:$0x1]
  %v60 = vld [vmem:[%s0 + $0x34] sm:$0x1]
  %v61 = vld [vmem:[%s0 + $0x3c] sm:$0x1]
  %v62 = vld [vmem:[%s0 + $0x54] sm:$0x1]
  %v63 = vld [vmem:[%s0 + $0x5c] sm:$0x1]
  %v64 = vld [vmem:[%s0 + $0x64] sm:$0x1]
  %v65 = vld [vmem:[%s0 + $0x6c] sm:$0x1]
  %v66 = vld [vmem:[%s0 + $0x74] sm:$0x1]
  %v67 = vld [vmem:[%s0 + $0x7c] sm:$0x1]
  %v68 = vld [vmem:[%s0 + $0x84] sm:$0x1]
  %v69 = vld [vmem:[%s0 + $0x8c] sm:$0x1]
  %vm70 = vsmask.f32 3328
  %vm71 = vsmask.f32 7440
  %vm72 = vmor %vm70, %vm71
  %v74 = vshrl.u32 %v38, 16
  %v76 = vrot.slane %v74, 4
  %v77 = vshll.u32 %v38, 16
  %v79 = vrot.slane %v77, 5
  %v80 = vor.u32 %v76, %v79
  %v81 = vrot.slane %v80, 4
  %v83 = vshll.u32 %v54, 16
  %v85 = vrot.slane %v83, 5
  %v86 = vsel %vm72, %v81, %v85
  %v88 = vshrl.u32 %v39, 16
  %v90 = vrot.slane %v88, 4
  %v91 = vshll.u32 %v39, 16
  %v93 = vrot.slane %v91, 5
  %v94 = vor.u32 %v90, %v93
  %v95 = vrot.slane %v94, 4
  %v97 = vshll.u32 %v55, 16
  %v99 = vrot.slane %v97, 5
  %v100 = vsel %vm72, %v95, %v99
  %v102 = vshrl.u32 %v40, 16
  %v104 = vrot.slane %v102, 4
  %v105 = vshll.u32 %v40, 16
  %v107 = vrot.slane %v105, 5
  %v108 = vor.u32 %v104, %v107
  %v109 = vrot.slane %v108, 4
  %v111 = vshll.u32 %v56, 16
  %v113 = vrot.slane %v111, 5
  %v114 = vsel %vm72, %v109, %v113
  %v116 = vshrl.u32 %v41, 16
  %v118 = vrot.slane %v116, 4
  %v119 = vshll.u32 %v41, 16
  %v121 = vrot.slane %v119, 5
  %v122 = vor.u32 %v118, %v121
  %v123 = vrot.slane %v122, 4
  %v125 = vshll.u32 %v57, 16
  %v127 = vrot.slane %v125, 5
  %v128 = vsel %vm72, %v123, %v127
  %v130 = vshrl.u32 %v42, 16
  %v132 = vrot.slane %v130, 4
  %v133 = vshll.u32 %v42, 16
  %v135 = vrot.slane %v133, 5
  %v136 = vor.u32 %v132, %v135
  %v137 = vrot.slane %v136, 4
  %v139 = vshll.u32 %v58, 16
  %v141 = vrot.slane %v139, 5
  %v142 = vsel %vm72, %v137, %v141
  %v144 = vshrl.u32 %v43, 16
  %v146 = vrot.slane %v144, 4
  %v147 = vshll.u32 %v43, 16
  %v149 = vrot.slane %v147, 5
  %v150 = vor.u32 %v146, %v149
  %v151 = vrot.slane %v150, 4
  %v153 = vshll.u32 %v59, 16
  %v155 = vrot.slane %v153, 5
  %v156 = vsel %vm72, %v151, %v155
  %v158 = vshrl.u32 %v44, 16
  %v160 = vrot.slane %v158, 4
  %v161 = vshll.u32 %v44, 16
  %v163 = vrot.slane %v161, 5
  %v164 = vor.u32 %v160, %v163
  %v165 = vrot.slane %v164, 4
  %v167 = vshll.u32 %v60, 16
  %v169 = vrot.slane %v167, 5
  %v170 = vsel %vm72, %v165, %v169
  %v172 = vshrl.u32 %v45, 16
  %v174 = vrot.slane %v172, 4
  %v175 = vshll.u32 %v45, 16
  %v177 = vrot.slane %v175, 5
  %v178 = vor.u32 %v174, %v177
  %v179 = vrot.slane %v178, 4
  %v181 = vshll.u32 %v61, 16
  %v183 = vrot.slane %v181, 5
  %v184 = vsel %vm72, %v179, %v183
  %v186 = vshrl.u32 %v46, 16
  %v188 = vrot.slane %v186, 4
  %v189 = vshll.u32 %v46, 16
  %v191 = vrot.slane %v189, 5
  %v192 = vor.u32 %v188, %v191
  %v193 = vrot.slane %v192, 4
  %v195 = vshll.u32 %v62, 16
  %v197 = vrot.slane %v195, 5
  %v198 = vsel %vm72, %v193, %v197
  %v200 = vshrl.u32 %v47, 16
  %v202 = vrot.slane %v200, 4
  %v203 = vshll.u32 %v47, 16
  %v205 = vrot.slane %v203, 5
  %v206 = vor.u32 %v202, %v205
  %v207 = vrot.slane %v206, 4
  %v209 = vshll.u32 %v63, 16
  %v211 = vrot.slane %v209, 5
  %v212 = vsel %vm72, %v207, %v211
  %v214 = vshrl.u32 %v48, 16
  %v216 = vrot.slane %v214, 4
  %v217 = vshll.u32 %v48, 16
  %v219 = vrot.slane %v217, 5
  %v220 = vor.u32 %v216, %v219
  %v221 = vrot.slane %v220, 4
  %v223 = vshll.u32 %v64, 16
  %v225 = vrot.slane %v223, 5
  %v226 = vsel %vm72, %v221, %v225
  %v228 = vshrl.u32 %v49, 16
  %v230 = vrot.slane %v228, 4
  %v231 = vshll.u32 %v49, 16
  %v233 = vrot.slane %v231, 5
  %v234 = vor.u32 %v230, %v233
  %v235 = vrot.slane %v234, 4
  %v237 = vshll.u32 %v65, 16
  %v239 = vrot.slane %v237, 5
  %v240 = vsel %vm72, %v235, %v239
  %v242 = vshrl.u32 %v50, 16
  %v244 = vrot.slane %v242, 4
  %v245 = vshll.u32 %v50, 16
  %v247 = vrot.slane %v245, 5
  %v248 = vor.u32 %v244, %v247
  %v249 = vrot.slane %v248, 4
  %v251 = vshll.u32 %v66, 16
  %v253 = vrot.slane %v251, 5
  %v254 = vsel %vm72, %v249, %v253
  %v256 = vshrl.u32 %v51, 16
  %v258 = vrot.slane %v256, 4
  %v259 = vshll.u32 %v51, 16
  %v261 = vrot.slane %v259, 5
  %v262 = vor.u32 %v258, %v261
  %v263 = vrot.slane %v262, 4
  %v265 = vshll.u32 %v67, 16
  %v267 = vrot.slane %v265, 5
  %v268 = vsel %vm72, %v263, %v267
  %v270 = vshrl.u32 %v52, 16
  %v272 = vrot.slane %v270, 4
  %v273 = vshll.u32 %v52, 16
  %v275 = vrot.slane %v273, 5
  %v276 = vor.u32 %v272, %v275
  %v277 = vrot.slane %v276, 4
  %v279 = vshll.u32 %v68, 16
  %v281 = vrot.slane %v279, 5
  %v282 = vsel %vm72, %v277, %v281
  %v284 = vshrl.u32 %v53, 16
  %v286 = vrot.slane %v284, 4
  %v287 = vshll.u32 %v53, 16
  %v289 = vrot.slane %v287, 5
  %v290 = vor.u32 %v286, %v289
  %v291 = vrot.slane %v290, 4
  %v293 = vshll.u32 %v69, 16
  %v295 = vrot.slane %v293, 5
  %v296 = vsel %vm72, %v291, %v295
  %v297 = vld [vmem:[%s0] sm:$0xe]
  %v298 = vld [vmem:[%s0 + $0x8] sm:$0xe]
  %v299 = vld [vmem:[%s0 + $0x10] sm:$0xe]
  %v300 = vld [vmem:[%s0 + $0x18] sm:$0xe]
  %v301 = vld [vmem:[%s0 + $0x20] sm:$0xe]
  %v302 = vld [vmem:[%s0 + $0x28] sm:$0xe]
  %v303 = vld [vmem:[%s0 + $0x30] sm:$0xe]
  %v304 = vld [vmem:[%s0 + $0x38] sm:$0xe]
  %v305 = vld [vmem:[%s0 + $0x50] sm:$0xe]
  %v306 = vld [vmem:[%s0 + $0x58] sm:$0xe]
  %v307 = vld [vmem:[%s0 + $0x60] sm:$0xe]
  %v308 = vld [vmem:[%s0 + $0x68] sm:$0xe]
  %v309 = vld [vmem:[%s0 + $0x70] sm:$0xe]
  %v310 = vld [vmem:[%s0 + $0x78] sm:$0xe]
  %v311 = vld [vmem:[%s0 + $0x80] sm:$0xe]
  %v312 = vld [vmem:[%s0 + $0x88] sm:$0xe]
  %vm345 = vcmask 1042432
  %vm346 = vcmask 1046532
  %vm347 = vmor %vm345, %vm346
  %v348 = vrot.slane %v297, 5
  %v349 = vrot.slane %v348, 4
  %v350 = vrot.slane %v54, 5
  %v351 = vsel %vm347, %v349, %v350
  %v352 = vrot.slane %v298, 5
  %v353 = vrot.slane %v352, 4
  %v354 = vrot.slane %v55, 5
  %v355 = vsel %vm347, %v353, %v354
  %v356 = vrot.slane %v299, 5
  %v357 = vrot.slane %v356, 4
  %v358 = vrot.slane %v56, 5
  %v359 = vsel %vm347, %v357, %v358
  %v360 = vrot.slane %v300, 5
  %v361 = vrot.slane %v360, 4
  %v362 = vrot.slane %v57, 5
  %v363 = vsel %vm347, %v361, %v362
  %v364 = vrot.slane %v301, 5
  %v365 = vrot.slane %v364, 4
  %v366 = vrot.slane %v58, 5
  %v367 = vsel %vm347, %v365, %v366
  %v368 = vrot.slane %v302, 5
  %v369 = vrot.slane %v368, 4
  %v370 = vrot.slane %v59, 5
  %v371 = vsel %vm347, %v369, %v370
  %v372 = vrot.slane %v303, 5
  %v373 = vrot.slane %v372, 4
  %v374 = vrot.slane %v60, 5
  %v375 = vsel %vm347, %v373, %v374
  %v376 = vrot.slane %v304, 5
  %v377 = vrot.slane %v376, 4
  %v378 = vrot.slane %v61, 5
  %v379 = vsel %vm347, %v377, %v378
  %v380 = vrot.slane %v305, 5
  %v381 = vrot.slane %v380, 4
  %v382 = vrot.slane %v62, 5
  %v383 = vsel %vm347, %v381, %v382
  %v384 = vrot.slane %v306, 5
  %v385 = vrot.slane %v384, 4
  %v386 = vrot.slane %v63, 5
  %v387 = vsel %vm347, %v385, %v386
  %v388 = vrot.slane %v307, 5
  %v389 = vrot.slane %v388, 4
  %v390 = vrot.slane %v64, 5
  %v391 = vsel %vm347, %v389, %v390
  %v392 = vrot.slane %v308, 5
  %v393 = vrot.slane %v392, 4
  %v394 = vrot.slane %v65, 5
  %v395 = vsel %vm347, %v393, %v394
  %v396 = vrot.slane %v309, 5
  %v397 = vrot.slane %v396, 4
  %v398 = vrot.slane %v66, 5
  %v399 = vsel %vm347, %v397, %v398
  %v400 = vrot.slane %v310, 5
  %v401 = vrot.slane %v400, 4
  %v402 = vrot.slane %v67, 5
  %v403 = vsel %vm347, %v401, %v402
  %v404 = vrot.slane %v311, 5
  %v405 = vrot.slane %v404, 4
  %v406 = vrot.slane %v68, 5
  %v407 = vsel %vm347, %v405, %v406
  %v408 = vrot.slane %v312, 5
  %v409 = vrot.slane %v408, 4
  %v410 = vrot.slane %v69, 5
  %v411 = vsel %vm347, %v409, %v410
  %s412 = scalar_lea.vmem %s0, 8
  %v413 = vld [vmem:[%s412] sm:$0xf]
  %v414 = vld [vmem:[%s412 + $0x8] sm:$0xf]
  %v415 = vld [vmem:[%s412 + $0x10] sm:$0xf]
  %v416 = vld [vmem:[%s412 + $0x18] sm:$0xf]
  %v417 = vld [vmem:[%s412 + $0x20] sm:$0xf]
  %v418 = vld [vmem:[%s412 + $0x28] sm:$0xf]
  %v419 = vld [vmem:[%s412 + $0x30] sm:$0xf]
  %v420 = vld [vmem:[%s412 + $0x38] sm:$0xf]
  %v421 = vld [vmem:[%s412 + $0x50] sm:$0xf]
  %v422 = vld [vmem:[%s412 + $0x58] sm:$0xf]
  %v423 = vld [vmem:[%s412 + $0x60] sm:$0xf]
  %v424 = vld [vmem:[%s412 + $0x68] sm:$0xf]
  %v425 = vld [vmem:[%s412 + $0x70] sm:$0xf]
  %v426 = vld [vmem:[%s412 + $0x78] sm:$0xf]
  %v427 = vld [vmem:[%s412 + $0x80] sm:$0xf]
  %v428 = vld [vmem:[%s412 + $0x88] sm:$0xf]
  %v429 = vld [vmem:[%s412 + $0x4] sm:$0x1]
  %v430 = vld [vmem:[%s412 + $0xc] sm:$0x1]
  %v431 = vld [vmem:[%s412 + $0x14] sm:$0x1]
  %v432 = vld [vmem:[%s412 + $0x1c] sm:$0x1]
  %v433 = vld [vmem:[%s412 + $0x24] sm:$0x1]
  %v434 = vld [vmem:[%s412 + $0x2c] sm:$0x1]
  %v435 = vld [vmem:[%s412 + $0x34] sm:$0x1]
  %v436 = vld [vmem:[%s412 + $0x3c] sm:$0x1]
  %v437 = vld [vmem:[%s412 + $0x54] sm:$0x1]
  %v438 = vld [vmem:[%s412 + $0x5c] sm:$0x1]
  %v439 = vld [vmem:[%s412 + $0x64] sm:$0x1]
  %v440 = vld [vmem:[%s412 + $0x6c] sm:$0x1]
  %v441 = vld [vmem:[%s412 + $0x74] sm:$0x1]
  %v442 = vld [vmem:[%s412 + $0x7c] sm:$0x1]
  %v443 = vld [vmem:[%s412 + $0x84] sm:$0x1]
  %v444 = vld [vmem:[%s412 + $0x8c] sm:$0x1]
  %v446 = vshrl.u32 %v413, 16
  %v448 = vrot.slane %v446, 4
  %v449 = vshll.u32 %v413, 16
  %v451 = vrot.slane %v449, 5
  %v452 = vor.u32 %v448, %v451
  %v453 = vrot.slane %v452, 4
  %v455 = vshll.u32 %v429, 16
  %v457 = vrot.slane %v455, 5
  %v458 = vsel %vm72, %v453, %v457
  %v460 = vshrl.u32 %v414, 16
  %v462 = vrot.slane %v460, 4
  %v463 = vshll.u32 %v414, 16
  %v465 = vrot.slane %v463, 5
  %v466 = vor.u32 %v462, %v465
  %v467 = vrot.slane %v466, 4
  %v469 = vshll.u32 %v430, 16
  %v471 = vrot.slane %v469, 5
  %v472 = vsel %vm72, %v467, %v471
  %v474 = vshrl.u32 %v415, 16
  %v476 = vrot.slane %v474, 4
  %v477 = vshll.u32 %v415, 16
  %v479 = vrot.slane %v477, 5
  %v480 = vor.u32 %v476, %v479
  %v481 = vrot.slane %v480, 4
  %v483 = vshll.u32 %v431, 16
  %v485 = vrot.slane %v483, 5
  %v486 = vsel %vm72, %v481, %v485
  %v488 = vshrl.u32 %v416, 16
  %v490 = vrot.slane %v488, 4
  %v491 = vshll.u32 %v416, 16
  %v493 = vrot.slane %v491, 5
  %v494 = vor.u32 %v490, %v493
  %v495 = vrot.slane %v494, 4
  %v497 = vshll.u32 %v432, 16
  %v499 = vrot.slane %v497, 5
  %v500 = vsel %vm72, %v495, %v499
  %v502 = vshrl.u32 %v417, 16
  %v504 = vrot.slane %v502, 4
  %v505 = vshll.u32 %v417, 16
  %v507 = vrot.slane %v505, 5
  %v508 = vor.u32 %v504, %v507
  %v509 = vrot.slane %v508, 4
  %v511 = vshll.u32 %v433, 16
  %v513 = vrot.slane %v511, 5
  %v514 = vsel %vm72, %v509, %v513
  %v516 = vshrl.u32 %v418, 16
  %v518 = vrot.slane %v516, 4
  %v519 = vshll.u32 %v418, 16
  %v521 = vrot.slane %v519, 5
  %v522 = vor.u32 %v518, %v521
  %v523 = vrot.slane %v522, 4
  %v525 = vshll.u32 %v434, 16
  %v527 = vrot.slane %v525, 5
  %v528 = vsel %vm72, %v523, %v527
  %v530 = vshrl.u32 %v419, 16
  %v532 = vrot.slane %v530, 4
  %v533 = vshll.u32 %v419, 16
  %v535 = vrot.slane %v533, 5
  %v536 = vor.u32 %v532, %v535
  %v537 = vrot.slane %v536, 4
  %v539 = vshll.u32 %v435, 16
  %v541 = vrot.slane %v539, 5
  %v542 = vsel %vm72, %v537, %v541
  %v544 = vshrl.u32 %v420, 16
  %v546 = vrot.slane %v544, 4
  %v547 = vshll.u32 %v420, 16
  %v549 = vrot.slane %v547, 5
  %v550 = vor.u32 %v546, %v549
  %v551 = vrot.slane %v550, 4
  %v553 = vshll.u32 %v436, 16
  %v555 = vrot.slane %v553, 5
  %v556 = vsel %vm72, %v551, %v555
  %v558 = vshrl.u32 %v421, 16
  %v560 = vrot.slane %v558, 4
  %v561 = vshll.u32 %v421, 16
  %v563 = vrot.slane %v561, 5
  %v564 = vor.u32 %v560, %v563
  %v565 = vrot.slane %v564, 4
  %v567 = vshll.u32 %v437, 16
  %v569 = vrot.slane %v567, 5
  %v570 = vsel %vm72, %v565, %v569
  %v572 = vshrl.u32 %v422, 16
  %v574 = vrot.slane %v572, 4
  %v575 = vshll.u32 %v422, 16
  %v577 = vrot.slane %v575, 5
  %v578 = vor.u32 %v574, %v577
  %v579 = vrot.slane %v578, 4
  %v581 = vshll.u32 %v438, 16
  %v583 = vrot.slane %v581, 5
  %v584 = vsel %vm72, %v579, %v583
  %v586 = vshrl.u32 %v423, 16
  %v588 = vrot.slane %v586, 4
  %v589 = vshll.u32 %v423, 16
  %v591 = vrot.slane %v589, 5
  %v592 = vor.u32 %v588, %v591
  %v593 = vrot.slane %v592, 4
  %v595 = vshll.u32 %v439, 16
  %v597 = vrot.slane %v595, 5
  %v598 = vsel %vm72, %v593, %v597
  %v600 = vshrl.u32 %v424, 16
  %v602 = vrot.slane %v600, 4
  %v603 = vshll.u32 %v424, 16
  %v605 = vrot.slane %v603, 5
  %v606 = vor.u32 %v602, %v605
  %v607 = vrot.slane %v606, 4
  %v609 = vshll.u32 %v440, 16
  %v611 = vrot.slane %v609, 5
  %v612 = vsel %vm72, %v607, %v611
  %v614 = vshrl.u32 %v425, 16
  %v616 = vrot.slane %v614, 4
  %v617 = vshll.u32 %v425, 16
  %v619 = vrot.slane %v617, 5
  %v620 = vor.u32 %v616, %v619
  %v621 = vrot.slane %v620, 4
  %v623 = vshll.u32 %v441, 16
  %v625 = vrot.slane %v623, 5
  %v626 = vsel %vm72, %v621, %v625
  %v628 = vshrl.u32 %v426, 16
  %v630 = vrot.slane %v628, 4
  %v631 = vshll.u32 %v426, 16
  %v633 = vrot.slane %v631, 5
  %v634 = vor.u32 %v630, %v633
  %v635 = vrot.slane %v634, 4
  %v637 = vshll.u32 %v442, 16
  %v639 = vrot.slane %v637, 5
  %v640 = vsel %vm72, %v635, %v639
  %v642 = vshrl.u32 %v427, 16
  %v644 = vrot.slane %v642, 4
  %v645 = vshll.u32 %v427, 16
  %v647 = vrot.slane %v645, 5
  %v648 = vor.u32 %v644, %v647
  %v649 = vrot.slane %v648, 4
  %v651 = vshll.u32 %v443, 16
  %v653 = vrot.slane %v651, 5
  %v654 = vsel %vm72, %v649, %v653
  %v656 = vshrl.u32 %v428, 16
  %v658 = vrot.slane %v656, 4
  %v659 = vshll.u32 %v428, 16
  %v661 = vrot.slane %v659, 5
  %v662 = vor.u32 %v658, %v661
  %v663 = vrot.slane %v662, 4
  %v665 = vshll.u32 %v444, 16
  %v667 = vrot.slane %v665, 5
  %v668 = vsel %vm72, %v663, %v667
  %v669 = vld [vmem:[%s412] sm:$0xe]
  %v670 = vld [vmem:[%s412 + $0x8] sm:$0xe]
  %v671 = vld [vmem:[%s412 + $0x10] sm:$0xe]
  %v672 = vld [vmem:[%s412 + $0x18] sm:$0xe]
  %v673 = vld [vmem:[%s412 + $0x20] sm:$0xe]
  %v674 = vld [vmem:[%s412 + $0x28] sm:$0xe]
  %v675 = vld [vmem:[%s412 + $0x30] sm:$0xe]
  %v676 = vld [vmem:[%s412 + $0x38] sm:$0xe]
  %v677 = vld [vmem:[%s412 + $0x50] sm:$0xe]
  %v678 = vld [vmem:[%s412 + $0x58] sm:$0xe]
  %v679 = vld [vmem:[%s412 + $0x60] sm:$0xe]
  %v680 = vld [vmem:[%s412 + $0x68] sm:$0xe]
  %v681 = vld [vmem:[%s412 + $0x70] sm:$0xe]
  %v682 = vld [vmem:[%s412 + $0x78] sm:$0xe]
  %v683 = vld [vmem:[%s412 + $0x80] sm:$0xe]
  %v684 = vld [vmem:[%s412 + $0x88] sm:$0xe]
  %v717 = vrot.slane %v669, 5
  %v718 = vrot.slane %v717, 4
  %v719 = vrot.slane %v429, 5
  %v720 = vsel %vm347, %v718, %v719
  %v721 = vrot.slane %v670, 5
  %v722 = vrot.slane %v721, 4
  %v723 = vrot.slane %v430, 5
  %v724 = vsel %vm347, %v722, %v723
  %v725 = vrot.slane %v671, 5
  %v726 = vrot.slane %v725, 4
  %v727 = vrot.slane %v431, 5
  %v728 = vsel %vm347, %v726, %v727
  %v729 = vrot.slane %v672, 5
  %v730 = vrot.slane %v729, 4
  %v731 = vrot.slane %v432, 5
  %v732 = vsel %vm347, %v730, %v731
  %v733 = vrot.slane %v673, 5
  %v734 = vrot.slane %v733, 4
  %v735 = vrot.slane %v433, 5
  %v736 = vsel %vm347, %v734, %v735
  %v737 = vrot.slane %v674, 5
  %v738 = vrot.slane %v737, 4
  %v739 = vrot.slane %v434, 5
  %v740 = vsel %vm347, %v738, %v739
  %v741 = vrot.slane %v675, 5
  %v742 = vrot.slane %v741, 4
  %v743 = vrot.slane %v435, 5
  %v744 = vsel %vm347, %v742, %v743
  %v745 = vrot.slane %v676, 5
  %v746 = vrot.slane %v745, 4
  %v747 = vrot.slane %v436, 5
  %v748 = vsel %vm347, %v746, %v747
  %v749 = vrot.slane %v677, 5
  %v750 = vrot.slane %v749, 4
  %v751 = vrot.slane %v437, 5
  %v752 = vsel %vm347, %v750, %v751
  %v753 = vrot.slane %v678, 5
  %v754 = vrot.slane %v753, 4
  %v755 = vrot.slane %v438, 5
  %v756 = vsel %vm347, %v754, %v755
  %v757 = vrot.slane %v679, 5
  %v758 = vrot.slane %v757, 4
  %v759 = vrot.slane %v439, 5
  %v760 = vsel %vm347, %v758, %v759
  %v761 = vrot.slane %v680, 5
  %v762 = vrot.slane %v761, 4
  %v763 = vrot.slane %v440, 5
  %v764 = vsel %vm347, %v762, %v763
  %v765 = vrot.slane %v681, 5
  %v766 = vrot.slane %v765, 4
  %v767 = vrot.slane %v441, 5
  %v768 = vsel %vm347, %v766, %v767
  %v769 = vrot.slane %v682, 5
  %v770 = vrot.slane %v769, 4
  %v771 = vrot.slane %v442, 5
  %v772 = vsel %vm347, %v770, %v771
  %v773 = vrot.slane %v683, 5
  %v774 = vrot.slane %v773, 4
  %v775 = vrot.slane %v443, 5
  %v776 = vsel %vm347, %v774, %v775
  %v777 = vrot.slane %v684, 5
  %v778 = vrot.slane %v777, 4
  %v779 = vrot.slane %v444, 5
  %v780 = vsel %vm347, %v778, %v779
  %s781 = scalar_lea.vmem %s0, 16
  %v782 = vld [vmem:[%s781] sm:$0xf]
  %v783 = vld [vmem:[%s781 + $0x8] sm:$0xf]
  %v784 = vld [vmem:[%s781 + $0x10] sm:$0xf]
  %v785 = vld [vmem:[%s781 + $0x18] sm:$0xf]
  %v786 = vld [vmem:[%s781 + $0x20] sm:$0xf]
  %v787 = vld [vmem:[%s781 + $0x28] sm:$0xf]
  %v788 = vld [vmem:[%s781 + $0x30] sm:$0xf]
  %v789 = vld [vmem:[%s781 + $0x38] sm:$0xf]
  %v790 = vld [vmem:[%s781 + $0x50] sm:$0xf]
  %v791 = vld [vmem:[%s781 + $0x58] sm:$0xf]
  %v792 = vld [vmem:[%s781 + $0x60] sm:$0xf]
  %v793 = vld [vmem:[%s781 + $0x68] sm:$0xf]
  %v794 = vld [vmem:[%s781 + $0x70] sm:$0xf]
  %v795 = vld [vmem:[%s781 + $0x78] sm:$0xf]
  %v796 = vld [vmem:[%s781 + $0x80] sm:$0xf]
  %v797 = vld [vmem:[%s781 + $0x88] sm:$0xf]
  %v798 = vld [vmem:[%s781 + $0x4] sm:$0x1]
  %v799 = vld [vmem:[%s781 + $0xc] sm:$0x1]
  %v800 = vld [vmem:[%s781 + $0x14] sm:$0x1]
  %v801 = vld [vmem:[%s781 + $0x1c] sm:$0x1]
  %v802 = vld [vmem:[%s781 + $0x24] sm:$0x1]
  %v803 = vld [vmem:[%s781 + $0x2c] sm:$0x1]
  %v804 = vld [vmem:[%s781 + $0x34] sm:$0x1]
  %v805 = vld [vmem:[%s781 + $0x3c] sm:$0x1]
  %v806 = vld [vmem:[%s781 + $0x54] sm:$0x1]
  %v807 = vld [vmem:[%s781 + $0x5c] sm:$0x1]
  %v808 = vld [vmem:[%s781 + $0x64] sm:$0x1]
  %v809 = vld [vmem:[%s781 + $0x6c] sm:$0x1]
  %v810 = vld [vmem:[%s781 + $0x74] sm:$0x1]
  %v811 = vld [vmem:[%s781 + $0x7c] sm:$0x1]
  %v812 = vld [vmem:[%s781 + $0x84] sm:$0x1]
  %v813 = vld [vmem:[%s781 + $0x8c] sm:$0x1]
  %v815 = vshrl.u32 %v782, 16
  %v817 = vrot.slane %v815, 4
  %v818 = vshll.u32 %v782, 16
  %v820 = vrot.slane %v818, 5
  %v821 = vor.u32 %v817, %v820
  %v822 = vrot.slane %v821, 4
  %v824 = vshll.u32 %v798, 16
  %v826 = vrot.slane %v824, 5
  %v827 = vsel %vm72, %v822, %v826
  %v829 = vshrl.u32 %v783, 16
  %v831 = vrot.slane %v829, 4
  %v832 = vshll.u32 %v783, 16
  %v834 = vrot.slane %v832, 5
  %v835 = vor.u32 %v831, %v834
  %v836 = vrot.slane %v835, 4
  %v838 = vshll.u32 %v799, 16
  %v840 = vrot.slane %v838, 5
  %v841 = vsel %vm72, %v836, %v840
  %v843 = vshrl.u32 %v784, 16
  %v845 = vrot.slane %v843, 4
  %v846 = vshll.u32 %v784, 16
  %v848 = vrot.slane %v846, 5
  %v849 = vor.u32 %v845, %v848
  %v850 = vrot.slane %v849, 4
  %v852 = vshll.u32 %v800, 16
  %v854 = vrot.slane %v852, 5
  %v855 = vsel %vm72, %v850, %v854
  %v857 = vshrl.u32 %v785, 16
  %v859 = vrot.slane %v857, 4
  %v860 = vshll.u32 %v785, 16
  %v862 = vrot.slane %v860, 5
  %v863 = vor.u32 %v859, %v862
  %v864 = vrot.slane %v863, 4
  %v866 = vshll.u32 %v801, 16
  %v868 = vrot.slane %v866, 5
  %v869 = vsel %vm72, %v864, %v868
  %v871 = vshrl.u32 %v786, 16
  %v873 = vrot.slane %v871, 4
  %v874 = vshll.u32 %v786, 16
  %v876 = vrot.slane %v874, 5
  %v877 = vor.u32 %v873, %v876
  %v878 = vrot.slane %v877, 4
  %v880 = vshll.u32 %v802, 16
  %v882 = vrot.slane %v880, 5
  %v883 = vsel %vm72, %v878, %v882
  %v885 = vshrl.u32 %v787, 16
  %v887 = vrot.slane %v885, 4
  %v888 = vshll.u32 %v787, 16
  %v890 = vrot.slane %v888, 5
  %v891 = vor.u32 %v887, %v890
  %v892 = vrot.slane %v891, 4
  %v894 = vshll.u32 %v803, 16
  %v896 = vrot.slane %v894, 5
  %v897 = vsel %vm72, %v892, %v896
  %v899 = vshrl.u32 %v788, 16
  %v901 = vrot.slane %v899, 4
  %v902 = vshll.u32 %v788, 16
  %v904 = vrot.slane %v902, 5
  %v905 = vor.u32 %v901, %v904
  %v906 = vrot.slane %v905, 4
  %v908 = vshll.u32 %v804, 16
  %v910 = vrot.slane %v908, 5
  %v911 = vsel %vm72, %v906, %v910
  %v913 = vshrl.u32 %v789, 16
  %v915 = vrot.slane %v913, 4
  %v916 = vshll.u32 %v789, 16
  %v918 = vrot.slane %v916, 5
  %v919 = vor.u32 %v915, %v918
  %v920 = vrot.slane %v919, 4
  %v922 = vshll.u32 %v805, 16
  %v924 = vrot.slane %v922, 5
  %v925 = vsel %vm72, %v920, %v924
  %v927 = vshrl.u32 %v790, 16
  %v929 = vrot.slane %v927, 4
  %v930 = vshll.u32 %v790, 16
  %v932 = vrot.slane %v930, 5
  %v933 = vor.u32 %v929, %v932
  %v934 = vrot.slane %v933, 4
  %v936 = vshll.u32 %v806, 16
  %v938 = vrot.slane %v936, 5
  %v939 = vsel %vm72, %v934, %v938
  %v941 = vshrl.u32 %v791, 16
  %v943 = vrot.slane %v941, 4
  %v944 = vshll.u32 %v791, 16
  %v946 = vrot.slane %v944, 5
  %v947 = vor.u32 %v943, %v946
  %v948 = vrot.slane %v947, 4
  %v950 = vshll.u32 %v807, 16
  %v952 = vrot.slane %v950, 5
  %v953 = vsel %vm72, %v948, %v952
  %v955 = vshrl.u32 %v792, 16
  %v957 = vrot.slane %v955, 4
  %v958 = vshll.u32 %v792, 16
  %v960 = vrot.slane %v958, 5
  %v961 = vor.u32 %v957, %v960
  %v962 = vrot.slane %v961, 4
  %v964 = vshll.u32 %v808, 16
  %v966 = vrot.slane %v964, 5
  %v967 = vsel %vm72, %v962, %v966
  %v969 = vshrl.u32 %v793, 16
  %v971 = vrot.slane %v969, 4
  %v972 = vshll.u32 %v793, 16
  %v974 = vrot.slane %v972, 5
  %v975 = vor.u32 %v971, %v974
  %v976 = vrot.slane %v975, 4
  %v978 = vshll.u32 %v809, 16
  %v980 = vrot.slane %v978, 5
  %v981 = vsel %vm72, %v976, %v980
  %v983 = vshrl.u32 %v794, 16
  %v985 = vrot.slane %v983, 4
  %v986 = vshll.u32 %v794, 16
  %v988 = vrot.slane %v986, 5
  %v989 = vor.u32 %v985, %v988
  %v990 = vrot.slane %v989, 4
  %v992 = vshll.u32 %v810, 16
  %v994 = vrot.slane %v992, 5
  %v995 = vsel %vm72, %v990, %v994
  %v997 = vshrl.u32 %v795, 16
  %v999 = vrot.slane %v997, 4
  %v1000 = vshll.u32 %v795, 16
  %v1002 = vrot.slane %v1000, 5
  %v1003 = vor.u32 %v999, %v1002
  %v1004 = vrot.slane %v1003, 4
  %v1006 = vshll.u32 %v811, 16
  %v1008 = vrot.slane %v1006, 5
  %v1009 = vsel %vm72, %v1004, %v1008
  %v1011 = vshrl.u32 %v796, 16
  %v1013 = vrot.slane %v1011, 4
  %v1014 = vshll.u32 %v796, 16
  %v1016 = vrot.slane %v1014, 5
  %v1017 = vor.u32 %v1013, %v1016
  %v1018 = vrot.slane %v1017, 4
  %v1020 = vshll.u32 %v812, 16
  %v1022 = vrot.slane %v1020, 5
  %v1023 = vsel %vm72, %v1018, %v1022
  %v1025 = vshrl.u32 %v797, 16
  %v1027 = vrot.slane %v1025, 4
  %v1028 = vshll.u32 %v797, 16
  %v1030 = vrot.slane %v1028, 5
  %v1031 = vor.u32 %v1027, %v1030
  %v1032 = vrot.slane %v1031, 4
  %v1034 = vshll.u32 %v813, 16
  %v1036 = vrot.slane %v1034, 5
  %v1037 = vsel %vm72, %v1032, %v1036
  %v1038 = vld [vmem:[%s781] sm:$0xe]
  %v1039 = vld [vmem:[%s781 + $0x8] sm:$0xe]
  %v1040 = vld [vmem:[%s781 + $0x10] sm:$0xe]
  %v1041 = vld [vmem:[%s781 + $0x18] sm:$0xe]
  %v1042 = vld [vmem:[%s781 + $0x20] sm:$0xe]
  %v1043 = vld [vmem:[%s781 + $0x28] sm:$0xe]
  %v1044 = vld [vmem:[%s781 + $0x30] sm:$0xe]
  %v1045 = vld [vmem:[%s781 + $0x38] sm:$0xe]
  %v1046 = vld [vmem:[%s781 + $0x50] sm:$0xe]
  %v1047 = vld [vmem:[%s781 + $0x58] sm:$0xe]
  %v1048 = vld [vmem:[%s781 + $0x60] sm:$0xe]
  %v1049 = vld [vmem:[%s781 + $0x68] sm:$0xe]
  %v1050 = vld [vmem:[%s781 + $0x70] sm:$0xe]
  %v1051 = vld [vmem:[%s781 + $0x78] sm:$0xe]
  %v1052 = vld [vmem:[%s781 + $0x80] sm:$0xe]
  %v1053 = vld [vmem:[%s781 + $0x88] sm:$0xe]
  %v1086 = vrot.slane %v1038, 5
  %v1087 = vrot.slane %v1086, 4
  %v1088 = vrot.slane %v798, 5
  %v1089 = vsel %vm347, %v1087, %v1088
  %v1090 = vrot.slane %v1039, 5
  %v1091 = vrot.slane %v1090, 4
  %v1092 = vrot.slane %v799, 5
  %v1093 = vsel %vm347, %v1091, %v1092
  %v1094 = vrot.slane %v1040, 5
  %v1095 = vrot.slane %v1094, 4
  %v1096 = vrot.slane %v800, 5
  %v1097 = vsel %vm347, %v1095, %v1096
  %v1098 = vrot.slane %v1041, 5
  %v1099 = vrot.slane %v1098, 4
  %v1100 = vrot.slane %v801, 5
  %v1101 = vsel %vm347, %v1099, %v1100
  %v1102 = vrot.slane %v1042, 5
  %v1103 = vrot.slane %v1102, 4
  %v1104 = vrot.slane %v802, 5
  %v1105 = vsel %vm347, %v1103, %v1104
  %v1106 = vrot.slane %v1043, 5
  %v1107 = vrot.slane %v1106, 4
  %v1108 = vrot.slane %v803, 5
  %v1109 = vsel %vm347, %v1107, %v1108
  %v1110 = vrot.slane %v1044, 5
  %v1111 = vrot.slane %v1110, 4
  %v1112 = vrot.slane %v804, 5
  %v1113 = vsel %vm347, %v1111, %v1112
  %v1114 = vrot.slane %v1045, 5
  %v1115 = vrot.slane %v1114, 4
  %v1116 = vrot.slane %v805, 5
  %v1117 = vsel %vm347, %v1115, %v1116
  %v1118 = vrot.slane %v1046, 5
  %v1119 = vrot.slane %v1118, 4
  %v1120 = vrot.slane %v806, 5
  %v1121 = vsel %vm347, %v1119, %v1120
  %v1122 = vrot.slane %v1047, 5
  %v1123 = vrot.slane %v1122, 4
  %v1124 = vrot.slane %v807, 5
  %v1125 = vsel %vm347, %v1123, %v1124
  %v1126 = vrot.slane %v1048, 5
  %v1127 = vrot.slane %v1126, 4
  %v1128 = vrot.slane %v808, 5
  %v1129 = vsel %vm347, %v1127, %v1128
  %v1130 = vrot.slane %v1049, 5
  %v1131 = vrot.slane %v1130, 4
  %v1132 = vrot.slane %v809, 5
  %v1133 = vsel %vm347, %v1131, %v1132
  %v1134 = vrot.slane %v1050, 5
  %v1135 = vrot.slane %v1134, 4
  %v1136 = vrot.slane %v810, 5
  %v1137 = vsel %vm347, %v1135, %v1136
  %v1138 = vrot.slane %v1051, 5
  %v1139 = vrot.slane %v1138, 4
  %v1140 = vrot.slane %v811, 5
  %v1141 = vsel %vm347, %v1139, %v1140
  %v1142 = vrot.slane %v1052, 5
  %v1143 = vrot.slane %v1142, 4
  %v1144 = vrot.slane %v812, 5
  %v1145 = vsel %vm347, %v1143, %v1144
  %v1146 = vrot.slane %v1053, 5
  %v1147 = vrot.slane %v1146, 4
  %v1148 = vrot.slane %v813, 5
  %v1149 = vsel %vm347, %v1147, %v1148
  %v1166 = vunpack.c.l.b16 %v38
  %v1167 = vunpack.c.l.b16 %v39
  %v1168 = vunpack.c.l.b16 %v40
  %v1169 = vunpack.c.l.b16 %v41
  %v1170 = vunpack.c.l.b16 %v42
  %v1171 = vunpack.c.l.b16 %v43
  %v1172 = vunpack.c.l.b16 %v44
  %v1173 = vunpack.c.l.b16 %v45
  %v1174 = vunpack.c.l.b16 %v46
  %v1175 = vunpack.c.l.b16 %v47
  %v1176 = vunpack.c.l.b16 %v48
  %v1177 = vunpack.c.l.b16 %v49
  %v1178 = vunpack.c.l.b16 %v50
  %v1179 = vunpack.c.l.b16 %v51
  %v1180 = vunpack.c.l.b16 %v52
  %v1181 = vunpack.c.l.b16 %v53
  %v1182 = vpack.c.b16 %v1167, %v1166
  %v1183 = vpack.c.b16 %v1169, %v1168
  %v1184 = vpack.c.b16 %v1171, %v1170
  %v1185 = vpack.c.b16 %v1173, %v1172
  %v1186 = vpack.c.b16 %v1175, %v1174
  %v1187 = vpack.c.b16 %v1177, %v1176
  %v1188 = vpack.c.b16 %v1179, %v1178
  %v1189 = vpack.c.b16 %v1181, %v1180
  %v1198 = vunpack.c.l.b16 %v86
  %v1199 = vunpack.c.l.b16 %v100
  %v1200 = vunpack.c.l.b16 %v114
  %v1201 = vunpack.c.l.b16 %v128
  %v1202 = vunpack.c.l.b16 %v142
  %v1203 = vunpack.c.l.b16 %v156
  %v1204 = vunpack.c.l.b16 %v170
  %v1205 = vunpack.c.l.b16 %v184
  %v1206 = vunpack.c.l.b16 %v198
  %v1207 = vunpack.c.l.b16 %v212
  %v1208 = vunpack.c.l.b16 %v226
  %v1209 = vunpack.c.l.b16 %v240
  %v1210 = vunpack.c.l.b16 %v254
  %v1211 = vunpack.c.l.b16 %v268
  %v1212 = vunpack.c.l.b16 %v282
  %v1213 = vunpack.c.l.b16 %v296
  %v1214 = vpack.c.b16 %v1199, %v1198
  %v1215 = vpack.c.b16 %v1201, %v1200
  %v1216 = vpack.c.b16 %v1203, %v1202
  %v1217 = vpack.c.b16 %v1205, %v1204
  %v1218 = vpack.c.b16 %v1207, %v1206
  %v1219 = vpack.c.b16 %v1209, %v1208
  %v1220 = vpack.c.b16 %v1211, %v1210
  %v1221 = vpack.c.b16 %v1213, %v1212
  %v1230 = vunpack.c.l.b16 %v351
  %v1231 = vunpack.c.l.b16 %v355
  %v1232 = vunpack.c.l.b16 %v359
  %v1233 = vunpack.c.l.b16 %v363
  %v1234 = vunpack.c.l.b16 %v367
  %v1235 = vunpack.c.l.b16 %v371
  %v1236 = vunpack.c.l.b16 %v375
  %v1237 = vunpack.c.l.b16 %v379
  %v1238 = vunpack.c.l.b16 %v383
  %v1239 = vunpack.c.l.b16 %v387
  %v1240 = vunpack.c.l.b16 %v391
  %v1241 = vunpack.c.l.b16 %v395
  %v1242 = vunpack.c.l.b16 %v399
  %v1243 = vunpack.c.l.b16 %v403
  %v1244 = vunpack.c.l.b16 %v407
  %v1245 = vunpack.c.l.b16 %v411
  %v1246 = vpack.c.b16 %v1231, %v1230
  %v1247 = vpack.c.b16 %v1233, %v1232
  %v1248 = vpack.c.b16 %v1235, %v1234
  %v1249 = vpack.c.b16 %v1237, %v1236
  %v1250 = vpack.c.b16 %v1239, %v1238
  %v1251 = vpack.c.b16 %v1241, %v1240
  %v1252 = vpack.c.b16 %v1243, %v1242
  %v1253 = vpack.c.b16 %v1245, %v1244
  %v1278 = vunpack.c.l.b16 %v413
  %v1279 = vunpack.c.l.b16 %v414
  %v1280 = vunpack.c.l.b16 %v415
  %v1281 = vunpack.c.l.b16 %v416
  %v1282 = vunpack.c.l.b16 %v417
  %v1283 = vunpack.c.l.b16 %v418
  %v1284 = vunpack.c.l.b16 %v419
  %v1285 = vunpack.c.l.b16 %v420
  %v1286 = vunpack.c.l.b16 %v421
  %v1287 = vunpack.c.l.b16 %v422
  %v1288 = vunpack.c.l.b16 %v423
  %v1289 = vunpack.c.l.b16 %v424
  %v1290 = vunpack.c.l.b16 %v425
  %v1291 = vunpack.c.l.b16 %v426
  %v1292 = vunpack.c.l.b16 %v427
  %v1293 = vunpack.c.l.b16 %v428
  %v1294 = vpack.c.b16 %v1279, %v1278
  %v1295 = vpack.c.b16 %v1281, %v1280
  %v1296 = vpack.c.b16 %v1283, %v1282
  %v1297 = vpack.c.b16 %v1285, %v1284
  %v1298 = vpack.c.b16 %v1287, %v1286
  %v1299 = vpack.c.b16 %v1289, %v1288
  %v1300 = vpack.c.b16 %v1291, %v1290
  %v1301 = vpack.c.b16 %v1293, %v1292
  %v1310 = vunpack.c.l.b16 %v458
  %v1311 = vunpack.c.l.b16 %v472
  %v1312 = vunpack.c.l.b16 %v486
  %v1313 = vunpack.c.l.b16 %v500
  %v1314 = vunpack.c.l.b16 %v514
  %v1315 = vunpack.c.l.b16 %v528
  %v1316 = vunpack.c.l.b16 %v542
  %v1317 = vunpack.c.l.b16 %v556
  %v1318 = vunpack.c.l.b16 %v570
  %v1319 = vunpack.c.l.b16 %v584
  %v1320 = vunpack.c.l.b16 %v598
  %v1321 = vunpack.c.l.b16 %v612
  %v1322 = vunpack.c.l.b16 %v626
  %v1323 = vunpack.c.l.b16 %v640
  %v1324 = vunpack.c.l.b16 %v654
  %v1325 = vunpack.c.l.b16 %v668
  %v1326 = vpack.c.b16 %v1311, %v1310
  %v1327 = vpack.c.b16 %v1313, %v1312
  %v1328 = vpack.c.b16 %v1315, %v1314
  %v1329 = vpack.c.b16 %v1317, %v1316
  %v1330 = vpack.c.b16 %v1319, %v1318
  %v1331 = vpack.c.b16 %v1321, %v1320
  %v1332 = vpack.c.b16 %v1323, %v1322
  %v1333 = vpack.c.b16 %v1325, %v1324
  %v1342 = vunpack.c.l.b16 %v720
  %v1343 = vunpack.c.l.b16 %v724
  %v1344 = vunpack.c.l.b16 %v728
  %v1345 = vunpack.c.l.b16 %v732
  %v1346 = vunpack.c.l.b16 %v736
  %v1347 = vunpack.c.l.b16 %v740
  %v1348 = vunpack.c.l.b16 %v744
  %v1349 = vunpack.c.l.b16 %v748
  %v1350 = vunpack.c.l.b16 %v752
  %v1351 = vunpack.c.l.b16 %v756
  %v1352 = vunpack.c.l.b16 %v760
  %v1353 = vunpack.c.l.b16 %v764
  %v1354 = vunpack.c.l.b16 %v768
  %v1355 = vunpack.c.l.b16 %v772
  %v1356 = vunpack.c.l.b16 %v776
  %v1357 = vunpack.c.l.b16 %v780
  %v1358 = vpack.c.b16 %v1343, %v1342
  %v1359 = vpack.c.b16 %v1345, %v1344
  %v1360 = vpack.c.b16 %v1347, %v1346
  %v1361 = vpack.c.b16 %v1349, %v1348
  %v1362 = vpack.c.b16 %v1351, %v1350
  %v1363 = vpack.c.b16 %v1353, %v1352
  %v1364 = vpack.c.b16 %v1355, %v1354
  %v1365 = vpack.c.b16 %v1357, %v1356
  %v1390 = vunpack.c.l.b16 %v782
  %v1391 = vunpack.c.l.b16 %v783
  %v1392 = vunpack.c.l.b16 %v784
  %v1393 = vunpack.c.l.b16 %v785
  %v1394 = vunpack.c.l.b16 %v786
  %v1395 = vunpack.c.l.b16 %v787
  %v1396 = vunpack.c.l.b16 %v788
  %v1397 = vunpack.c.l.b16 %v789
  %v1398 = vunpack.c.l.b16 %v790
  %v1399 = vunpack.c.l.b16 %v791
  %v1400 = vunpack.c.l.b16 %v792
  %v1401 = vunpack.c.l.b16 %v793
  %v1402 = vunpack.c.l.b16 %v794
  %v1403 = vunpack.c.l.b16 %v795
  %v1404 = vunpack.c.l.b16 %v796
  %v1405 = vunpack.c.l.b16 %v797
  %v1406 = vpack.c.b16 %v1391, %v1390
  %v1407 = vpack.c.b16 %v1393, %v1392
  %v1408 = vpack.c.b16 %v1395, %v1394
  %v1409 = vpack.c.b16 %v1397, %v1396
  %v1410 = vpack.c.b16 %v1399, %v1398
  %v1411 = vpack.c.b16 %v1401, %v1400
  %v1412 = vpack.c.b16 %v1403, %v1402
  %v1413 = vpack.c.b16 %v1405, %v1404
  %v1422 = vunpack.c.l.b16 %v827
  %v1423 = vunpack.c.l.b16 %v841
  %v1424 = vunpack.c.l.b16 %v855
  %v1425 = vunpack.c.l.b16 %v869
  %v1426 = vunpack.c.l.b16 %v883
  %v1427 = vunpack.c.l.b16 %v897
  %v1428 = vunpack.c.l.b16 %v911
  %v1429 = vunpack.c.l.b16 %v925
  %v1430 = vunpack.c.l.b16 %v939
  %v1431 = vunpack.c.l.b16 %v953
  %v1432 = vunpack.c.l.b16 %v967
  %v1433 = vunpack.c.l.b16 %v981
  %v1434 = vunpack.c.l.b16 %v995
  %v1435 = vunpack.c.l.b16 %v1009
  %v1436 = vunpack.c.l.b16 %v1023
  %v1437 = vunpack.c.l.b16 %v1037
  %v1438 = vpack.c.b16 %v1423, %v1422
  %v1439 = vpack.c.b16 %v1425, %v1424
  %v1440 = vpack.c.b16 %v1427, %v1426
  %v1441 = vpack.c.b16 %v1429, %v1428
  %v1442 = vpack.c.b16 %v1431, %v1430
  %v1443 = vpack.c.b16 %v1433, %v1432
  %v1444 = vpack.c.b16 %v1435, %v1434
  %v1445 = vpack.c.b16 %v1437, %v1436
  %v1454 = vunpack.c.l.b16 %v1089
  %v1455 = vunpack.c.l.b16 %v1093
  %v1456 = vunpack.c.l.b16 %v1097
  %v1457 = vunpack.c.l.b16 %v1101
  %v1458 = vunpack.c.l.b16 %v1105
  %v1459 = vunpack.c.l.b16 %v1109
  %v1460 = vunpack.c.l.b16 %v1113
  %v1461 = vunpack.c.l.b16 %v1117
  %v1462 = vunpack.c.l.b16 %v1121
  %v1463 = vunpack.c.l.b16 %v1125
  %v1464 = vunpack.c.l.b16 %v1129
  %v1465 = vunpack.c.l.b16 %v1133
  %v1466 = vunpack.c.l.b16 %v1137
  %v1467 = vunpack.c.l.b16 %v1141
  %v1468 = vunpack.c.l.b16 %v1145
  %v1469 = vunpack.c.l.b16 %v1149
  %v1470 = vpack.c.b16 %v1455, %v1454
  %v1471 = vpack.c.b16 %v1457, %v1456
  %v1472 = vpack.c.b16 %v1459, %v1458
  %v1473 = vpack.c.b16 %v1461, %v1460
  %v1474 = vpack.c.b16 %v1463, %v1462
  %v1475 = vpack.c.b16 %v1465, %v1464
  %v1476 = vpack.c.b16 %v1467, %v1466
  %v1477 = vpack.c.b16 %v1469, %v1468
  %v1486 = vld [vmem:[%s1] sm:$0xf]
  %v1487 = vld [vmem:[%s1 + $0x4] sm:$0xf]
  %v1488 = vld [vmem:[%s1 + $0x8] sm:$0xf]
  %v1489 = vld [vmem:[%s1 + $0xc] sm:$0xf]
  %v1490 = vld [vmem:[%s1 + $0x10] sm:$0xf]
  %v1491 = vld [vmem:[%s1 + $0x14] sm:$0xf]
  %v1492 = vld [vmem:[%s1 + $0x18] sm:$0xf]
  %v1493 = vld [vmem:[%s1 + $0x1c] sm:$0xf]
  %v1494 = vld [vmem:[%s1 + $0x20] sm:$0xf]
  %v1495 = vld [vmem:[%s1 + $0x24] sm:$0xf]
  %v1496 = vld [vmem:[%s1 + $0x28] sm:$0xf]
  %v1497 = vld [vmem:[%s1 + $0x2c] sm:$0xf]
  %v1498 = vld [vmem:[%s1 + $0x30] sm:$0xf]
  %v1499 = vld [vmem:[%s1 + $0x34] sm:$0xf]
  %v1500 = vld [vmem:[%s1 + $0x38] sm:$0xf]
  %v1501 = vld [vmem:[%s1 + $0x3c] sm:$0xf]
  %v1502 = vld [vmem:[%s1 + $0x40] sm:$0xf]
  %v1503 = vld [vmem:[%s1 + $0x44] sm:$0xf]
  %v1504 = vld [vmem:[%s1 + $0x48] sm:$0xf]
  %v1505 = vld [vmem:[%s1 + $0x4c] sm:$0xf]
  %v1506 = vld [vmem:[%s1 + $0x50] sm:$0xf]
  %v1507 = vld [vmem:[%s1 + $0x54] sm:$0xf]
  %v1508 = vld [vmem:[%s1 + $0x58] sm:$0xf]
  %v1509 = vld [vmem:[%s1 + $0x5c] sm:$0xf]
  %v1510 = vld [vmem:[%s1 + $0x60] sm:$0xf]
  %v1511 = vld [vmem:[%s1 + $0x64] sm:$0xf]
  %v1512 = vld [vmem:[%s1 + $0x68] sm:$0xf]
  %v1513 = vld [vmem:[%s1 + $0x6c] sm:$0xf]
  %v1514 = vld [vmem:[%s1 + $0x70] sm:$0xf]
  %v1515 = vld [vmem:[%s1 + $0x74] sm:$0xf]
  %v1516 = vld [vmem:[%s1 + $0x78] sm:$0xf]
  %v1517 = vld [vmem:[%s1 + $0x7c] sm:$0xf]
  %v1518 = vld [vmem:[%s1 + $0x80] sm:$0xf]
  %v1519 = vld [vmem:[%s1 + $0x84] sm:$0xf]
  %v1520 = vld [vmem:[%s1 + $0x88] sm:$0xf]
  %v1521 = vld [vmem:[%s1 + $0x8c] sm:$0xf]
  %v1522 = vld [vmem:[%s1 + $0x90] sm:$0xf]
  %v1523 = vld [vmem:[%s1 + $0x94] sm:$0xf]
  %v1524 = vld [vmem:[%s1 + $0x98] sm:$0xf]
  %v1525 = vld [vmem:[%s1 + $0x9c] sm:$0xf]
  %v1526 = vld [vmem:[%s1 + $0xa0] sm:$0xf]
  %v1527 = vld [vmem:[%s1 + $0xa4] sm:$0xf]
  %v1528 = vld [vmem:[%s1 + $0xa8] sm:$0xf]
  %v1529 = vld [vmem:[%s1 + $0xac] sm:$0xf]
  %v1530 = vld [vmem:[%s1 + $0xb0] sm:$0xf]
  %v1531 = vld [vmem:[%s1 + $0xb4] sm:$0xf]
  %v1532 = vld [vmem:[%s1 + $0xb8] sm:$0xf]
  %v1533 = vld [vmem:[%s1 + $0xbc] sm:$0xf]
  %v1534 = vld [vmem:[%s1 + $0xc0] sm:$0xf]
  %v1535 = vld [vmem:[%s1 + $0xc4] sm:$0xf]
  %v1536 = vld [vmem:[%s1 + $0xc8] sm:$0xf]
  %v1537 = vld [vmem:[%s1 + $0xcc] sm:$0xf]
  %v1538 = vld [vmem:[%s1 + $0xd0] sm:$0xf]
  %v1539 = vld [vmem:[%s1 + $0xd4] sm:$0xf]
  %v1540 = vld [vmem:[%s1 + $0xd8] sm:$0xf]
  %v1541 = vld [vmem:[%s1 + $0xdc] sm:$0xf]
  %v1542 = vld [vmem:[%s1 + $0xe0] sm:$0xf]
  %v1543 = vld [vmem:[%s1 + $0xe4] sm:$0xf]
  %v1544 = vld [vmem:[%s1 + $0xe8] sm:$0xf]
  %v1545 = vld [vmem:[%s1 + $0xec] sm:$0xf]
  %v1546 = vld [vmem:[%s1 + $0xf0] sm:$0xf]
  %v1547 = vld [vmem:[%s1 + $0xf4] sm:$0xf]
  %v1548 = vld [vmem:[%s1 + $0xf8] sm:$0xf]
  %v1549 = vld [vmem:[%s1 + $0xfc] sm:$0xf]
  %v1550 = vld [vmem:[%s1 + $0x100] sm:$0xf]
  %v1551 = vld [vmem:[%s1 + $0x104] sm:$0xf]
  %v1552 = vld [vmem:[%s1 + $0x108] sm:$0xf]
  %v1553 = vld [vmem:[%s1 + $0x10c] sm:$0xf]
  %v1554 = vld [vmem:[%s1 + $0x110] sm:$0xf]
  %v1555 = vld [vmem:[%s1 + $0x114] sm:$0xf]
  %v1556 = vld [vmem:[%s1 + $0x118] sm:$0xf]
  %v1557 = vld [vmem:[%s1 + $0x11c] sm:$0xf]
  %v1558 = vld [vmem:[%s1 + $0x120] sm:$0xf]
  %v1559 = vld [vmem:[%s1 + $0x124] sm:$0xf]
  %v1560 = vld [vmem:[%s1 + $0x128] sm:$0xf]
  %v1561 = vld [vmem:[%s1 + $0x12c] sm:$0xf]
  %v1562 = vld [vmem:[%s1 + $0x130] sm:$0xf]
  %v1563 = vld [vmem:[%s1 + $0x134] sm:$0xf]
  %v1564 = vld [vmem:[%s1 + $0x138] sm:$0xf]
  %v1565 = vld [vmem:[%s1 + $0x13c] sm:$0xf]
  %v1566 = vld [vmem:[%s1 + $0x140] sm:$0xf]
  %v1567 = vld [vmem:[%s1 + $0x144] sm:$0xf]
  %v1568 = vld [vmem:[%s1 + $0x148] sm:$0xf]
  %v1569 = vld [vmem:[%s1 + $0x14c] sm:$0xf]
  %v1570 = vld [vmem:[%s1 + $0x150] sm:$0xf]
  %v1571 = vld [vmem:[%s1 + $0x154] sm:$0xf]
  %v1572 = vld [vmem:[%s1 + $0x158] sm:$0xf]
  %v1573 = vld [vmem:[%s1 + $0x15c] sm:$0xf]
  %v1574 = vld [vmem:[%s1 + $0x160] sm:$0xf]
  %v1575 = vld [vmem:[%s1 + $0x164] sm:$0xf]
  %v1576 = vld [vmem:[%s1 + $0x168] sm:$0xf]
  %v1577 = vld [vmem:[%s1 + $0x16c] sm:$0xf]
  %v1578 = vld [vmem:[%s1 + $0x170] sm:$0xf]
  %v1579 = vld [vmem:[%s1 + $0x174] sm:$0xf]
  %v1580 = vld [vmem:[%s1 + $0x178] sm:$0xf]
  %v1581 = vld [vmem:[%s1 + $0x17c] sm:$0xf]
  %v1582 = vld [vmem:[%s1 + $0x180] sm:$0xf]
  %v1583 = vld [vmem:[%s1 + $0x184] sm:$0xf]
  %v1584 = vld [vmem:[%s1 + $0x188] sm:$0xf]
  %v1585 = vld [vmem:[%s1 + $0x18c] sm:$0xf]
  %v1586 = vld [vmem:[%s1 + $0x190] sm:$0xf]
  %v1587 = vld [vmem:[%s1 + $0x194] sm:$0xf]
  %v1588 = vld [vmem:[%s1 + $0x198] sm:$0xf]
  %v1589 = vld [vmem:[%s1 + $0x19c] sm:$0xf]
  %v1590 = vld [vmem:[%s1 + $0x1a0] sm:$0xf]
  %v1591 = vld [vmem:[%s1 + $0x1a4] sm:$0xf]
  %v1592 = vld [vmem:[%s1 + $0x1a8] sm:$0xf]
  %v1593 = vld [vmem:[%s1 + $0x1ac] sm:$0xf]
  %v1594 = vld [vmem:[%s1 + $0x1b0] sm:$0xf]
  %v1595 = vld [vmem:[%s1 + $0x1b4] sm:$0xf]
  %v1596 = vld [vmem:[%s1 + $0x1b8] sm:$0xf]
  %v1597 = vld [vmem:[%s1 + $0x1bc] sm:$0xf]
  %v1598 = vld [vmem:[%s1 + $0x1c0] sm:$0xf]
  %v1599 = vld [vmem:[%s1 + $0x1c4] sm:$0xf]
  %v1600 = vld [vmem:[%s1 + $0x1c8] sm:$0xf]
  %v1601 = vld [vmem:[%s1 + $0x1cc] sm:$0xf]
  %v1602 = vld [vmem:[%s1 + $0x1d0] sm:$0xf]
  %v1603 = vld [vmem:[%s1 + $0x1d4] sm:$0xf]
  %v1604 = vld [vmem:[%s1 + $0x1d8] sm:$0xf]
  %v1605 = vld [vmem:[%s1 + $0x1dc] sm:$0xf]
  %v1606 = vld [vmem:[%s1 + $0x1e0] sm:$0xf]
  %v1607 = vld [vmem:[%s1 + $0x1e4] sm:$0xf]
  %v1608 = vld [vmem:[%s1 + $0x1e8] sm:$0xf]
  %v1609 = vld [vmem:[%s1 + $0x1ec] sm:$0xf]
  %v1610 = vld [vmem:[%s1 + $0x1f0] sm:$0xf]
  %v1611 = vld [vmem:[%s1 + $0x1f4] sm:$0xf]
  %v1612 = vld [vmem:[%s1 + $0x1f8] sm:$0xf]
  %v1613 = vld [vmem:[%s1 + $0x1fc] sm:$0xf]
  %v1614 = vld [vmem:[%s1 + $0x200] sm:$0xf]
  %v1615 = vld [vmem:[%s1 + $0x204] sm:$0xf]
  %v1616 = vld [vmem:[%s1 + $0x208] sm:$0xf]
  %v1617 = vld [vmem:[%s1 + $0x20c] sm:$0xf]
  %v1618 = vld [vmem:[%s1 + $0x210] sm:$0xf]
  %v1619 = vld [vmem:[%s1 + $0x214] sm:$0xf]
  %v1620 = vld [vmem:[%s1 + $0x218] sm:$0xf]
  %v1621 = vld [vmem:[%s1 + $0x21c] sm:$0xf]
  %v1622 = vld [vmem:[%s1 + $0x220] sm:$0xf]
  %v1623 = vld [vmem:[%s1 + $0x224] sm:$0xf]
  %v1624 = vld [vmem:[%s1 + $0x228] sm:$0xf]
  %v1625 = vld [vmem:[%s1 + $0x22c] sm:$0xf]
  %v1626 = vld [vmem:[%s1 + $0x230] sm:$0xf]
  %v1627 = vld [vmem:[%s1 + $0x234] sm:$0xf]
  %v1628 = vld [vmem:[%s1 + $0x238] sm:$0xf]
  %v1629 = vld [vmem:[%s1 + $0x23c] sm:$0xf]
  %v1774 = vunpack.c.l.b16 %v1486
  %v1775 = vunpack.c.l.b16 %v1487
  %v1776 = vunpack.c.l.b16 %v1488
  %v1777 = vunpack.c.l.b16 %v1489
  %v1778 = vunpack.c.l.b16 %v1490
  %v1779 = vunpack.c.l.b16 %v1491
  %v1780 = vunpack.c.l.b16 %v1492
  %v1781 = vunpack.c.l.b16 %v1493
  %v1782 = vunpack.c.l.b16 %v1494
  %v1783 = vunpack.c.l.b16 %v1495
  %v1784 = vunpack.c.l.b16 %v1496
  %v1785 = vunpack.c.l.b16 %v1497
  %v1786 = vunpack.c.l.b16 %v1498
  %v1787 = vunpack.c.l.b16 %v1499
  %v1788 = vunpack.c.l.b16 %v1500
  %v1789 = vunpack.c.l.b16 %v1501
  %v1790 = vunpack.c.l.b16 %v1502
  %v1791 = vunpack.c.l.b16 %v1503
  %v1792 = vunpack.c.l.b16 %v1504
  %v1793 = vunpack.c.l.b16 %v1505
  %v1794 = vunpack.c.l.b16 %v1506
  %v1795 = vunpack.c.l.b16 %v1507
  %v1796 = vunpack.c.l.b16 %v1508
  %v1797 = vunpack.c.l.b16 %v1509
  %v1798 = vunpack.c.l.b16 %v1510
  %v1799 = vunpack.c.l.b16 %v1511
  %v1800 = vunpack.c.l.b16 %v1512
  %v1801 = vunpack.c.l.b16 %v1513
  %v1802 = vunpack.c.l.b16 %v1514
  %v1803 = vunpack.c.l.b16 %v1515
  %v1804 = vunpack.c.l.b16 %v1516
  %v1805 = vunpack.c.l.b16 %v1517
  %v1806 = vunpack.c.l.b16 %v1518
  %v1807 = vunpack.c.l.b16 %v1519
  %v1808 = vunpack.c.l.b16 %v1520
  %v1809 = vunpack.c.l.b16 %v1521
  %v1810 = vunpack.c.l.b16 %v1522
  %v1811 = vunpack.c.l.b16 %v1523
  %v1812 = vunpack.c.l.b16 %v1524
  %v1813 = vunpack.c.l.b16 %v1525
  %v1814 = vunpack.c.l.b16 %v1526
  %v1815 = vunpack.c.l.b16 %v1527
  %v1816 = vunpack.c.l.b16 %v1528
  %v1817 = vunpack.c.l.b16 %v1529
  %v1818 = vunpack.c.l.b16 %v1530
  %v1819 = vunpack.c.l.b16 %v1531
  %v1820 = vunpack.c.l.b16 %v1532
  %v1821 = vunpack.c.l.b16 %v1533
  %v1822 = vunpack.c.l.b16 %v1534
  %v1823 = vunpack.c.l.b16 %v1535
  %v1824 = vunpack.c.l.b16 %v1536
  %v1825 = vunpack.c.l.b16 %v1537
  %v1826 = vunpack.c.l.b16 %v1538
  %v1827 = vunpack.c.l.b16 %v1539
  %v1828 = vunpack.c.l.b16 %v1540
  %v1829 = vunpack.c.l.b16 %v1541
  %v1830 = vunpack.c.l.b16 %v1542
  %v1831 = vunpack.c.l.b16 %v1543
  %v1832 = vunpack.c.l.b16 %v1544
  %v1833 = vunpack.c.l.b16 %v1545
  %v1834 = vunpack.c.l.b16 %v1546
  %v1835 = vunpack.c.l.b16 %v1547
  %v1836 = vunpack.c.l.b16 %v1548
  %v1837 = vunpack.c.l.b16 %v1549
  %v1838 = vunpack.c.l.b16 %v1550
  %v1839 = vunpack.c.l.b16 %v1551
  %v1840 = vunpack.c.l.b16 %v1552
  %v1841 = vunpack.c.l.b16 %v1553
  %v1842 = vunpack.c.l.b16 %v1554
  %v1843 = vunpack.c.l.b16 %v1555
  %v1844 = vunpack.c.l.b16 %v1556
  %v1845 = vunpack.c.l.b16 %v1557
  %v1846 = vunpack.c.l.b16 %v1558
  %v1847 = vunpack.c.l.b16 %v1559
  %v1848 = vunpack.c.l.b16 %v1560
  %v1849 = vunpack.c.l.b16 %v1561
  %v1850 = vunpack.c.l.b16 %v1562
  %v1851 = vunpack.c.l.b16 %v1563
  %v1852 = vunpack.c.l.b16 %v1564
  %v1853 = vunpack.c.l.b16 %v1565
  %v1854 = vunpack.c.l.b16 %v1566
  %v1855 = vunpack.c.l.b16 %v1567
  %v1856 = vunpack.c.l.b16 %v1568
  %v1857 = vunpack.c.l.b16 %v1569
  %v1858 = vunpack.c.l.b16 %v1570
  %v1859 = vunpack.c.l.b16 %v1571
  %v1860 = vunpack.c.l.b16 %v1572
  %v1861 = vunpack.c.l.b16 %v1573
  %v1862 = vunpack.c.l.b16 %v1574
  %v1863 = vunpack.c.l.b16 %v1575
  %v1864 = vunpack.c.l.b16 %v1576
  %v1865 = vunpack.c.l.b16 %v1577
  %v1866 = vunpack.c.l.b16 %v1578
  %v1867 = vunpack.c.l.b16 %v1579
  %v1868 = vunpack.c.l.b16 %v1580
  %v1869 = vunpack.c.l.b16 %v1581
  %v1870 = vunpack.c.l.b16 %v1582
  %v1871 = vunpack.c.l.b16 %v1583
  %v1872 = vunpack.c.l.b16 %v1584
  %v1873 = vunpack.c.l.b16 %v1585
  %v1874 = vunpack.c.l.b16 %v1586
  %v1875 = vunpack.c.l.b16 %v1587
  %v1876 = vunpack.c.l.b16 %v1588
  %v1877 = vunpack.c.l.b16 %v1589
  %v1878 = vunpack.c.l.b16 %v1590
  %v1879 = vunpack.c.l.b16 %v1591
  %v1880 = vunpack.c.l.b16 %v1592
  %v1881 = vunpack.c.l.b16 %v1593
  %v1882 = vunpack.c.l.b16 %v1594
  %v1883 = vunpack.c.l.b16 %v1595
  %v1884 = vunpack.c.l.b16 %v1596
  %v1885 = vunpack.c.l.b16 %v1597
  %v1886 = vunpack.c.l.b16 %v1598
  %v1887 = vunpack.c.l.b16 %v1599
  %v1888 = vunpack.c.l.b16 %v1600
  %v1889 = vunpack.c.l.b16 %v1601
  %v1890 = vunpack.c.l.b16 %v1602
  %v1891 = vunpack.c.l.b16 %v1603
  %v1892 = vunpack.c.l.b16 %v1604
  %v1893 = vunpack.c.l.b16 %v1605
  %v1894 = vunpack.c.l.b16 %v1606
  %v1895 = vunpack.c.l.b16 %v1607
  %v1896 = vunpack.c.l.b16 %v1608
  %v1897 = vunpack.c.l.b16 %v1609
  %v1898 = vunpack.c.l.b16 %v1610
  %v1899 = vunpack.c.l.b16 %v1611
  %v1900 = vunpack.c.l.b16 %v1612
  %v1901 = vunpack.c.l.b16 %v1613
  %v1902 = vunpack.c.l.b16 %v1614
  %v1903 = vunpack.c.l.b16 %v1615
  %v1904 = vunpack.c.l.b16 %v1616
  %v1905 = vunpack.c.l.b16 %v1617
  %v1906 = vunpack.c.l.b16 %v1618
  %v1907 = vunpack.c.l.b16 %v1619
  %v1908 = vunpack.c.l.b16 %v1620
  %v1909 = vunpack.c.l.b16 %v1621
  %v1910 = vunpack.c.l.b16 %v1622
  %v1911 = vunpack.c.l.b16 %v1623
  %v1912 = vunpack.c.l.b16 %v1624
  %v1913 = vunpack.c.l.b16 %v1625
  %v1914 = vunpack.c.l.b16 %v1626
  %v1915 = vunpack.c.l.b16 %v1627
  %v1916 = vunpack.c.l.b16 %v1628
  %v1917 = vunpack.c.l.b16 %v1629
  %v1918 = vpack.c.b16 %v1775, %v1774
  %v1919 = vpack.c.b16 %v1777, %v1776
  %v1920 = vpack.c.b16 %v1779, %v1778
  %v1921 = vpack.c.b16 %v1781, %v1780
  %v1922 = vpack.c.b16 %v1783, %v1782
  %v1923 = vpack.c.b16 %v1785, %v1784
  %v1924 = vpack.c.b16 %v1787, %v1786
  %v1925 = vpack.c.b16 %v1789, %v1788
  %v1926 = vpack.c.b16 %v1791, %v1790
  %v1927 = vpack.c.b16 %v1793, %v1792
  %v1928 = vpack.c.b16 %v1795, %v1794
  %v1929 = vpack.c.b16 %v1797, %v1796
  %v1930 = vpack.c.b16 %v1799, %v1798
  %v1931 = vpack.c.b16 %v1801, %v1800
  %v1932 = vpack.c.b16 %v1803, %v1802
  %v1933 = vpack.c.b16 %v1805, %v1804
  %v1934 = vpack.c.b16 %v1807, %v1806
  %v1935 = vpack.c.b16 %v1809, %v1808
  %v1936 = vpack.c.b16 %v1811, %v1810
  %v1937 = vpack.c.b16 %v1813, %v1812
  %v1938 = vpack.c.b16 %v1815, %v1814
  %v1939 = vpack.c.b16 %v1817, %v1816
  %v1940 = vpack.c.b16 %v1819, %v1818
  %v1941 = vpack.c.b16 %v1821, %v1820
  %v1942 = vpack.c.b16 %v1823, %v1822
  %v1943 = vpack.c.b16 %v1825, %v1824
  %v1944 = vpack.c.b16 %v1827, %v1826
  %v1945 = vpack.c.b16 %v1829, %v1828
  %v1946 = vpack.c.b16 %v1831, %v1830
  %v1947 = vpack.c.b16 %v1833, %v1832
  %v1948 = vpack.c.b16 %v1835, %v1834
  %v1949 = vpack.c.b16 %v1837, %v1836
  %v1950 = vpack.c.b16 %v1839, %v1838
  %v1951 = vpack.c.b16 %v1841, %v1840
  %v1952 = vpack.c.b16 %v1843, %v1842
  %v1953 = vpack.c.b16 %v1845, %v1844
  %v1954 = vpack.c.b16 %v1847, %v1846
  %v1955 = vpack.c.b16 %v1849, %v1848
  %v1956 = vpack.c.b16 %v1851, %v1850
  %v1957 = vpack.c.b16 %v1853, %v1852
  %v1958 = vpack.c.b16 %v1855, %v1854
  %v1959 = vpack.c.b16 %v1857, %v1856
  %v1960 = vpack.c.b16 %v1859, %v1858
  %v1961 = vpack.c.b16 %v1861, %v1860
  %v1962 = vpack.c.b16 %v1863, %v1862
  %v1963 = vpack.c.b16 %v1865, %v1864
  %v1964 = vpack.c.b16 %v1867, %v1866
  %v1965 = vpack.c.b16 %v1869, %v1868
  %v1966 = vpack.c.b16 %v1871, %v1870
  %v1967 = vpack.c.b16 %v1873, %v1872
  %v1968 = vpack.c.b16 %v1875, %v1874
  %v1969 = vpack.c.b16 %v1877, %v1876
  %v1970 = vpack.c.b16 %v1879, %v1878
  %v1971 = vpack.c.b16 %v1881, %v1880
  %v1972 = vpack.c.b16 %v1883, %v1882
  %v1973 = vpack.c.b16 %v1885, %v1884
  %v1974 = vpack.c.b16 %v1887, %v1886
  %v1975 = vpack.c.b16 %v1889, %v1888
  %v1976 = vpack.c.b16 %v1891, %v1890
  %v1977 = vpack.c.b16 %v1893, %v1892
  %v1978 = vpack.c.b16 %v1895, %v1894
  %v1979 = vpack.c.b16 %v1897, %v1896
  %v1980 = vpack.c.b16 %v1899, %v1898
  %v1981 = vpack.c.b16 %v1901, %v1900
  %v1982 = vpack.c.b16 %v1903, %v1902
  %v1983 = vpack.c.b16 %v1905, %v1904
  %v1984 = vpack.c.b16 %v1907, %v1906
  %v1985 = vpack.c.b16 %v1909, %v1908
  %v1986 = vpack.c.b16 %v1911, %v1910
  %v1987 = vpack.c.b16 %v1913, %v1912
  %v1988 = vpack.c.b16 %v1915, %v1914
  %v1989 = vpack.c.b16 %v1917, %v1916
  %2062 = vmatprep.subr.bf16.mxu0 0
  %2063 = vmatpush1.bf16.msra.mxu0 %v1918
  %2064 = vmatprep.subr.bf16.mxu0 0
  %2065 = vmatpush1.bf16.msra.mxu0 %v1919
  %2066 = vmatprep.subr.bf16.mxu0 0
  %2067 = vmatpush1.bf16.msra.mxu0 %v1920
  %2068 = vmatprep.subr.bf16.mxu0 0
  %2069 = vmatpush1.bf16.msra.mxu0 %v1921
  %2070 = vmatprep.subr.bf16.mxu0 0
  %2071 = vmatpush1.bf16.msra.mxu0 %v1922
  %2072 = vmatprep.subr.bf16.mxu0 0
  %2073 = vmatpush1.bf16.msra.mxu0 %v1923
  %2074 = vmatprep.subr.bf16.mxu0 0
  %2075 = vmatpush1.bf16.msra.mxu0 %v1924
  %2076 = vmatprep.subr.bf16.mxu0 0
  %2077 = vmatpush1.bf16.msra.mxu0 %v1925
  %2078 = vmatprep.subr.bf16.mxu0 0
  %2079 = vmatpush1.bf16.msra.mxu0 %v1926
  %2080 = vmatprep.subr.bf16.mxu0 0
  %2081 = vmatpush1.bf16.msra.mxu0 %v1927
  %2082 = vmatprep.subr.bf16.mxu0 0
  %2083 = vmatpush1.bf16.msra.mxu0 %v1928
  %2084 = vmatprep.subr.bf16.mxu0 0
  %2085 = vmatpush1.bf16.msra.mxu0 %v1929
  %2086 = vmatprep.subr.bf16.mxu0 0
  %2087 = vmatpush1.bf16.msra.mxu0 %v1930
  %2088 = vmatprep.subr.bf16.mxu0 0
  %2089 = vmatpush1.bf16.msra.mxu0 %v1931
  %2090 = vmatprep.subr.bf16.mxu0 0
  %2091 = vmatpush1.bf16.msra.mxu0 %v1932
  %2092 = vmatprep.subr.bf16.mxu0 0
  %2093 = vmatpush1.bf16.msra.mxu0 %v1933
  %2094 = vmatprep.mubr.bf16.mxu0 %v1214
  %2095 = vmatmul.mubr.bf16.gmra.mrb[0].mxu0 %v1182
  %v2096 = vpop.f32.mrb[0].mxu0
  %v2097 = vadd.f32 0.0, %v2096
  %v2098 = vpop.f32.mrb[0].mxu0
  %v2099 = vpop.f32.mrb[0].mxu0
  %v2100 = vadd.f32 0.0, %v2099
  %v2101 = vpop.f32.mrb[0].mxu0
  %2102 = vmatprep.mubr.bf16.mxu0 %v1215
  %2103 = vmatmul.mubr.bf16.gmra.mrb[0].mxu0 %v1183
  %v2104 = vpop.f32.mrb[0].mxu0
  %v2105 = vadd.f32 0.0, %v2104
  %v2106 = vpop.f32.mrb[0].mxu0
  %v2107 = vpop.f32.mrb[0].mxu0
  %v2108 = vadd.f32 0.0, %v2107
  %v2109 = vpop.f32.mrb[0].mxu0
  %2110 = vmatprep.mubr.bf16.mxu0 %v1216
  %2111 = vmatmul.mubr.bf16.gmra.mrb[0].mxu0 %v1184
  %v2112 = vpop.f32.mrb[0].mxu0
  %v2113 = vadd.f32 0.0, %v2112
  %v2114 = vpop.f32.mrb[0].mxu0
  %v2115 = vpop.f32.mrb[0].mxu0
  %v2116 = vadd.f32 0.0, %v2115
  %v2117 = vpop.f32.mrb[0].mxu0
  %2118 = vmatprep.mubr.bf16.mxu0 %v1217
  %2119 = vmatmul.mubr.bf16.gmra.mrb[0].mxu0 %v1185
  %v2120 = vpop.f32.mrb[0].mxu0
  %v2121 = vadd.f32 0.0, %v2120
  %v2122 = vpop.f32.mrb[0].mxu0
  %v2123 = vpop.f32.mrb[0].mxu0
  %v2124 = vadd.f32 0.0, %v2123
  %v2125 = vpop.f32.mrb[0].mxu0
  %2126 = vmatprep.mubr.bf16.mxu0 %v1218
  %2127 = vmatmul.mubr.bf16.gmra.mrb[0].mxu0 %v1186
  %v2128 = vpop.f32.mrb[0].mxu0
  %v2129 = vadd.f32 0.0, %v2128
  %v2130 = vpop.f32.mrb[0].mxu0
  %v2131 = vpop.f32.mrb[0].mxu0
  %v2132 = vadd.f32 0.0, %v2131
  %v2133 = vpop.f32.mrb[0].mxu0
  %2134 = vmatprep.mubr.bf16.mxu0 %v1219
  %2135 = vmatmul.mubr.bf16.gmra.mrb[0].mxu0 %v1187
  %v2136 = vpop.f32.mrb[0].mxu0
  %v2137 = vadd.f32 0.0, %v2136
  %v2138 = vpop.f32.mrb[0].mxu0
  %v2139 = vpop.f32.mrb[0].mxu0
  %v2140 = vadd.f32 0.0, %v2139
  %v2141 = vpop.f32.mrb[0].mxu0
  %2142 = vmatprep.mubr.bf16.mxu0 %v1220
  %2143 = vmatmul.mubr.bf16.gmra.mrb[0].mxu0 %v1188
  %v2144 = vpop.f32.mrb[0].mxu0
  %v2145 = vadd.f32 0.0, %v2144
  %v2146 = vpop.f32.mrb[0].mxu0
  %v2147 = vpop.f32.mrb[0].mxu0
  %v2148 = vadd.f32 0.0, %v2147
  %v2149 = vpop.f32.mrb[0].mxu0
  %2150 = vmatprep.mubr.bf16.mxu0 %v1221
  %2151 = vmatmul.mubr.bf16.gmra.mrb[0].mxu0 %v1189
  %v2152 = vpop.f32.mrb[0].mxu0
  %v2153 = vadd.f32 0.0, %v2152
  %v2154 = vpop.f32.mrb[0].mxu0
  %v2155 = vpop.f32.mrb[0].mxu0
  %v2156 = vadd.f32 0.0, %v2155
  %v2157 = vpop.f32.mrb[0].mxu0
  %2158 = vdwg.mxu0
  %2159 = vmatprep.subr.bf16.mxu0 0
  %2160 = vmatpush1.bf16.msra.mxu0 %v1934
  %2161 = vmatprep.subr.bf16.mxu0 0
  %2162 = vmatpush1.bf16.msra.mxu0 %v1935
  %2163 = vmatprep.subr.bf16.mxu0 0
  %2164 = vmatpush1.bf16.msra.mxu0 %v1936
  %2165 = vmatprep.subr.bf16.mxu0 0
  %2166 = vmatpush1.bf16.msra.mxu0 %v1937
  %2167 = vmatprep.subr.bf16.mxu0 0
  %2168 = vmatpush1.bf16.msra.mxu0 %v1938
  %2169 = vmatprep.subr.bf16.mxu0 0
  %2170 = vmatpush1.bf16.msra.mxu0 %v1939
  %2171 = vmatprep.subr.bf16.mxu0 0
  %2172 = vmatpush1.bf16.msra.mxu0 %v1940
  %2173 = vmatprep.subr.bf16.mxu0 0
  %2174 = vmatpush1.bf16.msra.mxu0 %v1941
  %2175 = vmatprep.subr.bf16.mxu0 0
  %2176 = vmatpush1.bf16.msra.mxu0 %v1942
  %2177 = vmatprep.subr.bf16.mxu0 0
  %2178 = vmatpush1.bf16.msra.mxu0 %v1943
  %2179 = vmatprep.subr.bf16.mxu0 0
  %2180 = vmatpush1.bf16.msra.mxu0 %v1944
  %2181 = vmatprep.subr.bf16.mxu0 0
  %2182 = vmatpush1.bf16.msra.mxu0 %v1945
  %2183 = vmatprep.subr.bf16.mxu0 0
  %2184 = vmatpush1.bf16.msra.mxu0 %v1946
  %2185 = vmatprep.subr.bf16.mxu0 0
  %2186 = vmatpush1.bf16.msra.mxu0 %v1947
  %2187 = vmatprep.subr.bf16.mxu0 0
  %2188 = vmatpush1.bf16.msra.mxu0 %v1948
  %2189 = vmatprep.subr.bf16.mxu0 0
  %2190 = vmatpush1.bf16.msra.mxu0 %v1949
  %2191 = vmatprep.mubr.bf16.mxu0 %v1294
  %2192 = vmatmul.mubr.bf16.gmra.mrb[0].mxu0 %v1246
  %v2193 = vpop.f32.mrb[0].mxu0
  %v2194 = vadd.f32 %v2097, %v2193
  %v2195 = vpop.f32.mrb[0].mxu0
  %v2196 = vpop.f32.mrb[0].mxu0
  %v2197 = vadd.f32 %v2100, %v2196
  %v2198 = vpop.f32.mrb[0].mxu0
  %2199 = vmatprep.mubr.bf16.mxu0 %v1295
  %2200 = vmatmul.mubr.bf16.gmra.mrb[0].mxu0 %v1247
  %v2201 = vpop.f32.mrb[0].mxu0
  %v2202 = vadd.f32 %v2105, %v2201
  %v2203 = vpop.f32.mrb[0].mxu0
  %v2204 = vpop.f32.mrb[0].mxu0
  %v2205 = vadd.f32 %v2108, %v2204
  %v2206 = vpop.f32.mrb[0].mxu0
  %2207 = vmatprep.mubr.bf16.mxu0 %v1296
  %2208 = vmatmul.mubr.bf16.gmra.mrb[0].mxu0 %v1248
  %v2209 = vpop.f32.mrb[0].mxu0
  %v2210 = vadd.f32 %v2113, %v2209
  %v2211 = vpop.f32.mrb[0].mxu0
  %v2212 = vpop.f32.mrb[0].mxu0
  %v2213 = vadd.f32 %v2116, %v2212
  %v2214 = vpop.f32.mrb[0].mxu0
  %2215 = vmatprep.mubr.bf16.mxu0 %v1297
  %2216 = vmatmul.mubr.bf16.gmra.mrb[0].mxu0 %v1249
  %v2217 = vpop.f32.mrb[0].mxu0
  %v2218 = vadd.f32 %v2121, %v2217
  %v2219 = vpop.f32.mrb[0].mxu0
  %v2220 = vpop.f32.mrb[0].mxu0
  %v2221 = vadd.f32 %v2124, %v2220
  %v2222 = vpop.f32.mrb[0].mxu0
  %2223 = vmatprep.mubr.bf16.mxu0 %v1298
  %2224 = vmatmul.mubr.bf16.gmra.mrb[0].mxu0 %v1250
  %v2225 = vpop.f32.mrb[0].mxu0
  %v2226 = vadd.f32 %v2129, %v2225
  %v2227 = vpop.f32.mrb[0].mxu0
  %v2228 = vpop.f32.mrb[0].mxu0
  %v2229 = vadd.f32 %v2132, %v2228
  %v2230 = vpop.f32.mrb[0].mxu0
  %2231 = vmatprep.mubr.bf16.mxu0 %v1299
  %2232 = vmatmul.mubr.bf16.gmra.mrb[0].mxu0 %v1251
  %v2233 = vpop.f32.mrb[0].mxu0
  %v2234 = vadd.f32 %v2137, %v2233
  %v2235 = vpop.f32.mrb[0].mxu0
  %v2236 = vpop.f32.mrb[0].mxu0
  %v2237 = vadd.f32 %v2140, %v2236
  %v2238 = vpop.f32.mrb[0].mxu0
  %2239 = vmatprep.mubr.bf16.mxu0 %v1300
  %2240 = vmatmul.mubr.bf16.gmra.mrb[0].mxu0 %v1252
  %v2241 = vpop.f32.mrb[0].mxu0
  %v2242 = vadd.f32 %v2145, %v2241
  %v2243 = vpop.f32.mrb[0].mxu0
  %v2244 = vpop.f32.mrb[0].mxu0
  %v2245 = vadd.f32 %v2148, %v2244
  %v2246 = vpop.f32.mrb[0].mxu0
  %2247 = vmatprep.mubr.bf16.mxu0 %v1301
  %2248 = vmatmul.mubr.bf16.gmra.mrb[0].mxu0 %v1253
  %v2249 = vpop.f32.mrb[0].mxu0
  %v2250 = vadd.f32 %v2153, %v2249
  %v2251 = vpop.f32.mrb[0].mxu0
  %v2252 = vpop.f32.mrb[0].mxu0
  %v2253 = vadd.f32 %v2156, %v2252
  %v2254 = vpop.f32.mrb[0].mxu0
  %2255 = vdwg.mxu0
  %2256 = vmatprep.subr.bf16.mxu0 0
  %2257 = vmatpush1.bf16.msra.mxu0 %v1950
  %2258 = vmatprep.subr.bf16.mxu0 0
  %2259 = vmatpush1.bf16.msra.mxu0 %v1951
  %2260 = vmatprep.subr.bf16.mxu0 0
  %2261 = vmatpush1.bf16.msra.mxu0 %v1952
  %2262 = vmatprep.subr.bf16.mxu0 0
  %2263 = vmatpush1.bf16.msra.mxu0 %v1953
  %2264 = vmatprep.subr.bf16.mxu0 0
  %2265 = vmatpush1.bf16.msra.mxu0 %v1954
  %2266 = vmatprep.subr.bf16.mxu0 0
  %2267 = vmatpush1.bf16.msra.mxu0 %v1955
  %2268 = vmatprep.subr.bf16.mxu0 0
  %2269 = vmatpush1.bf16.msra.mxu0 %v1956
  %2270 = vmatprep.subr.bf16.mxu0 0
  %2271 = vmatpush1.bf16.msra.mxu0 %v1957
  %2272 = vmatprep.subr.bf16.mxu0 0
  %2273 = vmatpush1.bf16.msra.mxu0 %v1958
  %2274 = vmatprep.subr.bf16.mxu0 0
  %2275 = vmatpush1.bf16.msra.mxu0 %v1959
  %2276 = vmatprep.subr.bf16.mxu0 0
  %2277 = vmatpush1.bf16.msra.mxu0 %v1960
  %2278 = vmatprep.subr.bf16.mxu0 0
  %2279 = vmatpush1.bf16.msra.mxu0 %v1961
  %2280 = vmatprep.subr.bf16.mxu0 0
  %2281 = vmatpush1.bf16.msra.mxu0 %v1962
  %2282 = vmatprep.subr.bf16.mxu0 0
  %2283 = vmatpush1.bf16.msra.mxu0 %v1963
  %2284 = vmatprep.subr.bf16.mxu0 0
  %2285 = vmatpush1.bf16.msra.mxu0 %v1964
  %2286 = vmatprep.subr.bf16.mxu0 0
  %2287 = vmatpush1.bf16.msra.mxu0 %v1965
  %2288 = vmatprep.mubr.bf16.mxu0 %v1358
  %2289 = vmatmul.mubr.bf16.gmra.mrb[0].mxu0 %v1326
  %v2290 = vpop.f32.mrb[0].mxu0
  %v2291 = vadd.f32 %v2194, %v2290
  %v2292 = vpop.f32.mrb[0].mxu0
  %v2293 = vpop.f32.mrb[0].mxu0
  %v2294 = vadd.f32 %v2197, %v2293
  %v2295 = vpop.f32.mrb[0].mxu0
  %2296 = vmatprep.mubr.bf16.mxu0 %v1359
  %2297 = vmatmul.mubr.bf16.gmra.mrb[0].mxu0 %v1327
  %v2298 = vpop.f32.mrb[0].mxu0
  %v2299 = vadd.f32 %v2202, %v2298
  %v2300 = vpop.f32.mrb[0].mxu0
  %v2301 = vpop.f32.mrb[0].mxu0
  %v2302 = vadd.f32 %v2205, %v2301
  %v2303 = vpop.f32.mrb[0].mxu0
  %2304 = vmatprep.mubr.bf16.mxu0 %v1360
  %2305 = vmatmul.mubr.bf16.gmra.mrb[0].mxu0 %v1328
  %v2306 = vpop.f32.mrb[0].mxu0
  %v2307 = vadd.f32 %v2210, %v2306
  %v2308 = vpop.f32.mrb[0].mxu0
  %v2309 = vpop.f32.mrb[0].mxu0
  %v2310 = vadd.f32 %v2213, %v2309
  %v2311 = vpop.f32.mrb[0].mxu0
  %2312 = vmatprep.mubr.bf16.mxu0 %v1361
  %2313 = vmatmul.mubr.bf16.gmra.mrb[0].mxu0 %v1329
  %v2314 = vpop.f32.mrb[0].mxu0
  %v2315 = vadd.f32 %v2218, %v2314
  %v2316 = vpop.f32.mrb[0].mxu0
  %v2317 = vpop.f32.mrb[0].mxu0
  %v2318 = vadd.f32 %v2221, %v2317
  %v2319 = vpop.f32.mrb[0].mxu0
  %2320 = vmatprep.mubr.bf16.mxu0 %v1362
  %2321 = vmatmul.mubr.bf16.gmra.mrb[0].mxu0 %v1330
  %v2322 = vpop.f32.mrb[0].mxu0
  %v2323 = vadd.f32 %v2226, %v2322
  %v2324 = vpop.f32.mrb[0].mxu0
  %v2325 = vpop.f32.mrb[0].mxu0
  %v2326 = vadd.f32 %v2229, %v2325
  %v2327 = vpop.f32.mrb[0].mxu0
  %2328 = vmatprep.mubr.bf16.mxu0 %v1363
  %2329 = vmatmul.mubr.bf16.gmra.mrb[0].mxu0 %v1331
  %v2330 = vpop.f32.mrb[0].mxu0
  %v2331 = vadd.f32 %v2234, %v2330
  %v2332 = vpop.f32.mrb[0].mxu0
  %v2333 = vpop.f32.mrb[0].mxu0
  %v2334 = vadd.f32 %v2237, %v2333
  %v2335 = vpop.f32.mrb[0].mxu0
  %2336 = vmatprep.mubr.bf16.mxu0 %v1364
  %2337 = vmatmul.mubr.bf16.gmra.mrb[0].mxu0 %v1332
  %v2338 = vpop.f32.mrb[0].mxu0
  %v2339 = vadd.f32 %v2242, %v2338
  %v2340 = vpop.f32.mrb[0].mxu0
  %v2341 = vpop.f32.mrb[0].mxu0
  %v2342 = vadd.f32 %v2245, %v2341
  %v2343 = vpop.f32.mrb[0].mxu0
  %2344 = vmatprep.mubr.bf16.mxu0 %v1365
  %2345 = vmatmul.mubr.bf16.gmra.mrb[0].mxu0 %v1333
  %v2346 = vpop.f32.mrb[0].mxu0
  %v2347 = vadd.f32 %v2250, %v2346
  %v2348 = vpop.f32.mrb[0].mxu0
  %v2349 = vpop.f32.mrb[0].mxu0
  %v2350 = vadd.f32 %v2253, %v2349
  %v2351 = vpop.f32.mrb[0].mxu0
  %2352 = vdwg.mxu0
  %2353 = vmatprep.subr.bf16.mxu0 0
  %2354 = vmatpush1.bf16.msra.mxu0 %v1966
  %2355 = vmatprep.subr.bf16.mxu0 0
  %2356 = vmatpush1.bf16.msra.mxu0 %v1967
  %2357 = vmatprep.subr.bf16.mxu0 0
  %2358 = vmatpush1.bf16.msra.mxu0 %v1968
  %2359 = vmatprep.subr.bf16.mxu0 0
  %2360 = vmatpush1.bf16.msra.mxu0 %v1969
  %2361 = vmatprep.subr.bf16.mxu0 0
  %2362 = vmatpush1.bf16.msra.mxu0 %v1970
  %2363 = vmatprep.subr.bf16.mxu0 0
  %2364 = vmatpush1.bf16.msra.mxu0 %v1971
  %2365 = vmatprep.subr.bf16.mxu0 0
  %2366 = vmatpush1.bf16.msra.mxu0 %v1972
  %2367 = vmatprep.subr.bf16.mxu0 0
  %2368 = vmatpush1.bf16.msra.mxu0 %v1973
  %2369 = vmatprep.subr.bf16.mxu0 0
  %2370 = vmatpush1.bf16.msra.mxu0 %v1974
  %2371 = vmatprep.subr.bf16.mxu0 0
  %2372 = vmatpush1.bf16.msra.mxu0 %v1975
  %2373 = vmatprep.subr.bf16.mxu0 0
  %2374 = vmatpush1.bf16.msra.mxu0 %v1976
  %2375 = vmatprep.subr.bf16.mxu0 0
  %2376 = vmatpush1.bf16.msra.mxu0 %v1977
  %2377 = vmatprep.subr.bf16.mxu0 0
  %2378 = vmatpush1.bf16.msra.mxu0 %v1978
  %2379 = vmatprep.subr.bf16.mxu0 0
  %2380 = vmatpush1.bf16.msra.mxu0 %v1979
  %2381 = vmatprep.subr.bf16.mxu0 0
  %2382 = vmatpush1.bf16.msra.mxu0 %v1980
  %2383 = vmatprep.subr.bf16.mxu0 0
  %2384 = vmatpush1.bf16.msra.mxu0 %v1981
  %2385 = vmatprep.mubr.bf16.mxu0 %v1438
  %2386 = vmatmul.mubr.bf16.gmra.mrb[0].mxu0 %v1406
  %v2387 = vpop.f32.mrb[0].mxu0
  %v2388 = vadd.f32 %v2291, %v2387
  %v2389 = vpop.f32.mrb[0].mxu0
  %v2390 = vpop.f32.mrb[0].mxu0
  %v2391 = vadd.f32 %v2294, %v2390
  %v2392 = vpop.f32.mrb[0].mxu0
  %2393 = vmatprep.mubr.bf16.mxu0 %v1439
  %2394 = vmatmul.mubr.bf16.gmra.mrb[0].mxu0 %v1407
  %v2395 = vpop.f32.mrb[0].mxu0
  %v2396 = vadd.f32 %v2299, %v2395
  %v2397 = vpop.f32.mrb[0].mxu0
  %v2398 = vpop.f32.mrb[0].mxu0
  %v2399 = vadd.f32 %v2302, %v2398
  %v2400 = vpop.f32.mrb[0].mxu0
  %2401 = vmatprep.mubr.bf16.mxu0 %v1440
  %2402 = vmatmul.mubr.bf16.gmra.mrb[0].mxu0 %v1408
  %v2403 = vpop.f32.mrb[0].mxu0
  %v2404 = vadd.f32 %v2307, %v2403
  %v2405 = vpop.f32.mrb[0].mxu0
  %v2406 = vpop.f32.mrb[0].mxu0
  %v2407 = vadd.f32 %v2310, %v2406
  %v2408 = vpop.f32.mrb[0].mxu0
  %2409 = vmatprep.mubr.bf16.mxu0 %v1441
  %2410 = vmatmul.mubr.bf16.gmra.mrb[0].mxu0 %v1409
  %v2411 = vpop.f32.mrb[0].mxu0
  %v2412 = vadd.f32 %v2315, %v2411
  %v2413 = vpop.f32.mrb[0].mxu0
  %v2414 = vpop.f32.mrb[0].mxu0
  %v2415 = vadd.f32 %v2318, %v2414
  %v2416 = vpop.f32.mrb[0].mxu0
  %2417 = vmatprep.mubr.bf16.mxu0 %v1442
  %2418 = vmatmul.mubr.bf16.gmra.mrb[0].mxu0 %v1410
  %v2419 = vpop.f32.mrb[0].mxu0
  %v2420 = vadd.f32 %v2323, %v2419
  %v2421 = vpop.f32.mrb[0].mxu0
  %v2422 = vpop.f32.mrb[0].mxu0
  %v2423 = vadd.f32 %v2326, %v2422
  %v2424 = vpop.f32.mrb[0].mxu0
  %2425 = vmatprep.mubr.bf16.mxu0 %v1443
  %2426 = vmatmul.mubr.bf16.gmra.mrb[0].mxu0 %v1411
  %v2427 = vpop.f32.mrb[0].mxu0
  %v2428 = vadd.f32 %v2331, %v2427
  %v2429 = vpop.f32.mrb[0].mxu0
  %v2430 = vpop.f32.mrb[0].mxu0
  %v2431 = vadd.f32 %v2334, %v2430
  %v2432 = vpop.f32.mrb[0].mxu0
  %2433 = vmatprep.mubr.bf16.mxu0 %v1444
  %2434 = vmatmul.mubr.bf16.gmra.mrb[0].mxu0 %v1412
  %v2435 = vpop.f32.mrb[0].mxu0
  %v2436 = vadd.f32 %v2339, %v2435
  %v2437 = vpop.f32.mrb[0].mxu0
  %v2438 = vpop.f32.mrb[0].mxu0
  %v2439 = vadd.f32 %v2342, %v2438
  %v2440 = vpop.f32.mrb[0].mxu0
  %2441 = vmatprep.mubr.bf16.mxu0 %v1445
  %2442 = vmatmul.mubr.bf16.gmra.mrb[0].mxu0 %v1413
  %v2443 = vpop.f32.mrb[0].mxu0
  %v2444 = vadd.f32 %v2347, %v2443
  %v2445 = vpop.f32.mrb[0].mxu0
  %v2446 = vpop.f32.mrb[0].mxu0
  %v2447 = vadd.f32 %v2350, %v2446
  %v2448 = vpop.f32.mrb[0].mxu0
  %2449 = vdwg.mxu0
  %2450 = vmatprep.subr.bf16.mxu0 0
  %2451 = vmatpush1.bf16.msra.mxu0 %v1982
  %2452 = vmatprep.subr.bf16.mxu0 0
  %2453 = vmatpush1.bf16.msra.mxu0 %v1983
  %2454 = vmatprep.subr.bf16.mxu0 0
  %2455 = vmatpush1.bf16.msra.mxu0 %v1984
  %2456 = vmatprep.subr.bf16.mxu0 0
  %2457 = vmatpush1.bf16.msra.mxu0 %v1985
  %2458 = vmatprep.subr.bf16.mxu0 0
  %2459 = vmatpush1.bf16.msra.mxu0 %v1986
  %2460 = vmatprep.subr.bf16.mxu0 0
  %2461 = vmatpush1.bf16.msra.mxu0 %v1987
  %2462 = vmatprep.subr.bf16.mxu0 0
  %2463 = vmatpush1.bf16.msra.mxu0 %v1988
  %2464 = vmatprep.subr.bf16.mxu0 0
  %2465 = vmatpush1.bf16.msra.mxu0 %v1989
  %2466 = vmatprep.subr.bf16.mxu0 0
  %2467 = vmatpush1.bf16.msra.mxu0 0
  %2468 = vmatprep.subr.bf16.mxu0 0
  %2469 = vmatpush1.bf16.msra.mxu0 0
  %2470 = vmatprep.subr.bf16.mxu0 0
  %2471 = vmatpush1.bf16.msra.mxu0 0
  %2472 = vmatprep.subr.bf16.mxu0 0
  %2473 = vmatpush1.bf16.msra.mxu0 0
  %2474 = vmatprep.subr.bf16.mxu0 0
  %2475 = vmatpush1.bf16.msra.mxu0 0
  %2476 = vmatprep.subr.bf16.mxu0 0
  %2477 = vmatpush1.bf16.msra.mxu0 0
  %2478 = vmatprep.subr.bf16.mxu0 0
  %2479 = vmatpush1.bf16.msra.mxu0 0
  %2480 = vmatprep.subr.bf16.mxu0 0
  %2481 = vmatpush1.bf16.msra.mxu0 0
  %2482 = vmatprep.mubr.bf16.mxu0 0
  %2483 = vmatmul.mubr.bf16.gmra.mrb[0].mxu0 %v1470
  %v2484 = vpop.f32.mrb[0].mxu0
  %v2485 = vadd.f32 %v2388, %v2484
  %v2486 = vpop.f32.mrb[0].mxu0
  %v2487 = vpop.f32.mrb[0].mxu0
  %v2488 = vadd.f32 %v2391, %v2487
  %v2489 = vpop.f32.mrb[0].mxu0
  %2490 = vmatprep.mubr.bf16.mxu0 0
  %2491 = vmatmul.mubr.bf16.gmra.mrb[0].mxu0 %v1471
  %v2492 = vpop.f32.mrb[0].mxu0
  %v2493 = vadd.f32 %v2396, %v2492
  %v2494 = vpop.f32.mrb[0].mxu0
  %v2495 = vpop.f32.mrb[0].mxu0
  %v2496 = vadd.f32 %v2399, %v2495
  %v2497 = vpop.f32.mrb[0].mxu0
  %2498 = vmatprep.mubr.bf16.mxu0 0
  %2499 = vmatmul.mubr.bf16.gmra.mrb[0].mxu0 %v1472
  %v2500 = vpop.f32.mrb[0].mxu0
  %v2501 = vadd.f32 %v2404, %v2500
  %v2502 = vpop.f32.mrb[0].mxu0
  %v2503 = vpop.f32.mrb[0].mxu0
  %v2504 = vadd.f32 %v2407, %v2503
  %v2505 = vpop.f32.mrb[0].mxu0
  %2506 = vmatprep.mubr.bf16.mxu0 0
  %2507 = vmatmul.mubr.bf16.gmra.mrb[0].mxu0 %v1473
  %v2508 = vpop.f32.mrb[0].mxu0
  %v2509 = vadd.f32 %v2412, %v2508
  %v2510 = vpop.f32.mrb[0].mxu0
  %v2511 = vpop.f32.mrb[0].mxu0
  %v2512 = vadd.f32 %v2415, %v2511
  %v2513 = vpop.f32.mrb[0].mxu0
  %2514 = vmatprep.mubr.bf16.mxu0 0
  %2515 = vmatmul.mubr.bf16.gmra.mrb[0].mxu0 %v1474
  %v2516 = vpop.f32.mrb[0].mxu0
  %v2517 = vadd.f32 %v2420, %v2516
  %v2518 = vpop.f32.mrb[0].mxu0
  %v2519 = vpop.f32.mrb[0].mxu0
  %v2520 = vadd.f32 %v2423, %v2519
  %v2521 = vpop.f32.mrb[0].mxu0
  %2522 = vmatprep.mubr.bf16.mxu0 0
  %2523 = vmatmul.mubr.bf16.gmra.mrb[0].mxu0 %v1475
  %v2524 = vpop.f32.mrb[0].mxu0
  %v2525 = vadd.f32 %v2428, %v2524
  %v2526 = vpop.f32.mrb[0].mxu0
  %v2527 = vpop.f32.mrb[0].mxu0
  %v2528 = vadd.f32 %v2431, %v2527
  %v2529 = vpop.f32.mrb[0].mxu0
  %2530 = vmatprep.mubr.bf16.mxu0 0
  %2531 = vmatmul.mubr.bf16.gmra.mrb[0].mxu0 %v1476
  %v2532 = vpop.f32.mrb[0].mxu0
  %v2533 = vadd.f32 %v2436, %v2532
  %v2534 = vpop.f32.mrb[0].mxu0
  %v2535 = vpop.f32.mrb[0].mxu0
  %v2536 = vadd.f32 %v2439, %v2535
  %v2537 = vpop.f32.mrb[0].mxu0
  %2538 = vmatprep.mubr.bf16.mxu0 0
  %2539 = vmatmul.mubr.bf16.gmra.mrb[0].mxu0 %v1477
  %v2540 = vpop.f32.mrb[0].mxu0
  %v2541 = vadd.f32 %v2444, %v2540
  %v2542 = vpop.f32.mrb[0].mxu0
  %v2543 = vpop.f32.mrb[0].mxu0
  %v2544 = vadd.f32 %v2447, %v2543
  %v2545 = vpop.f32.mrb[0].mxu0
  %2546 = vdwg.mxu0
  %v2547 = vld [vmem:[#allocation2] sm:$0xff]
  %v2548 = vld [vmem:[#allocation2 + $0x8] sm:$0xff]
  %v2549 = vld [vmem:[#allocation2 + $0x10] sm:$0xff]
  %v2550 = vld [vmem:[#allocation2 + $0x18] sm:$0xff]
  %v2551 = vld [vmem:[#allocation2 + $0x20] sm:$0xff]
  %v2552 = vld [vmem:[#allocation2 + $0x28] sm:$0xff]
  %v2553 = vld [vmem:[#allocation2 + $0x30] sm:$0xff]
  %v2554 = vld [vmem:[#allocation2 + $0x38] sm:$0xff]
  %v2555 = vld [vmem:[#allocation2 + $0x40] sm:$0xff]
  %v2556 = vld [vmem:[#allocation2 + $0x48] sm:$0xff]
  %v2557 = vld [vmem:[#allocation2 + $0x50] sm:$0xff]
  %v2558 = vld [vmem:[#allocation2 + $0x58] sm:$0xff]
  %v2559 = vld [vmem:[#allocation2 + $0x60] sm:$0xff]
  %v2560 = vld [vmem:[#allocation2 + $0x68] sm:$0xff]
  %v2561 = vld [vmem:[#allocation2 + $0x70] sm:$0xff]
  %v2562 = vld [vmem:[#allocation2 + $0x78] sm:$0xff]
  %v2563 = vadd.f32 %v2547, %v2485
  %v2564 = vadd.f32 %v2548, %v2488
  %v2565 = vadd.f32 %v2549, %v2493
  %v2566 = vadd.f32 %v2550, %v2496
  %v2567 = vadd.f32 %v2551, %v2501
  %v2568 = vadd.f32 %v2552, %v2504
  %v2569 = vadd.f32 %v2553, %v2509
  %v2570 = vadd.f32 %v2554, %v2512
  %v2571 = vadd.f32 %v2555, %v2517
  %v2572 = vadd.f32 %v2556, %v2520
  %v2573 = vadd.f32 %v2557, %v2525
  %v2574 = vadd.f32 %v2558, %v2528
  %v2575 = vadd.f32 %v2559, %v2533
  %v2576 = vadd.f32 %v2560, %v2536
  %v2577 = vadd.f32 %v2561, %v2541
  %v2578 = vadd.f32 %v2562, %v2544
  %2579 = vst [vmem:[#allocation2] sm:$0xff] %v2563
  %2580 = vst [vmem:[#allocation2 + $0x8] sm:$0xff] %v2564
  %2581 = vst [vmem:[#allocation2 + $0x10] sm:$0xff] %v2565
  %2582 = vst [vmem:[#allocation2 + $0x18] sm:$0xff] %v2566
  %2583 = vst [vmem:[#allocation2 + $0x20] sm:$0xff] %v2567
  %2584 = vst [vmem:[#allocation2 + $0x28] sm:$0xff] %v2568
  %2585 = vst [vmem:[#allocation2 + $0x30] sm:$0xff] %v2569
  %2586 = vst [vmem:[#allocation2 + $0x38] sm:$0xff] %v2570
  %2587 = vst [vmem:[#allocation2 + $0x40] sm:$0xff] %v2571
  %2588 = vst [vmem:[#allocation2 + $0x48] sm:$0xff] %v2572
  %2589 = vst [vmem:[#allocation2 + $0x50] sm:$0xff] %v2573
  %2590 = vst [vmem:[#allocation2 + $0x58] sm:$0xff] %v2574
  %2591 = vst [vmem:[#allocation2 + $0x60] sm:$0xff] %v2575
  %2592 = vst [vmem:[#allocation2 + $0x68] sm:$0xff] %v2576
  %2593 = vst [vmem:[#allocation2 + $0x70] sm:$0xff] %v2577
  %2594 = vst [vmem:[#allocation2 + $0x78] sm:$0xff] %v2578
  // Predicated region
  $region22: #{resnet_layer.6} parent=0 // pred_check
    %p2595 = pneg %p18
  $region23: #{resnet_layer.6} parent=0 // pred_check_branch
    %2597 = sbr.rel (%p2595) target = $region25
  $region24: #{resnet_layer.6} parent=0 // pred_region
    %v2598 = vld [vmem:[#allocation2] sm:$0xff]
    %v2599 = vld [vmem:[#allocation2 + $0x8] sm:$0xff]
    %v2600 = vld [vmem:[#allocation2 + $0x10] sm:$0xff]
    %v2601 = vld [vmem:[#allocation2 + $0x18] sm:$0xff]
    %v2602 = vld [vmem:[#allocation2 + $0x20] sm:$0xff]
    %v2603 = vld [vmem:[#allocation2 + $0x28] sm:$0xff]
    %v2604 = vld [vmem:[#allocation2 + $0x30] sm:$0xff]
    %v2605 = vld [vmem:[#allocation2 + $0x38] sm:$0xff]
    %v2606 = vld [vmem:[#allocation2 + $0x40] sm:$0xff]
    %v2607 = vld [vmem:[#allocation2 + $0x48] sm:$0xff]
    %v2608 = vld [vmem:[#allocation2 + $0x50] sm:$0xff]
    %v2609 = vld [vmem:[#allocation2 + $0x58] sm:$0xff]
    %v2610 = vld [vmem:[#allocation2 + $0x60] sm:$0xff]
    %v2611 = vld [vmem:[#allocation2 + $0x68] sm:$0xff]
    %v2612 = vld [vmem:[#allocation2 + $0x70] sm:$0xff]
    %v2613 = vld [vmem:[#allocation2 + $0x78] sm:$0xff]
    %v2614 = vld [vmem:[%s2] sm:$0x1]
    %v2616 = vlaneseq
    %v2617 = vshrl.u32 %v2616, 7
    %v2618 = vsub.s32 0, %v2617
    %v2619 = vrot.slane %v2614, %v2618
    %v2621 = vmul.f32 %v2598, %v2619
    %v2622 = vmul.f32 %v2599, %v2619
    %v2623 = vmul.f32 %v2600, %v2619
    %v2624 = vmul.f32 %v2601, %v2619
    %v2625 = vmul.f32 %v2602, %v2619
    %v2626 = vmul.f32 %v2603, %v2619
    %v2627 = vmul.f32 %v2604, %v2619
    %v2628 = vmul.f32 %v2605, %v2619
    %v2629 = vmul.f32 %v2606, %v2619
    %v2630 = vmul.f32 %v2607, %v2619
    %v2631 = vmul.f32 %v2608, %v2619
    %v2632 = vmul.f32 %v2609, %v2619
    %v2633 = vmul.f32 %v2610, %v2619
    %v2634 = vmul.f32 %v2611, %v2619
    %v2635 = vmul.f32 %v2612, %v2619
    %v2636 = vmul.f32 %v2613, %v2619
    %v2637 = vld [vmem:[%s3] sm:$0x1]
    %v2639 = vlaneseq
    %v2640 = vshrl.u32 %v2639, 7
    %v2641 = vsub.s32 0, %v2640
    %v2642 = vrot.slane %v2637, %v2641
    %v2644 = vadd.f32 %v2621, %v2642
    %v2645 = vadd.f32 %v2622, %v2642
    %v2646 = vadd.f32 %v2623, %v2642
    %v2647 = vadd.f32 %v2624, %v2642
    %v2648 = vadd.f32 %v2625, %v2642
    %v2649 = vadd.f32 %v2626, %v2642
    %v2650 = vadd.f32 %v2627, %v2642
    %v2651 = vadd.f32 %v2628, %v2642
    %v2652 = vadd.f32 %v2629, %v2642
    %v2653 = vadd.f32 %v2630, %v2642
    %v2654 = vadd.f32 %v2631, %v2642
    %v2655 = vadd.f32 %v2632, %v2642
    %v2656 = vadd.f32 %v2633, %v2642
    %v2657 = vadd.f32 %v2634, %v2642
    %v2658 = vadd.f32 %v2635, %v2642
    %v2659 = vadd.f32 %v2636, %v2642
    %v2660 = vmax.f32 %v2644, 0.0
    %v2661 = vmax.f32 %v2645, 0.0
    %v2662 = vmax.f32 %v2646, 0.0
    %v2663 = vmax.f32 %v2647, 0.0
    %v2664 = vmax.f32 %v2648, 0.0
    %v2665 = vmax.f32 %v2649, 0.0
    %v2666 = vmax.f32 %v2650, 0.0
    %v2667 = vmax.f32 %v2651, 0.0
    %v2668 = vmax.f32 %v2652, 0.0
    %v2669 = vmax.f32 %v2653, 0.0
    %v2670 = vmax.f32 %v2654, 0.0
    %v2671 = vmax.f32 %v2655, 0.0
    %v2672 = vmax.f32 %v2656, 0.0
    %v2673 = vmax.f32 %v2657, 0.0
    %v2674 = vmax.f32 %v2658, 0.0
    %v2675 = vmax.f32 %v2659, 0.0
    %v2676 = vpack.c.bf16 %v2660, %v2660
    %v2677 = vpack.c.bf16 %v2661, %v2661
    %v2678 = vpack.c.bf16 %v2662, %v2662
    %v2679 = vpack.c.bf16 %v2663, %v2663
    %v2680 = vpack.c.bf16 %v2664, %v2664
    %v2681 = vpack.c.bf16 %v2665, %v2665
    %v2682 = vpack.c.bf16 %v2666, %v2666
    %v2683 = vpack.c.bf16 %v2667, %v2667
    %v2684 = vpack.c.bf16 %v2668, %v2668
    %v2685 = vpack.c.bf16 %v2669, %v2669
    %v2686 = vpack.c.bf16 %v2670, %v2670
    %v2687 = vpack.c.bf16 %v2671, %v2671
    %v2688 = vpack.c.bf16 %v2672, %v2672
    %v2689 = vpack.c.bf16 %v2673, %v2673
    %v2690 = vpack.c.bf16 %v2674, %v2674
    %v2691 = vpack.c.bf16 %v2675, %v2675
    %2692 = vst [vmem:[%s4] sm:$0xf] %v2676
    %2693 = vst [vmem:[%s4 + $0x4] sm:$0xf] %v2677
    %2694 = vst [vmem:[%s4 + $0x8] sm:$0xf] %v2678
    %2695 = vst [vmem:[%s4 + $0xc] sm:$0xf] %v2679
    %2696 = vst [vmem:[%s4 + $0x10] sm:$0xf] %v2680
    %2697 = vst [vmem:[%s4 + $0x14] sm:$0xf] %v2681
    %2698 = vst [vmem:[%s4 + $0x18] sm:$0xf] %v2682
    %2699 = vst [vmem:[%s4 + $0x1c] sm:$0xf] %v2683
    %2700 = vst [vmem:[%s4 + $0x20] sm:$0xf] %v2684
    %2701 = vst [vmem:[%s4 + $0x24] sm:$0xf] %v2685
    %2702 = vst [vmem:[%s4 + $0x28] sm:$0xf] %v2686
    %2703 = vst [vmem:[%s4 + $0x2c] sm:$0xf] %v2687
    %2704 = vst [vmem:[%s4 + $0x30] sm:$0xf] %v2688
    %2705 = vst [vmem:[%s4 + $0x34] sm:$0xf] %v2689
    %2706 = vst [vmem:[%s4 + $0x38] sm:$0xf] %v2690
    %2707 = vst [vmem:[%s4 + $0x3c] sm:$0xf] %v2691
  $region25: #{resnet_layer.6} parent=0 // pred_fallthru
    _
  // Predicated region
  $region26: #{resnet_layer.6} parent=0 // pred_check
    _
  $region27: #{resnet_layer.6} parent=0 // pred_check_branch
    %2709 = sbr.rel (0) target = $region29
  $region28: #{resnet_layer.6} parent=0 // pred_region
    _
  $region29: #{resnet_layer.6} parent=0 // pred_fallthru
    _
  // Predicated region
  $region30: #{resnet_layer.6} parent=0 // pred_check
    _
  $region31: #{resnet_layer.6} parent=0 // pred_check_branch
    %2711 = sbr.rel (0) target = $region33
  $region32: #{resnet_layer.6} parent=0 // pred_region
    _
  $region33: #{resnet_layer.6} parent=0 // pred_fallthru
    _

// kernel: resnet_layer.7
$region0: #{resnet_layer.7}
  #allocation0 [shape = 'u32[]', space=smem, size = 0x4, offset = 0x4, fixed_abs, tag = 'smem constant byte address 0x4 - core index']
  #allocation1 [shape = 'u32[144,128]{1,0:T(1,128)}', space=vmem, size = 0x12000, scoped, tag = 'internal scratch']
  #allocation2 [shape = 'f32[128,128]{1,0:T(8,128)}', space=vmem, size = 0x10000, scoped, tag = 'scratch operand']
  %s0 = inlined_call_operand.vmem [shape: bf16[2,1,10,10,128], index: 0, kind: input, shape index: {}]
  %s1 = inlined_call_operand.vmem [shape: bf16[9,128,128], index: 1, kind: input, shape index: {}]
  %s2 = inlined_call_operand.vmem [shape: f32[1,128], index: 2, kind: input, shape index: {}]
  %s3 = inlined_call_operand.vmem [shape: f32[1,128], index: 3, kind: input, shape index: {}]
  %s4 = inlined_call_operand.vmem [shape: bf16[2,8,8,128], index: 4, kind: input, shape index: {}]
  %s5 = inlined_call_operand.hbm [shape: f32[2,8,8,128], index: 5, kind: output, shape index: {}]
  %s6 = sld [smem:[#allocation0]]
  $region38: #{resnet_layer.7} parent=0
    _
  %s8 = ssub.s32 1, %s6
  %s9 = scalar_select 0, %s8, %s6
  $region1: #{resnet_layer.7} parent=0
    #allocation3 [shape = 'u8[65536]{0}', space=vmem, size = 0x10000, scoped, tag = 'output window, operand 0, single buffered']
    #allocation4 [shape = 's32[1]{0}', space=sflag, size = 0x4, scoped, tag = 'scoped memory for resnet_layer.7']
    %10 = vsyncpa [#allocation4], 0
    // Predicated region
    $region2: #{resnet_layer.7} parent=1 // pred_check
      _
    $region3: #{resnet_layer.7} parent=1 // pred_check_branch
      %12 = sbr.rel (0) target = $region5
    $region4: #{resnet_layer.7} parent=1 // pred_region
      _
    $region5: #{resnet_layer.7} parent=1 // pred_fallthru
      _
    // Predicated region
    $region6: #{resnet_layer.7} parent=1 // pred_check
      _
    $region7: #{resnet_layer.7} parent=1 // pred_check_branch
      %14 = sbr.rel (0) target = $region9
    $region8: #{resnet_layer.7} parent=1 // pred_region
      _
    $region9: #{resnet_layer.7} parent=1 // pred_fallthru
      _
    // Predicated region
    $region10: #{resnet_layer.7} parent=1 // pred_check
      _
    $region11: #{resnet_layer.7} parent=1 // pred_check_branch
      %16 = sbr.rel (0) target = $region13
    $region12: #{resnet_layer.7} parent=1 // pred_region
      _
    $region13: #{resnet_layer.7} parent=1 // pred_fallthru
      _
    // Predicated region
    $region14: #{resnet_layer.7} parent=1 // pred_check
      _
    $region15: #{resnet_layer.7} parent=1 // pred_check_branch
      %18 = sbr.rel (0) target = $region17
    $region16: #{resnet_layer.7} parent=1 // pred_region
      _
    $region17: #{resnet_layer.7} parent=1 // pred_fallthru
      _
    // Predicated region
    $region18: #{resnet_layer.7} parent=1 // pred_check
      _
    $region19: #{resnet_layer.7} parent=1 // pred_check_branch
      %20 = sbr.rel (0) target = $region21
    $region20: #{resnet_layer.7} parent=1 // pred_region
      _
    $region21: #{resnet_layer.7} parent=1 // pred_fallthru
      _
    %p22 = scmp.eq.s32.totalorder 0, 0
    // Predicated region
    $region22: #{resnet_layer.7} parent=1 // pred_check
      %p23 = pneg %p22
    $region23: #{resnet_layer.7} parent=1 // pred_check_branch
      %25 = sbr.rel (%p23) target = $region25
    $region24: #{resnet_layer.7} parent=1 // pred_region
      %26 = vst [vmem:[#allocation2] sm:$0xff] 0.0
      %27 = vst [vmem:[#allocation2 + $0x8] sm:$0xff] 0.0
      %28 = vst [vmem:[#allocation2 + $0x10] sm:$0xff] 0.0
      %29 = vst [vmem:[#allocation2 + $0x18] sm:$0xff] 0.0
      %30 = vst [vmem:[#allocation2 + $0x20] sm:$0xff] 0.0
      %31 = vst [vmem:[#allocation2 + $0x28] sm:$0xff] 0.0
      %32 = vst [vmem:[#allocation2 + $0x30] sm:$0xff] 0.0
      %33 = vst [vmem:[#allocation2 + $0x38] sm:$0xff] 0.0
      %34 = vst [vmem:[#allocation2 + $0x40] sm:$0xff] 0.0
      %35 = vst [vmem:[#allocation2 + $0x48] sm:$0xff] 0.0
      %36 = vst [vmem:[#allocation2 + $0x50] sm:$0xff] 0.0
      %37 = vst [vmem:[#allocation2 + $0x58] sm:$0xff] 0.0
      %38 = vst [vmem:[#allocation2 + $0x60] sm:$0xff] 0.0
      %39 = vst [vmem:[#allocation2 + $0x68] sm:$0xff] 0.0
      %40 = vst [vmem:[#allocation2 + $0x70] sm:$0xff] 0.0
      %41 = vst [vmem:[#allocation2 + $0x78] sm:$0xff] 0.0
    $region25: #{resnet_layer.7} parent=1 // pred_fallthru
      _
    %v42 = vld [vmem:[%s0] sm:$0xf]
    %v43 = vld [vmem:[%s0 + $0x8] sm:$0xf]
    %v44 = vld [vmem:[%s0 + $0x10] sm:$0xf]
    %v45 = vld [vmem:[%s0 + $0x18] sm:$0xf]
    %v46 = vld [vmem:[%s0 + $0x20] sm:$0xf]
    %v47 = vld [vmem:[%s0 + $0x28] sm:$0xf]
    %v48 = vld [vmem:[%s0 + $0x30] sm:$0xf]
    %v49 = vld [vmem:[%s0 + $0x38] sm:$0xf]
    %v50 = vld [vmem:[%s0 + $0x50] sm:$0xf]
    %v51 = vld [vmem:[%s0 + $0x58] sm:$0xf]
    %v52 = vld [vmem:[%s0 + $0x60] sm:$0xf]
    %v53 = vld [vmem:[%s0 + $0x68] sm:$0xf]
    %v54 = vld [vmem:[%s0 + $0x70] sm:$0xf]
    %v55 = vld [vmem:[%s0 + $0x78] sm:$0xf]
    %v56 = vld [vmem:[%s0 + $0x80] sm:$0xf]
    %v57 = vld [vmem:[%s0 + $0x88] sm:$0xf]
    %v58 = vld [vmem:[%s0 + $0x4] sm:$0x1]
    %v59 = vld [vmem:[%s0 + $0xc] sm:$0x1]
    %v60 = vld [vmem:[%s0 + $0x14] sm:$0x1]
    %v61 = vld [vmem:[%s0 + $0x1c] sm:$0x1]
    %v62 = vld [vmem:[%s0 + $0x24] sm:$0x1]
    %v63 = vld [vmem:[%s0 + $0x2c] sm:$0x1]
    %v64 = vld [vmem:[%s0 + $0x34] sm:$0x1]
    %v65 = vld [vmem:[%s0 + $0x3c] sm:$0x1]
    %v66 = vld [vmem:[%s0 + $0x54] sm:$0x1]
    %v67 = vld [vmem:[%s0 + $0x5c] sm:$0x1]
    %v68 = vld [vmem:[%s0 + $0x64] sm:$0x1]
    %v69 = vld [vmem:[%s0 + $0x6c] sm:$0x1]
    %v70 = vld [vmem:[%s0 + $0x74] sm:$0x1]
    %v71 = vld [vmem:[%s0 + $0x7c] sm:$0x1]
    %v72 = vld [vmem:[%s0 + $0x84] sm:$0x1]
    %v73 = vld [vmem:[%s0 + $0x8c] sm:$0x1]
    %vm74 = vsmask.f32 3328
    %vm75 = vsmask.f32 7440
    %vm76 = vmor %vm74, %vm75
    %v78 = vshrl.u32 %v42, 16
    %v80 = vrot.slane %v78, 4
    %v81 = vshll.u32 %v42, 16
    %v83 = vrot.slane %v81, 5
    %v84 = vor.u32 %v80, %v83
    %v85 = vrot.slane %v84, 4
    %v87 = vshll.u32 %v58, 16
    %v89 = vrot.slane %v87, 5
    %v90 = vsel %vm76, %v85, %v89
    %v92 = vshrl.u32 %v43, 16
    %v94 = vrot.slane %v92, 4
    %v95 = vshll.u32 %v43, 16
    %v97 = vrot.slane %v95, 5
    %v98 = vor.u32 %v94, %v97
    %v99 = vrot.slane %v98, 4
    %v101 = vshll.u32 %v59, 16
    %v103 = vrot.slane %v101, 5
    %v104 = vsel %vm76, %v99, %v103
    %v106 = vshrl.u32 %v44, 16
    %v108 = vrot.slane %v106, 4
    %v109 = vshll.u32 %v44, 16
    %v111 = vrot.slane %v109, 5
    %v112 = vor.u32 %v108, %v111
    %v113 = vrot.slane %v112, 4
    %v115 = vshll.u32 %v60, 16
    %v117 = vrot.slane %v115, 5
    %v118 = vsel %vm76, %v113, %v117
    %v120 = vshrl.u32 %v45, 16
    %v122 = vrot.slane %v120, 4
    %v123 = vshll.u32 %v45, 16
    %v125 = vrot.slane %v123, 5
    %v126 = vor.u32 %v122, %v125
    %v127 = vrot.slane %v126, 4
    %v129 = vshll.u32 %v61, 16
    %v131 = vrot.slane %v129, 5
    %v132 = vsel %vm76, %v127, %v131
    %v134 = vshrl.u32 %v46, 16
    %v136 = vrot.slane %v134, 4
    %v137 = vshll.u32 %v46, 16
    %v139 = vrot.slane %v137, 5
    %v140 = vor.u32 %v136, %v139
    %v141 = vrot.slane %v140, 4
    %v143 = vshll.u32 %v62, 16
    %v145 = vrot.slane %v143, 5
    %v146 = vsel %vm76, %v141, %v145
    %v148 = vshrl.u32 %v47, 16
    %v150 = vrot.slane %v148, 4
    %v151 = vshll.u32 %v47, 16
    %v153 = vrot.slane %v151, 5
    %v154 = vor.u32 %v150, %v153
    %v155 = vrot.slane %v154, 4
    %v157 = vshll.u32 %v63, 16
    %v159 = vrot.slane %v157, 5
    %v160 = vsel %vm76, %v155, %v159
    %v162 = vshrl.u32 %v48, 16
    %v164 = vrot.slane %v162, 4
    %v165 = vshll.u32 %v48, 16
    %v167 = vrot.slane %v165, 5
    %v168 = vor.u32 %v164, %v167
    %v169 = vrot.slane %v168, 4
    %v171 = vshll.u32 %v64, 16
    %v173 = vrot.slane %v171, 5
    %v174 = vsel %vm76, %v169, %v173
    %v176 = vshrl.u32 %v49, 16
    %v178 = vrot.slane %v176, 4
    %v179 = vshll.u32 %v49, 16
    %v181 = vrot.slane %v179, 5
    %v182 = vor.u32 %v178, %v181
    %v183 = vrot.slane %v182, 4
    %v185 = vshll.u32 %v65, 16
    %v187 = vrot.slane %v185, 5
    %v188 = vsel %vm76, %v183, %v187
    %v190 = vshrl.u32 %v50, 16
    %v192 = vrot.slane %v190, 4
    %v193 = vshll.u32 %v50, 16
    %v195 = vrot.slane %v193, 5
    %v196 = vor.u32 %v192, %v195
    %v197 = vrot.slane %v196, 4
    %v199 = vshll.u32 %v66, 16
    %v201 = vrot.slane %v199, 5
    %v202 = vsel %vm76, %v197, %v201
    %v204 = vshrl.u32 %v51, 16
    %v206 = vrot.slane %v204, 4
    %v207 = vshll.u32 %v51, 16
    %v209 = vrot.slane %v207, 5
    %v210 = vor.u32 %v206, %v209
    %v211 = vrot.slane %v210, 4
    %v213 = vshll.u32 %v67, 16
    %v215 = vrot.slane %v213, 5
    %v216 = vsel %vm76, %v211, %v215
    %v218 = vshrl.u32 %v52, 16
    %v220 = vrot.slane %v218, 4
    %v221 = vshll.u32 %v52, 16
    %v223 = vrot.slane %v221, 5
    %v224 = vor.u32 %v220, %v223
    %v225 = vrot.slane %v224, 4
    %v227 = vshll.u32 %v68, 16
    %v229 = vrot.slane %v227, 5
    %v230 = vsel %vm76, %v225, %v229
    %v232 = vshrl.u32 %v53, 16
    %v234 = vrot.slane %v232, 4
    %v235 = vshll.u32 %v53, 16
    %v237 = vrot.slane %v235, 5
    %v238 = vor.u32 %v234, %v237
    %v239 = vrot.slane %v238, 4
    %v241 = vshll.u32 %v69, 16
    %v243 = vrot.slane %v241, 5
    %v244 = vsel %vm76, %v239, %v243
    %v246 = vshrl.u32 %v54, 16
    %v248 = vrot.slane %v246, 4
    %v249 = vshll.u32 %v54, 16
    %v251 = vrot.slane %v249, 5
    %v252 = vor.u32 %v248, %v251
    %v253 = vrot.slane %v252, 4
    %v255 = vshll.u32 %v70, 16
    %v257 = vrot.slane %v255, 5
    %v258 = vsel %vm76, %v253, %v257
    %v260 = vshrl.u32 %v55, 16
    %v262 = vrot.slane %v260, 4
    %v263 = vshll.u32 %v55, 16
    %v265 = vrot.slane %v263, 5
    %v266 = vor.u32 %v262, %v265
    %v267 = vrot.slane %v266, 4
    %v269 = vshll.u32 %v71, 16
    %v271 = vrot.slane %v269, 5
    %v272 = vsel %vm76, %v267, %v271
    %v274 = vshrl.u32 %v56, 16
    %v276 = vrot.slane %v274, 4
    %v277 = vshll.u32 %v56, 16
    %v279 = vrot.slane %v277, 5
    %v280 = vor.u32 %v276, %v279
    %v281 = vrot.slane %v280, 4
    %v283 = vshll.u32 %v72, 16
    %v285 = vrot.slane %v283, 5
    %v286 = vsel %vm76, %v281, %v285
    %v288 = vshrl.u32 %v57, 16
    %v290 = vrot.slane %v288, 4
    %v291 = vshll.u32 %v57, 16
    %v293 = vrot.slane %v291, 5
    %v294 = vor.u32 %v290, %v293
    %v295 = vrot.slane %v294, 4
    %v297 = vshll.u32 %v73, 16
    %v299 = vrot.slane %v297, 5
    %v300 = vsel %vm76, %v295, %v299
    %v301 = vld [vmem:[%s0] sm:$0xe]
    %v302 = vld [vmem:[%s0 + $0x8] sm:$0xe]
    %v303 = vld [vmem:[%s0 + $0x10] sm:$0xe]
    %v304 = vld [vmem:[%s0 + $0x18] sm:$0xe]
    %v305 = vld [vmem:[%s0 + $0x20] sm:$0xe]
    %v306 = vld [vmem:[%s0 + $0x28] sm:$0xe]
    %v307 = vld [vmem:[%s0 + $0x30] sm:$0xe]
    %v308 = vld [vmem:[%s0 + $0x38] sm:$0xe]
    %v309 = vld [vmem:[%s0 + $0x50] sm:$0xe]
    %v310 = vld [vmem:[%s0 + $0x58] sm:$0xe]
    %v311 = vld [vmem:[%s0 + $0x60] sm:$0xe]
    %v312 = vld [vmem:[%s0 + $0x68] sm:$0xe]
    %v313 = vld [vmem:[%s0 + $0x70] sm:$0xe]
    %v314 = vld [vmem:[%s0 + $0x78] sm:$0xe]
    %v315 = vld [vmem:[%s0 + $0x80] sm:$0xe]
    %v316 = vld [vmem:[%s0 + $0x88] sm:$0xe]
    %vm349 = vcmask 1042432
    %vm350 = vcmask 1046532
    %vm351 = vmor %vm349, %vm350
    %v352 = vrot.slane %v301, 5
    %v353 = vrot.slane %v352, 4
    %v354 = vrot.slane %v58, 5
    %v355 = vsel %vm351, %v353, %v354
    %v356 = vrot.slane %v302, 5
    %v357 = vrot.slane %v356, 4
    %v358 = vrot.slane %v59, 5
    %v359 = vsel %vm351, %v357, %v358
    %v360 = vrot.slane %v303, 5
    %v361 = vrot.slane %v360, 4
    %v362 = vrot.slane %v60, 5
    %v363 = vsel %vm351, %v361, %v362
    %v364 = vrot.slane %v304, 5
    %v365 = vrot.slane %v364, 4
    %v366 = vrot.slane %v61, 5
    %v367 = vsel %vm351, %v365, %v366
    %v368 = vrot.slane %v305, 5
    %v369 = vrot.slane %v368, 4
    %v370 = vrot.slane %v62, 5
    %v371 = vsel %vm351, %v369, %v370
    %v372 = vrot.slane %v306, 5
    %v373 = vrot.slane %v372, 4
    %v374 = vrot.slane %v63, 5
    %v375 = vsel %vm351, %v373, %v374
    %v376 = vrot.slane %v307, 5
    %v377 = vrot.slane %v376, 4
    %v378 = vrot.slane %v64, 5
    %v379 = vsel %vm351, %v377, %v378
    %v380 = vrot.slane %v308, 5
    %v381 = vrot.slane %v380, 4
    %v382 = vrot.slane %v65, 5
    %v383 = vsel %vm351, %v381, %v382
    %v384 = vrot.slane %v309, 5
    %v385 = vrot.slane %v384, 4
    %v386 = vrot.slane %v66, 5
    %v387 = vsel %vm351, %v385, %v386
    %v388 = vrot.slane %v310, 5
    %v389 = vrot.slane %v388, 4
    %v390 = vrot.slane %v67, 5
    %v391 = vsel %vm351, %v389, %v390
    %v392 = vrot.slane %v311, 5
    %v393 = vrot.slane %v392, 4
    %v394 = vrot.slane %v68, 5
    %v395 = vsel %vm351, %v393, %v394
    %v396 = vrot.slane %v312, 5
    %v397 = vrot.slane %v396, 4
    %v398 = vrot.slane %v69, 5
    %v399 = vsel %vm351, %v397, %v398
    %v400 = vrot.slane %v313, 5
    %v401 = vrot.slane %v400, 4
    %v402 = vrot.slane %v70, 5
    %v403 = vsel %vm351, %v401, %v402
    %v404 = vrot.slane %v314, 5
    %v405 = vrot.slane %v404, 4
    %v406 = vrot.slane %v71, 5
    %v407 = vsel %vm351, %v405, %v406
    %v408 = vrot.slane %v315, 5
    %v409 = vrot.slane %v408, 4
    %v410 = vrot.slane %v72, 5
    %v411 = vsel %vm351, %v409, %v410
    %v412 = vrot.slane %v316, 5
    %v413 = vrot.slane %v412, 4
    %v414 = vrot.slane %v73, 5
    %v415 = vsel %vm351, %v413, %v414
    %s416 = scalar_lea.vmem %s0, 8
    %v417 = vld [vmem:[%s416] sm:$0xf]
    %v418 = vld [vmem:[%s416 + $0x8] sm:$0xf]
    %v419 = vld [vmem:[%s416 + $0x10] sm:$0xf]
    %v420 = vld [vmem:[%s416 + $0x18] sm:$0xf]
    %v421 = vld [vmem:[%s416 + $0x20] sm:$0xf]
    %v422 = vld [vmem:[%s416 + $0x28] sm:$0xf]
    %v423 = vld [vmem:[%s416 + $0x30] sm:$0xf]
    %v424 = vld [vmem:[%s416 + $0x38] sm:$0xf]
    %v425 = vld [vmem:[%s416 + $0x50] sm:$0xf]
    %v426 = vld [vmem:[%s416 + $0x58] sm:$0xf]
    %v427 = vld [vmem:[%s416 + $0x60] sm:$0xf]
    %v428 = vld [vmem:[%s416 + $0x68] sm:$0xf]
    %v429 = vld [vmem:[%s416 + $0x70] sm:$0xf]
    %v430 = vld [vmem:[%s416 + $0x78] sm:$0xf]
    %v431 = vld [vmem:[%s416 + $0x80] sm:$0xf]
    %v432 = vld [vmem:[%s416 + $0x88] sm:$0xf]
    %v433 = vld [vmem:[%s416 + $0x4] sm:$0x1]
    %v434 = vld [vmem:[%s416 + $0xc] sm:$0x1]
    %v435 = vld [vmem:[%s416 + $0x14] sm:$0x1]
    %v436 = vld [vmem:[%s416 + $0x1c] sm:$0x1]
    %v437 = vld [vmem:[%s416 + $0x24] sm:$0x1]
    %v438 = vld [vmem:[%s416 + $0x2c] sm:$0x1]
    %v439 = vld [vmem:[%s416 + $0x34] sm:$0x1]
    %v440 = vld [vmem:[%s416 + $0x3c] sm:$0x1]
    %v441 = vld [vmem:[%s416 + $0x54] sm:$0x1]
    %v442 = vld [vmem:[%s416 + $0x5c] sm:$0x1]
    %v443 = vld [vmem:[%s416 + $0x64] sm:$0x1]
    %v444 = vld [vmem:[%s416 + $0x6c] sm:$0x1]
    %v445 = vld [vmem:[%s416 + $0x74] sm:$0x1]
    %v446 = vld [vmem:[%s416 + $0x7c] sm:$0x1]
    %v447 = vld [vmem:[%s416 + $0x84] sm:$0x1]
    %v448 = vld [vmem:[%s416 + $0x8c] sm:$0x1]
    %v450 = vshrl.u32 %v417, 16
    %v452 = vrot.slane %v450, 4
    %v453 = vshll.u32 %v417, 16
    %v455 = vrot.slane %v453, 5
    %v456 = vor.u32 %v452, %v455
    %v457 = vrot.slane %v456, 4
    %v459 = vshll.u32 %v433, 16
    %v461 = vrot.slane %v459, 5
    %v462 = vsel %vm76, %v457, %v461
    %v464 = vshrl.u32 %v418, 16
    %v466 = vrot.slane %v464, 4
    %v467 = vshll.u32 %v418, 16
    %v469 = vrot.slane %v467, 5
    %v470 = vor.u32 %v466, %v469
    %v471 = vrot.slane %v470, 4
    %v473 = vshll.u32 %v434, 16
    %v475 = vrot.slane %v473, 5
    %v476 = vsel %vm76, %v471, %v475
    %v478 = vshrl.u32 %v419, 16
    %v480 = vrot.slane %v478, 4
    %v481 = vshll.u32 %v419, 16
    %v483 = vrot.slane %v481, 5
    %v484 = vor.u32 %v480, %v483
    %v485 = vrot.slane %v484, 4
    %v487 = vshll.u32 %v435, 16
    %v489 = vrot.slane %v487, 5
    %v490 = vsel %vm76, %v485, %v489
    %v492 = vshrl.u32 %v420, 16
    %v494 = vrot.slane %v492, 4
    %v495 = vshll.u32 %v420, 16
    %v497 = vrot.slane %v495, 5
    %v498 = vor.u32 %v494, %v497
    %v499 = vrot.slane %v498, 4
    %v501 = vshll.u32 %v436, 16
    %v503 = vrot.slane %v501, 5
    %v504 = vsel %vm76, %v499, %v503
    %v506 = vshrl.u32 %v421, 16
    %v508 = vrot.slane %v506, 4
    %v509 = vshll.u32 %v421, 16
    %v511 = vrot.slane %v509, 5
    %v512 = vor.u32 %v508, %v511
    %v513 = vrot.slane %v512, 4
    %v515 = vshll.u32 %v437, 16
    %v517 = vrot.slane %v515, 5
    %v518 = vsel %vm76, %v513, %v517
    %v520 = vshrl.u32 %v422, 16
    %v522 = vrot.slane %v520, 4
    %v523 = vshll.u32 %v422, 16
    %v525 = vrot.slane %v523, 5
    %v526 = vor.u32 %v522, %v525
    %v527 = vrot.slane %v526, 4
    %v529 = vshll.u32 %v438, 16
    %v531 = vrot.slane %v529, 5
    %v532 = vsel %vm76, %v527, %v531
    %v534 = vshrl.u32 %v423, 16
    %v536 = vrot.slane %v534, 4
    %v537 = vshll.u32 %v423, 16
    %v539 = vrot.slane %v537, 5
    %v540 = vor.u32 %v536, %v539
    %v541 = vrot.slane %v540, 4
    %v543 = vshll.u32 %v439, 16
    %v545 = vrot.slane %v543, 5
    %v546 = vsel %vm76, %v541, %v545
    %v548 = vshrl.u32 %v424, 16
    %v550 = vrot.slane %v548, 4
    %v551 = vshll.u32 %v424, 16
    %v553 = vrot.slane %v551, 5
    %v554 = vor.u32 %v550, %v553
    %v555 = vrot.slane %v554, 4
    %v557 = vshll.u32 %v440, 16
    %v559 = vrot.slane %v557, 5
    %v560 = vsel %vm76, %v555, %v559
    %v562 = vshrl.u32 %v425, 16
    %v564 = vrot.slane %v562, 4
    %v565 = vshll.u32 %v425, 16
    %v567 = vrot.slane %v565, 5
    %v568 = vor.u32 %v564, %v567
    %v569 = vrot.slane %v568, 4
    %v571 = vshll.u32 %v441, 16
    %v573 = vrot.slane %v571, 5
    %v574 = vsel %vm76, %v569, %v573
    %v576 = vshrl.u32 %v426, 16
    %v578 = vrot.slane %v576, 4
    %v579 = vshll.u32 %v426, 16
    %v581 = vrot.slane %v579, 5
    %v582 = vor.u32 %v578, %v581
    %v583 = vrot.slane %v582, 4
    %v585 = vshll.u32 %v442, 16
    %v587 = vrot.slane %v585, 5
    %v588 = vsel %vm76, %v583, %v587
    %v590 = vshrl.u32 %v427, 16
    %v592 = vrot.slane %v590, 4
    %v593 = vshll.u32 %v427, 16
    %v595 = vrot.slane %v593, 5
    %v596 = vor.u32 %v592, %v595
    %v597 = vrot.slane %v596, 4
    %v599 = vshll.u32 %v443, 16
    %v601 = vrot.slane %v599, 5
    %v602 = vsel %vm76, %v597, %v601
    %v604 = vshrl.u32 %v428, 16
    %v606 = vrot.slane %v604, 4
    %v607 = vshll.u32 %v428, 16
    %v609 = vrot.slane %v607, 5
    %v610 = vor.u32 %v606, %v609
    %v611 = vrot.slane %v610, 4
    %v613 = vshll.u32 %v444, 16
    %v615 = vrot.slane %v613, 5
    %v616 = vsel %vm76, %v611, %v615
    %v618 = vshrl.u32 %v429, 16
    %v620 = vrot.slane %v618, 4
    %v621 = vshll.u32 %v429, 16
    %v623 = vrot.slane %v621, 5
    %v624 = vor.u32 %v620, %v623
    %v625 = vrot.slane %v624, 4
    %v627 = vshll.u32 %v445, 16
    %v629 = vrot.slane %v627, 5
    %v630 = vsel %vm76, %v625, %v629
    %v632 = vshrl.u32 %v430, 16
    %v634 = vrot.slane %v632, 4
    %v635 = vshll.u32 %v430, 16
    %v637 = vrot.slane %v635, 5
    %v638 = vor.u32 %v634, %v637
    %v639 = vrot.slane %v638, 4
    %v641 = vshll.u32 %v446, 16
    %v643 = vrot.slane %v641, 5
    %v644 = vsel %vm76, %v639, %v643
    %v646 = vshrl.u32 %v431, 16
    %v648 = vrot.slane %v646, 4
    %v649 = vshll.u32 %v431, 16
    %v651 = vrot.slane %v649, 5
    %v652 = vor.u32 %v648, %v651
    %v653 = vrot.slane %v652, 4
    %v655 = vshll.u32 %v447, 16
    %v657 = vrot.slane %v655, 5
    %v658 = vsel %vm76, %v653, %v657
    %v660 = vshrl.u32 %v432, 16
    %v662 = vrot.slane %v660, 4
    %v663 = vshll.u32 %v432, 16
    %v665 = vrot.slane %v663, 5
    %v666 = vor.u32 %v662, %v665
    %v667 = vrot.slane %v666, 4
    %v669 = vshll.u32 %v448, 16
    %v671 = vrot.slane %v669, 5
    %v672 = vsel %vm76, %v667, %v671
    %v673 = vld [vmem:[%s416] sm:$0xe]
    %v674 = vld [vmem:[%s416 + $0x8] sm:$0xe]
    %v675 = vld [vmem:[%s416 + $0x10] sm:$0xe]
    %v676 = vld [vmem:[%s416 + $0x18] sm:$0xe]
    %v677 = vld [vmem:[%s416 + $0x20] sm:$0xe]
    %v678 = vld [vmem:[%s416 + $0x28] sm:$0xe]
    %v679 = vld [vmem:[%s416 + $0x30] sm:$0xe]
    %v680 = vld [vmem:[%s416 + $0x38] sm:$0xe]
    %v681 = vld [vmem:[%s416 + $0x50] sm:$0xe]
    %v682 = vld [vmem:[%s416 + $0x58] sm:$0xe]
    %v683 = vld [vmem:[%s416 + $0x60] sm:$0xe]
    %v684 = vld [vmem:[%s416 + $0x68] sm:$0xe]
    %v685 = vld [vmem:[%s416 + $0x70] sm:$0xe]
    %v686 = vld [vmem:[%s416 + $0x78] sm:$0xe]
    %v687 = vld [vmem:[%s416 + $0x80] sm:$0xe]
    %v688 = vld [vmem:[%s416 + $0x88] sm:$0xe]
    %v721 = vrot.slane %v673, 5
    %v722 = vrot.slane %v721, 4
    %v723 = vrot.slane %v433, 5
    %v724 = vsel %vm351, %v722, %v723
    %v725 = vrot.slane %v674, 5
    %v726 = vrot.slane %v725, 4
    %v727 = vrot.slane %v434, 5
    %v728 = vsel %vm351, %v726, %v727
    %v729 = vrot.slane %v675, 5
    %v730 = vrot.slane %v729, 4
    %v731 = vrot.slane %v435, 5
    %v732 = vsel %vm351, %v730, %v731
    %v733 = vrot.slane %v676, 5
    %v734 = vrot.slane %v733, 4
    %v735 = vrot.slane %v436, 5
    %v736 = vsel %vm351, %v734, %v735
    %v737 = vrot.slane %v677, 5
    %v738 = vrot.slane %v737, 4
    %v739 = vrot.slane %v437, 5
    %v740 = vsel %vm351, %v738, %v739
    %v741 = vrot.slane %v678, 5
    %v742 = vrot.slane %v741, 4
    %v743 = vrot.slane %v438, 5
    %v744 = vsel %vm351, %v742, %v743
    %v745 = vrot.slane %v679, 5
    %v746 = vrot.slane %v745, 4
    %v747 = vrot.slane %v439, 5
    %v748 = vsel %vm351, %v746, %v747
    %v749 = vrot.slane %v680, 5
    %v750 = vrot.slane %v749, 4
    %v751 = vrot.slane %v440, 5
    %v752 = vsel %vm351, %v750, %v751
    %v753 = vrot.slane %v681, 5
    %v754 = vrot.slane %v753, 4
    %v755 = vrot.slane %v441, 5
    %v756 = vsel %vm351, %v754, %v755
    %v757 = vrot.slane %v682, 5
    %v758 = vrot.slane %v757, 4
    %v759 = vrot.slane %v442, 5
    %v760 = vsel %vm351, %v758, %v759
    %v761 = vrot.slane %v683, 5
    %v762 = vrot.slane %v761, 4
    %v763 = vrot.slane %v443, 5
    %v764 = vsel %vm351, %v762, %v763
    %v765 = vrot.slane %v684, 5
    %v766 = vrot.slane %v765, 4
    %v767 = vrot.slane %v444, 5
    %v768 = vsel %vm351, %v766, %v767
    %v769 = vrot.slane %v685, 5
    %v770 = vrot.slane %v769, 4
    %v771 = vrot.slane %v445, 5
    %v772 = vsel %vm351, %v770, %v771
    %v773 = vrot.slane %v686, 5
    %v774 = vrot.slane %v773, 4
    %v775 = vrot.slane %v446, 5
    %v776 = vsel %vm351, %v774, %v775
    %v777 = vrot.slane %v687, 5
    %v778 = vrot.slane %v777, 4
    %v779 = vrot.slane %v447, 5
    %v780 = vsel %vm351, %v778, %v779
    %v781 = vrot.slane %v688, 5
    %v782 = vrot.slane %v781, 4
    %v783 = vrot.slane %v448, 5
    %v784 = vsel %vm351, %v782, %v783
    %s785 = scalar_lea.vmem %s0, 16
    %v786 = vld [vmem:[%s785] sm:$0xf]
    %v787 = vld [vmem:[%s785 + $0x8] sm:$0xf]
    %v788 = vld [vmem:[%s785 + $0x10] sm:$0xf]
    %v789 = vld [vmem:[%s785 + $0x18] sm:$0xf]
    %v790 = vld [vmem:[%s785 + $0x20] sm:$0xf]
    %v791 = vld [vmem:[%s785 + $0x28] sm:$0xf]
    %v792 = vld [vmem:[%s785 + $0x30] sm:$0xf]
    %v793 = vld [vmem:[%s785 + $0x38] sm:$0xf]
    %v794 = vld [vmem:[%s785 + $0x50] sm:$0xf]
    %v795 = vld [vmem:[%s785 + $0x58] sm:$0xf]
    %v796 = vld [vmem:[%s785 + $0x60] sm:$0xf]
    %v797 = vld [vmem:[%s785 + $0x68] sm:$0xf]
    %v798 = vld [vmem:[%s785 + $0x70] sm:$0xf]
    %v799 = vld [vmem:[%s785 + $0x78] sm:$0xf]
    %v800 = vld [vmem:[%s785 + $0x80] sm:$0xf]
    %v801 = vld [vmem:[%s785 + $0x88] sm:$0xf]
    %v802 = vld [vmem:[%s785 + $0x4] sm:$0x1]
    %v803 = vld [vmem:[%s785 + $0xc] sm:$0x1]
    %v804 = vld [vmem:[%s785 + $0x14] sm:$0x1]
    %v805 = vld [vmem:[%s785 + $0x1c] sm:$0x1]
    %v806 = vld [vmem:[%s785 + $0x24] sm:$0x1]
    %v807 = vld [vmem:[%s785 + $0x2c] sm:$0x1]
    %v808 = vld [vmem:[%s785 + $0x34] sm:$0x1]
    %v809 = vld [vmem:[%s785 + $0x3c] sm:$0x1]
    %v810 = vld [vmem:[%s785 + $0x54] sm:$0x1]
    %v811 = vld [vmem:[%s785 + $0x5c] sm:$0x1]
    %v812 = vld [vmem:[%s785 + $0x64] sm:$0x1]
    %v813 = vld [vmem:[%s785 + $0x6c] sm:$0x1]
    %v814 = vld [vmem:[%s785 + $0x74] sm:$0x1]
    %v815 = vld [vmem:[%s785 + $0x7c] sm:$0x1]
    %v816 = vld [vmem:[%s785 + $0x84] sm:$0x1]
    %v817 = vld [vmem:[%s785 + $0x8c] sm:$0x1]
    %v819 = vshrl.u32 %v786, 16
    %v821 = vrot.slane %v819, 4
    %v822 = vshll.u32 %v786, 16
    %v824 = vrot.slane %v822, 5
    %v825 = vor.u32 %v821, %v824
    %v826 = vrot.slane %v825, 4
    %v828 = vshll.u32 %v802, 16
    %v830 = vrot.slane %v828, 5
    %v831 = vsel %vm76, %v826, %v830
    %v833 = vshrl.u32 %v787, 16
    %v835 = vrot.slane %v833, 4
    %v836 = vshll.u32 %v787, 16
    %v838 = vrot.slane %v836, 5
    %v839 = vor.u32 %v835, %v838
    %v840 = vrot.slane %v839, 4
    %v842 = vshll.u32 %v803, 16
    %v844 = vrot.slane %v842, 5
    %v845 = vsel %vm76, %v840, %v844
    %v847 = vshrl.u32 %v788, 16
    %v849 = vrot.slane %v847, 4
    %v850 = vshll.u32 %v788, 16
    %v852 = vrot.slane %v850, 5
    %v853 = vor.u32 %v849, %v852
    %v854 = vrot.slane %v853, 4
    %v856 = vshll.u32 %v804, 16
    %v858 = vrot.slane %v856, 5
    %v859 = vsel %vm76, %v854, %v858
    %v861 = vshrl.u32 %v789, 16
    %v863 = vrot.slane %v861, 4
    %v864 = vshll.u32 %v789, 16
    %v866 = vrot.slane %v864, 5
    %v867 = vor.u32 %v863, %v866
    %v868 = vrot.slane %v867, 4
    %v870 = vshll.u32 %v805, 16
    %v872 = vrot.slane %v870, 5
    %v873 = vsel %vm76, %v868, %v872
    %v875 = vshrl.u32 %v790, 16
    %v877 = vrot.slane %v875, 4
    %v878 = vshll.u32 %v790, 16
    %v880 = vrot.slane %v878, 5
    %v881 = vor.u32 %v877, %v880
    %v882 = vrot.slane %v881, 4
    %v884 = vshll.u32 %v806, 16
    %v886 = vrot.slane %v884, 5
    %v887 = vsel %vm76, %v882, %v886
    %v889 = vshrl.u32 %v791, 16
    %v891 = vrot.slane %v889, 4
    %v892 = vshll.u32 %v791, 16
    %v894 = vrot.slane %v892, 5
    %v895 = vor.u32 %v891, %v894
    %v896 = vrot.slane %v895, 4
    %v898 = vshll.u32 %v807, 16
    %v900 = vrot.slane %v898, 5
    %v901 = vsel %vm76, %v896, %v900
    %v903 = vshrl.u32 %v792, 16
    %v905 = vrot.slane %v903, 4
    %v906 = vshll.u32 %v792, 16
    %v908 = vrot.slane %v906, 5
    %v909 = vor.u32 %v905, %v908
    %v910 = vrot.slane %v909, 4
    %v912 = vshll.u32 %v808, 16
    %v914 = vrot.slane %v912, 5
    %v915 = vsel %vm76, %v910, %v914
    %v917 = vshrl.u32 %v793, 16
    %v919 = vrot.slane %v917, 4
    %v920 = vshll.u32 %v793, 16
    %v922 = vrot.slane %v920, 5
    %v923 = vor.u32 %v919, %v922
    %v924 = vrot.slane %v923, 4
    %v926 = vshll.u32 %v809, 16
    %v928 = vrot.slane %v926, 5
    %v929 = vsel %vm76, %v924, %v928
    %v931 = vshrl.u32 %v794, 16
    %v933 = vrot.slane %v931, 4
    %v934 = vshll.u32 %v794, 16
    %v936 = vrot.slane %v934, 5
    %v937 = vor.u32 %v933, %v936
    %v938 = vrot.slane %v937, 4
    %v940 = vshll.u32 %v810, 16
    %v942 = vrot.slane %v940, 5
    %v943 = vsel %vm76, %v938, %v942
    %v945 = vshrl.u32 %v795, 16
    %v947 = vrot.slane %v945, 4
    %v948 = vshll.u32 %v795, 16
    %v950 = vrot.slane %v948, 5
    %v951 = vor.u32 %v947, %v950
    %v952 = vrot.slane %v951, 4
    %v954 = vshll.u32 %v811, 16
    %v956 = vrot.slane %v954, 5
    %v957 = vsel %vm76, %v952, %v956
    %v959 = vshrl.u32 %v796, 16
    %v961 = vrot.slane %v959, 4
    %v962 = vshll.u32 %v796, 16
    %v964 = vrot.slane %v962, 5
    %v965 = vor.u32 %v961, %v964
    %v966 = vrot.slane %v965, 4
    %v968 = vshll.u32 %v812, 16
    %v970 = vrot.slane %v968, 5
    %v971 = vsel %vm76, %v966, %v970
    %v973 = vshrl.u32 %v797, 16
    %v975 = vrot.slane %v973, 4
    %v976 = vshll.u32 %v797, 16
    %v978 = vrot.slane %v976, 5
    %v979 = vor.u32 %v975, %v978
    %v980 = vrot.slane %v979, 4
    %v982 = vshll.u32 %v813, 16
    %v984 = vrot.slane %v982, 5
    %v985 = vsel %vm76, %v980, %v984
    %v987 = vshrl.u32 %v798, 16
    %v989 = vrot.slane %v987, 4
    %v990 = vshll.u32 %v798, 16
    %v992 = vrot.slane %v990, 5
    %v993 = vor.u32 %v989, %v992
    %v994 = vrot.slane %v993, 4
    %v996 = vshll.u32 %v814, 16
    %v998 = vrot.slane %v996, 5
    %v999 = vsel %vm76, %v994, %v998
    %v1001 = vshrl.u32 %v799, 16
    %v1003 = vrot.slane %v1001, 4
    %v1004 = vshll.u32 %v799, 16
    %v1006 = vrot.slane %v1004, 5
    %v1007 = vor.u32 %v1003, %v1006
    %v1008 = vrot.slane %v1007, 4
    %v1010 = vshll.u32 %v815, 16
    %v1012 = vrot.slane %v1010, 5
    %v1013 = vsel %vm76, %v1008, %v1012
    %v1015 = vshrl.u32 %v800, 16
    %v1017 = vrot.slane %v1015, 4
    %v1018 = vshll.u32 %v800, 16
    %v1020 = vrot.slane %v1018, 5
    %v1021 = vor.u32 %v1017, %v1020
    %v1022 = vrot.slane %v1021, 4
    %v1024 = vshll.u32 %v816, 16
    %v1026 = vrot.slane %v1024, 5
    %v1027 = vsel %vm76, %v1022, %v1026
    %v1029 = vshrl.u32 %v801, 16
    %v1031 = vrot.slane %v1029, 4
    %v1032 = vshll.u32 %v801, 16
    %v1034 = vrot.slane %v1032, 5
    %v1035 = vor.u32 %v1031, %v1034
    %v1036 = vrot.slane %v1035, 4
    %v1038 = vshll.u32 %v817, 16
    %v1040 = vrot.slane %v1038, 5
    %v1041 = vsel %vm76, %v1036, %v1040
    %v1042 = vld [vmem:[%s785] sm:$0xe]
    %v1043 = vld [vmem:[%s785 + $0x8] sm:$0xe]
    %v1044 = vld [vmem:[%s785 + $0x10] sm:$0xe]
    %v1045 = vld [vmem:[%s785 + $0x18] sm:$0xe]
    %v1046 = vld [vmem:[%s785 + $0x20] sm:$0xe]
    %v1047 = vld [vmem:[%s785 + $0x28] sm:$0xe]
    %v1048 = vld [vmem:[%s785 + $0x30] sm:$0xe]
    %v1049 = vld [vmem:[%s785 + $0x38] sm:$0xe]
    %v1050 = vld [vmem:[%s785 + $0x50] sm:$0xe]
    %v1051 = vld [vmem:[%s785 + $0x58] sm:$0xe]
    %v1052 = vld [vmem:[%s785 + $0x60] sm:$0xe]
    %v1053 = vld [vmem:[%s785 + $0x68] sm:$0xe]
    %v1054 = vld [vmem:[%s785 + $0x70] sm:$0xe]
    %v1055 = vld [vmem:[%s785 + $0x78] sm:$0xe]
    %v1056 = vld [vmem:[%s785 + $0x80] sm:$0xe]
    %v1057 = vld [vmem:[%s785 + $0x88] sm:$0xe]
    %v1090 = vrot.slane %v1042, 5
    %v1091 = vrot.slane %v1090, 4
    %v1092 = vrot.slane %v802, 5
    %v1093 = vsel %vm351, %v1091, %v1092
    %v1094 = vrot.slane %v1043, 5
    %v1095 = vrot.slane %v1094, 4
    %v1096 = vrot.slane %v803, 5
    %v1097 = vsel %vm351, %v1095, %v1096
    %v1098 = vrot.slane %v1044, 5
    %v1099 = vrot.slane %v1098, 4
    %v1100 = vrot.slane %v804, 5
    %v1101 = vsel %vm351, %v1099, %v1100
    %v1102 = vrot.slane %v1045, 5
    %v1103 = vrot.slane %v1102, 4
    %v1104 = vrot.slane %v805, 5
    %v1105 = vsel %vm351, %v1103, %v1104
    %v1106 = vrot.slane %v1046, 5
    %v1107 = vrot.slane %v1106, 4
    %v1108 = vrot.slane %v806, 5
    %v1109 = vsel %vm351, %v1107, %v1108
    %v1110 = vrot.slane %v1047, 5
    %v1111 = vrot.slane %v1110, 4
    %v1112 = vrot.slane %v807, 5
    %v1113 = vsel %vm351, %v1111, %v1112
    %v1114 = vrot.slane %v1048, 5
    %v1115 = vrot.slane %v1114, 4
    %v1116 = vrot.slane %v808, 5
    %v1117 = vsel %vm351, %v1115, %v1116
    %v1118 = vrot.slane %v1049, 5
    %v1119 = vrot.slane %v1118, 4
    %v1120 = vrot.slane %v809, 5
    %v1121 = vsel %vm351, %v1119, %v1120
    %v1122 = vrot.slane %v1050, 5
    %v1123 = vrot.slane %v1122, 4
    %v1124 = vrot.slane %v810, 5
    %v1125 = vsel %vm351, %v1123, %v1124
    %v1126 = vrot.slane %v1051, 5
    %v1127 = vrot.slane %v1126, 4
    %v1128 = vrot.slane %v811, 5
    %v1129 = vsel %vm351, %v1127, %v1128
    %v1130 = vrot.slane %v1052, 5
    %v1131 = vrot.slane %v1130, 4
    %v1132 = vrot.slane %v812, 5
    %v1133 = vsel %vm351, %v1131, %v1132
    %v1134 = vrot.slane %v1053, 5
    %v1135 = vrot.slane %v1134, 4
    %v1136 = vrot.slane %v813, 5
    %v1137 = vsel %vm351, %v1135, %v1136
    %v1138 = vrot.slane %v1054, 5
    %v1139 = vrot.slane %v1138, 4
    %v1140 = vrot.slane %v814, 5
    %v1141 = vsel %vm351, %v1139, %v1140
    %v1142 = vrot.slane %v1055, 5
    %v1143 = vrot.slane %v1142, 4
    %v1144 = vrot.slane %v815, 5
    %v1145 = vsel %vm351, %v1143, %v1144
    %v1146 = vrot.slane %v1056, 5
    %v1147 = vrot.slane %v1146, 4
    %v1148 = vrot.slane %v816, 5
    %v1149 = vsel %vm351, %v1147, %v1148
    %v1150 = vrot.slane %v1057, 5
    %v1151 = vrot.slane %v1150, 4
    %v1152 = vrot.slane %v817, 5
    %v1153 = vsel %vm351, %v1151, %v1152
    %v1170 = vunpack.c.l.b16 %v42
    %v1171 = vunpack.c.l.b16 %v43
    %v1172 = vunpack.c.l.b16 %v44
    %v1173 = vunpack.c.l.b16 %v45
    %v1174 = vunpack.c.l.b16 %v46
    %v1175 = vunpack.c.l.b16 %v47
    %v1176 = vunpack.c.l.b16 %v48
    %v1177 = vunpack.c.l.b16 %v49
    %v1178 = vunpack.c.l.b16 %v50
    %v1179 = vunpack.c.l.b16 %v51
    %v1180 = vunpack.c.l.b16 %v52
    %v1181 = vunpack.c.l.b16 %v53
    %v1182 = vunpack.c.l.b16 %v54
    %v1183 = vunpack.c.l.b16 %v55
    %v1184 = vunpack.c.l.b16 %v56
    %v1185 = vunpack.c.l.b16 %v57
    %v1186 = vpack.c.b16 %v1171, %v1170
    %v1187 = vpack.c.b16 %v1173, %v1172
    %v1188 = vpack.c.b16 %v1175, %v1174
    %v1189 = vpack.c.b16 %v1177, %v1176
    %v1190 = vpack.c.b16 %v1179, %v1178
    %v1191 = vpack.c.b16 %v1181, %v1180
    %v1192 = vpack.c.b16 %v1183, %v1182
    %v1193 = vpack.c.b16 %v1185, %v1184
    %v1202 = vunpack.c.l.b16 %v90
    %v1203 = vunpack.c.l.b16 %v104
    %v1204 = vunpack.c.l.b16 %v118
    %v1205 = vunpack.c.l.b16 %v132
    %v1206 = vunpack.c.l.b16 %v146
    %v1207 = vunpack.c.l.b16 %v160
    %v1208 = vunpack.c.l.b16 %v174
    %v1209 = vunpack.c.l.b16 %v188
    %v1210 = vunpack.c.l.b16 %v202
    %v1211 = vunpack.c.l.b16 %v216
    %v1212 = vunpack.c.l.b16 %v230
    %v1213 = vunpack.c.l.b16 %v244
    %v1214 = vunpack.c.l.b16 %v258
    %v1215 = vunpack.c.l.b16 %v272
    %v1216 = vunpack.c.l.b16 %v286
    %v1217 = vunpack.c.l.b16 %v300
    %v1218 = vpack.c.b16 %v1203, %v1202
    %v1219 = vpack.c.b16 %v1205, %v1204
    %v1220 = vpack.c.b16 %v1207, %v1206
    %v1221 = vpack.c.b16 %v1209, %v1208
    %v1222 = vpack.c.b16 %v1211, %v1210
    %v1223 = vpack.c.b16 %v1213, %v1212
    %v1224 = vpack.c.b16 %v1215, %v1214
    %v1225 = vpack.c.b16 %v1217, %v1216
    %v1234 = vunpack.c.l.b16 %v355
    %v1235 = vunpack.c.l.b16 %v359
    %v1236 = vunpack.c.l.b16 %v363
    %v1237 = vunpack.c.l.b16 %v367
    %v1238 = vunpack.c.l.b16 %v371
    %v1239 = vunpack.c.l.b16 %v375
    %v1240 = vunpack.c.l.b16 %v379
    %v1241 = vunpack.c.l.b16 %v383
    %v1242 = vunpack.c.l.b16 %v387
    %v1243 = vunpack.c.l.b16 %v391
    %v1244 = vunpack.c.l.b16 %v395
    %v1245 = vunpack.c.l.b16 %v399
    %v1246 = vunpack.c.l.b16 %v403
    %v1247 = vunpack.c.l.b16 %v407
    %v1248 = vunpack.c.l.b16 %v411
    %v1249 = vunpack.c.l.b16 %v415
    %v1250 = vpack.c.b16 %v1235, %v1234
    %v1251 = vpack.c.b16 %v1237, %v1236
    %v1252 = vpack.c.b16 %v1239, %v1238
    %v1253 = vpack.c.b16 %v1241, %v1240
    %v1254 = vpack.c.b16 %v1243, %v1242
    %v1255 = vpack.c.b16 %v1245, %v1244
    %v1256 = vpack.c.b16 %v1247, %v1246
    %v1257 = vpack.c.b16 %v1249, %v1248
    %v1282 = vunpack.c.l.b16 %v417
    %v1283 = vunpack.c.l.b16 %v418
    %v1284 = vunpack.c.l.b16 %v419
    %v1285 = vunpack.c.l.b16 %v420
    %v1286 = vunpack.c.l.b16 %v421
    %v1287 = vunpack.c.l.b16 %v422
    %v1288 = vunpack.c.l.b16 %v423
    %v1289 = vunpack.c.l.b16 %v424
    %v1290 = vunpack.c.l.b16 %v425
    %v1291 = vunpack.c.l.b16 %v426
    %v1292 = vunpack.c.l.b16 %v427
    %v1293 = vunpack.c.l.b16 %v428
    %v1294 = vunpack.c.l.b16 %v429
    %v1295 = vunpack.c.l.b16 %v430
    %v1296 = vunpack.c.l.b16 %v431
    %v1297 = vunpack.c.l.b16 %v432
    %v1298 = vpack.c.b16 %v1283, %v1282
    %v1299 = vpack.c.b16 %v1285, %v1284
    %v1300 = vpack.c.b16 %v1287, %v1286
    %v1301 = vpack.c.b16 %v1289, %v1288
    %v1302 = vpack.c.b16 %v1291, %v1290
    %v1303 = vpack.c.b16 %v1293, %v1292
    %v1304 = vpack.c.b16 %v1295, %v1294
    %v1305 = vpack.c.b16 %v1297, %v1296
    %v1314 = vunpack.c.l.b16 %v462
    %v1315 = vunpack.c.l.b16 %v476
    %v1316 = vunpack.c.l.b16 %v490
    %v1317 = vunpack.c.l.b16 %v504
    %v1318 = vunpack.c.l.b16 %v518
    %v1319 = vunpack.c.l.b16 %v532
    %v1320 = vunpack.c.l.b16 %v546
    %v1321 = vunpack.c.l.b16 %v560
    %v1322 = vunpack.c.l.b16 %v574
    %v1323 = vunpack.c.l.b16 %v588
    %v1324 = vunpack.c.l.b16 %v602
    %v1325 = vunpack.c.l.b16 %v616
    %v1326 = vunpack.c.l.b16 %v630
    %v1327 = vunpack.c.l.b16 %v644
    %v1328 = vunpack.c.l.b16 %v658
    %v1329 = vunpack.c.l.b16 %v672
    %v1330 = vpack.c.b16 %v1315, %v1314
    %v1331 = vpack.c.b16 %v1317, %v1316
    %v1332 = vpack.c.b16 %v1319, %v1318
    %v1333 = vpack.c.b16 %v1321, %v1320
    %v1334 = vpack.c.b16 %v1323, %v1322
    %v1335 = vpack.c.b16 %v1325, %v1324
    %v1336 = vpack.c.b16 %v1327, %v1326
    %v1337 = vpack.c.b16 %v1329, %v1328
    %v1346 = vunpack.c.l.b16 %v724
    %v1347 = vunpack.c.l.b16 %v728
    %v1348 = vunpack.c.l.b16 %v732
    %v1349 = vunpack.c.l.b16 %v736
    %v1350 = vunpack.c.l.b16 %v740
    %v1351 = vunpack.c.l.b16 %v744
    %v1352 = vunpack.c.l.b16 %v748
    %v1353 = vunpack.c.l.b16 %v752
    %v1354 = vunpack.c.l.b16 %v756
    %v1355 = vunpack.c.l.b16 %v760
    %v1356 = vunpack.c.l.b16 %v764
    %v1357 = vunpack.c.l.b16 %v768
    %v1358 = vunpack.c.l.b16 %v772
    %v1359 = vunpack.c.l.b16 %v776
    %v1360 = vunpack.c.l.b16 %v780
    %v1361 = vunpack.c.l.b16 %v784
    %v1362 = vpack.c.b16 %v1347, %v1346
    %v1363 = vpack.c.b16 %v1349, %v1348
    %v1364 = vpack.c.b16 %v1351, %v1350
    %v1365 = vpack.c.b16 %v1353, %v1352
    %v1366 = vpack.c.b16 %v1355, %v1354
    %v1367 = vpack.c.b16 %v1357, %v1356
    %v1368 = vpack.c.b16 %v1359, %v1358
    %v1369 = vpack.c.b16 %v1361, %v1360
    %v1394 = vunpack.c.l.b16 %v786
    %v1395 = vunpack.c.l.b16 %v787
    %v1396 = vunpack.c.l.b16 %v788
    %v1397 = vunpack.c.l.b16 %v789
    %v1398 = vunpack.c.l.b16 %v790
    %v1399 = vunpack.c.l.b16 %v791
    %v1400 = vunpack.c.l.b16 %v792
    %v1401 = vunpack.c.l.b16 %v793
    %v1402 = vunpack.c.l.b16 %v794
    %v1403 = vunpack.c.l.b16 %v795
    %v1404 = vunpack.c.l.b16 %v796
    %v1405 = vunpack.c.l.b16 %v797
    %v1406 = vunpack.c.l.b16 %v798
    %v1407 = vunpack.c.l.b16 %v799
    %v1408 = vunpack.c.l.b16 %v800
    %v1409 = vunpack.c.l.b16 %v801
    %v1410 = vpack.c.b16 %v1395, %v1394
    %v1411 = vpack.c.b16 %v1397, %v1396
    %v1412 = vpack.c.b16 %v1399, %v1398
    %v1413 = vpack.c.b16 %v1401, %v1400
    %v1414 = vpack.c.b16 %v1403, %v1402
    %v1415 = vpack.c.b16 %v1405, %v1404
    %v1416 = vpack.c.b16 %v1407, %v1406
    %v1417 = vpack.c.b16 %v1409, %v1408
    %v1426 = vunpack.c.l.b16 %v831
    %v1427 = vunpack.c.l.b16 %v845
    %v1428 = vunpack.c.l.b16 %v859
    %v1429 = vunpack.c.l.b16 %v873
    %v1430 = vunpack.c.l.b16 %v887
    %v1431 = vunpack.c.l.b16 %v901
    %v1432 = vunpack.c.l.b16 %v915
    %v1433 = vunpack.c.l.b16 %v929
    %v1434 = vunpack.c.l.b16 %v943
    %v1435 = vunpack.c.l.b16 %v957
    %v1436 = vunpack.c.l.b16 %v971
    %v1437 = vunpack.c.l.b16 %v985
    %v1438 = vunpack.c.l.b16 %v999
    %v1439 = vunpack.c.l.b16 %v1013
    %v1440 = vunpack.c.l.b16 %v1027
    %v1441 = vunpack.c.l.b16 %v1041
    %v1442 = vpack.c.b16 %v1427, %v1426
    %v1443 = vpack.c.b16 %v1429, %v1428
    %v1444 = vpack.c.b16 %v1431, %v1430
    %v1445 = vpack.c.b16 %v1433, %v1432
    %v1446 = vpack.c.b16 %v1435, %v1434
    %v1447 = vpack.c.b16 %v1437, %v1436
    %v1448 = vpack.c.b16 %v1439, %v1438
    %v1449 = vpack.c.b16 %v1441, %v1440
    %v1458 = vunpack.c.l.b16 %v1093
    %v1459 = vunpack.c.l.b16 %v1097
    %v1460 = vunpack.c.l.b16 %v1101
    %v1461 = vunpack.c.l.b16 %v1105
    %v1462 = vunpack.c.l.b16 %v1109
    %v1463 = vunpack.c.l.b16 %v1113
    %v1464 = vunpack.c.l.b16 %v1117
    %v1465 = vunpack.c.l.b16 %v1121
    %v1466 = vunpack.c.l.b16 %v1125
    %v1467 = vunpack.c.l.b16 %v1129
    %v1468 = vunpack.c.l.b16 %v1133
    %v1469 = vunpack.c.l.b16 %v1137
    %v1470 = vunpack.c.l.b16 %v1141
    %v1471 = vunpack.c.l.b16 %v1145
    %v1472 = vunpack.c.l.b16 %v1149
    %v1473 = vunpack.c.l.b16 %v1153
    %v1474 = vpack.c.b16 %v1459, %v1458
    %v1475 = vpack.c.b16 %v1461, %v1460
    %v1476 = vpack.c.b16 %v1463, %v1462
    %v1477 = vpack.c.b16 %v1465, %v1464
    %v1478 = vpack.c.b16 %v1467, %v1466
    %v1479 = vpack.c.b16 %v1469, %v1468
    %v1480 = vpack.c.b16 %v1471, %v1470
    %v1481 = vpack.c.b16 %v1473, %v1472
    %v1490 = vld [vmem:[%s1] sm:$0xf]
    %v1491 = vld [vmem:[%s1 + $0x4] sm:$0xf]
    %v1492 = vld [vmem:[%s1 + $0x8] sm:$0xf]
    %v1493 = vld [vmem:[%s1 + $0xc] sm:$0xf]
    %v1494 = vld [vmem:[%s1 + $0x10] sm:$0xf]
    %v1495 = vld [vmem:[%s1 + $0x14] sm:$0xf]
    %v1496 = vld [vmem:[%s1 + $0x18] sm:$0xf]
    %v1497 = vld [vmem:[%s1 + $0x1c] sm:$0xf]
    %v1498 = vld [vmem:[%s1 + $0x20] sm:$0xf]
    %v1499 = vld [vmem:[%s1 + $0x24] sm:$0xf]
    %v1500 = vld [vmem:[%s1 + $0x28] sm:$0xf]
    %v1501 = vld [vmem:[%s1 + $0x2c] sm:$0xf]
    %v1502 = vld [vmem:[%s1 + $0x30] sm:$0xf]
    %v1503 = vld [vmem:[%s1 + $0x34] sm:$0xf]
    %v1504 = vld [vmem:[%s1 + $0x38] sm:$0xf]
    %v1505 = vld [vmem:[%s1 + $0x3c] sm:$0xf]
    %v1506 = vld [vmem:[%s1 + $0x40] sm:$0xf]
    %v1507 = vld [vmem:[%s1 + $0x44] sm:$0xf]
    %v1508 = vld [vmem:[%s1 + $0x48] sm:$0xf]
    %v1509 = vld [vmem:[%s1 + $0x4c] sm:$0xf]
    %v1510 = vld [vmem:[%s1 + $0x50] sm:$0xf]
    %v1511 = vld [vmem:[%s1 + $0x54] sm:$0xf]
    %v1512 = vld [vmem:[%s1 + $0x58] sm:$0xf]
    %v1513 = vld [vmem:[%s1 + $0x5c] sm:$0xf]
    %v1514 = vld [vmem:[%s1 + $0x60] sm:$0xf]
    %v1515 = vld [vmem:[%s1 + $0x64] sm:$0xf]
    %v1516 = vld [vmem:[%s1 + $0x68] sm:$0xf]
    %v1517 = vld [vmem:[%s1 + $0x6c] sm:$0xf]
    %v1518 = vld [vmem:[%s1 + $0x70] sm:$0xf]
    %v1519 = vld [vmem:[%s1 + $0x74] sm:$0xf]
    %v1520 = vld [vmem:[%s1 + $0x78] sm:$0xf]
    %v1521 = vld [vmem:[%s1 + $0x7c] sm:$0xf]
    %v1522 = vld [vmem:[%s1 + $0x80] sm:$0xf]
    %v1523 = vld [vmem:[%s1 + $0x84] sm:$0xf]
    %v1524 = vld [vmem:[%s1 + $0x88] sm:$0xf]
    %v1525 = vld [vmem:[%s1 + $0x8c] sm:$0xf]
    %v1526 = vld [vmem:[%s1 + $0x90] sm:$0xf]
    %v1527 = vld [vmem:[%s1 + $0x94] sm:$0xf]
    %v1528 = vld [vmem:[%s1 + $0x98] sm:$0xf]
    %v1529 = vld [vmem:[%s1 + $0x9c] sm:$0xf]
    %v1530 = vld [vmem:[%s1 + $0xa0] sm:$0xf]
    %v1531 = vld [vmem:[%s1 + $0xa4] sm:$0xf]
    %v1532 = vld [vmem:[%s1 + $0xa8] sm:$0xf]
    %v1533 = vld [vmem:[%s1 + $0xac] sm:$0xf]
    %v1534 = vld [vmem:[%s1 + $0xb0] sm:$0xf]
    %v1535 = vld [vmem:[%s1 + $0xb4] sm:$0xf]
    %v1536 = vld [vmem:[%s1 + $0xb8] sm:$0xf]
    %v1537 = vld [vmem:[%s1 + $0xbc] sm:$0xf]
    %v1538 = vld [vmem:[%s1 + $0xc0] sm:$0xf]
    %v1539 = vld [vmem:[%s1 + $0xc4] sm:$0xf]
    %v1540 = vld [vmem:[%s1 + $0xc8] sm:$0xf]
    %v1541 = vld [vmem:[%s1 + $0xcc] sm:$0xf]
    %v1542 = vld [vmem:[%s1 + $0xd0] sm:$0xf]
    %v1543 = vld [vmem:[%s1 + $0xd4] sm:$0xf]
    %v1544 = vld [vmem:[%s1 + $0xd8] sm:$0xf]
    %v1545 = vld [vmem:[%s1 + $0xdc] sm:$0xf]
    %v1546 = vld [vmem:[%s1 + $0xe0] sm:$0xf]
    %v1547 = vld [vmem:[%s1 + $0xe4] sm:$0xf]
    %v1548 = vld [vmem:[%s1 + $0xe8] sm:$0xf]
    %v1549 = vld [vmem:[%s1 + $0xec] sm:$0xf]
    %v1550 = vld [vmem:[%s1 + $0xf0] sm:$0xf]
    %v1551 = vld [vmem:[%s1 + $0xf4] sm:$0xf]
    %v1552 = vld [vmem:[%s1 + $0xf8] sm:$0xf]
    %v1553 = vld [vmem:[%s1 + $0xfc] sm:$0xf]
    %v1554 = vld [vmem:[%s1 + $0x100] sm:$0xf]
    %v1555 = vld [vmem:[%s1 + $0x104] sm:$0xf]
    %v1556 = vld [vmem:[%s1 + $0x108] sm:$0xf]
    %v1557 = vld [vmem:[%s1 + $0x10c] sm:$0xf]
    %v1558 = vld [vmem:[%s1 + $0x110] sm:$0xf]
    %v1559 = vld [vmem:[%s1 + $0x114] sm:$0xf]
    %v1560 = vld [vmem:[%s1 + $0x118] sm:$0xf]
    %v1561 = vld [vmem:[%s1 + $0x11c] sm:$0xf]
    %v1562 = vld [vmem:[%s1 + $0x120] sm:$0xf]
    %v1563 = vld [vmem:[%s1 + $0x124] sm:$0xf]
    %v1564 = vld [vmem:[%s1 + $0x128] sm:$0xf]
    %v1565 = vld [vmem:[%s1 + $0x12c] sm:$0xf]
    %v1566 = vld [vmem:[%s1 + $0x130] sm:$0xf]
    %v1567 = vld [vmem:[%s1 + $0x134] sm:$0xf]
    %v1568 = vld [vmem:[%s1 + $0x138] sm:$0xf]
    %v1569 = vld [vmem:[%s1 + $0x13c] sm:$0xf]
    %v1570 = vld [vmem:[%s1 + $0x140] sm:$0xf]
    %v1571 = vld [vmem:[%s1 + $0x144] sm:$0xf]
    %v1572 = vld [vmem:[%s1 + $0x148] sm:$0xf]
    %v1573 = vld [vmem:[%s1 + $0x14c] sm:$0xf]
    %v1574 = vld [vmem:[%s1 + $0x150] sm:$0xf]
    %v1575 = vld [vmem:[%s1 + $0x154] sm:$0xf]
    %v1576 = vld [vmem:[%s1 + $0x158] sm:$0xf]
    %v1577 = vld [vmem:[%s1 + $0x15c] sm:$0xf]
    %v1578 = vld [vmem:[%s1 + $0x160] sm:$0xf]
    %v1579 = vld [vmem:[%s1 + $0x164] sm:$0xf]
    %v1580 = vld [vmem:[%s1 + $0x168] sm:$0xf]
    %v1581 = vld [vmem:[%s1 + $0x16c] sm:$0xf]
    %v1582 = vld [vmem:[%s1 + $0x170] sm:$0xf]
    %v1583 = vld [vmem:[%s1 + $0x174] sm:$0xf]
    %v1584 = vld [vmem:[%s1 + $0x178] sm:$0xf]
    %v1585 = vld [vmem:[%s1 + $0x17c] sm:$0xf]
    %v1586 = vld [vmem:[%s1 + $0x180] sm:$0xf]
    %v1587 = vld [vmem:[%s1 + $0x184] sm:$0xf]
    %v1588 = vld [vmem:[%s1 + $0x188] sm:$0xf]
    %v1589 = vld [vmem:[%s1 + $0x18c] sm:$0xf]
    %v1590 = vld [vmem:[%s1 + $0x190] sm:$0xf]
    %v1591 = vld [vmem:[%s1 + $0x194] sm:$0xf]
    %v1592 = vld [vmem:[%s1 + $0x198] sm:$0xf]
    %v1593 = vld [vmem:[%s1 + $0x19c] sm:$0xf]
    %v1594 = vld [vmem:[%s1 + $0x1a0] sm:$0xf]
    %v1595 = vld [vmem:[%s1 + $0x1a4] sm:$0xf]
    %v1596 = vld [vmem:[%s1 + $0x1a8] sm:$0xf]
    %v1597 = vld [vmem:[%s1 + $0x1ac] sm:$0xf]
    %v1598 = vld [vmem:[%s1 + $0x1b0] sm:$0xf]
    %v1599 = vld [vmem:[%s1 + $0x1b4] sm:$0xf]
    %v1600 = vld [vmem:[%s1 + $0x1b8] sm:$0xf]
    %v1601 = vld [vmem:[%s1 + $0x1bc] sm:$0xf]
    %v1602 = vld [vmem:[%s1 + $0x1c0] sm:$0xf]
    %v1603 = vld [vmem:[%s1 + $0x1c4] sm:$0xf]
    %v1604 = vld [vmem:[%s1 + $0x1c8] sm:$0xf]
    %v1605 = vld [vmem:[%s1 + $0x1cc] sm:$0xf]
    %v1606 = vld [vmem:[%s1 + $0x1d0] sm:$0xf]
    %v1607 = vld [vmem:[%s1 + $0x1d4] sm:$0xf]
    %v1608 = vld [vmem:[%s1 + $0x1d8] sm:$0xf]
    %v1609 = vld [vmem:[%s1 + $0x1dc] sm:$0xf]
    %v1610 = vld [vmem:[%s1 + $0x1e0] sm:$0xf]
    %v1611 = vld [vmem:[%s1 + $0x1e4] sm:$0xf]
    %v1612 = vld [vmem:[%s1 + $0x1e8] sm:$0xf]
    %v1613 = vld [vmem:[%s1 + $0x1ec] sm:$0xf]
    %v1614 = vld [vmem:[%s1 + $0x1f0] sm:$0xf]
    %v1615 = vld [vmem:[%s1 + $0x1f4] sm:$0xf]
    %v1616 = vld [vmem:[%s1 + $0x1f8] sm:$0xf]
    %v1617 = vld [vmem:[%s1 + $0x1fc] sm:$0xf]
    %v1618 = vld [vmem:[%s1 + $0x200] sm:$0xf]
    %v1619 = vld [vmem:[%s1 + $0x204] sm:$0xf]
    %v1620 = vld [vmem:[%s1 + $0x208] sm:$0xf]
    %v1621 = vld [vmem:[%s1 + $0x20c] sm:$0xf]
    %v1622 = vld [vmem:[%s1 + $0x210] sm:$0xf]
    %v1623 = vld [vmem:[%s1 + $0x214] sm:$0xf]
    %v1624 = vld [vmem:[%s1 + $0x218] sm:$0xf]
    %v1625 = vld [vmem:[%s1 + $0x21c] sm:$0xf]
    %v1626 = vld [vmem:[%s1 + $0x220] sm:$0xf]
    %v1627 = vld [vmem:[%s1 + $0x224] sm:$0xf]
    %v1628 = vld [vmem:[%s1 + $0x228] sm:$0xf]
    %v1629 = vld [vmem:[%s1 + $0x22c] sm:$0xf]
    %v1630 = vld [vmem:[%s1 + $0x230] sm:$0xf]
    %v1631 = vld [vmem:[%s1 + $0x234] sm:$0xf]
    %v1632 = vld [vmem:[%s1 + $0x238] sm:$0xf]
    %v1633 = vld [vmem:[%s1 + $0x23c] sm:$0xf]
    %v1778 = vunpack.c.l.b16 %v1490
    %v1779 = vunpack.c.l.b16 %v1491
    %v1780 = vunpack.c.l.b16 %v1492
    %v1781 = vunpack.c.l.b16 %v1493
    %v1782 = vunpack.c.l.b16 %v1494
    %v1783 = vunpack.c.l.b16 %v1495
    %v1784 = vunpack.c.l.b16 %v1496
    %v1785 = vunpack.c.l.b16 %v1497
    %v1786 = vunpack.c.l.b16 %v1498
    %v1787 = vunpack.c.l.b16 %v1499
    %v1788 = vunpack.c.l.b16 %v1500
    %v1789 = vunpack.c.l.b16 %v1501
    %v1790 = vunpack.c.l.b16 %v1502
    %v1791 = vunpack.c.l.b16 %v1503
    %v1792 = vunpack.c.l.b16 %v1504
    %v1793 = vunpack.c.l.b16 %v1505
    %v1794 = vunpack.c.l.b16 %v1506
    %v1795 = vunpack.c.l.b16 %v1507
    %v1796 = vunpack.c.l.b16 %v1508
    %v1797 = vunpack.c.l.b16 %v1509
    %v1798 = vunpack.c.l.b16 %v1510
    %v1799 = vunpack.c.l.b16 %v1511
    %v1800 = vunpack.c.l.b16 %v1512
    %v1801 = vunpack.c.l.b16 %v1513
    %v1802 = vunpack.c.l.b16 %v1514
    %v1803 = vunpack.c.l.b16 %v1515
    %v1804 = vunpack.c.l.b16 %v1516
    %v1805 = vunpack.c.l.b16 %v1517
    %v1806 = vunpack.c.l.b16 %v1518
    %v1807 = vunpack.c.l.b16 %v1519
    %v1808 = vunpack.c.l.b16 %v1520
    %v1809 = vunpack.c.l.b16 %v1521
    %v1810 = vunpack.c.l.b16 %v1522
    %v1811 = vunpack.c.l.b16 %v1523
    %v1812 = vunpack.c.l.b16 %v1524
    %v1813 = vunpack.c.l.b16 %v1525
    %v1814 = vunpack.c.l.b16 %v1526
    %v1815 = vunpack.c.l.b16 %v1527
    %v1816 = vunpack.c.l.b16 %v1528
    %v1817 = vunpack.c.l.b16 %v1529
    %v1818 = vunpack.c.l.b16 %v1530
    %v1819 = vunpack.c.l.b16 %v1531
    %v1820 = vunpack.c.l.b16 %v1532
    %v1821 = vunpack.c.l.b16 %v1533
    %v1822 = vunpack.c.l.b16 %v1534
    %v1823 = vunpack.c.l.b16 %v1535
    %v1824 = vunpack.c.l.b16 %v1536
    %v1825 = vunpack.c.l.b16 %v1537
    %v1826 = vunpack.c.l.b16 %v1538
    %v1827 = vunpack.c.l.b16 %v1539
    %v1828 = vunpack.c.l.b16 %v1540
    %v1829 = vunpack.c.l.b16 %v1541
    %v1830 = vunpack.c.l.b16 %v1542
    %v1831 = vunpack.c.l.b16 %v1543
    %v1832 = vunpack.c.l.b16 %v1544
    %v1833 = vunpack.c.l.b16 %v1545
    %v1834 = vunpack.c.l.b16 %v1546
    %v1835 = vunpack.c.l.b16 %v1547
    %v1836 = vunpack.c.l.b16 %v1548
    %v1837 = vunpack.c.l.b16 %v1549
    %v1838 = vunpack.c.l.b16 %v1550
    %v1839 = vunpack.c.l.b16 %v1551
    %v1840 = vunpack.c.l.b16 %v1552
    %v1841 = vunpack.c.l.b16 %v1553
    %v1842 = vunpack.c.l.b16 %v1554
    %v1843 = vunpack.c.l.b16 %v1555
    %v1844 = vunpack.c.l.b16 %v1556
    %v1845 = vunpack.c.l.b16 %v1557
    %v1846 = vunpack.c.l.b16 %v1558
    %v1847 = vunpack.c.l.b16 %v1559
    %v1848 = vunpack.c.l.b16 %v1560
    %v1849 = vunpack.c.l.b16 %v1561
    %v1850 = vunpack.c.l.b16 %v1562
    %v1851 = vunpack.c.l.b16 %v1563
    %v1852 = vunpack.c.l.b16 %v1564
    %v1853 = vunpack.c.l.b16 %v1565
    %v1854 = vunpack.c.l.b16 %v1566
    %v1855 = vunpack.c.l.b16 %v1567
    %v1856 = vunpack.c.l.b16 %v1568
    %v1857 = vunpack.c.l.b16 %v1569
    %v1858 = vunpack.c.l.b16 %v1570
    %v1859 = vunpack.c.l.b16 %v1571
    %v1860 = vunpack.c.l.b16 %v1572
    %v1861 = vunpack.c.l.b16 %v1573
    %v1862 = vunpack.c.l.b16 %v1574
    %v1863 = vunpack.c.l.b16 %v1575
    %v1864 = vunpack.c.l.b16 %v1576
    %v1865 = vunpack.c.l.b16 %v1577
    %v1866 = vunpack.c.l.b16 %v1578
    %v1867 = vunpack.c.l.b16 %v1579
    %v1868 = vunpack.c.l.b16 %v1580
    %v1869 = vunpack.c.l.b16 %v1581
    %v1870 = vunpack.c.l.b16 %v1582
    %v1871 = vunpack.c.l.b16 %v1583
    %v1872 = vunpack.c.l.b16 %v1584
    %v1873 = vunpack.c.l.b16 %v1585
    %v1874 = vunpack.c.l.b16 %v1586
    %v1875 = vunpack.c.l.b16 %v1587
    %v1876 = vunpack.c.l.b16 %v1588
    %v1877 = vunpack.c.l.b16 %v1589
    %v1878 = vunpack.c.l.b16 %v1590
    %v1879 = vunpack.c.l.b16 %v1591
    %v1880 = vunpack.c.l.b16 %v1592
    %v1881 = vunpack.c.l.b16 %v1593
    %v1882 = vunpack.c.l.b16 %v1594
    %v1883 = vunpack.c.l.b16 %v1595
    %v1884 = vunpack.c.l.b16 %v1596
    %v1885 = vunpack.c.l.b16 %v1597
    %v1886 = vunpack.c.l.b16 %v1598
    %v1887 = vunpack.c.l.b16 %v1599
    %v1888 = vunpack.c.l.b16 %v1600
    %v1889 = vunpack.c.l.b16 %v1601
    %v1890 = vunpack.c.l.b16 %v1602
    %v1891 = vunpack.c.l.b16 %v1603
    %v1892 = vunpack.c.l.b16 %v1604
    %v1893 = vunpack.c.l.b16 %v1605
    %v1894 = vunpack.c.l.b16 %v1606
    %v1895 = vunpack.c.l.b16 %v1607
    %v1896 = vunpack.c.l.b16 %v1608
    %v1897 = vunpack.c.l.b16 %v1609
    %v1898 = vunpack.c.l.b16 %v1610
    %v1899 = vunpack.c.l.b16 %v1611
    %v1900 = vunpack.c.l.b16 %v1612
    %v1901 = vunpack.c.l.b16 %v1613
    %v1902 = vunpack.c.l.b16 %v1614
    %v1903 = vunpack.c.l.b16 %v1615
    %v1904 = vunpack.c.l.b16 %v1616
    %v1905 = vunpack.c.l.b16 %v1617
    %v1906 = vunpack.c.l.b16 %v1618
    %v1907 = vunpack.c.l.b16 %v1619
    %v1908 = vunpack.c.l.b16 %v1620
    %v1909 = vunpack.c.l.b16 %v1621
    %v1910 = vunpack.c.l.b16 %v1622
    %v1911 = vunpack.c.l.b16 %v1623
    %v1912 = vunpack.c.l.b16 %v1624
    %v1913 = vunpack.c.l.b16 %v1625
    %v1914 = vunpack.c.l.b16 %v1626
    %v1915 = vunpack.c.l.b16 %v1627
    %v1916 = vunpack.c.l.b16 %v1628
    %v1917 = vunpack.c.l.b16 %v1629
    %v1918 = vunpack.c.l.b16 %v1630
    %v1919 = vunpack.c.l.b16 %v1631
    %v1920 = vunpack.c.l.b16 %v1632
    %v1921 = vunpack.c.l.b16 %v1633
    %v1922 = vpack.c.b16 %v1779, %v1778
    %v1923 = vpack.c.b16 %v1781, %v1780
    %v1924 = vpack.c.b16 %v1783, %v1782
    %v1925 = vpack.c.b16 %v1785, %v1784
    %v1926 = vpack.c.b16 %v1787, %v1786
    %v1927 = vpack.c.b16 %v1789, %v1788
    %v1928 = vpack.c.b16 %v1791, %v1790
    %v1929 = vpack.c.b16 %v1793, %v1792
    %v1930 = vpack.c.b16 %v1795, %v1794
    %v1931 = vpack.c.b16 %v1797, %v1796
    %v1932 = vpack.c.b16 %v1799, %v1798
    %v1933 = vpack.c.b16 %v1801, %v1800
    %v1934 = vpack.c.b16 %v1803, %v1802
    %v1935 = vpack.c.b16 %v1805, %v1804
    %v1936 = vpack.c.b16 %v1807, %v1806
    %v1937 = vpack.c.b16 %v1809, %v1808
    %v1938 = vpack.c.b16 %v1811, %v1810
    %v1939 = vpack.c.b16 %v1813, %v1812
    %v1940 = vpack.c.b16 %v1815, %v1814
    %v1941 = vpack.c.b16 %v1817, %v1816
    %v1942 = vpack.c.b16 %v1819, %v1818
    %v1943 = vpack.c.b16 %v1821, %v1820
    %v1944 = vpack.c.b16 %v1823, %v1822
    %v1945 = vpack.c.b16 %v1825, %v1824
    %v1946 = vpack.c.b16 %v1827, %v1826
    %v1947 = vpack.c.b16 %v1829, %v1828
    %v1948 = vpack.c.b16 %v1831, %v1830
    %v1949 = vpack.c.b16 %v1833, %v1832
    %v1950 = vpack.c.b16 %v1835, %v1834
    %v1951 = vpack.c.b16 %v1837, %v1836
    %v1952 = vpack.c.b16 %v1839, %v1838
    %v1953 = vpack.c.b16 %v1841, %v1840
    %v1954 = vpack.c.b16 %v1843, %v1842
    %v1955 = vpack.c.b16 %v1845, %v1844
    %v1956 = vpack.c.b16 %v1847, %v1846
    %v1957 = vpack.c.b16 %v1849, %v1848
    %v1958 = vpack.c.b16 %v1851, %v1850
    %v1959 = vpack.c.b16 %v1853, %v1852
    %v1960 = vpack.c.b16 %v1855, %v1854
    %v1961 = vpack.c.b16 %v1857, %v1856
    %v1962 = vpack.c.b16 %v1859, %v1858
    %v1963 = vpack.c.b16 %v1861, %v1860
    %v1964 = vpack.c.b16 %v1863, %v1862
    %v1965 = vpack.c.b16 %v1865, %v1864
    %v1966 = vpack.c.b16 %v1867, %v1866
    %v1967 = vpack.c.b16 %v1869, %v1868
    %v1968 = vpack.c.b16 %v1871, %v1870
    %v1969 = vpack.c.b16 %v1873, %v1872
    %v1970 = vpack.c.b16 %v1875, %v1874
    %v1971 = vpack.c.b16 %v1877, %v1876
    %v1972 = vpack.c.b16 %v1879, %v1878
    %v1973 = vpack.c.b16 %v1881, %v1880
    %v1974 = vpack.c.b16 %v1883, %v1882
    %v1975 = vpack.c.b16 %v1885, %v1884
    %v1976 = vpack.c.b16 %v1887, %v1886
    %v1977 = vpack.c.b16 %v1889, %v1888
    %v1978 = vpack.c.b16 %v1891, %v1890
    %v1979 = vpack.c.b16 %v1893, %v1892
    %v1980 = vpack.c.b16 %v1895, %v1894
    %v1981 = vpack.c.b16 %v1897, %v1896
    %v1982 = vpack.c.b16 %v1899, %v1898
    %v1983 = vpack.c.b16 %v1901, %v1900
    %v1984 = vpack.c.b16 %v1903, %v1902
    %v1985 = vpack.c.b16 %v1905, %v1904
    %v1986 = vpack.c.b16 %v1907, %v1906
    %v1987 = vpack.c.b16 %v1909, %v1908
    %v1988 = vpack.c.b16 %v1911, %v1910
    %v1989 = vpack.c.b16 %v1913, %v1912
    %v1990 = vpack.c.b16 %v1915, %v1914
    %v1991 = vpack.c.b16 %v1917, %v1916
    %v1992 = vpack.c.b16 %v1919, %v1918
    %v1993 = vpack.c.b16 %v1921, %v1920
    %2066 = vmatprep.subr.bf16.mxu0 0
    %2067 = vmatpush1.bf16.msra.mxu0 %v1922
    %2068 = vmatprep.subr.bf16.mxu0 0
    %2069 = vmatpush1.bf16.msra.mxu0 %v1923
    %2070 = vmatprep.subr.bf16.mxu0 0
    %2071 = vmatpush1.bf16.msra.mxu0 %v1924
    %2072 = vmatprep.subr.bf16.mxu0 0
    %2073 = vmatpush1.bf16.msra.mxu0 %v1925
    %2074 = vmatprep.subr.bf16.mxu0 0
    %2075 = vmatpush1.bf16.msra.mxu0 %v1926
    %2076 = vmatprep.subr.bf16.mxu0 0
    %2077 = vmatpush1.bf16.msra.mxu0 %v1927
    %2078 = vmatprep.subr.bf16.mxu0 0
    %2079 = vmatpush1.bf16.msra.mxu0 %v1928
    %2080 = vmatprep.subr.bf16.mxu0 0
    %2081 = vmatpush1.bf16.msra.mxu0 %v1929
    %2082 = vmatprep.subr.bf16.mxu0 0
    %2083 = vmatpush1.bf16.msra.mxu0 %v1930
    %2084 = vmatprep.subr.bf16.mxu0 0
    %2085 = vmatpush1.bf16.msra.mxu0 %v1931
    %2086 = vmatprep.subr.bf16.mxu0 0
    %2087 = vmatpush1.bf16.msra.mxu0 %v1932
    %2088 = vmatprep.subr.bf16.mxu0 0
    %2089 = vmatpush1.bf16.msra.mxu0 %v1933
    %2090 = vmatprep.subr.bf16.mxu0 0
    %2091 = vmatpush1.bf16.msra.mxu0 %v1934
    %2092 = vmatprep.subr.bf16.mxu0 0
    %2093 = vmatpush1.bf16.msra.mxu0 %v1935
    %2094 = vmatprep.subr.bf16.mxu0 0
    %2095 = vmatpush1.bf16.msra.mxu0 %v1936
    %2096 = vmatprep.subr.bf16.mxu0 0
    %2097 = vmatpush1.bf16.msra.mxu0 %v1937
    %2098 = vmatprep.mubr.bf16.mxu0 %v1218
    %2099 = vmatmul.mubr.bf16.gmra.mrb[0].mxu0 %v1186
    %v2100 = vpop.f32.mrb[0].mxu0
    %v2101 = vadd.f32 0.0, %v2100
    %v2102 = vpop.f32.mrb[0].mxu0
    %v2103 = vpop.f32.mrb[0].mxu0
    %v2104 = vadd.f32 0.0, %v2103
    %v2105 = vpop.f32.mrb[0].mxu0
    %2106 = vmatprep.mubr.bf16.mxu0 %v1219
    %2107 = vmatmul.mubr.bf16.gmra.mrb[0].mxu0 %v1187
    %v2108 = vpop.f32.mrb[0].mxu0
    %v2109 = vadd.f32 0.0, %v2108
    %v2110 = vpop.f32.mrb[0].mxu0
    %v2111 = vpop.f32.mrb[0].mxu0
    %v2112 = vadd.f32 0.0, %v2111
    %v2113 = vpop.f32.mrb[0].mxu0
    %2114 = vmatprep.mubr.bf16.mxu0 %v1220
    %2115 = vmatmul.mubr.bf16.gmra.mrb[0].mxu0 %v1188
    %v2116 = vpop.f32.mrb[0].mxu0
    %v2117 = vadd.f32 0.0, %v2116
    %v2118 = vpop.f32.mrb[0].mxu0
    %v2119 = vpop.f32.mrb[0].mxu0
    %v2120 = vadd.f32 0.0, %v2119
    %v2121 = vpop.f32.mrb[0].mxu0
    %2122 = vmatprep.mubr.bf16.mxu0 %v1221
    %2123 = vmatmul.mubr.bf16.gmra.mrb[0].mxu0 %v1189
    %v2124 = vpop.f32.mrb[0].mxu0
    %v2125 = vadd.f32 0.0, %v2124
    %v2126 = vpop.f32.mrb[0].mxu0
    %v2127 = vpop.f32.mrb[0].mxu0
    %v2128 = vadd.f32 0.0, %v2127
    %v2129 = vpop.f32.mrb[0].mxu0
    %2130 = vmatprep.mubr.bf16.mxu0 %v1222
    %2131 = vmatmul.mubr.bf16.gmra.mrb[0].mxu0 %v1190
    %v2132 = vpop.f32.mrb[0].mxu0
    %v2133 = vadd.f32 0.0, %v2132
    %v2134 = vpop.f32.mrb[0].mxu0
    %v2135 = vpop.f32.mrb[0].mxu0
    %v2136 = vadd.f32 0.0, %v2135
    %v2137 = vpop.f32.mrb[0].mxu0
    %2138 = vmatprep.mubr.bf16.mxu0 %v1223
    %2139 = vmatmul.mubr.bf16.gmra.mrb[0].mxu0 %v1191
    %v2140 = vpop.f32.mrb[0].mxu0
    %v2141 = vadd.f32 0.0, %v2140
    %v2142 = vpop.f32.mrb[0].mxu0
    %v2143 = vpop.f32.mrb[0].mxu0
    %v2144 = vadd.f32 0.0, %v2143
    %v2145 = vpop.f32.mrb[0].mxu0
    %2146 = vmatprep.mubr.bf16.mxu0 %v1224
    %2147 = vmatmul.mubr.bf16.gmra.mrb[0].mxu0 %v1192
    %v2148 = vpop.f32.mrb[0].mxu0
    %v2149 = vadd.f32 0.0, %v2148
    %v2150 = vpop.f32.mrb[0].mxu0
    %v2151 = vpop.f32.mrb[0].mxu0
    %v2152 = vadd.f32 0.0, %v2151
    %v2153 = vpop.f32.mrb[0].mxu0
    %2154 = vmatprep.mubr.bf16.mxu0 %v1225
    %2155 = vmatmul.mubr.bf16.gmra.mrb[0].mxu0 %v1193
    %v2156 = vpop.f32.mrb[0].mxu0
    %v2157 = vadd.f32 0.0, %v2156
    %v2158 = vpop.f32.mrb[0].mxu0
    %v2159 = vpop.f32.mrb[0].mxu0
    %v2160 = vadd.f32 0.0, %v2159
    %v2161 = vpop.f32.mrb[0].mxu0
    %2162 = vdwg.mxu0
    %2163 = vmatprep.subr.bf16.mxu0 0
    %2164 = vmatpush1.bf16.msra.mxu0 %v1938
    %2165 = vmatprep.subr.bf16.mxu0 0
    %2166 = vmatpush1.bf16.msra.mxu0 %v1939
    %2167 = vmatprep.subr.bf16.mxu0 0
    %2168 = vmatpush1.bf16.msra.mxu0 %v1940
    %2169 = vmatprep.subr.bf16.mxu0 0
    %2170 = vmatpush1.bf16.msra.mxu0 %v1941
    %2171 = vmatprep.subr.bf16.mxu0 0
    %2172 = vmatpush1.bf16.msra.mxu0 %v1942
    %2173 = vmatprep.subr.bf16.mxu0 0
    %2174 = vmatpush1.bf16.msra.mxu0 %v1943
    %2175 = vmatprep.subr.bf16.mxu0 0
    %2176 = vmatpush1.bf16.msra.mxu0 %v1944
    %2177 = vmatprep.subr.bf16.mxu0 0
    %2178 = vmatpush1.bf16.msra.mxu0 %v1945
    %2179 = vmatprep.subr.bf16.mxu0 0
    %2180 = vmatpush1.bf16.msra.mxu0 %v1946
    %2181 = vmatprep.subr.bf16.mxu0 0
    %2182 = vmatpush1.bf16.msra.mxu0 %v1947
    %2183 = vmatprep.subr.bf16.mxu0 0
    %2184 = vmatpush1.bf16.msra.mxu0 %v1948
    %2185 = vmatprep.subr.bf16.mxu0 0
    %2186 = vmatpush1.bf16.msra.mxu0 %v1949
    %2187 = vmatprep.subr.bf16.mxu0 0
    %2188 = vmatpush1.bf16.msra.mxu0 %v1950
    %2189 = vmatprep.subr.bf16.mxu0 0
    %2190 = vmatpush1.bf16.msra.mxu0 %v1951
    %2191 = vmatprep.subr.bf16.mxu0 0
    %2192 = vmatpush1.bf16.msra.mxu0 %v1952
    %2193 = vmatprep.subr.bf16.mxu0 0
    %2194 = vmatpush1.bf16.msra.mxu0 %v1953
    %2195 = vmatprep.mubr.bf16.mxu0 %v1298
    %2196 = vmatmul.mubr.bf16.gmra.mrb[0].mxu0 %v1250
    %v2197 = vpop.f32.mrb[0].mxu0
    %v2198 = vadd.f32 %v2101, %v2197
    %v2199 = vpop.f32.mrb[0].mxu0
    %v2200 = vpop.f32.mrb[0].mxu0
    %v2201 = vadd.f32 %v2104, %v2200
    %v2202 = vpop.f32.mrb[0].mxu0
    %2203 = vmatprep.mubr.bf16.mxu0 %v1299
    %2204 = vmatmul.mubr.bf16.gmra.mrb[0].mxu0 %v1251
    %v2205 = vpop.f32.mrb[0].mxu0
    %v2206 = vadd.f32 %v2109, %v2205
    %v2207 = vpop.f32.mrb[0].mxu0
    %v2208 = vpop.f32.mrb[0].mxu0
    %v2209 = vadd.f32 %v2112, %v2208
    %v2210 = vpop.f32.mrb[0].mxu0
    %2211 = vmatprep.mubr.bf16.mxu0 %v1300
    %2212 = vmatmul.mubr.bf16.gmra.mrb[0].mxu0 %v1252
    %v2213 = vpop.f32.mrb[0].mxu0
    %v2214 = vadd.f32 %v2117, %v2213
    %v2215 = vpop.f32.mrb[0].mxu0
    %v2216 = vpop.f32.mrb[0].mxu0
    %v2217 = vadd.f32 %v2120, %v2216
    %v2218 = vpop.f32.mrb[0].mxu0
    %2219 = vmatprep.mubr.bf16.mxu0 %v1301
    %2220 = vmatmul.mubr.bf16.gmra.mrb[0].mxu0 %v1253
    %v2221 = vpop.f32.mrb[0].mxu0
    %v2222 = vadd.f32 %v2125, %v2221
    %v2223 = vpop.f32.mrb[0].mxu0
    %v2224 = vpop.f32.mrb[0].mxu0
    %v2225 = vadd.f32 %v2128, %v2224
    %v2226 = vpop.f32.mrb[0].mxu0
    %2227 = vmatprep.mubr.bf16.mxu0 %v1302
    %2228 = vmatmul.mubr.bf16.gmra.mrb[0].mxu0 %v1254
    %v2229 = vpop.f32.mrb[0].mxu0
    %v2230 = vadd.f32 %v2133, %v2229
    %v2231 = vpop.f32.mrb[0].mxu0
    %v2232 = vpop.f32.mrb[0].mxu0
    %v2233 = vadd.f32 %v2136, %v2232
    %v2234 = vpop.f32.mrb[0].mxu0
    %2235 = vmatprep.mubr.bf16.mxu0 %v1303
    %2236 = vmatmul.mubr.bf16.gmra.mrb[0].mxu0 %v1255
    %v2237 = vpop.f32.mrb[0].mxu0
    %v2238 = vadd.f32 %v2141, %v2237
    %v2239 = vpop.f32.mrb[0].mxu0
    %v2240 = vpop.f32.mrb[0].mxu0
    %v2241 = vadd.f32 %v2144, %v2240
    %v2242 = vpop.f32.mrb[0].mxu0
    %2243 = vmatprep.mubr.bf16.mxu0 %v1304
    %2244 = vmatmul.mubr.bf16.gmra.mrb[0].mxu0 %v1256
    %v2245 = vpop.f32.mrb[0].mxu0
    %v2246 = vadd.f32 %v2149, %v2245
    %v2247 = vpop.f32.mrb[0].mxu0
    %v2248 = vpop.f32.mrb[0].mxu0
    %v2249 = vadd.f32 %v2152, %v2248
    %v2250 = vpop.f32.mrb[0].mxu0
    %2251 = vmatprep.mubr.bf16.mxu0 %v1305
    %2252 = vmatmul.mubr.bf16.gmra.mrb[0].mxu0 %v1257
    %v2253 = vpop.f32.mrb[0].mxu0
    %v2254 = vadd.f32 %v2157, %v2253
    %v2255 = vpop.f32.mrb[0].mxu0
    %v2256 = vpop.f32.mrb[0].mxu0
    %v2257 = vadd.f32 %v2160, %v2256
    %v2258 = vpop.f32.mrb[0].mxu0
    %2259 = vdwg.mxu0
    %2260 = vmatprep.subr.bf16.mxu0 0
    %2261 = vmatpush1.bf16.msra.mxu0 %v1954
    %2262 = vmatprep.subr.bf16.mxu0 0
    %2263 = vmatpush1.bf16.msra.mxu0 %v1955
    %2264 = vmatprep.subr.bf16.mxu0 0
    %2265 = vmatpush1.bf16.msra.mxu0 %v1956
    %2266 = vmatprep.subr.bf16.mxu0 0
    %2267 = vmatpush1.bf16.msra.mxu0 %v1957
    %2268 = vmatprep.subr.bf16.mxu0 0
    %2269 = vmatpush1.bf16.msra.mxu0 %v1958
    %2270 = vmatprep.subr.bf16.mxu0 0
    %2271 = vmatpush1.bf16.msra.mxu0 %v1959
    %2272 = vmatprep.subr.bf16.mxu0 0
    %2273 = vmatpush1.bf16.msra.mxu0 %v1960
    %2274 = vmatprep.subr.bf16.mxu0 0
    %2275 = vmatpush1.bf16.msra.mxu0 %v1961
    %2276 = vmatprep.subr.bf16.mxu0 0
    %2277 = vmatpush1.bf16.msra.mxu0 %v1962
    %2278 = vmatprep.subr.bf16.mxu0 0
    %2279 = vmatpush1.bf16.msra.mxu0 %v1963
    %2280 = vmatprep.subr.bf16.mxu0 0
    %2281 = vmatpush1.bf16.msra.mxu0 %v1964
    %2282 = vmatprep.subr.bf16.mxu0 0
    %2283 = vmatpush1.bf16.msra.mxu0 %v1965
    %2284 = vmatprep.subr.bf16.mxu0 0
    %2285 = vmatpush1.bf16.msra.mxu0 %v1966
    %2286 = vmatprep.subr.bf16.mxu0 0
    %2287 = vmatpush1.bf16.msra.mxu0 %v1967
    %2288 = vmatprep.subr.bf16.mxu0 0
    %2289 = vmatpush1.bf16.msra.mxu0 %v1968
    %2290 = vmatprep.subr.bf16.mxu0 0
    %2291 = vmatpush1.bf16.msra.mxu0 %v1969
    %2292 = vmatprep.mubr.bf16.mxu0 %v1362
    %2293 = vmatmul.mubr.bf16.gmra.mrb[0].mxu0 %v1330
    %v2294 = vpop.f32.mrb[0].mxu0
    %v2295 = vadd.f32 %v2198, %v2294
    %v2296 = vpop.f32.mrb[0].mxu0
    %v2297 = vpop.f32.mrb[0].mxu0
    %v2298 = vadd.f32 %v2201, %v2297
    %v2299 = vpop.f32.mrb[0].mxu0
    %2300 = vmatprep.mubr.bf16.mxu0 %v1363
    %2301 = vmatmul.mubr.bf16.gmra.mrb[0].mxu0 %v1331
    %v2302 = vpop.f32.mrb[0].mxu0
    %v2303 = vadd.f32 %v2206, %v2302
    %v2304 = vpop.f32.mrb[0].mxu0
    %v2305 = vpop.f32.mrb[0].mxu0
    %v2306 = vadd.f32 %v2209, %v2305
    %v2307 = vpop.f32.mrb[0].mxu0
    %2308 = vmatprep.mubr.bf16.mxu0 %v1364
    %2309 = vmatmul.mubr.bf16.gmra.mrb[0].mxu0 %v1332
    %v2310 = vpop.f32.mrb[0].mxu0
    %v2311 = vadd.f32 %v2214, %v2310
    %v2312 = vpop.f32.mrb[0].mxu0
    %v2313 = vpop.f32.mrb[0].mxu0
    %v2314 = vadd.f32 %v2217, %v2313
    %v2315 = vpop.f32.mrb[0].mxu0
    %2316 = vmatprep.mubr.bf16.mxu0 %v1365
    %2317 = vmatmul.mubr.bf16.gmra.mrb[0].mxu0 %v1333
    %v2318 = vpop.f32.mrb[0].mxu0
    %v2319 = vadd.f32 %v2222, %v2318
    %v2320 = vpop.f32.mrb[0].mxu0
    %v2321 = vpop.f32.mrb[0].mxu0
    %v2322 = vadd.f32 %v2225, %v2321
    %v2323 = vpop.f32.mrb[0].mxu0
    %2324 = vmatprep.mubr.bf16.mxu0 %v1366
    %2325 = vmatmul.mubr.bf16.gmra.mrb[0].mxu0 %v1334
    %v2326 = vpop.f32.mrb[0].mxu0
    %v2327 = vadd.f32 %v2230, %v2326
    %v2328 = vpop.f32.mrb[0].mxu0
    %v2329 = vpop.f32.mrb[0].mxu0
    %v2330 = vadd.f32 %v2233, %v2329
    %v2331 = vpop.f32.mrb[0].mxu0
    %2332 = vmatprep.mubr.bf16.mxu0 %v1367
    %2333 = vmatmul.mubr.bf16.gmra.mrb[0].mxu0 %v1335
    %v2334 = vpop.f32.mrb[0].mxu0
    %v2335 = vadd.f32 %v2238, %v2334
    %v2336 = vpop.f32.mrb[0].mxu0
    %v2337 = vpop.f32.mrb[0].mxu0
    %v2338 = vadd.f32 %v2241, %v2337
    %v2339 = vpop.f32.mrb[0].mxu0
    %2340 = vmatprep.mubr.bf16.mxu0 %v1368
    %2341 = vmatmul.mubr.bf16.gmra.mrb[0].mxu0 %v1336
    %v2342 = vpop.f32.mrb[0].mxu0
    %v2343 = vadd.f32 %v2246, %v2342
    %v2344 = vpop.f32.mrb[0].mxu0
    %v2345 = vpop.f32.mrb[0].mxu0
    %v2346 = vadd.f32 %v2249, %v2345
    %v2347 = vpop.f32.mrb[0].mxu0
    %2348 = vmatprep.mubr.bf16.mxu0 %v1369
    %2349 = vmatmul.mubr.bf16.gmra.mrb[0].mxu0 %v1337
    %v2350 = vpop.f32.mrb[0].mxu0
    %v2351 = vadd.f32 %v2254, %v2350
    %v2352 = vpop.f32.mrb[0].mxu0
    %v2353 = vpop.f32.mrb[0].mxu0
    %v2354 = vadd.f32 %v2257, %v2353
    %v2355 = vpop.f32.mrb[0].mxu0
    %2356 = vdwg.mxu0
    %2357 = vmatprep.subr.bf16.mxu0 0
    %2358 = vmatpush1.bf16.msra.mxu0 %v1970
    %2359 = vmatprep.subr.bf16.mxu0 0
    %2360 = vmatpush1.bf16.msra.mxu0 %v1971
    %2361 = vmatprep.subr.bf16.mxu0 0
    %2362 = vmatpush1.bf16.msra.mxu0 %v1972
    %2363 = vmatprep.subr.bf16.mxu0 0
    %2364 = vmatpush1.bf16.msra.mxu0 %v1973
    %2365 = vmatprep.subr.bf16.mxu0 0
    %2366 = vmatpush1.bf16.msra.mxu0 %v1974
    %2367 = vmatprep.subr.bf16.mxu0 0
    %2368 = vmatpush1.bf16.msra.mxu0 %v1975
    %2369 = vmatprep.subr.bf16.mxu0 0
    %2370 = vmatpush1.bf16.msra.mxu0 %v1976
    %2371 = vmatprep.subr.bf16.mxu0 0
    %2372 = vmatpush1.bf16.msra.mxu0 %v1977
    %2373 = vmatprep.subr.bf16.mxu0 0
    %2374 = vmatpush1.bf16.msra.mxu0 %v1978
    %2375 = vmatprep.subr.bf16.mxu0 0
    %2376 = vmatpush1.bf16.msra.mxu0 %v1979
    %2377 = vmatprep.subr.bf16.mxu0 0
    %2378 = vmatpush1.bf16.msra.mxu0 %v1980
    %2379 = vmatprep.subr.bf16.mxu0 0
    %2380 = vmatpush1.bf16.msra.mxu0 %v1981
    %2381 = vmatprep.subr.bf16.mxu0 0
    %2382 = vmatpush1.bf16.msra.mxu0 %v1982
    %2383 = vmatprep.subr.bf16.mxu0 0
    %2384 = vmatpush1.bf16.msra.mxu0 %v1983
    %2385 = vmatprep.subr.bf16.mxu0 0
    %2386 = vmatpush1.bf16.msra.mxu0 %v1984
    %2387 = vmatprep.subr.bf16.mxu0 0
    %2388 = vmatpush1.bf16.msra.mxu0 %v1985
    %2389 = vmatprep.mubr.bf16.mxu0 %v1442
    %2390 = vmatmul.mubr.bf16.gmra.mrb[0].mxu0 %v1410
    %v2391 = vpop.f32.mrb[0].mxu0
    %v2392 = vadd.f32 %v2295, %v2391
    %v2393 = vpop.f32.mrb[0].mxu0
    %v2394 = vpop.f32.mrb[0].mxu0
    %v2395 = vadd.f32 %v2298, %v2394
    %v2396 = vpop.f32.mrb[0].mxu0
    %2397 = vmatprep.mubr.bf16.mxu0 %v1443
    %2398 = vmatmul.mubr.bf16.gmra.mrb[0].mxu0 %v1411
    %v2399 = vpop.f32.mrb[0].mxu0
    %v2400 = vadd.f32 %v2303, %v2399
    %v2401 = vpop.f32.mrb[0].mxu0
    %v2402 = vpop.f32.mrb[0].mxu0
    %v2403 = vadd.f32 %v2306, %v2402
    %v2404 = vpop.f32.mrb[0].mxu0
    %2405 = vmatprep.mubr.bf16.mxu0 %v1444
    %2406 = vmatmul.mubr.bf16.gmra.mrb[0].mxu0 %v1412
    %v2407 = vpop.f32.mrb[0].mxu0
    %v2408 = vadd.f32 %v2311, %v2407
    %v2409 = vpop.f32.mrb[0].mxu0
    %v2410 = vpop.f32.mrb[0].mxu0
    %v2411 = vadd.f32 %v2314, %v2410
    %v2412 = vpop.f32.mrb[0].mxu0
    %2413 = vmatprep.mubr.bf16.mxu0 %v1445
    %2414 = vmatmul.mubr.bf16.gmra.mrb[0].mxu0 %v1413
    %v2415 = vpop.f32.mrb[0].mxu0
    %v2416 = vadd.f32 %v2319, %v2415
    %v2417 = vpop.f32.mrb[0].mxu0
    %v2418 = vpop.f32.mrb[0].mxu0
    %v2419 = vadd.f32 %v2322, %v2418
    %v2420 = vpop.f32.mrb[0].mxu0
    %2421 = vmatprep.mubr.bf16.mxu0 %v1446
    %2422 = vmatmul.mubr.bf16.gmra.mrb[0].mxu0 %v1414
    %v2423 = vpop.f32.mrb[0].mxu0
    %v2424 = vadd.f32 %v2327, %v2423
    %v2425 = vpop.f32.mrb[0].mxu0
    %v2426 = vpop.f32.mrb[0].mxu0
    %v2427 = vadd.f32 %v2330, %v2426
    %v2428 = vpop.f32.mrb[0].mxu0
    %2429 = vmatprep.mubr.bf16.mxu0 %v1447
    %2430 = vmatmul.mubr.bf16.gmra.mrb[0].mxu0 %v1415
    %v2431 = vpop.f32.mrb[0].mxu0
    %v2432 = vadd.f32 %v2335, %v2431
    %v2433 = vpop.f32.mrb[0].mxu0
    %v2434 = vpop.f32.mrb[0].mxu0
    %v2435 = vadd.f32 %v2338, %v2434
    %v2436 = vpop.f32.mrb[0].mxu0
    %2437 = vmatprep.mubr.bf16.mxu0 %v1448
    %2438 = vmatmul.mubr.bf16.gmra.mrb[0].mxu0 %v1416
    %v2439 = vpop.f32.mrb[0].mxu0
    %v2440 = vadd.f32 %v2343, %v2439
    %v2441 = vpop.f32.mrb[0].mxu0
    %v2442 = vpop.f32.mrb[0].mxu0
    %v2443 = vadd.f32 %v2346, %v2442
    %v2444 = vpop.f32.mrb[0].mxu0
    %2445 = vmatprep.mubr.bf16.mxu0 %v1449
    %2446 = vmatmul.mubr.bf16.gmra.mrb[0].mxu0 %v1417
    %v2447 = vpop.f32.mrb[0].mxu0
    %v2448 = vadd.f32 %v2351, %v2447
    %v2449 = vpop.f32.mrb[0].mxu0
    %v2450 = vpop.f32.mrb[0].mxu0
    %v2451 = vadd.f32 %v2354, %v2450
    %v2452 = vpop.f32.mrb[0].mxu0
    %2453 = vdwg.mxu0
    %2454 = vmatprep.subr.bf16.mxu0 0
    %2455 = vmatpush1.bf16.msra.mxu0 %v1986
    %2456 = vmatprep.subr.bf16.mxu0 0
    %2457 = vmatpush1.bf16.msra.mxu0 %v1987
    %2458 = vmatprep.subr.bf16.mxu0 0
    %2459 = vmatpush1.bf16.msra.mxu0 %v1988
    %2460 = vmatprep.subr.bf16.mxu0 0
    %2461 = vmatpush1.bf16.msra.mxu0 %v1989
    %2462 = vmatprep.subr.bf16.mxu0 0
    %2463 = vmatpush1.bf16.msra.mxu0 %v1990
    %2464 = vmatprep.subr.bf16.mxu0 0
    %2465 = vmatpush1.bf16.msra.mxu0 %v1991
    %2466 = vmatprep.subr.bf16.mxu0 0
    %2467 = vmatpush1.bf16.msra.mxu0 %v1992
    %2468 = vmatprep.subr.bf16.mxu0 0
    %2469 = vmatpush1.bf16.msra.mxu0 %v1993
    %2470 = vmatprep.subr.bf16.mxu0 0
    %2471 = vmatpush1.bf16.msra.mxu0 0
    %2472 = vmatprep.subr.bf16.mxu0 0
    %2473 = vmatpush1.bf16.msra.mxu0 0
    %2474 = vmatprep.subr.bf16.mxu0 0
    %2475 = vmatpush1.bf16.msra.mxu0 0
    %2476 = vmatprep.subr.bf16.mxu0 0
    %2477 = vmatpush1.bf16.msra.mxu0 0
    %2478 = vmatprep.subr.bf16.mxu0 0
    %2479 = vmatpush1.bf16.msra.mxu0 0
    %2480 = vmatprep.subr.bf16.mxu0 0
    %2481 = vmatpush1.bf16.msra.mxu0 0
    %2482 = vmatprep.subr.bf16.mxu0 0
    %2483 = vmatpush1.bf16.msra.mxu0 0
    %2484 = vmatprep.subr.bf16.mxu0 0
    %2485 = vmatpush1.bf16.msra.mxu0 0
    %2486 = vmatprep.mubr.bf16.mxu0 0
    %2487 = vmatmul.mubr.bf16.gmra.mrb[0].mxu0 %v1474
    %v2488 = vpop.f32.mrb[0].mxu0
    %v2489 = vadd.f32 %v2392, %v2488
    %v2490 = vpop.f32.mrb[0].mxu0
    %v2491 = vpop.f32.mrb[0].mxu0
    %v2492 = vadd.f32 %v2395, %v2491
    %v2493 = vpop.f32.mrb[0].mxu0
    %2494 = vmatprep.mubr.bf16.mxu0 0
    %2495 = vmatmul.mubr.bf16.gmra.mrb[0].mxu0 %v1475
    %v2496 = vpop.f32.mrb[0].mxu0
    %v2497 = vadd.f32 %v2400, %v2496
    %v2498 = vpop.f32.mrb[0].mxu0
    %v2499 = vpop.f32.mrb[0].mxu0
    %v2500 = vadd.f32 %v2403, %v2499
    %v2501 = vpop.f32.mrb[0].mxu0
    %2502 = vmatprep.mubr.bf16.mxu0 0
    %2503 = vmatmul.mubr.bf16.gmra.mrb[0].mxu0 %v1476
    %v2504 = vpop.f32.mrb[0].mxu0
    %v2505 = vadd.f32 %v2408, %v2504
    %v2506 = vpop.f32.mrb[0].mxu0
    %v2507 = vpop.f32.mrb[0].mxu0
    %v2508 = vadd.f32 %v2411, %v2507
    %v2509 = vpop.f32.mrb[0].mxu0
    %2510 = vmatprep.mubr.bf16.mxu0 0
    %2511 = vmatmul.mubr.bf16.gmra.mrb[0].mxu0 %v1477
    %v2512 = vpop.f32.mrb[0].mxu0
    %v2513 = vadd.f32 %v2416, %v2512
    %v2514 = vpop.f32.mrb[0].mxu0
    %v2515 = vpop.f32.mrb[0].mxu0
    %v2516 = vadd.f32 %v2419, %v2515
    %v2517 = vpop.f32.mrb[0].mxu0
    %2518 = vmatprep.mubr.bf16.mxu0 0
    %2519 = vmatmul.mubr.bf16.gmra.mrb[0].mxu0 %v1478
    %v2520 = vpop.f32.mrb[0].mxu0
    %v2521 = vadd.f32 %v2424, %v2520
    %v2522 = vpop.f32.mrb[0].mxu0
    %v2523 = vpop.f32.mrb[0].mxu0
    %v2524 = vadd.f32 %v2427, %v2523
    %v2525 = vpop.f32.mrb[0].mxu0
    %2526 = vmatprep.mubr.bf16.mxu0 0
    %2527 = vmatmul.mubr.bf16.gmra.mrb[0].mxu0 %v1479
    %v2528 = vpop.f32.mrb[0].mxu0
    %v2529 = vadd.f32 %v2432, %v2528
    %v2530 = vpop.f32.mrb[0].mxu0
    %v2531 = vpop.f32.mrb[0].mxu0
    %v2532 = vadd.f32 %v2435, %v2531
    %v2533 = vpop.f32.mrb[0].mxu0
    %2534 = vmatprep.mubr.bf16.mxu0 0
    %2535 = vmatmul.mubr.bf16.gmra.mrb[0].mxu0 %v1480
    %v2536 = vpop.f32.mrb[0].mxu0
    %v2537 = vadd.f32 %v2440, %v2536
    %v2538 = vpop.f32.mrb[0].mxu0
    %v2539 = vpop.f32.mrb[0].mxu0
    %v2540 = vadd.f32 %v2443, %v2539
    %v2541 = vpop.f32.mrb[0].mxu0
    %2542 = vmatprep.mubr.bf16.mxu0 0
    %2543 = vmatmul.mubr.bf16.gmra.mrb[0].mxu0 %v1481
    %v2544 = vpop.f32.mrb[0].mxu0
    %v2545 = vadd.f32 %v2448, %v2544
    %v2546 = vpop.f32.mrb[0].mxu0
    %v2547 = vpop.f32.mrb[0].mxu0
    %v2548 = vadd.f32 %v2451, %v2547
    %v2549 = vpop.f32.mrb[0].mxu0
    %2550 = vdwg.mxu0
    %v2551 = vld [vmem:[#allocation2] sm:$0xff]
    %v2552 = vld [vmem:[#allocation2 + $0x8] sm:$0xff]
    %v2553 = vld [vmem:[#allocation2 + $0x10] sm:$0xff]
    %v2554 = vld [vmem:[#allocation2 + $0x18] sm:$0xff]
    %v2555 = vld [vmem:[#allocation2 + $0x20] sm:$0xff]
    %v2556 = vld [vmem:[#allocation2 + $0x28] sm:$0xff]
    %v2557 = vld [vmem:[#allocation2 + $0x30] sm:$0xff]
    %v2558 = vld [vmem:[#allocation2 + $0x38] sm:$0xff]
    %v2559 = vld [vmem:[#allocation2 + $0x40] sm:$0xff]
    %v2560 = vld [vmem:[#allocation2 + $0x48] sm:$0xff]
    %v2561 = vld [vmem:[#allocation2 + $0x50] sm:$0xff]
    %v2562 = vld [vmem:[#allocation2 + $0x58] sm:$0xff]
    %v2563 = vld [vmem:[#allocation2 + $0x60] sm:$0xff]
    %v2564 = vld [vmem:[#allocation2 + $0x68] sm:$0xff]
    %v2565 = vld [vmem:[#allocation2 + $0x70] sm:$0xff]
    %v2566 = vld [vmem:[#allocation2 + $0x78] sm:$0xff]
    %v2567 = vadd.f32 %v2551, %v2489
    %v2568 = vadd.f32 %v2552, %v2492
    %v2569 = vadd.f32 %v2553, %v2497
    %v2570 = vadd.f32 %v2554, %v2500
    %v2571 = vadd.f32 %v2555, %v2505
    %v2572 = vadd.f32 %v2556, %v2508
    %v2573 = vadd.f32 %v2557, %v2513
    %v2574 = vadd.f32 %v2558, %v2516
    %v2575 = vadd.f32 %v2559, %v2521
    %v2576 = vadd.f32 %v2560, %v2524
    %v2577 = vadd.f32 %v2561, %v2529
    %v2578 = vadd.f32 %v2562, %v2532
    %v2579 = vadd.f32 %v2563, %v2537
    %v2580 = vadd.f32 %v2564, %v2540
    %v2581 = vadd.f32 %v2565, %v2545
    %v2582 = vadd.f32 %v2566, %v2548
    %2583 = vst [vmem:[#allocation2] sm:$0xff] %v2567
    %2584 = vst [vmem:[#allocation2 + $0x8] sm:$0xff] %v2568
    %2585 = vst [vmem:[#allocation2 + $0x10] sm:$0xff] %v2569
    %2586 = vst [vmem:[#allocation2 + $0x18] sm:$0xff] %v2570
    %2587 = vst [vmem:[#allocation2 + $0x20] sm:$0xff] %v2571
    %2588 = vst [vmem:[#allocation2 + $0x28] sm:$0xff] %v2572
    %2589 = vst [vmem:[#allocation2 + $0x30] sm:$0xff] %v2573
    %2590 = vst [vmem:[#allocation2 + $0x38] sm:$0xff] %v2574
    %2591 = vst [vmem:[#allocation2 + $0x40] sm:$0xff] %v2575
    %2592 = vst [vmem:[#allocation2 + $0x48] sm:$0xff] %v2576
    %2593 = vst [vmem:[#allocation2 + $0x50] sm:$0xff] %v2577
    %2594 = vst [vmem:[#allocation2 + $0x58] sm:$0xff] %v2578
    %2595 = vst [vmem:[#allocation2 + $0x60] sm:$0xff] %v2579
    %2596 = vst [vmem:[#allocation2 + $0x68] sm:$0xff] %v2580
    %2597 = vst [vmem:[#allocation2 + $0x70] sm:$0xff] %v2581
    %2598 = vst [vmem:[#allocation2 + $0x78] sm:$0xff] %v2582
    // Predicated region
    $region26: #{resnet_layer.7} parent=1 // pred_check
      %p2599 = pneg %p22
    $region27: #{resnet_layer.7} parent=1 // pred_check_branch
      %2601 = sbr.rel (%p2599) target = $region29
    $region28: #{resnet_layer.7} parent=1 // pred_region
      %v2602 = vld [vmem:[#allocation2] sm:$0xff]
      %v2603 = vld [vmem:[#allocation2 + $0x8] sm:$0xff]
      %v2604 = vld [vmem:[#allocation2 + $0x10] sm:$0xff]
      %v2605 = vld [vmem:[#allocation2 + $0x18] sm:$0xff]
      %v2606 = vld [vmem:[#allocation2 + $0x20] sm:$0xff]
      %v2607 = vld [vmem:[#allocation2 + $0x28] sm:$0xff]
      %v2608 = vld [vmem:[#allocation2 + $0x30] sm:$0xff]
      %v2609 = vld [vmem:[#allocation2 + $0x38] sm:$0xff]
      %v2610 = vld [vmem:[#allocation2 + $0x40] sm:$0xff]
      %v2611 = vld [vmem:[#allocation2 + $0x48] sm:$0xff]
      %v2612 = vld [vmem:[#allocation2 + $0x50] sm:$0xff]
      %v2613 = vld [vmem:[#allocation2 + $0x58] sm:$0xff]
      %v2614 = vld [vmem:[#allocation2 + $0x60] sm:$0xff]
      %v2615 = vld [vmem:[#allocation2 + $0x68] sm:$0xff]
      %v2616 = vld [vmem:[#allocation2 + $0x70] sm:$0xff]
      %v2617 = vld [vmem:[#allocation2 + $0x78] sm:$0xff]
      %v2618 = vld [vmem:[%s2] sm:$0x1]
      %v2620 = vlaneseq
      %v2621 = vshrl.u32 %v2620, 7
      %v2622 = vsub.s32 0, %v2621
      %v2623 = vrot.slane %v2618, %v2622
      %v2625 = vmul.f32 %v2602, %v2623
      %v2626 = vmul.f32 %v2603, %v2623
      %v2627 = vmul.f32 %v2604, %v2623
      %v2628 = vmul.f32 %v2605, %v2623
      %v2629 = vmul.f32 %v2606, %v2623
      %v2630 = vmul.f32 %v2607, %v2623
      %v2631 = vmul.f32 %v2608, %v2623
      %v2632 = vmul.f32 %v2609, %v2623
      %v2633 = vmul.f32 %v2610, %v2623
      %v2634 = vmul.f32 %v2611, %v2623
      %v2635 = vmul.f32 %v2612, %v2623
      %v2636 = vmul.f32 %v2613, %v2623
      %v2637 = vmul.f32 %v2614, %v2623
      %v2638 = vmul.f32 %v2615, %v2623
      %v2639 = vmul.f32 %v2616, %v2623
      %v2640 = vmul.f32 %v2617, %v2623
      %v2641 = vld [vmem:[%s3] sm:$0x1]
      %v2643 = vlaneseq
      %v2644 = vshrl.u32 %v2643, 7
      %v2645 = vsub.s32 0, %v2644
      %v2646 = vrot.slane %v2641, %v2645
      %v2648 = vadd.f32 %v2625, %v2646
      %v2649 = vadd.f32 %v2626, %v2646
      %v2650 = vadd.f32 %v2627, %v2646
      %v2651 = vadd.f32 %v2628, %v2646
      %v2652 = vadd.f32 %v2629, %v2646
      %v2653 = vadd.f32 %v2630, %v2646
      %v2654 = vadd.f32 %v2631, %v2646
      %v2655 = vadd.f32 %v2632, %v2646
      %v2656 = vadd.f32 %v2633, %v2646
      %v2657 = vadd.f32 %v2634, %v2646
      %v2658 = vadd.f32 %v2635, %v2646
      %v2659 = vadd.f32 %v2636, %v2646
      %v2660 = vadd.f32 %v2637, %v2646
      %v2661 = vadd.f32 %v2638, %v2646
      %v2662 = vadd.f32 %v2639, %v2646
      %v2663 = vadd.f32 %v2640, %v2646
      %v2664 = vld [vmem:[%s4] sm:$0xf]
      %v2665 = vld [vmem:[%s4 + $0x4] sm:$0xf]
      %v2666 = vld [vmem:[%s4 + $0x8] sm:$0xf]
      %v2667 = vld [vmem:[%s4 + $0xc] sm:$0xf]
      %v2668 = vld [vmem:[%s4 + $0x10] sm:$0xf]
      %v2669 = vld [vmem:[%s4 + $0x14] sm:$0xf]
      %v2670 = vld [vmem:[%s4 + $0x18] sm:$0xf]
      %v2671 = vld [vmem:[%s4 + $0x1c] sm:$0xf]
      %v2672 = vld [vmem:[%s4 + $0x20] sm:$0xf]
      %v2673 = vld [vmem:[%s4 + $0x24] sm:$0xf]
      %v2674 = vld [vmem:[%s4 + $0x28] sm:$0xf]
      %v2675 = vld [vmem:[%s4 + $0x2c] sm:$0xf]
      %v2676 = vld [vmem:[%s4 + $0x30] sm:$0xf]
      %v2677 = vld [vmem:[%s4 + $0x34] sm:$0xf]
      %v2678 = vld [vmem:[%s4 + $0x38] sm:$0xf]
      %v2679 = vld [vmem:[%s4 + $0x3c] sm:$0xf]
      %v2680 = vunpack.c.l.bf16 %v2664
      %v2681 = vunpack.c.l.bf16 %v2665
      %v2682 = vunpack.c.l.bf16 %v2666
      %v2683 = vunpack.c.l.bf16 %v2667
      %v2684 = vunpack.c.l.bf16 %v2668
      %v2685 = vunpack.c.l.bf16 %v2669
      %v2686 = vunpack.c.l.bf16 %v2670
      %v2687 = vunpack.c.l.bf16 %v2671
      %v2688 = vunpack.c.l.bf16 %v2672
      %v2689 = vunpack.c.l.bf16 %v2673
      %v2690 = vunpack.c.l.bf16 %v2674
      %v2691 = vunpack.c.l.bf16 %v2675
      %v2692 = vunpack.c.l.bf16 %v2676
      %v2693 = vunpack.c.l.bf16 %v2677
      %v2694 = vunpack.c.l.bf16 %v2678
      %v2695 = vunpack.c.l.bf16 %v2679
      %v2696 = vadd.f32 %v2648, %v2680
      %v2697 = vadd.f32 %v2649, %v2681
      %v2698 = vadd.f32 %v2650, %v2682
      %v2699 = vadd.f32 %v2651, %v2683
      %v2700 = vadd.f32 %v2652, %v2684
      %v2701 = vadd.f32 %v2653, %v2685
      %v2702 = vadd.f32 %v2654, %v2686
      %v2703 = vadd.f32 %v2655, %v2687
      %v2704 = vadd.f32 %v2656, %v2688
      %v2705 = vadd.f32 %v2657, %v2689
      %v2706 = vadd.f32 %v2658, %v2690
      %v2707 = vadd.f32 %v2659, %v2691
      %v2708 = vadd.f32 %v2660, %v2692
      %v2709 = vadd.f32 %v2661, %v2693
      %v2710 = vadd.f32 %v2662, %v2694
      %v2711 = vadd.f32 %v2663, %v2695
      %2712 = vst [vmem:[#allocation3] sm:$0xff] %v2696
      %2713 = vst [vmem:[#allocation3 + $0x8] sm:$0xff] %v2697
      %2714 = vst [vmem:[#allocation3 + $0x10] sm:$0xff] %v2698
      %2715 = vst [vmem:[#allocation3 + $0x18] sm:$0xff] %v2699
      %2716 = vst [vmem:[#allocation3 + $0x20] sm:$0xff] %v2700
      %2717 = vst [vmem:[#allocation3 + $0x28] sm:$0xff] %v2701
      %2718 = vst [vmem:[#allocation3 + $0x30] sm:$0xff] %v2702
      %2719 = vst [vmem:[#allocation3 + $0x38] sm:$0xff] %v2703
      %2720 = vst [vmem:[#allocation3 + $0x40] sm:$0xff] %v2704
      %2721 = vst [vmem:[#allocation3 + $0x48] sm:$0xff] %v2705
      %2722 = vst [vmem:[#allocation3 + $0x50] sm:$0xff] %v2706
      %2723 = vst [vmem:[#allocation3 + $0x58] sm:$0xff] %v2707
      %2724 = vst [vmem:[#allocation3 + $0x60] sm:$0xff] %v2708
      %2725 = vst [vmem:[#allocation3 + $0x68] sm:$0xff] %v2709
      %2726 = vst [vmem:[#allocation3 + $0x70] sm:$0xff] %v2710
      %2727 = vst [vmem:[#allocation3 + $0x78] sm:$0xff] %v2711
    $region29: #{resnet_layer.7} parent=1 // pred_fallthru
      _
    // Predicated region
    $region30: #{resnet_layer.7} parent=1 // pred_check
      _
    $region31: #{resnet_layer.7} parent=1 // pred_check_branch
      %2729 = sbr.rel (0) target = $region33
    $region32: #{resnet_layer.7} parent=1 // pred_region
      %s2731 = ssub.s32 2048, 2048
      %2732 = vsyncadd [#allocation4], %s2731
      %s2733 = sshll.u32 [#allocation3], 4
      %s2734 = int_to_ptr.vmem [resolvable:$true] %s2733
      %2739 = dma.vmem_to_hbm [thread:$0]  %s2734, 2048, %s5, [#allocation4], 128, 128, 8
    $region33: #{resnet_layer.7} parent=1 // pred_fallthru
      _
    // Predicated region
    $region34: #{resnet_layer.7} parent=1 // pred_check
      _
    $region35: #{resnet_layer.7} parent=1 // pred_check_branch
      %2741 = sbr.rel (0) target = $region37
    $region36: #{resnet_layer.7} parent=1 // pred_region
      %2742 = dma.done [#allocation4], 2048
    $region37: #{resnet_layer.7} parent=1 // pred_fallthru
      _
    %2743 = vsyncpa [#allocation4], 1

// kernel: resnet_layer.4
$region0: #{resnet_layer.4}
  #allocation0 [shape = 'u32[]', space=smem, size = 0x4, offset = 0x4, fixed_abs, tag = 'smem constant byte address 0x4 - core index']
  #allocation1 [shape = 'u32[144,128]{1,0:T(1,128)}', space=vmem, size = 0x12000, scoped, tag = 'internal scratch']
  #allocation2 [shape = 'f32[128,128]{1,0:T(8,128)}', space=vmem, size = 0x10000, scoped, tag = 'scratch operand']
  #allocation3 [shape = 'f32[128,128]{1,0:T(8,128)}', space=vmem, size = 0x10000, scoped, tag = 'scratch operand']
  %s0 = inlined_call_operand.vmem [shape: bf16[2,4,9,9,128], index: 0, kind: input, shape index: {}]
  %s1 = inlined_call_operand.vmem [shape: bf16[9,128,128], index: 1, kind: input, shape index: {}]
  %s2 = inlined_call_operand.vmem [shape: bf16[128,128], index: 2, kind: input, shape index: {}]
  %s3 = inlined_call_operand.vmem [shape: f32[1,128], index: 3, kind: input, shape index: {}]
  %s4 = inlined_call_operand.vmem [shape: f32[1,128], index: 4, kind: input, shape index: {}]
  %s5 = inlined_call_operand.vmem [shape: f32[1,128], index: 5, kind: input, shape index: {}]
  %s6 = inlined_call_operand.vmem [shape: f32[1,128], index: 6, kind: input, shape index: {}]
  %s7 = inlined_call_operand.vmem [shape: bf16[2,8,8,128], index: 7, kind: output, shape index: {0}]
  %s8 = inlined_call_operand.vmem [shape: bf16[2,8,8,128], index: 8, kind: output, shape index: {1}]
  %9 = xla_tuple %s7, %s8
  %s10 = sld [smem:[#allocation0]]
  $region54: #{resnet_layer.4} parent=0
    _
  %s12 = ssub.s32 1, %s10
  %s13 = scalar_select 0, %s12, %s10
  // Predicated region
  $region2: #{resnet_layer.4} parent=0 // pred_check
    _
  $region3: #{resnet_layer.4} parent=0 // pred_check_branch
    %15 = sbr.rel (0) target = $region5
  $region4: #{resnet_layer.4} parent=0 // pred_region
    _
  $region5: #{resnet_layer.4} parent=0 // pred_fallthru
    _
  // Predicated region
  $region6: #{resnet_layer.4} parent=0 // pred_check
    _
  $region7: #{resnet_layer.4} parent=0 // pred_check_branch
    %17 = sbr.rel (0) target = $region9
  $region8: #{resnet_layer.4} parent=0 // pred_region
    _
  $region9: #{resnet_layer.4} parent=0 // pred_fallthru
    _
  // Predicated region
  $region10: #{resnet_layer.4} parent=0 // pred_check
    _
  $region11: #{resnet_layer.4} parent=0 // pred_check_branch
    %19 = sbr.rel (0) target = $region13
  $region12: #{resnet_layer.4} parent=0 // pred_region
    _
  $region13: #{resnet_layer.4} parent=0 // pred_fallthru
    _
  // Predicated region
  $region14: #{resnet_layer.4} parent=0 // pred_check
    _
  $region15: #{resnet_layer.4} parent=0 // pred_check_branch
    %21 = sbr.rel (0) target = $region17
  $region16: #{resnet_layer.4} parent=0 // pred_region
    _
  $region17: #{resnet_layer.4} parent=0 // pred_fallthru
    _
  // Predicated region
  $region18: #{resnet_layer.4} parent=0 // pred_check
    _
  $region19: #{resnet_layer.4} parent=0 // pred_check_branch
    %23 = sbr.rel (0) target = $region21
  $region20: #{resnet_layer.4} parent=0 // pred_region
    _
  $region21: #{resnet_layer.4} parent=0 // pred_fallthru
    _
  // Predicated region
  $region22: #{resnet_layer.4} parent=0 // pred_check
    _
  $region23: #{resnet_layer.4} parent=0 // pred_check_branch
    %25 = sbr.rel (0) target = $region25
  $region24: #{resnet_layer.4} parent=0 // pred_region
    _
  $region25: #{resnet_layer.4} parent=0 // pred_fallthru
    _
  // Predicated region
  $region26: #{resnet_layer.4} parent=0 // pred_check
    _
  $region27: #{resnet_layer.4} parent=0 // pred_check_branch
    %27 = sbr.rel (0) target = $region29
  $region28: #{resnet_layer.4} parent=0 // pred_region
    _
  $region29: #{resnet_layer.4} parent=0 // pred_fallthru
    _
  %p29 = scmp.eq.s32.totalorder 0, 0
  // Predicated region
  $region30: #{resnet_layer.4} parent=0 // pred_check
    %p30 = pneg %p29
  $region31: #{resnet_layer.4} parent=0 // pred_check_branch
    %32 = sbr.rel (%p30) target = $region33
  $region32: #{resnet_layer.4} parent=0 // pred_region
    %33 = vst [vmem:[#allocation2] sm:$0xff] 0.0
    %34 = vst [vmem:[#allocation2 + $0x8] sm:$0xff] 0.0
    %35 = vst [vmem:[#allocation2 + $0x10] sm:$0xff] 0.0
    %36 = vst [vmem:[#allocation2 + $0x18] sm:$0xff] 0.0
    %37 = vst [vmem:[#allocation2 + $0x20] sm:$0xff] 0.0
    %38 = vst [vmem:[#allocation2 + $0x28] sm:$0xff] 0.0
    %39 = vst [vmem:[#allocation2 + $0x30] sm:$0xff] 0.0
    %40 = vst [vmem:[#allocation2 + $0x38] sm:$0xff] 0.0
    %41 = vst [vmem:[#allocation2 + $0x40] sm:$0xff] 0.0
    %42 = vst [vmem:[#allocation2 + $0x48] sm:$0xff] 0.0
    %43 = vst [vmem:[#allocation2 + $0x50] sm:$0xff] 0.0
    %44 = vst [vmem:[#allocation2 + $0x58] sm:$0xff] 0.0
    %45 = vst [vmem:[#allocation2 + $0x60] sm:$0xff] 0.0
    %46 = vst [vmem:[#allocation2 + $0x68] sm:$0xff] 0.0
    %47 = vst [vmem:[#allocation2 + $0x70] sm:$0xff] 0.0
    %48 = vst [vmem:[#allocation2 + $0x78] sm:$0xff] 0.0
    %49 = vst [vmem:[#allocation3] sm:$0xff] 0.0
    %50 = vst [vmem:[#allocation3 + $0x8] sm:$0xff] 0.0
    %51 = vst [vmem:[#allocation3 + $0x10] sm:$0xff] 0.0
    %52 = vst [vmem:[#allocation3 + $0x18] sm:$0xff] 0.0
    %53 = vst [vmem:[#allocation3 + $0x20] sm:$0xff] 0.0
    %54 = vst [vmem:[#allocation3 + $0x28] sm:$0xff] 0.0
    %55 = vst [vmem:[#allocation3 + $0x30] sm:$0xff] 0.0
    %56 = vst [vmem:[#allocation3 + $0x38] sm:$0xff] 0.0
    %57 = vst [vmem:[#allocation3 + $0x40] sm:$0xff] 0.0
    %58 = vst [vmem:[#allocation3 + $0x48] sm:$0xff] 0.0
    %59 = vst [vmem:[#allocation3 + $0x50] sm:$0xff] 0.0
    %60 = vst [vmem:[#allocation3 + $0x58] sm:$0xff] 0.0
    %61 = vst [vmem:[#allocation3 + $0x60] sm:$0xff] 0.0
    %62 = vst [vmem:[#allocation3 + $0x68] sm:$0xff] 0.0
    %63 = vst [vmem:[#allocation3 + $0x70] sm:$0xff] 0.0
    %64 = vst [vmem:[#allocation3 + $0x78] sm:$0xff] 0.0
  $region33: #{resnet_layer.4} parent=0 // pred_fallthru
    _
  %v65 = vld [vmem:[%s0] sm:$0xf]
  %v66 = vld [vmem:[%s0 + $0x8] sm:$0xf]
  %v67 = vld [vmem:[%s0 + $0x10] sm:$0xf]
  %v68 = vld [vmem:[%s0 + $0x18] sm:$0xf]
  %v69 = vld [vmem:[%s0 + $0x20] sm:$0xf]
  %v70 = vld [vmem:[%s0 + $0x28] sm:$0xf]
  %v71 = vld [vmem:[%s0 + $0x30] sm:$0xf]
  %v72 = vld [vmem:[%s0 + $0x38] sm:$0xf]
  %v73 = vld [vmem:[%s0 + $0x120] sm:$0xf]
  %v74 = vld [vmem:[%s0 + $0x128] sm:$0xf]
  %v75 = vld [vmem:[%s0 + $0x130] sm:$0xf]
  %v76 = vld [vmem:[%s0 + $0x138] sm:$0xf]
  %v77 = vld [vmem:[%s0 + $0x140] sm:$0xf]
  %v78 = vld [vmem:[%s0 + $0x148] sm:$0xf]
  %v79 = vld [vmem:[%s0 + $0x150] sm:$0xf]
  %v80 = vld [vmem:[%s0 + $0x158] sm:$0xf]
  %s81 = scalar_lea.vmem %s0, 72
  %v82 = vld [vmem:[%s81] sm:$0xf]
  %v83 = vld [vmem:[%s81 + $0x8] sm:$0xf]
  %v84 = vld [vmem:[%s81 + $0x10] sm:$0xf]
  %v85 = vld [vmem:[%s81 + $0x18] sm:$0xf]
  %v86 = vld [vmem:[%s81 + $0x20] sm:$0xf]
  %v87 = vld [vmem:[%s81 + $0x28] sm:$0xf]
  %v88 = vld [vmem:[%s81 + $0x30] sm:$0xf]
  %v89 = vld [vmem:[%s81 + $0x38] sm:$0xf]
  %v90 = vld [vmem:[%s81 + $0x120] sm:$0xf]
  %v91 = vld [vmem:[%s81 + $0x128] sm:$0xf]
  %v92 = vld [vmem:[%s81 + $0x130] sm:$0xf]
  %v93 = vld [vmem:[%s81 + $0x138] sm:$0xf]
  %v94 = vld [vmem:[%s81 + $0x140] sm:$0xf]
  %v95 = vld [vmem:[%s81 + $0x148] sm:$0xf]
  %v96 = vld [vmem:[%s81 + $0x150] sm:$0xf]
  %v97 = vld [vmem:[%s81 + $0x158] sm:$0xf]
  %v98 = vld [vmem:[%s0 + $0x4] sm:$0x1]
  %v99 = vld [vmem:[%s0 + $0xc] sm:$0x1]
  %v100 = vld [vmem:[%s0 + $0x14] sm:$0x1]
  %v101 = vld [vmem:[%s0 + $0x1c] sm:$0x1]
  %v102 = vld [vmem:[%s0 + $0x24] sm:$0x1]
  %v103 = vld [vmem:[%s0 + $0x2c] sm:$0x1]
  %v104 = vld [vmem:[%s0 + $0x34] sm:$0x1]
  %v105 = vld [vmem:[%s0 + $0x3c] sm:$0x1]
  %v106 = vld [vmem:[%s0 + $0x124] sm:$0x1]
  %v107 = vld [vmem:[%s0 + $0x12c] sm:$0x1]
  %v108 = vld [vmem:[%s0 + $0x134] sm:$0x1]
  %v109 = vld [vmem:[%s0 + $0x13c] sm:$0x1]
  %v110 = vld [vmem:[%s0 + $0x144] sm:$0x1]
  %v111 = vld [vmem:[%s0 + $0x14c] sm:$0x1]
  %v112 = vld [vmem:[%s0 + $0x154] sm:$0x1]
  %v113 = vld [vmem:[%s0 + $0x15c] sm:$0x1]
  %vm114 = vsmask.f32 3328
  %vm115 = vsmask.f32 7440
  %vm116 = vmor %vm114, %vm115
  %v118 = vshrl.u32 %v65, 16
  %v120 = vrot.slane %v118, 4
  %v121 = vshll.u32 %v65, 16
  %v123 = vrot.slane %v121, 5
  %v124 = vor.u32 %v120, %v123
  %v125 = vrot.slane %v124, 4
  %v127 = vshll.u32 %v98, 16
  %v129 = vrot.slane %v127, 5
  %v130 = vsel %vm116, %v125, %v129
  %v132 = vshrl.u32 %v66, 16
  %v134 = vrot.slane %v132, 4
  %v135 = vshll.u32 %v66, 16
  %v137 = vrot.slane %v135, 5
  %v138 = vor.u32 %v134, %v137
  %v139 = vrot.slane %v138, 4
  %v141 = vshll.u32 %v99, 16
  %v143 = vrot.slane %v141, 5
  %v144 = vsel %vm116, %v139, %v143
  %v146 = vshrl.u32 %v67, 16
  %v148 = vrot.slane %v146, 4
  %v149 = vshll.u32 %v67, 16
  %v151 = vrot.slane %v149, 5
  %v152 = vor.u32 %v148, %v151
  %v153 = vrot.slane %v152, 4
  %v155 = vshll.u32 %v100, 16
  %v157 = vrot.slane %v155, 5
  %v158 = vsel %vm116, %v153, %v157
  %v160 = vshrl.u32 %v68, 16
  %v162 = vrot.slane %v160, 4
  %v163 = vshll.u32 %v68, 16
  %v165 = vrot.slane %v163, 5
  %v166 = vor.u32 %v162, %v165
  %v167 = vrot.slane %v166, 4
  %v169 = vshll.u32 %v101, 16
  %v171 = vrot.slane %v169, 5
  %v172 = vsel %vm116, %v167, %v171
  %v174 = vshrl.u32 %v69, 16
  %v176 = vrot.slane %v174, 4
  %v177 = vshll.u32 %v69, 16
  %v179 = vrot.slane %v177, 5
  %v180 = vor.u32 %v176, %v179
  %v181 = vrot.slane %v180, 4
  %v183 = vshll.u32 %v102, 16
  %v185 = vrot.slane %v183, 5
  %v186 = vsel %vm116, %v181, %v185
  %v188 = vshrl.u32 %v70, 16
  %v190 = vrot.slane %v188, 4
  %v191 = vshll.u32 %v70, 16
  %v193 = vrot.slane %v191, 5
  %v194 = vor.u32 %v190, %v193
  %v195 = vrot.slane %v194, 4
  %v197 = vshll.u32 %v103, 16
  %v199 = vrot.slane %v197, 5
  %v200 = vsel %vm116, %v195, %v199
  %v202 = vshrl.u32 %v71, 16
  %v204 = vrot.slane %v202, 4
  %v205 = vshll.u32 %v71, 16
  %v207 = vrot.slane %v205, 5
  %v208 = vor.u32 %v204, %v207
  %v209 = vrot.slane %v208, 4
  %v211 = vshll.u32 %v104, 16
  %v213 = vrot.slane %v211, 5
  %v214 = vsel %vm116, %v209, %v213
  %v216 = vshrl.u32 %v72, 16
  %v218 = vrot.slane %v216, 4
  %v219 = vshll.u32 %v72, 16
  %v221 = vrot.slane %v219, 5
  %v222 = vor.u32 %v218, %v221
  %v223 = vrot.slane %v222, 4
  %v225 = vshll.u32 %v105, 16
  %v227 = vrot.slane %v225, 5
  %v228 = vsel %vm116, %v223, %v227
  %v230 = vshrl.u32 %v73, 16
  %v232 = vrot.slane %v230, 4
  %v233 = vshll.u32 %v73, 16
  %v235 = vrot.slane %v233, 5
  %v236 = vor.u32 %v232, %v235
  %v237 = vrot.slane %v236, 4
  %v239 = vshll.u32 %v106, 16
  %v241 = vrot.slane %v239, 5
  %v242 = vsel %vm116, %v237, %v241
  %v244 = vshrl.u32 %v74, 16
  %v246 = vrot.slane %v244, 4
  %v247 = vshll.u32 %v74, 16
  %v249 = vrot.slane %v247, 5
  %v250 = vor.u32 %v246, %v249
  %v251 = vrot.slane %v250, 4
  %v253 = vshll.u32 %v107, 16
  %v255 = vrot.slane %v253, 5
  %v256 = vsel %vm116, %v251, %v255
  %v258 = vshrl.u32 %v75, 16
  %v260 = vrot.slane %v258, 4
  %v261 = vshll.u32 %v75, 16
  %v263 = vrot.slane %v261, 5
  %v264 = vor.u32 %v260, %v263
  %v265 = vrot.slane %v264, 4
  %v267 = vshll.u32 %v108, 16
  %v269 = vrot.slane %v267, 5
  %v270 = vsel %vm116, %v265, %v269
  %v272 = vshrl.u32 %v76, 16
  %v274 = vrot.slane %v272, 4
  %v275 = vshll.u32 %v76, 16
  %v277 = vrot.slane %v275, 5
  %v278 = vor.u32 %v274, %v277
  %v279 = vrot.slane %v278, 4
  %v281 = vshll.u32 %v109, 16
  %v283 = vrot.slane %v281, 5
  %v284 = vsel %vm116, %v279, %v283
  %v286 = vshrl.u32 %v77, 16
  %v288 = vrot.slane %v286, 4
  %v289 = vshll.u32 %v77, 16
  %v291 = vrot.slane %v289, 5
  %v292 = vor.u32 %v288, %v291
  %v293 = vrot.slane %v292, 4
  %v295 = vshll.u32 %v110, 16
  %v297 = vrot.slane %v295, 5
  %v298 = vsel %vm116, %v293, %v297
  %v300 = vshrl.u32 %v78, 16
  %v302 = vrot.slane %v300, 4
  %v303 = vshll.u32 %v78, 16
  %v305 = vrot.slane %v303, 5
  %v306 = vor.u32 %v302, %v305
  %v307 = vrot.slane %v306, 4
  %v309 = vshll.u32 %v111, 16
  %v311 = vrot.slane %v309, 5
  %v312 = vsel %vm116, %v307, %v311
  %v314 = vshrl.u32 %v79, 16
  %v316 = vrot.slane %v314, 4
  %v317 = vshll.u32 %v79, 16
  %v319 = vrot.slane %v317, 5
  %v320 = vor.u32 %v316, %v319
  %v321 = vrot.slane %v320, 4
  %v323 = vshll.u32 %v112, 16
  %v325 = vrot.slane %v323, 5
  %v326 = vsel %vm116, %v321, %v325
  %v328 = vshrl.u32 %v80, 16
  %v330 = vrot.slane %v328, 4
  %v331 = vshll.u32 %v80, 16
  %v333 = vrot.slane %v331, 5
  %v334 = vor.u32 %v330, %v333
  %v335 = vrot.slane %v334, 4
  %v337 = vshll.u32 %v113, 16
  %v339 = vrot.slane %v337, 5
  %v340 = vsel %vm116, %v335, %v339
  %s341 = scalar_lea.vmem %s0, 144
  %v342 = vld [vmem:[%s341] sm:$0xf]
  %v343 = vld [vmem:[%s341 + $0x8] sm:$0xf]
  %v344 = vld [vmem:[%s341 + $0x10] sm:$0xf]
  %v345 = vld [vmem:[%s341 + $0x18] sm:$0xf]
  %v346 = vld [vmem:[%s341 + $0x20] sm:$0xf]
  %v347 = vld [vmem:[%s341 + $0x28] sm:$0xf]
  %v348 = vld [vmem:[%s341 + $0x30] sm:$0xf]
  %v349 = vld [vmem:[%s341 + $0x38] sm:$0xf]
  %v350 = vld [vmem:[%s341 + $0x120] sm:$0xf]
  %v351 = vld [vmem:[%s341 + $0x128] sm:$0xf]
  %v352 = vld [vmem:[%s341 + $0x130] sm:$0xf]
  %v353 = vld [vmem:[%s341 + $0x138] sm:$0xf]
  %v354 = vld [vmem:[%s341 + $0x140] sm:$0xf]
  %v355 = vld [vmem:[%s341 + $0x148] sm:$0xf]
  %v356 = vld [vmem:[%s341 + $0x150] sm:$0xf]
  %v357 = vld [vmem:[%s341 + $0x158] sm:$0xf]
  %s358 = scalar_lea.vmem %s0, 216
  %v359 = vld [vmem:[%s358] sm:$0xf]
  %v360 = vld [vmem:[%s358 + $0x8] sm:$0xf]
  %v361 = vld [vmem:[%s358 + $0x10] sm:$0xf]
  %v362 = vld [vmem:[%s358 + $0x18] sm:$0xf]
  %v363 = vld [vmem:[%s358 + $0x20] sm:$0xf]
  %v364 = vld [vmem:[%s358 + $0x28] sm:$0xf]
  %v365 = vld [vmem:[%s358 + $0x30] sm:$0xf]
  %v366 = vld [vmem:[%s358 + $0x38] sm:$0xf]
  %v367 = vld [vmem:[%s358 + $0x120] sm:$0xf]
  %v368 = vld [vmem:[%s358 + $0x128] sm:$0xf]
  %v369 = vld [vmem:[%s358 + $0x130] sm:$0xf]
  %v370 = vld [vmem:[%s358 + $0x138] sm:$0xf]
  %v371 = vld [vmem:[%s358 + $0x140] sm:$0xf]
  %v372 = vld [vmem:[%s358 + $0x148] sm:$0xf]
  %v373 = vld [vmem:[%s358 + $0x150] sm:$0xf]
  %v374 = vld [vmem:[%s358 + $0x158] sm:$0xf]
  %v375 = vld [vmem:[%s341 + $0x4] sm:$0x1]
  %v376 = vld [vmem:[%s341 + $0xc] sm:$0x1]
  %v377 = vld [vmem:[%s341 + $0x14] sm:$0x1]
  %v378 = vld [vmem:[%s341 + $0x1c] sm:$0x1]
  %v379 = vld [vmem:[%s341 + $0x24] sm:$0x1]
  %v380 = vld [vmem:[%s341 + $0x2c] sm:$0x1]
  %v381 = vld [vmem:[%s341 + $0x34] sm:$0x1]
  %v382 = vld [vmem:[%s341 + $0x3c] sm:$0x1]
  %v383 = vld [vmem:[%s341 + $0x124] sm:$0x1]
  %v384 = vld [vmem:[%s341 + $0x12c] sm:$0x1]
  %v385 = vld [vmem:[%s341 + $0x134] sm:$0x1]
  %v386 = vld [vmem:[%s341 + $0x13c] sm:$0x1]
  %v387 = vld [vmem:[%s341 + $0x144] sm:$0x1]
  %v388 = vld [vmem:[%s341 + $0x14c] sm:$0x1]
  %v389 = vld [vmem:[%s341 + $0x154] sm:$0x1]
  %v390 = vld [vmem:[%s341 + $0x15c] sm:$0x1]
  %v392 = vshrl.u32 %v342, 16
  %v394 = vrot.slane %v392, 4
  %v395 = vshll.u32 %v342, 16
  %v397 = vrot.slane %v395, 5
  %v398 = vor.u32 %v394, %v397
  %v399 = vrot.slane %v398, 4
  %v401 = vshll.u32 %v375, 16
  %v403 = vrot.slane %v401, 5
  %v404 = vsel %vm116, %v399, %v403
  %v406 = vshrl.u32 %v343, 16
  %v408 = vrot.slane %v406, 4
  %v409 = vshll.u32 %v343, 16
  %v411 = vrot.slane %v409, 5
  %v412 = vor.u32 %v408, %v411
  %v413 = vrot.slane %v412, 4
  %v415 = vshll.u32 %v376, 16
  %v417 = vrot.slane %v415, 5
  %v418 = vsel %vm116, %v413, %v417
  %v420 = vshrl.u32 %v344, 16
  %v422 = vrot.slane %v420, 4
  %v423 = vshll.u32 %v344, 16
  %v425 = vrot.slane %v423, 5
  %v426 = vor.u32 %v422, %v425
  %v427 = vrot.slane %v426, 4
  %v429 = vshll.u32 %v377, 16
  %v431 = vrot.slane %v429, 5
  %v432 = vsel %vm116, %v427, %v431
  %v434 = vshrl.u32 %v345, 16
  %v436 = vrot.slane %v434, 4
  %v437 = vshll.u32 %v345, 16
  %v439 = vrot.slane %v437, 5
  %v440 = vor.u32 %v436, %v439
  %v441 = vrot.slane %v440, 4
  %v443 = vshll.u32 %v378, 16
  %v445 = vrot.slane %v443, 5
  %v446 = vsel %vm116, %v441, %v445
  %v448 = vshrl.u32 %v346, 16
  %v450 = vrot.slane %v448, 4
  %v451 = vshll.u32 %v346, 16
  %v453 = vrot.slane %v451, 5
  %v454 = vor.u32 %v450, %v453
  %v455 = vrot.slane %v454, 4
  %v457 = vshll.u32 %v379, 16
  %v459 = vrot.slane %v457, 5
  %v460 = vsel %vm116, %v455, %v459
  %v462 = vshrl.u32 %v347, 16
  %v464 = vrot.slane %v462, 4
  %v465 = vshll.u32 %v347, 16
  %v467 = vrot.slane %v465, 5
  %v468 = vor.u32 %v464, %v467
  %v469 = vrot.slane %v468, 4
  %v471 = vshll.u32 %v380, 16
  %v473 = vrot.slane %v471, 5
  %v474 = vsel %vm116, %v469, %v473
  %v476 = vshrl.u32 %v348, 16
  %v478 = vrot.slane %v476, 4
  %v479 = vshll.u32 %v348, 16
  %v481 = vrot.slane %v479, 5
  %v482 = vor.u32 %v478, %v481
  %v483 = vrot.slane %v482, 4
  %v485 = vshll.u32 %v381, 16
  %v487 = vrot.slane %v485, 5
  %v488 = vsel %vm116, %v483, %v487
  %v490 = vshrl.u32 %v349, 16
  %v492 = vrot.slane %v490, 4
  %v493 = vshll.u32 %v349, 16
  %v495 = vrot.slane %v493, 5
  %v496 = vor.u32 %v492, %v495
  %v497 = vrot.slane %v496, 4
  %v499 = vshll.u32 %v382, 16
  %v501 = vrot.slane %v499, 5
  %v502 = vsel %vm116, %v497, %v501
  %v504 = vshrl.u32 %v350, 16
  %v506 = vrot.slane %v504, 4
  %v507 = vshll.u32 %v350, 16
  %v509 = vrot.slane %v507, 5
  %v510 = vor.u32 %v506, %v509
  %v511 = vrot.slane %v510, 4
  %v513 = vshll.u32 %v383, 16
  %v515 = vrot.slane %v513, 5
  %v516 = vsel %vm116, %v511, %v515
  %v518 = vshrl.u32 %v351, 16
  %v520 = vrot.slane %v518, 4
  %v521 = vshll.u32 %v351, 16
  %v523 = vrot.slane %v521, 5
  %v524 = vor.u32 %v520, %v523
  %v525 = vrot.slane %v524, 4
  %v527 = vshll.u32 %v384, 16
  %v529 = vrot.slane %v527, 5
  %v530 = vsel %vm116, %v525, %v529
  %v532 = vshrl.u32 %v352, 16
  %v534 = vrot.slane %v532, 4
  %v535 = vshll.u32 %v352, 16
  %v537 = vrot.slane %v535, 5
  %v538 = vor.u32 %v534, %v537
  %v539 = vrot.slane %v538, 4
  %v541 = vshll.u32 %v385, 16
  %v543 = vrot.slane %v541, 5
  %v544 = vsel %vm116, %v539, %v543
  %v546 = vshrl.u32 %v353, 16
  %v548 = vrot.slane %v546, 4
  %v549 = vshll.u32 %v353, 16
  %v551 = vrot.slane %v549, 5
  %v552 = vor.u32 %v548, %v551
  %v553 = vrot.slane %v552, 4
  %v555 = vshll.u32 %v386, 16
  %v557 = vrot.slane %v555, 5
  %v558 = vsel %vm116, %v553, %v557
  %v560 = vshrl.u32 %v354, 16
  %v562 = vrot.slane %v560, 4
  %v563 = vshll.u32 %v354, 16
  %v565 = vrot.slane %v563, 5
  %v566 = vor.u32 %v562, %v565
  %v567 = vrot.slane %v566, 4
  %v569 = vshll.u32 %v387, 16
  %v571 = vrot.slane %v569, 5
  %v572 = vsel %vm116, %v567, %v571
  %v574 = vshrl.u32 %v355, 16
  %v576 = vrot.slane %v574, 4
  %v577 = vshll.u32 %v355, 16
  %v579 = vrot.slane %v577, 5
  %v580 = vor.u32 %v576, %v579
  %v581 = vrot.slane %v580, 4
  %v583 = vshll.u32 %v388, 16
  %v585 = vrot.slane %v583, 5
  %v586 = vsel %vm116, %v581, %v585
  %v588 = vshrl.u32 %v356, 16
  %v590 = vrot.slane %v588, 4
  %v591 = vshll.u32 %v356, 16
  %v593 = vrot.slane %v591, 5
  %v594 = vor.u32 %v590, %v593
  %v595 = vrot.slane %v594, 4
  %v597 = vshll.u32 %v389, 16
  %v599 = vrot.slane %v597, 5
  %v600 = vsel %vm116, %v595, %v599
  %v602 = vshrl.u32 %v357, 16
  %v604 = vrot.slane %v602, 4
  %v605 = vshll.u32 %v357, 16
  %v607 = vrot.slane %v605, 5
  %v608 = vor.u32 %v604, %v607
  %v609 = vrot.slane %v608, 4
  %v611 = vshll.u32 %v390, 16
  %v613 = vrot.slane %v611, 5
  %v614 = vsel %vm116, %v609, %v613
  %s615 = scalar_lea.vmem %s0, 8
  %v616 = vld [vmem:[%s615] sm:$0xf]
  %v617 = vld [vmem:[%s615 + $0x8] sm:$0xf]
  %v618 = vld [vmem:[%s615 + $0x10] sm:$0xf]
  %v619 = vld [vmem:[%s615 + $0x18] sm:$0xf]
  %v620 = vld [vmem:[%s615 + $0x20] sm:$0xf]
  %v621 = vld [vmem:[%s615 + $0x28] sm:$0xf]
  %v622 = vld [vmem:[%s615 + $0x30] sm:$0xf]
  %v623 = vld [vmem:[%s615 + $0x38] sm:$0xf]
  %v624 = vld [vmem:[%s615 + $0x120] sm:$0xf]
  %v625 = vld [vmem:[%s615 + $0x128] sm:$0xf]
  %v626 = vld [vmem:[%s615 + $0x130] sm:$0xf]
  %v627 = vld [vmem:[%s615 + $0x138] sm:$0xf]
  %v628 = vld [vmem:[%s615 + $0x140] sm:$0xf]
  %v629 = vld [vmem:[%s615 + $0x148] sm:$0xf]
  %v630 = vld [vmem:[%s615 + $0x150] sm:$0xf]
  %v631 = vld [vmem:[%s615 + $0x158] sm:$0xf]
  %s632 = scalar_lea.vmem %s0, 80
  %v633 = vld [vmem:[%s632] sm:$0xf]
  %v634 = vld [vmem:[%s632 + $0x8] sm:$0xf]
  %v635 = vld [vmem:[%s632 + $0x10] sm:$0xf]
  %v636 = vld [vmem:[%s632 + $0x18] sm:$0xf]
  %v637 = vld [vmem:[%s632 + $0x20] sm:$0xf]
  %v638 = vld [vmem:[%s632 + $0x28] sm:$0xf]
  %v639 = vld [vmem:[%s632 + $0x30] sm:$0xf]
  %v640 = vld [vmem:[%s632 + $0x38] sm:$0xf]
  %v641 = vld [vmem:[%s632 + $0x120] sm:$0xf]
  %v642 = vld [vmem:[%s632 + $0x128] sm:$0xf]
  %v643 = vld [vmem:[%s632 + $0x130] sm:$0xf]
  %v644 = vld [vmem:[%s632 + $0x138] sm:$0xf]
  %v645 = vld [vmem:[%s632 + $0x140] sm:$0xf]
  %v646 = vld [vmem:[%s632 + $0x148] sm:$0xf]
  %v647 = vld [vmem:[%s632 + $0x150] sm:$0xf]
  %v648 = vld [vmem:[%s632 + $0x158] sm:$0xf]
  %v649 = vld [vmem:[%s615 + $0x4] sm:$0x1]
  %v650 = vld [vmem:[%s615 + $0xc] sm:$0x1]
  %v651 = vld [vmem:[%s615 + $0x14] sm:$0x1]
  %v652 = vld [vmem:[%s615 + $0x1c] sm:$0x1]
  %v653 = vld [vmem:[%s615 + $0x24] sm:$0x1]
  %v654 = vld [vmem:[%s615 + $0x2c] sm:$0x1]
  %v655 = vld [vmem:[%s615 + $0x34] sm:$0x1]
  %v656 = vld [vmem:[%s615 + $0x3c] sm:$0x1]
  %v657 = vld [vmem:[%s615 + $0x124] sm:$0x1]
  %v658 = vld [vmem:[%s615 + $0x12c] sm:$0x1]
  %v659 = vld [vmem:[%s615 + $0x134] sm:$0x1]
  %v660 = vld [vmem:[%s615 + $0x13c] sm:$0x1]
  %v661 = vld [vmem:[%s615 + $0x144] sm:$0x1]
  %v662 = vld [vmem:[%s615 + $0x14c] sm:$0x1]
  %v663 = vld [vmem:[%s615 + $0x154] sm:$0x1]
  %v664 = vld [vmem:[%s615 + $0x15c] sm:$0x1]
  %v666 = vshrl.u32 %v616, 16
  %v668 = vrot.slane %v666, 4
  %v669 = vshll.u32 %v616, 16
  %v671 = vrot.slane %v669, 5
  %v672 = vor.u32 %v668, %v671
  %v673 = vrot.slane %v672, 4
  %v675 = vshll.u32 %v649, 16
  %v677 = vrot.slane %v675, 5
  %v678 = vsel %vm116, %v673, %v677
  %v680 = vshrl.u32 %v617, 16
  %v682 = vrot.slane %v680, 4
  %v683 = vshll.u32 %v617, 16
  %v685 = vrot.slane %v683, 5
  %v686 = vor.u32 %v682, %v685
  %v687 = vrot.slane %v686, 4
  %v689 = vshll.u32 %v650, 16
  %v691 = vrot.slane %v689, 5
  %v692 = vsel %vm116, %v687, %v691
  %v694 = vshrl.u32 %v618, 16
  %v696 = vrot.slane %v694, 4
  %v697 = vshll.u32 %v618, 16
  %v699 = vrot.slane %v697, 5
  %v700 = vor.u32 %v696, %v699
  %v701 = vrot.slane %v700, 4
  %v703 = vshll.u32 %v651, 16
  %v705 = vrot.slane %v703, 5
  %v706 = vsel %vm116, %v701, %v705
  %v708 = vshrl.u32 %v619, 16
  %v710 = vrot.slane %v708, 4
  %v711 = vshll.u32 %v619, 16
  %v713 = vrot.slane %v711, 5
  %v714 = vor.u32 %v710, %v713
  %v715 = vrot.slane %v714, 4
  %v717 = vshll.u32 %v652, 16
  %v719 = vrot.slane %v717, 5
  %v720 = vsel %vm116, %v715, %v719
  %v722 = vshrl.u32 %v620, 16
  %v724 = vrot.slane %v722, 4
  %v725 = vshll.u32 %v620, 16
  %v727 = vrot.slane %v725, 5
  %v728 = vor.u32 %v724, %v727
  %v729 = vrot.slane %v728, 4
  %v731 = vshll.u32 %v653, 16
  %v733 = vrot.slane %v731, 5
  %v734 = vsel %vm116, %v729, %v733
  %v736 = vshrl.u32 %v621, 16
  %v738 = vrot.slane %v736, 4
  %v739 = vshll.u32 %v621, 16
  %v741 = vrot.slane %v739, 5
  %v742 = vor.u32 %v738, %v741
  %v743 = vrot.slane %v742, 4
  %v745 = vshll.u32 %v654, 16
  %v747 = vrot.slane %v745, 5
  %v748 = vsel %vm116, %v743, %v747
  %v750 = vshrl.u32 %v622, 16
  %v752 = vrot.slane %v750, 4
  %v753 = vshll.u32 %v622, 16
  %v755 = vrot.slane %v753, 5
  %v756 = vor.u32 %v752, %v755
  %v757 = vrot.slane %v756, 4
  %v759 = vshll.u32 %v655, 16
  %v761 = vrot.slane %v759, 5
  %v762 = vsel %vm116, %v757, %v761
  %v764 = vshrl.u32 %v623, 16
  %v766 = vrot.slane %v764, 4
  %v767 = vshll.u32 %v623, 16
  %v769 = vrot.slane %v767, 5
  %v770 = vor.u32 %v766, %v769
  %v771 = vrot.slane %v770, 4
  %v773 = vshll.u32 %v656, 16
  %v775 = vrot.slane %v773, 5
  %v776 = vsel %vm116, %v771, %v775
  %v778 = vshrl.u32 %v624, 16
  %v780 = vrot.slane %v778, 4
  %v781 = vshll.u32 %v624, 16
  %v783 = vrot.slane %v781, 5
  %v784 = vor.u32 %v780, %v783
  %v785 = vrot.slane %v784, 4
  %v787 = vshll.u32 %v657, 16
  %v789 = vrot.slane %v787, 5
  %v790 = vsel %vm116, %v785, %v789
  %v792 = vshrl.u32 %v625, 16
  %v794 = vrot.slane %v792, 4
  %v795 = vshll.u32 %v625, 16
  %v797 = vrot.slane %v795, 5
  %v798 = vor.u32 %v794, %v797
  %v799 = vrot.slane %v798, 4
  %v801 = vshll.u32 %v658, 16
  %v803 = vrot.slane %v801, 5
  %v804 = vsel %vm116, %v799, %v803
  %v806 = vshrl.u32 %v626, 16
  %v808 = vrot.slane %v806, 4
  %v809 = vshll.u32 %v626, 16
  %v811 = vrot.slane %v809, 5
  %v812 = vor.u32 %v808, %v811
  %v813 = vrot.slane %v812, 4
  %v815 = vshll.u32 %v659, 16
  %v817 = vrot.slane %v815, 5
  %v818 = vsel %vm116, %v813, %v817
  %v820 = vshrl.u32 %v627, 16
  %v822 = vrot.slane %v820, 4
  %v823 = vshll.u32 %v627, 16
  %v825 = vrot.slane %v823, 5
  %v826 = vor.u32 %v822, %v825
  %v827 = vrot.slane %v826, 4
  %v829 = vshll.u32 %v660, 16
  %v831 = vrot.slane %v829, 5
  %v832 = vsel %vm116, %v827, %v831
  %v834 = vshrl.u32 %v628, 16
  %v836 = vrot.slane %v834, 4
  %v837 = vshll.u32 %v628, 16
  %v839 = vrot.slane %v837, 5
  %v840 = vor.u32 %v836, %v839
  %v841 = vrot.slane %v840, 4
  %v843 = vshll.u32 %v661, 16
  %v845 = vrot.slane %v843, 5
  %v846 = vsel %vm116, %v841, %v845
  %v848 = vshrl.u32 %v629, 16
  %v850 = vrot.slane %v848, 4
  %v851 = vshll.u32 %v629, 16
  %v853 = vrot.slane %v851, 5
  %v854 = vor.u32 %v850, %v853
  %v855 = vrot.slane %v854, 4
  %v857 = vshll.u32 %v662, 16
  %v859 = vrot.slane %v857, 5
  %v860 = vsel %vm116, %v855, %v859
  %v862 = vshrl.u32 %v630, 16
  %v864 = vrot.slane %v862, 4
  %v865 = vshll.u32 %v630, 16
  %v867 = vrot.slane %v865, 5
  %v868 = vor.u32 %v864, %v867
  %v869 = vrot.slane %v868, 4
  %v871 = vshll.u32 %v663, 16
  %v873 = vrot.slane %v871, 5
  %v874 = vsel %vm116, %v869, %v873
  %v876 = vshrl.u32 %v631, 16
  %v878 = vrot.slane %v876, 4
  %v879 = vshll.u32 %v631, 16
  %v881 = vrot.slane %v879, 5
  %v882 = vor.u32 %v878, %v881
  %v883 = vrot.slane %v882, 4
  %v885 = vshll.u32 %v664, 16
  %v887 = vrot.slane %v885, 5
  %v888 = vsel %vm116, %v883, %v887
  %v905 = vunpack.c.l.b16 %v65
  %v906 = vunpack.c.l.b16 %v66
  %v907 = vunpack.c.l.b16 %v67
  %v908 = vunpack.c.l.b16 %v68
  %v909 = vunpack.c.l.b16 %v69
  %v910 = vunpack.c.l.b16 %v70
  %v911 = vunpack.c.l.b16 %v71
  %v912 = vunpack.c.l.b16 %v72
  %v913 = vunpack.c.l.b16 %v73
  %v914 = vunpack.c.l.b16 %v74
  %v915 = vunpack.c.l.b16 %v75
  %v916 = vunpack.c.l.b16 %v76
  %v917 = vunpack.c.l.b16 %v77
  %v918 = vunpack.c.l.b16 %v78
  %v919 = vunpack.c.l.b16 %v79
  %v920 = vunpack.c.l.b16 %v80
  %v921 = vpack.c.b16 %v906, %v905
  %v922 = vpack.c.b16 %v908, %v907
  %v923 = vpack.c.b16 %v910, %v909
  %v924 = vpack.c.b16 %v912, %v911
  %v925 = vpack.c.b16 %v914, %v913
  %v926 = vpack.c.b16 %v916, %v915
  %v927 = vpack.c.b16 %v918, %v917
  %v928 = vpack.c.b16 %v920, %v919
  %v953 = vunpack.c.l.b16 %v82
  %v954 = vunpack.c.l.b16 %v83
  %v955 = vunpack.c.l.b16 %v84
  %v956 = vunpack.c.l.b16 %v85
  %v957 = vunpack.c.l.b16 %v86
  %v958 = vunpack.c.l.b16 %v87
  %v959 = vunpack.c.l.b16 %v88
  %v960 = vunpack.c.l.b16 %v89
  %v961 = vunpack.c.l.b16 %v90
  %v962 = vunpack.c.l.b16 %v91
  %v963 = vunpack.c.l.b16 %v92
  %v964 = vunpack.c.l.b16 %v93
  %v965 = vunpack.c.l.b16 %v94
  %v966 = vunpack.c.l.b16 %v95
  %v967 = vunpack.c.l.b16 %v96
  %v968 = vunpack.c.l.b16 %v97
  %v969 = vpack.c.b16 %v954, %v953
  %v970 = vpack.c.b16 %v956, %v955
  %v971 = vpack.c.b16 %v958, %v957
  %v972 = vpack.c.b16 %v960, %v959
  %v973 = vpack.c.b16 %v962, %v961
  %v974 = vpack.c.b16 %v964, %v963
  %v975 = vpack.c.b16 %v966, %v965
  %v976 = vpack.c.b16 %v968, %v967
  %v985 = vunpack.c.l.b16 %v130
  %v986 = vunpack.c.l.b16 %v144
  %v987 = vunpack.c.l.b16 %v158
  %v988 = vunpack.c.l.b16 %v172
  %v989 = vunpack.c.l.b16 %v186
  %v990 = vunpack.c.l.b16 %v200
  %v991 = vunpack.c.l.b16 %v214
  %v992 = vunpack.c.l.b16 %v228
  %v993 = vunpack.c.l.b16 %v242
  %v994 = vunpack.c.l.b16 %v256
  %v995 = vunpack.c.l.b16 %v270
  %v996 = vunpack.c.l.b16 %v284
  %v997 = vunpack.c.l.b16 %v298
  %v998 = vunpack.c.l.b16 %v312
  %v999 = vunpack.c.l.b16 %v326
  %v1000 = vunpack.c.l.b16 %v340
  %v1001 = vpack.c.b16 %v986, %v985
  %v1002 = vpack.c.b16 %v988, %v987
  %v1003 = vpack.c.b16 %v990, %v989
  %v1004 = vpack.c.b16 %v992, %v991
  %v1005 = vpack.c.b16 %v994, %v993
  %v1006 = vpack.c.b16 %v996, %v995
  %v1007 = vpack.c.b16 %v998, %v997
  %v1008 = vpack.c.b16 %v1000, %v999
  %v1033 = vunpack.c.l.b16 %v342
  %v1034 = vunpack.c.l.b16 %v343
  %v1035 = vunpack.c.l.b16 %v344
  %v1036 = vunpack.c.l.b16 %v345
  %v1037 = vunpack.c.l.b16 %v346
  %v1038 = vunpack.c.l.b16 %v347
  %v1039 = vunpack.c.l.b16 %v348
  %v1040 = vunpack.c.l.b16 %v349
  %v1041 = vunpack.c.l.b16 %v350
  %v1042 = vunpack.c.l.b16 %v351
  %v1043 = vunpack.c.l.b16 %v352
  %v1044 = vunpack.c.l.b16 %v353
  %v1045 = vunpack.c.l.b16 %v354
  %v1046 = vunpack.c.l.b16 %v355
  %v1047 = vunpack.c.l.b16 %v356
  %v1048 = vunpack.c.l.b16 %v357
  %v1049 = vpack.c.b16 %v1034, %v1033
  %v1050 = vpack.c.b16 %v1036, %v1035
  %v1051 = vpack.c.b16 %v1038, %v1037
  %v1052 = vpack.c.b16 %v1040, %v1039
  %v1053 = vpack.c.b16 %v1042, %v1041
  %v1054 = vpack.c.b16 %v1044, %v1043
  %v1055 = vpack.c.b16 %v1046, %v1045
  %v1056 = vpack.c.b16 %v1048, %v1047
  %v1081 = vunpack.c.l.b16 %v359
  %v1082 = vunpack.c.l.b16 %v360
  %v1083 = vunpack.c.l.b16 %v361
  %v1084 = vunpack.c.l.b16 %v362
  %v1085 = vunpack.c.l.b16 %v363
  %v1086 = vunpack.c.l.b16 %v364
  %v1087 = vunpack.c.l.b16 %v365
  %v1088 = vunpack.c.l.b16 %v366
  %v1089 = vunpack.c.l.b16 %v367
  %v1090 = vunpack.c.l.b16 %v368
  %v1091 = vunpack.c.l.b16 %v369
  %v1092 = vunpack.c.l.b16 %v370
  %v1093 = vunpack.c.l.b16 %v371
  %v1094 = vunpack.c.l.b16 %v372
  %v1095 = vunpack.c.l.b16 %v373
  %v1096 = vunpack.c.l.b16 %v374
  %v1097 = vpack.c.b16 %v1082, %v1081
  %v1098 = vpack.c.b16 %v1084, %v1083
  %v1099 = vpack.c.b16 %v1086, %v1085
  %v1100 = vpack.c.b16 %v1088, %v1087
  %v1101 = vpack.c.b16 %v1090, %v1089
  %v1102 = vpack.c.b16 %v1092, %v1091
  %v1103 = vpack.c.b16 %v1094, %v1093
  %v1104 = vpack.c.b16 %v1096, %v1095
  %v1113 = vunpack.c.l.b16 %v404
  %v1114 = vunpack.c.l.b16 %v418
  %v1115 = vunpack.c.l.b16 %v432
  %v1116 = vunpack.c.l.b16 %v446
  %v1117 = vunpack.c.l.b16 %v460
  %v1118 = vunpack.c.l.b16 %v474
  %v1119 = vunpack.c.l.b16 %v488
  %v1120 = vunpack.c.l.b16 %v502
  %v1121 = vunpack.c.l.b16 %v516
  %v1122 = vunpack.c.l.b16 %v530
  %v1123 = vunpack.c.l.b16 %v544
  %v1124 = vunpack.c.l.b16 %v558
  %v1125 = vunpack.c.l.b16 %v572
  %v1126 = vunpack.c.l.b16 %v586
  %v1127 = vunpack.c.l.b16 %v600
  %v1128 = vunpack.c.l.b16 %v614
  %v1129 = vpack.c.b16 %v1114, %v1113
  %v1130 = vpack.c.b16 %v1116, %v1115
  %v1131 = vpack.c.b16 %v1118, %v1117
  %v1132 = vpack.c.b16 %v1120, %v1119
  %v1133 = vpack.c.b16 %v1122, %v1121
  %v1134 = vpack.c.b16 %v1124, %v1123
  %v1135 = vpack.c.b16 %v1126, %v1125
  %v1136 = vpack.c.b16 %v1128, %v1127
  %v1161 = vunpack.c.l.b16 %v616
  %v1162 = vunpack.c.l.b16 %v617
  %v1163 = vunpack.c.l.b16 %v618
  %v1164 = vunpack.c.l.b16 %v619
  %v1165 = vunpack.c.l.b16 %v620
  %v1166 = vunpack.c.l.b16 %v621
  %v1167 = vunpack.c.l.b16 %v622
  %v1168 = vunpack.c.l.b16 %v623
  %v1169 = vunpack.c.l.b16 %v624
  %v1170 = vunpack.c.l.b16 %v625
  %v1171 = vunpack.c.l.b16 %v626
  %v1172 = vunpack.c.l.b16 %v627
  %v1173 = vunpack.c.l.b16 %v628
  %v1174 = vunpack.c.l.b16 %v629
  %v1175 = vunpack.c.l.b16 %v630
  %v1176 = vunpack.c.l.b16 %v631
  %v1177 = vpack.c.b16 %v1162, %v1161
  %v1178 = vpack.c.b16 %v1164, %v1163
  %v1179 = vpack.c.b16 %v1166, %v1165
  %v1180 = vpack.c.b16 %v1168, %v1167
  %v1181 = vpack.c.b16 %v1170, %v1169
  %v1182 = vpack.c.b16 %v1172, %v1171
  %v1183 = vpack.c.b16 %v1174, %v1173
  %v1184 = vpack.c.b16 %v1176, %v1175
  %v1209 = vunpack.c.l.b16 %v633
  %v1210 = vunpack.c.l.b16 %v634
  %v1211 = vunpack.c.l.b16 %v635
  %v1212 = vunpack.c.l.b16 %v636
  %v1213 = vunpack.c.l.b16 %v637
  %v1214 = vunpack.c.l.b16 %v638
  %v1215 = vunpack.c.l.b16 %v639
  %v1216 = vunpack.c.l.b16 %v640
  %v1217 = vunpack.c.l.b16 %v641
  %v1218 = vunpack.c.l.b16 %v642
  %v1219 = vunpack.c.l.b16 %v643
  %v1220 = vunpack.c.l.b16 %v644
  %v1221 = vunpack.c.l.b16 %v645
  %v1222 = vunpack.c.l.b16 %v646
  %v1223 = vunpack.c.l.b16 %v647
  %v1224 = vunpack.c.l.b16 %v648
  %v1225 = vpack.c.b16 %v1210, %v1209
  %v1226 = vpack.c.b16 %v1212, %v1211
  %v1227 = vpack.c.b16 %v1214, %v1213
  %v1228 = vpack.c.b16 %v1216, %v1215
  %v1229 = vpack.c.b16 %v1218, %v1217
  %v1230 = vpack.c.b16 %v1220, %v1219
  %v1231 = vpack.c.b16 %v1222, %v1221
  %v1232 = vpack.c.b16 %v1224, %v1223
  %v1241 = vunpack.c.l.b16 %v678
  %v1242 = vunpack.c.l.b16 %v692
  %v1243 = vunpack.c.l.b16 %v706
  %v1244 = vunpack.c.l.b16 %v720
  %v1245 = vunpack.c.l.b16 %v734
  %v1246 = vunpack.c.l.b16 %v748
  %v1247 = vunpack.c.l.b16 %v762
  %v1248 = vunpack.c.l.b16 %v776
  %v1249 = vunpack.c.l.b16 %v790
  %v1250 = vunpack.c.l.b16 %v804
  %v1251 = vunpack.c.l.b16 %v818
  %v1252 = vunpack.c.l.b16 %v832
  %v1253 = vunpack.c.l.b16 %v846
  %v1254 = vunpack.c.l.b16 %v860
  %v1255 = vunpack.c.l.b16 %v874
  %v1256 = vunpack.c.l.b16 %v888
  %v1257 = vpack.c.b16 %v1242, %v1241
  %v1258 = vpack.c.b16 %v1244, %v1243
  %v1259 = vpack.c.b16 %v1246, %v1245
  %v1260 = vpack.c.b16 %v1248, %v1247
  %v1261 = vpack.c.b16 %v1250, %v1249
  %v1262 = vpack.c.b16 %v1252, %v1251
  %v1263 = vpack.c.b16 %v1254, %v1253
  %v1264 = vpack.c.b16 %v1256, %v1255
  %v1273 = vld [vmem:[%s1] sm:$0xf]
  %v1274 = vld [vmem:[%s1 + $0x4] sm:$0xf]
  %v1275 = vld [vmem:[%s1 + $0x8] sm:$0xf]
  %v1276 = vld [vmem:[%s1 + $0xc] sm:$0xf]
  %v1277 = vld [vmem:[%s1 + $0x10] sm:$0xf]
  %v1278 = vld [vmem:[%s1 + $0x14] sm:$0xf]
  %v1279 = vld [vmem:[%s1 + $0x18] sm:$0xf]
  %v1280 = vld [vmem:[%s1 + $0x1c] sm:$0xf]
  %v1281 = vld [vmem:[%s1 + $0x20] sm:$0xf]
  %v1282 = vld [vmem:[%s1 + $0x24] sm:$0xf]
  %v1283 = vld [vmem:[%s1 + $0x28] sm:$0xf]
  %v1284 = vld [vmem:[%s1 + $0x2c] sm:$0xf]
  %v1285 = vld [vmem:[%s1 + $0x30] sm:$0xf]
  %v1286 = vld [vmem:[%s1 + $0x34] sm:$0xf]
  %v1287 = vld [vmem:[%s1 + $0x38] sm:$0xf]
  %v1288 = vld [vmem:[%s1 + $0x3c] sm:$0xf]
  %v1289 = vld [vmem:[%s1 + $0x40] sm:$0xf]
  %v1290 = vld [vmem:[%s1 + $0x44] sm:$0xf]
  %v1291 = vld [vmem:[%s1 + $0x48] sm:$0xf]
  %v1292 = vld [vmem:[%s1 + $0x4c] sm:$0xf]
  %v1293 = vld [vmem:[%s1 + $0x50] sm:$0xf]
  %v1294 = vld [vmem:[%s1 + $0x54] sm:$0xf]
  %v1295 = vld [vmem:[%s1 + $0x58] sm:$0xf]
  %v1296 = vld [vmem:[%s1 + $0x5c] sm:$0xf]
  %v1297 = vld [vmem:[%s1 + $0x60] sm:$0xf]
  %v1298 = vld [vmem:[%s1 + $0x64] sm:$0xf]
  %v1299 = vld [vmem:[%s1 + $0x68] sm:$0xf]
  %v1300 = vld [vmem:[%s1 + $0x6c] sm:$0xf]
  %v1301 = vld [vmem:[%s1 + $0x70] sm:$0xf]
  %v1302 = vld [vmem:[%s1 + $0x74] sm:$0xf]
  %v1303 = vld [vmem:[%s1 + $0x78] sm:$0xf]
  %v1304 = vld [vmem:[%s1 + $0x7c] sm:$0xf]
  %v1305 = vld [vmem:[%s1 + $0x80] sm:$0xf]
  %v1306 = vld [vmem:[%s1 + $0x84] sm:$0xf]
  %v1307 = vld [vmem:[%s1 + $0x88] sm:$0xf]
  %v1308 = vld [vmem:[%s1 + $0x8c] sm:$0xf]
  %v1309 = vld [vmem:[%s1 + $0x90] sm:$0xf]
  %v1310 = vld [vmem:[%s1 + $0x94] sm:$0xf]
  %v1311 = vld [vmem:[%s1 + $0x98] sm:$0xf]
  %v1312 = vld [vmem:[%s1 + $0x9c] sm:$0xf]
  %v1313 = vld [vmem:[%s1 + $0xa0] sm:$0xf]
  %v1314 = vld [vmem:[%s1 + $0xa4] sm:$0xf]
  %v1315 = vld [vmem:[%s1 + $0xa8] sm:$0xf]
  %v1316 = vld [vmem:[%s1 + $0xac] sm:$0xf]
  %v1317 = vld [vmem:[%s1 + $0xb0] sm:$0xf]
  %v1318 = vld [vmem:[%s1 + $0xb4] sm:$0xf]
  %v1319 = vld [vmem:[%s1 + $0xb8] sm:$0xf]
  %v1320 = vld [vmem:[%s1 + $0xbc] sm:$0xf]
  %v1321 = vld [vmem:[%s1 + $0xc0] sm:$0xf]
  %v1322 = vld [vmem:[%s1 + $0xc4] sm:$0xf]
  %v1323 = vld [vmem:[%s1 + $0xc8] sm:$0xf]
  %v1324 = vld [vmem:[%s1 + $0xcc] sm:$0xf]
  %v1325 = vld [vmem:[%s1 + $0xd0] sm:$0xf]
  %v1326 = vld [vmem:[%s1 + $0xd4] sm:$0xf]
  %v1327 = vld [vmem:[%s1 + $0xd8] sm:$0xf]
  %v1328 = vld [vmem:[%s1 + $0xdc] sm:$0xf]
  %v1329 = vld [vmem:[%s1 + $0xe0] sm:$0xf]
  %v1330 = vld [vmem:[%s1 + $0xe4] sm:$0xf]
  %v1331 = vld [vmem:[%s1 + $0xe8] sm:$0xf]
  %v1332 = vld [vmem:[%s1 + $0xec] sm:$0xf]
  %v1333 = vld [vmem:[%s1 + $0xf0] sm:$0xf]
  %v1334 = vld [vmem:[%s1 + $0xf4] sm:$0xf]
  %v1335 = vld [vmem:[%s1 + $0xf8] sm:$0xf]
  %v1336 = vld [vmem:[%s1 + $0xfc] sm:$0xf]
  %v1337 = vld [vmem:[%s1 + $0x100] sm:$0xf]
  %v1338 = vld [vmem:[%s1 + $0x104] sm:$0xf]
  %v1339 = vld [vmem:[%s1 + $0x108] sm:$0xf]
  %v1340 = vld [vmem:[%s1 + $0x10c] sm:$0xf]
  %v1341 = vld [vmem:[%s1 + $0x110] sm:$0xf]
  %v1342 = vld [vmem:[%s1 + $0x114] sm:$0xf]
  %v1343 = vld [vmem:[%s1 + $0x118] sm:$0xf]
  %v1344 = vld [vmem:[%s1 + $0x11c] sm:$0xf]
  %v1345 = vld [vmem:[%s1 + $0x120] sm:$0xf]
  %v1346 = vld [vmem:[%s1 + $0x124] sm:$0xf]
  %v1347 = vld [vmem:[%s1 + $0x128] sm:$0xf]
  %v1348 = vld [vmem:[%s1 + $0x12c] sm:$0xf]
  %v1349 = vld [vmem:[%s1 + $0x130] sm:$0xf]
  %v1350 = vld [vmem:[%s1 + $0x134] sm:$0xf]
  %v1351 = vld [vmem:[%s1 + $0x138] sm:$0xf]
  %v1352 = vld [vmem:[%s1 + $0x13c] sm:$0xf]
  %v1353 = vld [vmem:[%s1 + $0x140] sm:$0xf]
  %v1354 = vld [vmem:[%s1 + $0x144] sm:$0xf]
  %v1355 = vld [vmem:[%s1 + $0x148] sm:$0xf]
  %v1356 = vld [vmem:[%s1 + $0x14c] sm:$0xf]
  %v1357 = vld [vmem:[%s1 + $0x150] sm:$0xf]
  %v1358 = vld [vmem:[%s1 + $0x154] sm:$0xf]
  %v1359 = vld [vmem:[%s1 + $0x158] sm:$0xf]
  %v1360 = vld [vmem:[%s1 + $0x15c] sm:$0xf]
  %v1361 = vld [vmem:[%s1 + $0x160] sm:$0xf]
  %v1362 = vld [vmem:[%s1 + $0x164] sm:$0xf]
  %v1363 = vld [vmem:[%s1 + $0x168] sm:$0xf]
  %v1364 = vld [vmem:[%s1 + $0x16c] sm:$0xf]
  %v1365 = vld [vmem:[%s1 + $0x170] sm:$0xf]
  %v1366 = vld [vmem:[%s1 + $0x174] sm:$0xf]
  %v1367 = vld [vmem:[%s1 + $0x178] sm:$0xf]
  %v1368 = vld [vmem:[%s1 + $0x17c] sm:$0xf]
  %v1369 = vld [vmem:[%s1 + $0x180] sm:$0xf]
  %v1370 = vld [vmem:[%s1 + $0x184] sm:$0xf]
  %v1371 = vld [vmem:[%s1 + $0x188] sm:$0xf]
  %v1372 = vld [vmem:[%s1 + $0x18c] sm:$0xf]
  %v1373 = vld [vmem:[%s1 + $0x190] sm:$0xf]
  %v1374 = vld [vmem:[%s1 + $0x194] sm:$0xf]
  %v1375 = vld [vmem:[%s1 + $0x198] sm:$0xf]
  %v1376 = vld [vmem:[%s1 + $0x19c] sm:$0xf]
  %v1377 = vld [vmem:[%s1 + $0x1a0] sm:$0xf]
  %v1378 = vld [vmem:[%s1 + $0x1a4] sm:$0xf]
  %v1379 = vld [vmem:[%s1 + $0x1a8] sm:$0xf]
  %v1380 = vld [vmem:[%s1 + $0x1ac] sm:$0xf]
  %v1381 = vld [vmem:[%s1 + $0x1b0] sm:$0xf]
  %v1382 = vld [vmem:[%s1 + $0x1b4] sm:$0xf]
  %v1383 = vld [vmem:[%s1 + $0x1b8] sm:$0xf]
  %v1384 = vld [vmem:[%s1 + $0x1bc] sm:$0xf]
  %v1385 = vld [vmem:[%s1 + $0x1c0] sm:$0xf]
  %v1386 = vld [vmem:[%s1 + $0x1c4] sm:$0xf]
  %v1387 = vld [vmem:[%s1 + $0x1c8] sm:$0xf]
  %v1388 = vld [vmem:[%s1 + $0x1cc] sm:$0xf]
  %v1389 = vld [vmem:[%s1 + $0x1d0] sm:$0xf]
  %v1390 = vld [vmem:[%s1 + $0x1d4] sm:$0xf]
  %v1391 = vld [vmem:[%s1 + $0x1d8] sm:$0xf]
  %v1392 = vld [vmem:[%s1 + $0x1dc] sm:$0xf]
  %v1393 = vld [vmem:[%s1 + $0x1e0] sm:$0xf]
  %v1394 = vld [vmem:[%s1 + $0x1e4] sm:$0xf]
  %v1395 = vld [vmem:[%s1 + $0x1e8] sm:$0xf]
  %v1396 = vld [vmem:[%s1 + $0x1ec] sm:$0xf]
  %v1397 = vld [vmem:[%s1 + $0x1f0] sm:$0xf]
  %v1398 = vld [vmem:[%s1 + $0x1f4] sm:$0xf]
  %v1399 = vld [vmem:[%s1 + $0x1f8] sm:$0xf]
  %v1400 = vld [vmem:[%s1 + $0x1fc] sm:$0xf]
  %v1401 = vld [vmem:[%s1 + $0x200] sm:$0xf]
  %v1402 = vld [vmem:[%s1 + $0x204] sm:$0xf]
  %v1403 = vld [vmem:[%s1 + $0x208] sm:$0xf]
  %v1404 = vld [vmem:[%s1 + $0x20c] sm:$0xf]
  %v1405 = vld [vmem:[%s1 + $0x210] sm:$0xf]
  %v1406 = vld [vmem:[%s1 + $0x214] sm:$0xf]
  %v1407 = vld [vmem:[%s1 + $0x218] sm:$0xf]
  %v1408 = vld [vmem:[%s1 + $0x21c] sm:$0xf]
  %v1409 = vld [vmem:[%s1 + $0x220] sm:$0xf]
  %v1410 = vld [vmem:[%s1 + $0x224] sm:$0xf]
  %v1411 = vld [vmem:[%s1 + $0x228] sm:$0xf]
  %v1412 = vld [vmem:[%s1 + $0x22c] sm:$0xf]
  %v1413 = vld [vmem:[%s1 + $0x230] sm:$0xf]
  %v1414 = vld [vmem:[%s1 + $0x234] sm:$0xf]
  %v1415 = vld [vmem:[%s1 + $0x238] sm:$0xf]
  %v1416 = vld [vmem:[%s1 + $0x23c] sm:$0xf]
  %v1561 = vunpack.c.l.b16 %v1273
  %v1562 = vunpack.c.l.b16 %v1274
  %v1563 = vunpack.c.l.b16 %v1275
  %v1564 = vunpack.c.l.b16 %v1276
  %v1565 = vunpack.c.l.b16 %v1277
  %v1566 = vunpack.c.l.b16 %v1278
  %v1567 = vunpack.c.l.b16 %v1279
  %v1568 = vunpack.c.l.b16 %v1280
  %v1569 = vunpack.c.l.b16 %v1281
  %v1570 = vunpack.c.l.b16 %v1282
  %v1571 = vunpack.c.l.b16 %v1283
  %v1572 = vunpack.c.l.b16 %v1284
  %v1573 = vunpack.c.l.b16 %v1285
  %v1574 = vunpack.c.l.b16 %v1286
  %v1575 = vunpack.c.l.b16 %v1287
  %v1576 = vunpack.c.l.b16 %v1288
  %v1577 = vunpack.c.l.b16 %v1289
  %v1578 = vunpack.c.l.b16 %v1290
  %v1579 = vunpack.c.l.b16 %v1291
  %v1580 = vunpack.c.l.b16 %v1292
  %v1581 = vunpack.c.l.b16 %v1293
  %v1582 = vunpack.c.l.b16 %v1294
  %v1583 = vunpack.c.l.b16 %v1295
  %v1584 = vunpack.c.l.b16 %v1296
  %v1585 = vunpack.c.l.b16 %v1297
  %v1586 = vunpack.c.l.b16 %v1298
  %v1587 = vunpack.c.l.b16 %v1299
  %v1588 = vunpack.c.l.b16 %v1300
  %v1589 = vunpack.c.l.b16 %v1301
  %v1590 = vunpack.c.l.b16 %v1302
  %v1591 = vunpack.c.l.b16 %v1303
  %v1592 = vunpack.c.l.b16 %v1304
  %v1593 = vunpack.c.l.b16 %v1305
  %v1594 = vunpack.c.l.b16 %v1306
  %v1595 = vunpack.c.l.b16 %v1307
  %v1596 = vunpack.c.l.b16 %v1308
  %v1597 = vunpack.c.l.b16 %v1309
  %v1598 = vunpack.c.l.b16 %v1310
  %v1599 = vunpack.c.l.b16 %v1311
  %v1600 = vunpack.c.l.b16 %v1312
  %v1601 = vunpack.c.l.b16 %v1313
  %v1602 = vunpack.c.l.b16 %v1314
  %v1603 = vunpack.c.l.b16 %v1315
  %v1604 = vunpack.c.l.b16 %v1316
  %v1605 = vunpack.c.l.b16 %v1317
  %v1606 = vunpack.c.l.b16 %v1318
  %v1607 = vunpack.c.l.b16 %v1319
  %v1608 = vunpack.c.l.b16 %v1320
  %v1609 = vunpack.c.l.b16 %v1321
  %v1610 = vunpack.c.l.b16 %v1322
  %v1611 = vunpack.c.l.b16 %v1323
  %v1612 = vunpack.c.l.b16 %v1324
  %v1613 = vunpack.c.l.b16 %v1325
  %v1614 = vunpack.c.l.b16 %v1326
  %v1615 = vunpack.c.l.b16 %v1327
  %v1616 = vunpack.c.l.b16 %v1328
  %v1617 = vunpack.c.l.b16 %v1329
  %v1618 = vunpack.c.l.b16 %v1330
  %v1619 = vunpack.c.l.b16 %v1331
  %v1620 = vunpack.c.l.b16 %v1332
  %v1621 = vunpack.c.l.b16 %v1333
  %v1622 = vunpack.c.l.b16 %v1334
  %v1623 = vunpack.c.l.b16 %v1335
  %v1624 = vunpack.c.l.b16 %v1336
  %v1625 = vunpack.c.l.b16 %v1337
  %v1626 = vunpack.c.l.b16 %v1338
  %v1627 = vunpack.c.l.b16 %v1339
  %v1628 = vunpack.c.l.b16 %v1340
  %v1629 = vunpack.c.l.b16 %v1341
  %v1630 = vunpack.c.l.b16 %v1342
  %v1631 = vunpack.c.l.b16 %v1343
  %v1632 = vunpack.c.l.b16 %v1344
  %v1633 = vunpack.c.l.b16 %v1345
  %v1634 = vunpack.c.l.b16 %v1346
  %v1635 = vunpack.c.l.b16 %v1347
  %v1636 = vunpack.c.l.b16 %v1348
  %v1637 = vunpack.c.l.b16 %v1349
  %v1638 = vunpack.c.l.b16 %v1350
  %v1639 = vunpack.c.l.b16 %v1351
  %v1640 = vunpack.c.l.b16 %v1352
  %v1641 = vunpack.c.l.b16 %v1353
  %v1642 = vunpack.c.l.b16 %v1354
  %v1643 = vunpack.c.l.b16 %v1355
  %v1644 = vunpack.c.l.b16 %v1356
  %v1645 = vunpack.c.l.b16 %v1357
  %v1646 = vunpack.c.l.b16 %v1358
  %v1647 = vunpack.c.l.b16 %v1359
  %v1648 = vunpack.c.l.b16 %v1360
  %v1649 = vunpack.c.l.b16 %v1361
  %v1650 = vunpack.c.l.b16 %v1362
  %v1651 = vunpack.c.l.b16 %v1363
  %v1652 = vunpack.c.l.b16 %v1364
  %v1653 = vunpack.c.l.b16 %v1365
  %v1654 = vunpack.c.l.b16 %v1366
  %v1655 = vunpack.c.l.b16 %v1367
  %v1656 = vunpack.c.l.b16 %v1368
  %v1657 = vunpack.c.l.b16 %v1369
  %v1658 = vunpack.c.l.b16 %v1370
  %v1659 = vunpack.c.l.b16 %v1371
  %v1660 = vunpack.c.l.b16 %v1372
  %v1661 = vunpack.c.l.b16 %v1373
  %v1662 = vunpack.c.l.b16 %v1374
  %v1663 = vunpack.c.l.b16 %v1375
  %v1664 = vunpack.c.l.b16 %v1376
  %v1665 = vunpack.c.l.b16 %v1377
  %v1666 = vunpack.c.l.b16 %v1378
  %v1667 = vunpack.c.l.b16 %v1379
  %v1668 = vunpack.c.l.b16 %v1380
  %v1669 = vunpack.c.l.b16 %v1381
  %v1670 = vunpack.c.l.b16 %v1382
  %v1671 = vunpack.c.l.b16 %v1383
  %v1672 = vunpack.c.l.b16 %v1384
  %v1673 = vunpack.c.l.b16 %v1385
  %v1674 = vunpack.c.l.b16 %v1386
  %v1675 = vunpack.c.l.b16 %v1387
  %v1676 = vunpack.c.l.b16 %v1388
  %v1677 = vunpack.c.l.b16 %v1389
  %v1678 = vunpack.c.l.b16 %v1390
  %v1679 = vunpack.c.l.b16 %v1391
  %v1680 = vunpack.c.l.b16 %v1392
  %v1681 = vunpack.c.l.b16 %v1393
  %v1682 = vunpack.c.l.b16 %v1394
  %v1683 = vunpack.c.l.b16 %v1395
  %v1684 = vunpack.c.l.b16 %v1396
  %v1685 = vunpack.c.l.b16 %v1397
  %v1686 = vunpack.c.l.b16 %v1398
  %v1687 = vunpack.c.l.b16 %v1399
  %v1688 = vunpack.c.l.b16 %v1400
  %v1689 = vunpack.c.l.b16 %v1401
  %v1690 = vunpack.c.l.b16 %v1402
  %v1691 = vunpack.c.l.b16 %v1403
  %v1692 = vunpack.c.l.b16 %v1404
  %v1693 = vunpack.c.l.b16 %v1405
  %v1694 = vunpack.c.l.b16 %v1406
  %v1695 = vunpack.c.l.b16 %v1407
  %v1696 = vunpack.c.l.b16 %v1408
  %v1697 = vunpack.c.l.b16 %v1409
  %v1698 = vunpack.c.l.b16 %v1410
  %v1699 = vunpack.c.l.b16 %v1411
  %v1700 = vunpack.c.l.b16 %v1412
  %v1701 = vunpack.c.l.b16 %v1413
  %v1702 = vunpack.c.l.b16 %v1414
  %v1703 = vunpack.c.l.b16 %v1415
  %v1704 = vunpack.c.l.b16 %v1416
  %v1705 = vpack.c.b16 %v1562, %v1561
  %v1706 = vpack.c.b16 %v1564, %v1563
  %v1707 = vpack.c.b16 %v1566, %v1565
  %v1708 = vpack.c.b16 %v1568, %v1567
  %v1709 = vpack.c.b16 %v1570, %v1569
  %v1710 = vpack.c.b16 %v1572, %v1571
  %v1711 = vpack.c.b16 %v1574, %v1573
  %v1712 = vpack.c.b16 %v1576, %v1575
  %v1713 = vpack.c.b16 %v1578, %v1577
  %v1714 = vpack.c.b16 %v1580, %v1579
  %v1715 = vpack.c.b16 %v1582, %v1581
  %v1716 = vpack.c.b16 %v1584, %v1583
  %v1717 = vpack.c.b16 %v1586, %v1585
  %v1718 = vpack.c.b16 %v1588, %v1587
  %v1719 = vpack.c.b16 %v1590, %v1589
  %v1720 = vpack.c.b16 %v1592, %v1591
  %v1721 = vpack.c.b16 %v1594, %v1593
  %v1722 = vpack.c.b16 %v1596, %v1595
  %v1723 = vpack.c.b16 %v1598, %v1597
  %v1724 = vpack.c.b16 %v1600, %v1599
  %v1725 = vpack.c.b16 %v1602, %v1601
  %v1726 = vpack.c.b16 %v1604, %v1603
  %v1727 = vpack.c.b16 %v1606, %v1605
  %v1728 = vpack.c.b16 %v1608, %v1607
  %v1729 = vpack.c.b16 %v1610, %v1609
  %v1730 = vpack.c.b16 %v1612, %v1611
  %v1731 = vpack.c.b16 %v1614, %v1613
  %v1732 = vpack.c.b16 %v1616, %v1615
  %v1733 = vpack.c.b16 %v1618, %v1617
  %v1734 = vpack.c.b16 %v1620, %v1619
  %v1735 = vpack.c.b16 %v1622, %v1621
  %v1736 = vpack.c.b16 %v1624, %v1623
  %v1737 = vpack.c.b16 %v1626, %v1625
  %v1738 = vpack.c.b16 %v1628, %v1627
  %v1739 = vpack.c.b16 %v1630, %v1629
  %v1740 = vpack.c.b16 %v1632, %v1631
  %v1741 = vpack.c.b16 %v1634, %v1633
  %v1742 = vpack.c.b16 %v1636, %v1635
  %v1743 = vpack.c.b16 %v1638, %v1637
  %v1744 = vpack.c.b16 %v1640, %v1639
  %v1745 = vpack.c.b16 %v1642, %v1641
  %v1746 = vpack.c.b16 %v1644, %v1643
  %v1747 = vpack.c.b16 %v1646, %v1645
  %v1748 = vpack.c.b16 %v1648, %v1647
  %v1749 = vpack.c.b16 %v1650, %v1649
  %v1750 = vpack.c.b16 %v1652, %v1651
  %v1751 = vpack.c.b16 %v1654, %v1653
  %v1752 = vpack.c.b16 %v1656, %v1655
  %v1753 = vpack.c.b16 %v1658, %v1657
  %v1754 = vpack.c.b16 %v1660, %v1659
  %v1755 = vpack.c.b16 %v1662, %v1661
  %v1756 = vpack.c.b16 %v1664, %v1663
  %v1757 = vpack.c.b16 %v1666, %v1665
  %v1758 = vpack.c.b16 %v1668, %v1667
  %v1759 = vpack.c.b16 %v1670, %v1669
  %v1760 = vpack.c.b16 %v1672, %v1671
  %v1761 = vpack.c.b16 %v1674, %v1673
  %v1762 = vpack.c.b16 %v1676, %v1675
  %v1763 = vpack.c.b16 %v1678, %v1677
  %v1764 = vpack.c.b16 %v1680, %v1679
  %v1765 = vpack.c.b16 %v1682, %v1681
  %v1766 = vpack.c.b16 %v1684, %v1683
  %v1767 = vpack.c.b16 %v1686, %v1685
  %v1768 = vpack.c.b16 %v1688, %v1687
  %v1769 = vpack.c.b16 %v1690, %v1689
  %v1770 = vpack.c.b16 %v1692, %v1691
  %v1771 = vpack.c.b16 %v1694, %v1693
  %v1772 = vpack.c.b16 %v1696, %v1695
  %v1773 = vpack.c.b16 %v1698, %v1697
  %v1774 = vpack.c.b16 %v1700, %v1699
  %v1775 = vpack.c.b16 %v1702, %v1701
  %v1776 = vpack.c.b16 %v1704, %v1703
  %1849 = vmatprep.subr.bf16.mxu0 0
  %1850 = vmatpush1.bf16.msra.mxu0 %v1705
  %1851 = vmatprep.subr.bf16.mxu0 0
  %1852 = vmatpush1.bf16.msra.mxu0 %v1706
  %1853 = vmatprep.subr.bf16.mxu0 0
  %1854 = vmatpush1.bf16.msra.mxu0 %v1707
  %1855 = vmatprep.subr.bf16.mxu0 0
  %1856 = vmatpush1.bf16.msra.mxu0 %v1708
  %1857 = vmatprep.subr.bf16.mxu0 0
  %1858 = vmatpush1.bf16.msra.mxu0 %v1709
  %1859 = vmatprep.subr.bf16.mxu0 0
  %1860 = vmatpush1.bf16.msra.mxu0 %v1710
  %1861 = vmatprep.subr.bf16.mxu0 0
  %1862 = vmatpush1.bf16.msra.mxu0 %v1711
  %1863 = vmatprep.subr.bf16.mxu0 0
  %1864 = vmatpush1.bf16.msra.mxu0 %v1712
  %1865 = vmatprep.subr.bf16.mxu0 0
  %1866 = vmatpush1.bf16.msra.mxu0 %v1713
  %1867 = vmatprep.subr.bf16.mxu0 0
  %1868 = vmatpush1.bf16.msra.mxu0 %v1714
  %1869 = vmatprep.subr.bf16.mxu0 0
  %1870 = vmatpush1.bf16.msra.mxu0 %v1715
  %1871 = vmatprep.subr.bf16.mxu0 0
  %1872 = vmatpush1.bf16.msra.mxu0 %v1716
  %1873 = vmatprep.subr.bf16.mxu0 0
  %1874 = vmatpush1.bf16.msra.mxu0 %v1717
  %1875 = vmatprep.subr.bf16.mxu0 0
  %1876 = vmatpush1.bf16.msra.mxu0 %v1718
  %1877 = vmatprep.subr.bf16.mxu0 0
  %1878 = vmatpush1.bf16.msra.mxu0 %v1719
  %1879 = vmatprep.subr.bf16.mxu0 0
  %1880 = vmatpush1.bf16.msra.mxu0 %v1720
  %1881 = vmatprep.mubr.bf16.mxu0 %v969
  %1882 = vmatmul.mubr.bf16.gmra.mrb[0].mxu0 %v921
  %v1883 = vpop.f32.mrb[0].mxu0
  %v1884 = vadd.f32 0.0, %v1883
  %v1885 = vpop.f32.mrb[0].mxu0
  %v1886 = vpop.f32.mrb[0].mxu0
  %v1887 = vadd.f32 0.0, %v1886
  %v1888 = vpop.f32.mrb[0].mxu0
  %1889 = vmatprep.mubr.bf16.mxu0 %v970
  %1890 = vmatmul.mubr.bf16.gmra.mrb[0].mxu0 %v922
  %v1891 = vpop.f32.mrb[0].mxu0
  %v1892 = vadd.f32 0.0, %v1891
  %v1893 = vpop.f32.mrb[0].mxu0
  %v1894 = vpop.f32.mrb[0].mxu0
  %v1895 = vadd.f32 0.0, %v1894
  %v1896 = vpop.f32.mrb[0].mxu0
  %1897 = vmatprep.mubr.bf16.mxu0 %v971
  %1898 = vmatmul.mubr.bf16.gmra.mrb[0].mxu0 %v923
  %v1899 = vpop.f32.mrb[0].mxu0
  %v1900 = vadd.f32 0.0, %v1899
  %v1901 = vpop.f32.mrb[0].mxu0
  %v1902 = vpop.f32.mrb[0].mxu0
  %v1903 = vadd.f32 0.0, %v1902
  %v1904 = vpop.f32.mrb[0].mxu0
  %1905 = vmatprep.mubr.bf16.mxu0 %v972
  %1906 = vmatmul.mubr.bf16.gmra.mrb[0].mxu0 %v924
  %v1907 = vpop.f32.mrb[0].mxu0
  %v1908 = vadd.f32 0.0, %v1907
  %v1909 = vpop.f32.mrb[0].mxu0
  %v1910 = vpop.f32.mrb[0].mxu0
  %v1911 = vadd.f32 0.0, %v1910
  %v1912 = vpop.f32.mrb[0].mxu0
  %1913 = vmatprep.mubr.bf16.mxu0 %v973
  %1914 = vmatmul.mubr.bf16.gmra.mrb[0].mxu0 %v925
  %v1915 = vpop.f32.mrb[0].mxu0
  %v1916 = vadd.f32 0.0, %v1915
  %v1917 = vpop.f32.mrb[0].mxu0
  %v1918 = vpop.f32.mrb[0].mxu0
  %v1919 = vadd.f32 0.0, %v1918
  %v1920 = vpop.f32.mrb[0].mxu0
  %1921 = vmatprep.mubr.bf16.mxu0 %v974
  %1922 = vmatmul.mubr.bf16.gmra.mrb[0].mxu0 %v926
  %v1923 = vpop.f32.mrb[0].mxu0
  %v1924 = vadd.f32 0.0, %v1923
  %v1925 = vpop.f32.mrb[0].mxu0
  %v1926 = vpop.f32.mrb[0].mxu0
  %v1927 = vadd.f32 0.0, %v1926
  %v1928 = vpop.f32.mrb[0].mxu0
  %1929 = vmatprep.mubr.bf16.mxu0 %v975
  %1930 = vmatmul.mubr.bf16.gmra.mrb[0].mxu0 %v927
  %v1931 = vpop.f32.mrb[0].mxu0
  %v1932 = vadd.f32 0.0, %v1931
  %v1933 = vpop.f32.mrb[0].mxu0
  %v1934 = vpop.f32.mrb[0].mxu0
  %v1935 = vadd.f32 0.0, %v1934
  %v1936 = vpop.f32.mrb[0].mxu0
  %1937 = vmatprep.mubr.bf16.mxu0 %v976
  %1938 = vmatmul.mubr.bf16.gmra.mrb[0].mxu0 %v928
  %v1939 = vpop.f32.mrb[0].mxu0
  %v1940 = vadd.f32 0.0, %v1939
  %v1941 = vpop.f32.mrb[0].mxu0
  %v1942 = vpop.f32.mrb[0].mxu0
  %v1943 = vadd.f32 0.0, %v1942
  %v1944 = vpop.f32.mrb[0].mxu0
  %1945 = vdwg.mxu0
  %1946 = vmatprep.subr.bf16.mxu0 0
  %1947 = vmatpush1.bf16.msra.mxu0 %v1721
  %1948 = vmatprep.subr.bf16.mxu0 0
  %1949 = vmatpush1.bf16.msra.mxu0 %v1722
  %1950 = vmatprep.subr.bf16.mxu0 0
  %1951 = vmatpush1.bf16.msra.mxu0 %v1723
  %1952 = vmatprep.subr.bf16.mxu0 0
  %1953 = vmatpush1.bf16.msra.mxu0 %v1724
  %1954 = vmatprep.subr.bf16.mxu0 0
  %1955 = vmatpush1.bf16.msra.mxu0 %v1725
  %1956 = vmatprep.subr.bf16.mxu0 0
  %1957 = vmatpush1.bf16.msra.mxu0 %v1726
  %1958 = vmatprep.subr.bf16.mxu0 0
  %1959 = vmatpush1.bf16.msra.mxu0 %v1727
  %1960 = vmatprep.subr.bf16.mxu0 0
  %1961 = vmatpush1.bf16.msra.mxu0 %v1728
  %1962 = vmatprep.subr.bf16.mxu0 0
  %1963 = vmatpush1.bf16.msra.mxu0 %v1729
  %1964 = vmatprep.subr.bf16.mxu0 0
  %1965 = vmatpush1.bf16.msra.mxu0 %v1730
  %1966 = vmatprep.subr.bf16.mxu0 0
  %1967 = vmatpush1.bf16.msra.mxu0 %v1731
  %1968 = vmatprep.subr.bf16.mxu0 0
  %1969 = vmatpush1.bf16.msra.mxu0 %v1732
  %1970 = vmatprep.subr.bf16.mxu0 0
  %1971 = vmatpush1.bf16.msra.mxu0 %v1733
  %1972 = vmatprep.subr.bf16.mxu0 0
  %1973 = vmatpush1.bf16.msra.mxu0 %v1734
  %1974 = vmatprep.subr.bf16.mxu0 0
  %1975 = vmatpush1.bf16.msra.mxu0 %v1735
  %1976 = vmatprep.subr.bf16.mxu0 0
  %1977 = vmatpush1.bf16.msra.mxu0 %v1736
  %1978 = vmatprep.mubr.bf16.mxu0 %v1049
  %1979 = vmatmul.mubr.bf16.gmra.mrb[0].mxu0 %v1001
  %v1980 = vpop.f32.mrb[0].mxu0
  %v1981 = vadd.f32 %v1884, %v1980
  %v1982 = vpop.f32.mrb[0].mxu0
  %v1983 = vpop.f32.mrb[0].mxu0
  %v1984 = vadd.f32 %v1887, %v1983
  %v1985 = vpop.f32.mrb[0].mxu0
  %1986 = vmatprep.mubr.bf16.mxu0 %v1050
  %1987 = vmatmul.mubr.bf16.gmra.mrb[0].mxu0 %v1002
  %v1988 = vpop.f32.mrb[0].mxu0
  %v1989 = vadd.f32 %v1892, %v1988
  %v1990 = vpop.f32.mrb[0].mxu0
  %v1991 = vpop.f32.mrb[0].mxu0
  %v1992 = vadd.f32 %v1895, %v1991
  %v1993 = vpop.f32.mrb[0].mxu0
  %1994 = vmatprep.mubr.bf16.mxu0 %v1051
  %1995 = vmatmul.mubr.bf16.gmra.mrb[0].mxu0 %v1003
  %v1996 = vpop.f32.mrb[0].mxu0
  %v1997 = vadd.f32 %v1900, %v1996
  %v1998 = vpop.f32.mrb[0].mxu0
  %v1999 = vpop.f32.mrb[0].mxu0
  %v2000 = vadd.f32 %v1903, %v1999
  %v2001 = vpop.f32.mrb[0].mxu0
  %2002 = vmatprep.mubr.bf16.mxu0 %v1052
  %2003 = vmatmul.mubr.bf16.gmra.mrb[0].mxu0 %v1004
  %v2004 = vpop.f32.mrb[0].mxu0
  %v2005 = vadd.f32 %v1908, %v2004
  %v2006 = vpop.f32.mrb[0].mxu0
  %v2007 = vpop.f32.mrb[0].mxu0
  %v2008 = vadd.f32 %v1911, %v2007
  %v2009 = vpop.f32.mrb[0].mxu0
  %2010 = vmatprep.mubr.bf16.mxu0 %v1053
  %2011 = vmatmul.mubr.bf16.gmra.mrb[0].mxu0 %v1005
  %v2012 = vpop.f32.mrb[0].mxu0
  %v2013 = vadd.f32 %v1916, %v2012
  %v2014 = vpop.f32.mrb[0].mxu0
  %v2015 = vpop.f32.mrb[0].mxu0
  %v2016 = vadd.f32 %v1919, %v2015
  %v2017 = vpop.f32.mrb[0].mxu0
  %2018 = vmatprep.mubr.bf16.mxu0 %v1054
  %2019 = vmatmul.mubr.bf16.gmra.mrb[0].mxu0 %v1006
  %v2020 = vpop.f32.mrb[0].mxu0
  %v2021 = vadd.f32 %v1924, %v2020
  %v2022 = vpop.f32.mrb[0].mxu0
  %v2023 = vpop.f32.mrb[0].mxu0
  %v2024 = vadd.f32 %v1927, %v2023
  %v2025 = vpop.f32.mrb[0].mxu0
  %2026 = vmatprep.mubr.bf16.mxu0 %v1055
  %2027 = vmatmul.mubr.bf16.gmra.mrb[0].mxu0 %v1007
  %v2028 = vpop.f32.mrb[0].mxu0
  %v2029 = vadd.f32 %v1932, %v2028
  %v2030 = vpop.f32.mrb[0].mxu0
  %v2031 = vpop.f32.mrb[0].mxu0
  %v2032 = vadd.f32 %v1935, %v2031
  %v2033 = vpop.f32.mrb[0].mxu0
  %2034 = vmatprep.mubr.bf16.mxu0 %v1056
  %2035 = vmatmul.mubr.bf16.gmra.mrb[0].mxu0 %v1008
  %v2036 = vpop.f32.mrb[0].mxu0
  %v2037 = vadd.f32 %v1940, %v2036
  %v2038 = vpop.f32.mrb[0].mxu0
  %v2039 = vpop.f32.mrb[0].mxu0
  %v2040 = vadd.f32 %v1943, %v2039
  %v2041 = vpop.f32.mrb[0].mxu0
  %2042 = vdwg.mxu0
  %2043 = vmatprep.subr.bf16.mxu0 0
  %2044 = vmatpush1.bf16.msra.mxu0 %v1737
  %2045 = vmatprep.subr.bf16.mxu0 0
  %2046 = vmatpush1.bf16.msra.mxu0 %v1738
  %2047 = vmatprep.subr.bf16.mxu0 0
  %2048 = vmatpush1.bf16.msra.mxu0 %v1739
  %2049 = vmatprep.subr.bf16.mxu0 0
  %2050 = vmatpush1.bf16.msra.mxu0 %v1740
  %2051 = vmatprep.subr.bf16.mxu0 0
  %2052 = vmatpush1.bf16.msra.mxu0 %v1741
  %2053 = vmatprep.subr.bf16.mxu0 0
  %2054 = vmatpush1.bf16.msra.mxu0 %v1742
  %2055 = vmatprep.subr.bf16.mxu0 0
  %2056 = vmatpush1.bf16.msra.mxu0 %v1743
  %2057 = vmatprep.subr.bf16.mxu0 0
  %2058 = vmatpush1.bf16.msra.mxu0 %v1744
  %2059 = vmatprep.subr.bf16.mxu0 0
  %2060 = vmatpush1.bf16.msra.mxu0 %v1745
  %2061 = vmatprep.subr.bf16.mxu0 0
  %2062 = vmatpush1.bf16.msra.mxu0 %v1746
  %2063 = vmatprep.subr.bf16.mxu0 0
  %2064 = vmatpush1.bf16.msra.mxu0 %v1747
  %2065 = vmatprep.subr.bf16.mxu0 0
  %2066 = vmatpush1.bf16.msra.mxu0 %v1748
  %2067 = vmatprep.subr.bf16.mxu0 0
  %2068 = vmatpush1.bf16.msra.mxu0 %v1749
  %2069 = vmatprep.subr.bf16.mxu0 0
  %2070 = vmatpush1.bf16.msra.mxu0 %v1750
  %2071 = vmatprep.subr.bf16.mxu0 0
  %2072 = vmatpush1.bf16.msra.mxu0 %v1751
  %2073 = vmatprep.subr.bf16.mxu0 0
  %2074 = vmatpush1.bf16.msra.mxu0 %v1752
  %2075 = vmatprep.mubr.bf16.mxu0 %v1129
  %2076 = vmatmul.mubr.bf16.gmra.mrb[0].mxu0 %v1097
  %v2077 = vpop.f32.mrb[0].mxu0
  %v2078 = vadd.f32 %v1981, %v2077
  %v2079 = vpop.f32.mrb[0].mxu0
  %v2080 = vpop.f32.mrb[0].mxu0
  %v2081 = vadd.f32 %v1984, %v2080
  %v2082 = vpop.f32.mrb[0].mxu0
  %2083 = vmatprep.mubr.bf16.mxu0 %v1130
  %2084 = vmatmul.mubr.bf16.gmra.mrb[0].mxu0 %v1098
  %v2085 = vpop.f32.mrb[0].mxu0
  %v2086 = vadd.f32 %v1989, %v2085
  %v2087 = vpop.f32.mrb[0].mxu0
  %v2088 = vpop.f32.mrb[0].mxu0
  %v2089 = vadd.f32 %v1992, %v2088
  %v2090 = vpop.f32.mrb[0].mxu0
  %2091 = vmatprep.mubr.bf16.mxu0 %v1131
  %2092 = vmatmul.mubr.bf16.gmra.mrb[0].mxu0 %v1099
  %v2093 = vpop.f32.mrb[0].mxu0
  %v2094 = vadd.f32 %v1997, %v2093
  %v2095 = vpop.f32.mrb[0].mxu0
  %v2096 = vpop.f32.mrb[0].mxu0
  %v2097 = vadd.f32 %v2000, %v2096
  %v2098 = vpop.f32.mrb[0].mxu0
  %2099 = vmatprep.mubr.bf16.mxu0 %v1132
  %2100 = vmatmul.mubr.bf16.gmra.mrb[0].mxu0 %v1100
  %v2101 = vpop.f32.mrb[0].mxu0
  %v2102 = vadd.f32 %v2005, %v2101
  %v2103 = vpop.f32.mrb[0].mxu0
  %v2104 = vpop.f32.mrb[0].mxu0
  %v2105 = vadd.f32 %v2008, %v2104
  %v2106 = vpop.f32.mrb[0].mxu0
  %2107 = vmatprep.mubr.bf16.mxu0 %v1133
  %2108 = vmatmul.mubr.bf16.gmra.mrb[0].mxu0 %v1101
  %v2109 = vpop.f32.mrb[0].mxu0
  %v2110 = vadd.f32 %v2013, %v2109
  %v2111 = vpop.f32.mrb[0].mxu0
  %v2112 = vpop.f32.mrb[0].mxu0
  %v2113 = vadd.f32 %v2016, %v2112
  %v2114 = vpop.f32.mrb[0].mxu0
  %2115 = vmatprep.mubr.bf16.mxu0 %v1134
  %2116 = vmatmul.mubr.bf16.gmra.mrb[0].mxu0 %v1102
  %v2117 = vpop.f32.mrb[0].mxu0
  %v2118 = vadd.f32 %v2021, %v2117
  %v2119 = vpop.f32.mrb[0].mxu0
  %v2120 = vpop.f32.mrb[0].mxu0
  %v2121 = vadd.f32 %v2024, %v2120
  %v2122 = vpop.f32.mrb[0].mxu0
  %2123 = vmatprep.mubr.bf16.mxu0 %v1135
  %2124 = vmatmul.mubr.bf16.gmra.mrb[0].mxu0 %v1103
  %v2125 = vpop.f32.mrb[0].mxu0
  %v2126 = vadd.f32 %v2029, %v2125
  %v2127 = vpop.f32.mrb[0].mxu0
  %v2128 = vpop.f32.mrb[0].mxu0
  %v2129 = vadd.f32 %v2032, %v2128
  %v2130 = vpop.f32.mrb[0].mxu0
  %2131 = vmatprep.mubr.bf16.mxu0 %v1136
  %2132 = vmatmul.mubr.bf16.gmra.mrb[0].mxu0 %v1104
  %v2133 = vpop.f32.mrb[0].mxu0
  %v2134 = vadd.f32 %v2037, %v2133
  %v2135 = vpop.f32.mrb[0].mxu0
  %v2136 = vpop.f32.mrb[0].mxu0
  %v2137 = vadd.f32 %v2040, %v2136
  %v2138 = vpop.f32.mrb[0].mxu0
  %2139 = vdwg.mxu0
  %2140 = vmatprep.subr.bf16.mxu0 0
  %2141 = vmatpush1.bf16.msra.mxu0 %v1753
  %2142 = vmatprep.subr.bf16.mxu0 0
  %2143 = vmatpush1.bf16.msra.mxu0 %v1754
  %2144 = vmatprep.subr.bf16.mxu0 0
  %2145 = vmatpush1.bf16.msra.mxu0 %v1755
  %2146 = vmatprep.subr.bf16.mxu0 0
  %2147 = vmatpush1.bf16.msra.mxu0 %v1756
  %2148 = vmatprep.subr.bf16.mxu0 0
  %2149 = vmatpush1.bf16.msra.mxu0 %v1757
  %2150 = vmatprep.subr.bf16.mxu0 0
  %2151 = vmatpush1.bf16.msra.mxu0 %v1758
  %2152 = vmatprep.subr.bf16.mxu0 0
  %2153 = vmatpush1.bf16.msra.mxu0 %v1759
  %2154 = vmatprep.subr.bf16.mxu0 0
  %2155 = vmatpush1.bf16.msra.mxu0 %v1760
  %2156 = vmatprep.subr.bf16.mxu0 0
  %2157 = vmatpush1.bf16.msra.mxu0 %v1761
  %2158 = vmatprep.subr.bf16.mxu0 0
  %2159 = vmatpush1.bf16.msra.mxu0 %v1762
  %2160 = vmatprep.subr.bf16.mxu0 0
  %2161 = vmatpush1.bf16.msra.mxu0 %v1763
  %2162 = vmatprep.subr.bf16.mxu0 0
  %2163 = vmatpush1.bf16.msra.mxu0 %v1764
  %2164 = vmatprep.subr.bf16.mxu0 0
  %2165 = vmatpush1.bf16.msra.mxu0 %v1765
  %2166 = vmatprep.subr.bf16.mxu0 0
  %2167 = vmatpush1.bf16.msra.mxu0 %v1766
  %2168 = vmatprep.subr.bf16.mxu0 0
  %2169 = vmatpush1.bf16.msra.mxu0 %v1767
  %2170 = vmatprep.subr.bf16.mxu0 0
  %2171 = vmatpush1.bf16.msra.mxu0 %v1768
  %2172 = vmatprep.mubr.bf16.mxu0 %v1225
  %2173 = vmatmul.mubr.bf16.gmra.mrb[0].mxu0 %v1177
  %v2174 = vpop.f32.mrb[0].mxu0
  %v2175 = vadd.f32 %v2078, %v2174
  %v2176 = vpop.f32.mrb[0].mxu0
  %v2177 = vpop.f32.mrb[0].mxu0
  %v2178 = vadd.f32 %v2081, %v2177
  %v2179 = vpop.f32.mrb[0].mxu0
  %2180 = vmatprep.mubr.bf16.mxu0 %v1226
  %2181 = vmatmul.mubr.bf16.gmra.mrb[0].mxu0 %v1178
  %v2182 = vpop.f32.mrb[0].mxu0
  %v2183 = vadd.f32 %v2086, %v2182
  %v2184 = vpop.f32.mrb[0].mxu0
  %v2185 = vpop.f32.mrb[0].mxu0
  %v2186 = vadd.f32 %v2089, %v2185
  %v2187 = vpop.f32.mrb[0].mxu0
  %2188 = vmatprep.mubr.bf16.mxu0 %v1227
  %2189 = vmatmul.mubr.bf16.gmra.mrb[0].mxu0 %v1179
  %v2190 = vpop.f32.mrb[0].mxu0
  %v2191 = vadd.f32 %v2094, %v2190
  %v2192 = vpop.f32.mrb[0].mxu0
  %v2193 = vpop.f32.mrb[0].mxu0
  %v2194 = vadd.f32 %v2097, %v2193
  %v2195 = vpop.f32.mrb[0].mxu0
  %2196 = vmatprep.mubr.bf16.mxu0 %v1228
  %2197 = vmatmul.mubr.bf16.gmra.mrb[0].mxu0 %v1180
  %v2198 = vpop.f32.mrb[0].mxu0
  %v2199 = vadd.f32 %v2102, %v2198
  %v2200 = vpop.f32.mrb[0].mxu0
  %v2201 = vpop.f32.mrb[0].mxu0
  %v2202 = vadd.f32 %v2105, %v2201
  %v2203 = vpop.f32.mrb[0].mxu0
  %2204 = vmatprep.mubr.bf16.mxu0 %v1229
  %2205 = vmatmul.mubr.bf16.gmra.mrb[0].mxu0 %v1181
  %v2206 = vpop.f32.mrb[0].mxu0
  %v2207 = vadd.f32 %v2110, %v2206
  %v2208 = vpop.f32.mrb[0].mxu0
  %v2209 = vpop.f32.mrb[0].mxu0
  %v2210 = vadd.f32 %v2113, %v2209
  %v2211 = vpop.f32.mrb[0].mxu0
  %2212 = vmatprep.mubr.bf16.mxu0 %v1230
  %2213 = vmatmul.mubr.bf16.gmra.mrb[0].mxu0 %v1182
  %v2214 = vpop.f32.mrb[0].mxu0
  %v2215 = vadd.f32 %v2118, %v2214
  %v2216 = vpop.f32.mrb[0].mxu0
  %v2217 = vpop.f32.mrb[0].mxu0
  %v2218 = vadd.f32 %v2121, %v2217
  %v2219 = vpop.f32.mrb[0].mxu0
  %2220 = vmatprep.mubr.bf16.mxu0 %v1231
  %2221 = vmatmul.mubr.bf16.gmra.mrb[0].mxu0 %v1183
  %v2222 = vpop.f32.mrb[0].mxu0
  %v2223 = vadd.f32 %v2126, %v2222
  %v2224 = vpop.f32.mrb[0].mxu0
  %v2225 = vpop.f32.mrb[0].mxu0
  %v2226 = vadd.f32 %v2129, %v2225
  %v2227 = vpop.f32.mrb[0].mxu0
  %2228 = vmatprep.mubr.bf16.mxu0 %v1232
  %2229 = vmatmul.mubr.bf16.gmra.mrb[0].mxu0 %v1184
  %v2230 = vpop.f32.mrb[0].mxu0
  %v2231 = vadd.f32 %v2134, %v2230
  %v2232 = vpop.f32.mrb[0].mxu0
  %v2233 = vpop.f32.mrb[0].mxu0
  %v2234 = vadd.f32 %v2137, %v2233
  %v2235 = vpop.f32.mrb[0].mxu0
  %2236 = vdwg.mxu0
  %2237 = vmatprep.subr.bf16.mxu0 0
  %2238 = vmatpush1.bf16.msra.mxu0 %v1769
  %2239 = vmatprep.subr.bf16.mxu0 0
  %2240 = vmatpush1.bf16.msra.mxu0 %v1770
  %2241 = vmatprep.subr.bf16.mxu0 0
  %2242 = vmatpush1.bf16.msra.mxu0 %v1771
  %2243 = vmatprep.subr.bf16.mxu0 0
  %2244 = vmatpush1.bf16.msra.mxu0 %v1772
  %2245 = vmatprep.subr.bf16.mxu0 0
  %2246 = vmatpush1.bf16.msra.mxu0 %v1773
  %2247 = vmatprep.subr.bf16.mxu0 0
  %2248 = vmatpush1.bf16.msra.mxu0 %v1774
  %2249 = vmatprep.subr.bf16.mxu0 0
  %2250 = vmatpush1.bf16.msra.mxu0 %v1775
  %2251 = vmatprep.subr.bf16.mxu0 0
  %2252 = vmatpush1.bf16.msra.mxu0 %v1776
  %2253 = vmatprep.subr.bf16.mxu0 0
  %2254 = vmatpush1.bf16.msra.mxu0 0
  %2255 = vmatprep.subr.bf16.mxu0 0
  %2256 = vmatpush1.bf16.msra.mxu0 0
  %2257 = vmatprep.subr.bf16.mxu0 0
  %2258 = vmatpush1.bf16.msra.mxu0 0
  %2259 = vmatprep.subr.bf16.mxu0 0
  %2260 = vmatpush1.bf16.msra.mxu0 0
  %2261 = vmatprep.subr.bf16.mxu0 0
  %2262 = vmatpush1.bf16.msra.mxu0 0
  %2263 = vmatprep.subr.bf16.mxu0 0
  %2264 = vmatpush1.bf16.msra.mxu0 0
  %2265 = vmatprep.subr.bf16.mxu0 0
  %2266 = vmatpush1.bf16.msra.mxu0 0
  %2267 = vmatprep.subr.bf16.mxu0 0
  %2268 = vmatpush1.bf16.msra.mxu0 0
  %2269 = vmatprep.mubr.bf16.mxu0 0
  %2270 = vmatmul.mubr.bf16.gmra.mrb[0].mxu0 %v1257
  %v2271 = vpop.f32.mrb[0].mxu0
  %v2272 = vadd.f32 %v2175, %v2271
  %v2273 = vpop.f32.mrb[0].mxu0
  %v2274 = vpop.f32.mrb[0].mxu0
  %v2275 = vadd.f32 %v2178, %v2274
  %v2276 = vpop.f32.mrb[0].mxu0
  %2277 = vmatprep.mubr.bf16.mxu0 0
  %2278 = vmatmul.mubr.bf16.gmra.mrb[0].mxu0 %v1258
  %v2279 = vpop.f32.mrb[0].mxu0
  %v2280 = vadd.f32 %v2183, %v2279
  %v2281 = vpop.f32.mrb[0].mxu0
  %v2282 = vpop.f32.mrb[0].mxu0
  %v2283 = vadd.f32 %v2186, %v2282
  %v2284 = vpop.f32.mrb[0].mxu0
  %2285 = vmatprep.mubr.bf16.mxu0 0
  %2286 = vmatmul.mubr.bf16.gmra.mrb[0].mxu0 %v1259
  %v2287 = vpop.f32.mrb[0].mxu0
  %v2288 = vadd.f32 %v2191, %v2287
  %v2289 = vpop.f32.mrb[0].mxu0
  %v2290 = vpop.f32.mrb[0].mxu0
  %v2291 = vadd.f32 %v2194, %v2290
  %v2292 = vpop.f32.mrb[0].mxu0
  %2293 = vmatprep.mubr.bf16.mxu0 0
  %2294 = vmatmul.mubr.bf16.gmra.mrb[0].mxu0 %v1260
  %v2295 = vpop.f32.mrb[0].mxu0
  %v2296 = vadd.f32 %v2199, %v2295
  %v2297 = vpop.f32.mrb[0].mxu0
  %v2298 = vpop.f32.mrb[0].mxu0
  %v2299 = vadd.f32 %v2202, %v2298
  %v2300 = vpop.f32.mrb[0].mxu0
  %2301 = vmatprep.mubr.bf16.mxu0 0
  %2302 = vmatmul.mubr.bf16.gmra.mrb[0].mxu0 %v1261
  %v2303 = vpop.f32.mrb[0].mxu0
  %v2304 = vadd.f32 %v2207, %v2303
  %v2305 = vpop.f32.mrb[0].mxu0
  %v2306 = vpop.f32.mrb[0].mxu0
  %v2307 = vadd.f32 %v2210, %v2306
  %v2308 = vpop.f32.mrb[0].mxu0
  %2309 = vmatprep.mubr.bf16.mxu0 0
  %2310 = vmatmul.mubr.bf16.gmra.mrb[0].mxu0 %v1262
  %v2311 = vpop.f32.mrb[0].mxu0
  %v2312 = vadd.f32 %v2215, %v2311
  %v2313 = vpop.f32.mrb[0].mxu0
  %v2314 = vpop.f32.mrb[0].mxu0
  %v2315 = vadd.f32 %v2218, %v2314
  %v2316 = vpop.f32.mrb[0].mxu0
  %2317 = vmatprep.mubr.bf16.mxu0 0
  %2318 = vmatmul.mubr.bf16.gmra.mrb[0].mxu0 %v1263
  %v2319 = vpop.f32.mrb[0].mxu0
  %v2320 = vadd.f32 %v2223, %v2319
  %v2321 = vpop.f32.mrb[0].mxu0
  %v2322 = vpop.f32.mrb[0].mxu0
  %v2323 = vadd.f32 %v2226, %v2322
  %v2324 = vpop.f32.mrb[0].mxu0
  %2325 = vmatprep.mubr.bf16.mxu0 0
  %2326 = vmatmul.mubr.bf16.gmra.mrb[0].mxu0 %v1264
  %v2327 = vpop.f32.mrb[0].mxu0
  %v2328 = vadd.f32 %v2231, %v2327
  %v2329 = vpop.f32.mrb[0].mxu0
  %v2330 = vpop.f32.mrb[0].mxu0
  %v2331 = vadd.f32 %v2234, %v2330
  %v2332 = vpop.f32.mrb[0].mxu0
  %2333 = vdwg.mxu0
  %v2334 = vld [vmem:[#allocation2] sm:$0xff]
  %v2335 = vld [vmem:[#allocation2 + $0x8] sm:$0xff]
  %v2336 = vld [vmem:[#allocation2 + $0x10] sm:$0xff]
  %v2337 = vld [vmem:[#allocation2 + $0x18] sm:$0xff]
  %v2338 = vld [vmem:[#allocation2 + $0x20] sm:$0xff]
  %v2339 = vld [vmem:[#allocation2 + $0x28] sm:$0xff]
  %v2340 = vld [vmem:[#allocation2 + $0x30] sm:$0xff]
  %v2341 = vld [vmem:[#allocation2 + $0x38] sm:$0xff]
  %v2342 = vld [vmem:[#allocation2 + $0x40] sm:$0xff]
  %v2343 = vld [vmem:[#allocation2 + $0x48] sm:$0xff]
  %v2344 = vld [vmem:[#allocation2 + $0x50] sm:$0xff]
  %v2345 = vld [vmem:[#allocation2 + $0x58] sm:$0xff]
  %v2346 = vld [vmem:[#allocation2 + $0x60] sm:$0xff]
  %v2347 = vld [vmem:[#allocation2 + $0x68] sm:$0xff]
  %v2348 = vld [vmem:[#allocation2 + $0x70] sm:$0xff]
  %v2349 = vld [vmem:[#allocation2 + $0x78] sm:$0xff]
  %v2350 = vadd.f32 %v2334, %v2272
  %v2351 = vadd.f32 %v2335, %v2275
  %v2352 = vadd.f32 %v2336, %v2280
  %v2353 = vadd.f32 %v2337, %v2283
  %v2354 = vadd.f32 %v2338, %v2288
  %v2355 = vadd.f32 %v2339, %v2291
  %v2356 = vadd.f32 %v2340, %v2296
  %v2357 = vadd.f32 %v2341, %v2299
  %v2358 = vadd.f32 %v2342, %v2304
  %v2359 = vadd.f32 %v2343, %v2307
  %v2360 = vadd.f32 %v2344, %v2312
  %v2361 = vadd.f32 %v2345, %v2315
  %v2362 = vadd.f32 %v2346, %v2320
  %v2363 = vadd.f32 %v2347, %v2323
  %v2364 = vadd.f32 %v2348, %v2328
  %v2365 = vadd.f32 %v2349, %v2331
  %2366 = vst [vmem:[#allocation2] sm:$0xff] %v2350
  %2367 = vst [vmem:[#allocation2 + $0x8] sm:$0xff] %v2351
  %2368 = vst [vmem:[#allocation2 + $0x10] sm:$0xff] %v2352
  %2369 = vst [vmem:[#allocation2 + $0x18] sm:$0xff] %v2353
  %2370 = vst [vmem:[#allocation2 + $0x20] sm:$0xff] %v2354
  %2371 = vst [vmem:[#allocation2 + $0x28] sm:$0xff] %v2355
  %2372 = vst [vmem:[#allocation2 + $0x30] sm:$0xff] %v2356
  %2373 = vst [vmem:[#allocation2 + $0x38] sm:$0xff] %v2357
  %2374 = vst [vmem:[#allocation2 + $0x40] sm:$0xff] %v2358
  %2375 = vst [vmem:[#allocation2 + $0x48] sm:$0xff] %v2359
  %2376 = vst [vmem:[#allocation2 + $0x50] sm:$0xff] %v2360
  %2377 = vst [vmem:[#allocation2 + $0x58] sm:$0xff] %v2361
  %2378 = vst [vmem:[#allocation2 + $0x60] sm:$0xff] %v2362
  %2379 = vst [vmem:[#allocation2 + $0x68] sm:$0xff] %v2363
  %2380 = vst [vmem:[#allocation2 + $0x70] sm:$0xff] %v2364
  %2381 = vst [vmem:[#allocation2 + $0x78] sm:$0xff] %v2365
  %v2382 = vld [vmem:[#allocation3] sm:$0xff]
  %v2383 = vld [vmem:[#allocation3 + $0x8] sm:$0xff]
  %v2384 = vld [vmem:[#allocation3 + $0x10] sm:$0xff]
  %v2385 = vld [vmem:[#allocation3 + $0x18] sm:$0xff]
  %v2386 = vld [vmem:[#allocation3 + $0x20] sm:$0xff]
  %v2387 = vld [vmem:[#allocation3 + $0x28] sm:$0xff]
  %v2388 = vld [vmem:[#allocation3 + $0x30] sm:$0xff]
  %v2389 = vld [vmem:[#allocation3 + $0x38] sm:$0xff]
  %v2390 = vld [vmem:[#allocation3 + $0x40] sm:$0xff]
  %v2391 = vld [vmem:[#allocation3 + $0x48] sm:$0xff]
  %v2392 = vld [vmem:[#allocation3 + $0x50] sm:$0xff]
  %v2393 = vld [vmem:[#allocation3 + $0x58] sm:$0xff]
  %v2394 = vld [vmem:[#allocation3 + $0x60] sm:$0xff]
  %v2395 = vld [vmem:[#allocation3 + $0x68] sm:$0xff]
  %v2396 = vld [vmem:[#allocation3 + $0x70] sm:$0xff]
  %v2397 = vld [vmem:[#allocation3 + $0x78] sm:$0xff]
  %v2398 = vld [vmem:[%s2] sm:$0xf]
  %v2399 = vld [vmem:[%s2 + $0x4] sm:$0xf]
  %v2400 = vld [vmem:[%s2 + $0x8] sm:$0xf]
  %v2401 = vld [vmem:[%s2 + $0xc] sm:$0xf]
  %v2402 = vld [vmem:[%s2 + $0x10] sm:$0xf]
  %v2403 = vld [vmem:[%s2 + $0x14] sm:$0xf]
  %v2404 = vld [vmem:[%s2 + $0x18] sm:$0xf]
  %v2405 = vld [vmem:[%s2 + $0x1c] sm:$0xf]
  %v2406 = vld [vmem:[%s2 + $0x20] sm:$0xf]
  %v2407 = vld [vmem:[%s2 + $0x24] sm:$0xf]
  %v2408 = vld [vmem:[%s2 + $0x28] sm:$0xf]
  %v2409 = vld [vmem:[%s2 + $0x2c] sm:$0xf]
  %v2410 = vld [vmem:[%s2 + $0x30] sm:$0xf]
  %v2411 = vld [vmem:[%s2 + $0x34] sm:$0xf]
  %v2412 = vld [vmem:[%s2 + $0x38] sm:$0xf]
  %v2413 = vld [vmem:[%s2 + $0x3c] sm:$0xf]
  %v2430 = vunpack.c.l.b16 %v2398
  %v2431 = vunpack.c.l.b16 %v2399
  %v2432 = vunpack.c.l.b16 %v2400
  %v2433 = vunpack.c.l.b16 %v2401
  %v2434 = vunpack.c.l.b16 %v2402
  %v2435 = vunpack.c.l.b16 %v2403
  %v2436 = vunpack.c.l.b16 %v2404
  %v2437 = vunpack.c.l.b16 %v2405
  %v2438 = vunpack.c.l.b16 %v2406
  %v2439 = vunpack.c.l.b16 %v2407
  %v2440 = vunpack.c.l.b16 %v2408
  %v2441 = vunpack.c.l.b16 %v2409
  %v2442 = vunpack.c.l.b16 %v2410
  %v2443 = vunpack.c.l.b16 %v2411
  %v2444 = vunpack.c.l.b16 %v2412
  %v2445 = vunpack.c.l.b16 %v2413
  %v2446 = vpack.c.b16 %v2431, %v2430
  %v2447 = vpack.c.b16 %v2433, %v2432
  %v2448 = vpack.c.b16 %v2435, %v2434
  %v2449 = vpack.c.b16 %v2437, %v2436
  %v2450 = vpack.c.b16 %v2439, %v2438
  %v2451 = vpack.c.b16 %v2441, %v2440
  %v2452 = vpack.c.b16 %v2443, %v2442
  %v2453 = vpack.c.b16 %v2445, %v2444
  %2462 = vmatprep.subr.bf16.mxu0 0
  %2463 = vmatpush1.bf16.msra.mxu0 %v2446
  %2464 = vmatprep.subr.bf16.mxu0 0
  %2465 = vmatpush1.bf16.msra.mxu0 %v2447
  %2466 = vmatprep.subr.bf16.mxu0 0
  %2467 = vmatpush1.bf16.msra.mxu0 %v2448
  %2468 = vmatprep.subr.bf16.mxu0 0
  %2469 = vmatpush1.bf16.msra.mxu0 %v2449
  %2470 = vmatprep.subr.bf16.mxu0 0
  %2471 = vmatpush1.bf16.msra.mxu0 %v2450
  %2472 = vmatprep.subr.bf16.mxu0 0
  %2473 = vmatpush1.bf16.msra.mxu0 %v2451
  %2474 = vmatprep.subr.bf16.mxu0 0
  %2475 = vmatpush1.bf16.msra.mxu0 %v2452
  %2476 = vmatprep.subr.bf16.mxu0 0
  %2477 = vmatpush1.bf16.msra.mxu0 %v2453
  %2478 = vmatprep.subr.bf16.mxu0 0
  %2479 = vmatpush1.bf16.msra.mxu0 0
  %2480 = vmatprep.subr.bf16.mxu0 0
  %2481 = vmatpush1.bf16.msra.mxu0 0
  %2482 = vmatprep.subr.bf16.mxu0 0
  %2483 = vmatpush1.bf16.msra.mxu0 0
  %2484 = vmatprep.subr.bf16.mxu0 0
  %2485 = vmatpush1.bf16.msra.mxu0 0
  %2486 = vmatprep.subr.bf16.mxu0 0
  %2487 = vmatpush1.bf16.msra.mxu0 0
  %2488 = vmatprep.subr.bf16.mxu0 0
  %2489 = vmatpush1.bf16.msra.mxu0 0
  %2490 = vmatprep.subr.bf16.mxu0 0
  %2491 = vmatpush1.bf16.msra.mxu0 0
  %2492 = vmatprep.subr.bf16.mxu0 0
  %2493 = vmatpush1.bf16.msra.mxu0 0
  %2494 = vmatprep.mubr.bf16.mxu0 0
  %2495 = vmatmul.mubr.bf16.gmra.mrb[0].mxu0 %v1097
  %v2496 = vpop.f32.mrb[0].mxu0
  %v2497 = vadd.f32 0.0, %v2496
  %v2498 = vpop.f32.mrb[0].mxu0
  %v2499 = vpop.f32.mrb[0].mxu0
  %v2500 = vadd.f32 0.0, %v2499
  %v2501 = vpop.f32.mrb[0].mxu0
  %2502 = vmatprep.mubr.bf16.mxu0 0
  %2503 = vmatmul.mubr.bf16.gmra.mrb[0].mxu0 %v1098
  %v2504 = vpop.f32.mrb[0].mxu0
  %v2505 = vadd.f32 0.0, %v2504
  %v2506 = vpop.f32.mrb[0].mxu0
  %v2507 = vpop.f32.mrb[0].mxu0
  %v2508 = vadd.f32 0.0, %v2507
  %v2509 = vpop.f32.mrb[0].mxu0
  %2510 = vmatprep.mubr.bf16.mxu0 0
  %2511 = vmatmul.mubr.bf16.gmra.mrb[0].mxu0 %v1099
  %v2512 = vpop.f32.mrb[0].mxu0
  %v2513 = vadd.f32 0.0, %v2512
  %v2514 = vpop.f32.mrb[0].mxu0
  %v2515 = vpop.f32.mrb[0].mxu0
  %v2516 = vadd.f32 0.0, %v2515
  %v2517 = vpop.f32.mrb[0].mxu0
  %2518 = vmatprep.mubr.bf16.mxu0 0
  %2519 = vmatmul.mubr.bf16.gmra.mrb[0].mxu0 %v1100
  %v2520 = vpop.f32.mrb[0].mxu0
  %v2521 = vadd.f32 0.0, %v2520
  %v2522 = vpop.f32.mrb[0].mxu0
  %v2523 = vpop.f32.mrb[0].mxu0
  %v2524 = vadd.f32 0.0, %v2523
  %v2525 = vpop.f32.mrb[0].mxu0
  %2526 = vmatprep.mubr.bf16.mxu0 0
  %2527 = vmatmul.mubr.bf16.gmra.mrb[0].mxu0 %v1101
  %v2528 = vpop.f32.mrb[0].mxu0
  %v2529 = vadd.f32 0.0, %v2528
  %v2530 = vpop.f32.mrb[0].mxu0
  %v2531 = vpop.f32.mrb[0].mxu0
  %v2532 = vadd.f32 0.0, %v2531
  %v2533 = vpop.f32.mrb[0].mxu0
  %2534 = vmatprep.mubr.bf16.mxu0 0
  %2535 = vmatmul.mubr.bf16.gmra.mrb[0].mxu0 %v1102
  %v2536 = vpop.f32.mrb[0].mxu0
  %v2537 = vadd.f32 0.0, %v2536
  %v2538 = vpop.f32.mrb[0].mxu0
  %v2539 = vpop.f32.mrb[0].mxu0
  %v2540 = vadd.f32 0.0, %v2539
  %v2541 = vpop.f32.mrb[0].mxu0
  %2542 = vmatprep.mubr.bf16.mxu0 0
  %2543 = vmatmul.mubr.bf16.gmra.mrb[0].mxu0 %v1103
  %v2544 = vpop.f32.mrb[0].mxu0
  %v2545 = vadd.f32 0.0, %v2544
  %v2546 = vpop.f32.mrb[0].mxu0
  %v2547 = vpop.f32.mrb[0].mxu0
  %v2548 = vadd.f32 0.0, %v2547
  %v2549 = vpop.f32.mrb[0].mxu0
  %2550 = vmatprep.mubr.bf16.mxu0 0
  %2551 = vmatmul.mubr.bf16.gmra.mrb[0].mxu0 %v1104
  %v2552 = vpop.f32.mrb[0].mxu0
  %v2553 = vadd.f32 0.0, %v2552
  %v2554 = vpop.f32.mrb[0].mxu0
  %v2555 = vpop.f32.mrb[0].mxu0
  %v2556 = vadd.f32 0.0, %v2555
  %v2557 = vpop.f32.mrb[0].mxu0
  %2558 = vdwg.mxu0
  %v2559 = vadd.f32 %v2382, %v2497
  %v2560 = vadd.f32 %v2383, %v2500
  %v2561 = vadd.f32 %v2384, %v2505
  %v2562 = vadd.f32 %v2385, %v2508
  %v2563 = vadd.f32 %v2386, %v2513
  %v2564 = vadd.f32 %v2387, %v2516
  %v2565 = vadd.f32 %v2388, %v2521
  %v2566 = vadd.f32 %v2389, %v2524
  %v2567 = vadd.f32 %v2390, %v2529
  %v2568 = vadd.f32 %v2391, %v2532
  %v2569 = vadd.f32 %v2392, %v2537
  %v2570 = vadd.f32 %v2393, %v2540
  %v2571 = vadd.f32 %v2394, %v2545
  %v2572 = vadd.f32 %v2395, %v2548
  %v2573 = vadd.f32 %v2396, %v2553
  %v2574 = vadd.f32 %v2397, %v2556
  %2575 = vst [vmem:[#allocation3] sm:$0xff] %v2559
  %2576 = vst [vmem:[#allocation3 + $0x8] sm:$0xff] %v2560
  %2577 = vst [vmem:[#allocation3 + $0x10] sm:$0xff] %v2561
  %2578 = vst [vmem:[#allocation3 + $0x18] sm:$0xff] %v2562
  %2579 = vst [vmem:[#allocation3 + $0x20] sm:$0xff] %v2563
  %2580 = vst [vmem:[#allocation3 + $0x28] sm:$0xff] %v2564
  %2581 = vst [vmem:[#allocation3 + $0x30] sm:$0xff] %v2565
  %2582 = vst [vmem:[#allocation3 + $0x38] sm:$0xff] %v2566
  %2583 = vst [vmem:[#allocation3 + $0x40] sm:$0xff] %v2567
  %2584 = vst [vmem:[#allocation3 + $0x48] sm:$0xff] %v2568
  %2585 = vst [vmem:[#allocation3 + $0x50] sm:$0xff] %v2569
  %2586 = vst [vmem:[#allocation3 + $0x58] sm:$0xff] %v2570
  %2587 = vst [vmem:[#allocation3 + $0x60] sm:$0xff] %v2571
  %2588 = vst [vmem:[#allocation3 + $0x68] sm:$0xff] %v2572
  %2589 = vst [vmem:[#allocation3 + $0x70] sm:$0xff] %v2573
  %2590 = vst [vmem:[#allocation3 + $0x78] sm:$0xff] %v2574
  // Predicated region
  $region34: #{resnet_layer.4} parent=0 // pred_check
    %p2591 = pneg %p29
  $region35: #{resnet_layer.4} parent=0 // pred_check_branch
    %2593 = sbr.rel (%p2591) target = $region37
  $region36: #{resnet_layer.4} parent=0 // pred_region
    %v2594 = vld [vmem:[#allocation2] sm:$0xff]
    %v2595 = vld [vmem:[#allocation2 + $0x8] sm:$0xff]
    %v2596 = vld [vmem:[#allocation2 + $0x10] sm:$0xff]
    %v2597 = vld [vmem:[#allocation2 + $0x18] sm:$0xff]
    %v2598 = vld [vmem:[#allocation2 + $0x20] sm:$0xff]
    %v2599 = vld [vmem:[#allocation2 + $0x28] sm:$0xff]
    %v2600 = vld [vmem:[#allocation2 + $0x30] sm:$0xff]
    %v2601 = vld [vmem:[#allocation2 + $0x38] sm:$0xff]
    %v2602 = vld [vmem:[#allocation2 + $0x40] sm:$0xff]
    %v2603 = vld [vmem:[#allocation2 + $0x48] sm:$0xff]
    %v2604 = vld [vmem:[#allocation2 + $0x50] sm:$0xff]
    %v2605 = vld [vmem:[#allocation2 + $0x58] sm:$0xff]
    %v2606 = vld [vmem:[#allocation2 + $0x60] sm:$0xff]
    %v2607 = vld [vmem:[#allocation2 + $0x68] sm:$0xff]
    %v2608 = vld [vmem:[#allocation2 + $0x70] sm:$0xff]
    %v2609 = vld [vmem:[#allocation2 + $0x78] sm:$0xff]
    %v2610 = vld [vmem:[%s3] sm:$0x1]
    %v2612 = vlaneseq
    %v2613 = vshrl.u32 %v2612, 7
    %v2614 = vsub.s32 0, %v2613
    %v2615 = vrot.slane %v2610, %v2614
    %v2617 = vmul.f32 %v2594, %v2615
    %v2618 = vmul.f32 %v2595, %v2615
    %v2619 = vmul.f32 %v2596, %v2615
    %v2620 = vmul.f32 %v2597, %v2615
    %v2621 = vmul.f32 %v2598, %v2615
    %v2622 = vmul.f32 %v2599, %v2615
    %v2623 = vmul.f32 %v2600, %v2615
    %v2624 = vmul.f32 %v2601, %v2615
    %v2625 = vmul.f32 %v2602, %v2615
    %v2626 = vmul.f32 %v2603, %v2615
    %v2627 = vmul.f32 %v2604, %v2615
    %v2628 = vmul.f32 %v2605, %v2615
    %v2629 = vmul.f32 %v2606, %v2615
    %v2630 = vmul.f32 %v2607, %v2615
    %v2631 = vmul.f32 %v2608, %v2615
    %v2632 = vmul.f32 %v2609, %v2615
    %v2633 = vld [vmem:[%s4] sm:$0x1]
    %v2635 = vlaneseq
    %v2636 = vshrl.u32 %v2635, 7
    %v2637 = vsub.s32 0, %v2636
    %v2638 = vrot.slane %v2633, %v2637
    %v2640 = vadd.f32 %v2617, %v2638
    %v2641 = vadd.f32 %v2618, %v2638
    %v2642 = vadd.f32 %v2619, %v2638
    %v2643 = vadd.f32 %v2620, %v2638
    %v2644 = vadd.f32 %v2621, %v2638
    %v2645 = vadd.f32 %v2622, %v2638
    %v2646 = vadd.f32 %v2623, %v2638
    %v2647 = vadd.f32 %v2624, %v2638
    %v2648 = vadd.f32 %v2625, %v2638
    %v2649 = vadd.f32 %v2626, %v2638
    %v2650 = vadd.f32 %v2627, %v2638
    %v2651 = vadd.f32 %v2628, %v2638
    %v2652 = vadd.f32 %v2629, %v2638
    %v2653 = vadd.f32 %v2630, %v2638
    %v2654 = vadd.f32 %v2631, %v2638
    %v2655 = vadd.f32 %v2632, %v2638
    %v2656 = vmax.f32 %v2640, 0.0
    %v2657 = vmax.f32 %v2641, 0.0
    %v2658 = vmax.f32 %v2642, 0.0
    %v2659 = vmax.f32 %v2643, 0.0
    %v2660 = vmax.f32 %v2644, 0.0
    %v2661 = vmax.f32 %v2645, 0.0
    %v2662 = vmax.f32 %v2646, 0.0
    %v2663 = vmax.f32 %v2647, 0.0
    %v2664 = vmax.f32 %v2648, 0.0
    %v2665 = vmax.f32 %v2649, 0.0
    %v2666 = vmax.f32 %v2650, 0.0
    %v2667 = vmax.f32 %v2651, 0.0
    %v2668 = vmax.f32 %v2652, 0.0
    %v2669 = vmax.f32 %v2653, 0.0
    %v2670 = vmax.f32 %v2654, 0.0
    %v2671 = vmax.f32 %v2655, 0.0
    %v2672 = vpack.c.bf16 %v2656, %v2656
    %v2673 = vpack.c.bf16 %v2657, %v2657
    %v2674 = vpack.c.bf16 %v2658, %v2658
    %v2675 = vpack.c.bf16 %v2659, %v2659
    %v2676 = vpack.c.bf16 %v2660, %v2660
    %v2677 = vpack.c.bf16 %v2661, %v2661
    %v2678 = vpack.c.bf16 %v2662, %v2662
    %v2679 = vpack.c.bf16 %v2663, %v2663
    %v2680 = vpack.c.bf16 %v2664, %v2664
    %v2681 = vpack.c.bf16 %v2665, %v2665
    %v2682 = vpack.c.bf16 %v2666, %v2666
    %v2683 = vpack.c.bf16 %v2667, %v2667
    %v2684 = vpack.c.bf16 %v2668, %v2668
    %v2685 = vpack.c.bf16 %v2669, %v2669
    %v2686 = vpack.c.bf16 %v2670, %v2670
    %v2687 = vpack.c.bf16 %v2671, %v2671
    %2688 = vst [vmem:[%s7] sm:$0xf] %v2672
    %2689 = vst [vmem:[%s7 + $0x4] sm:$0xf] %v2673
    %2690 = vst [vmem:[%s7 + $0x8] sm:$0xf] %v2674
    %2691 = vst [vmem:[%s7 + $0xc] sm:$0xf] %v2675
    %2692 = vst [vmem:[%s7 + $0x10] sm:$0xf] %v2676
    %2693 = vst [vmem:[%s7 + $0x14] sm:$0xf] %v2677
    %2694 = vst [vmem:[%s7 + $0x18] sm:$0xf] %v2678
    %2695 = vst [vmem:[%s7 + $0x1c] sm:$0xf] %v2679
    %2696 = vst [vmem:[%s7 + $0x20] sm:$0xf] %v2680
    %2697 = vst [vmem:[%s7 + $0x24] sm:$0xf] %v2681
    %2698 = vst [vmem:[%s7 + $0x28] sm:$0xf] %v2682
    %2699 = vst [vmem:[%s7 + $0x2c] sm:$0xf] %v2683
    %2700 = vst [vmem:[%s7 + $0x30] sm:$0xf] %v2684
    %2701 = vst [vmem:[%s7 + $0x34] sm:$0xf] %v2685
    %2702 = vst [vmem:[%s7 + $0x38] sm:$0xf] %v2686
    %2703 = vst [vmem:[%s7 + $0x3c] sm:$0xf] %v2687
    %v2704 = vld [vmem:[#allocation3] sm:$0xff]
    %v2705 = vld [vmem:[#allocation3 + $0x8] sm:$0xff]
    %v2706 = vld [vmem:[#allocation3 + $0x10] sm:$0xff]
    %v2707 = vld [vmem:[#allocation3 + $0x18] sm:$0xff]
    %v2708 = vld [vmem:[#allocation3 + $0x20] sm:$0xff]
    %v2709 = vld [vmem:[#allocation3 + $0x28] sm:$0xff]
    %v2710 = vld [vmem:[#allocation3 + $0x30] sm:$0xff]
    %v2711 = vld [vmem:[#allocation3 + $0x38] sm:$0xff]
    %v2712 = vld [vmem:[#allocation3 + $0x40] sm:$0xff]
    %v2713 = vld [vmem:[#allocation3 + $0x48] sm:$0xff]
    %v2714 = vld [vmem:[#allocation3 + $0x50] sm:$0xff]
    %v2715 = vld [vmem:[#allocation3 + $0x58] sm:$0xff]
    %v2716 = vld [vmem:[#allocation3 + $0x60] sm:$0xff]
    %v2717 = vld [vmem:[#allocation3 + $0x68] sm:$0xff]
    %v2718 = vld [vmem:[#allocation3 + $0x70] sm:$0xff]
    %v2719 = vld [vmem:[#allocation3 + $0x78] sm:$0xff]
    %v2720 = vld [vmem:[%s5] sm:$0x1]
    %v2722 = vlaneseq
    %v2723 = vshrl.u32 %v2722, 7
    %v2724 = vsub.s32 0, %v2723
    %v2725 = vrot.slane %v2720, %v2724
    %v2727 = vmul.f32 %v2704, %v2725
    %v2728 = vmul.f32 %v2705, %v2725
    %v2729 = vmul.f32 %v2706, %v2725
    %v2730 = vmul.f32 %v2707, %v2725
    %v2731 = vmul.f32 %v2708, %v2725
    %v2732 = vmul.f32 %v2709, %v2725
    %v2733 = vmul.f32 %v2710, %v2725
    %v2734 = vmul.f32 %v2711, %v2725
    %v2735 = vmul.f32 %v2712, %v2725
    %v2736 = vmul.f32 %v2713, %v2725
    %v2737 = vmul.f32 %v2714, %v2725
    %v2738 = vmul.f32 %v2715, %v2725
    %v2739 = vmul.f32 %v2716, %v2725
    %v2740 = vmul.f32 %v2717, %v2725
    %v2741 = vmul.f32 %v2718, %v2725
    %v2742 = vmul.f32 %v2719, %v2725
    %v2743 = vld [vmem:[%s6] sm:$0x1]
    %v2745 = vlaneseq
    %v2746 = vshrl.u32 %v2745, 7
    %v2747 = vsub.s32 0, %v2746
    %v2748 = vrot.slane %v2743, %v2747
    %v2750 = vadd.f32 %v2727, %v2748
    %v2751 = vadd.f32 %v2728, %v2748
    %v2752 = vadd.f32 %v2729, %v2748
    %v2753 = vadd.f32 %v2730, %v2748
    %v2754 = vadd.f32 %v2731, %v2748
    %v2755 = vadd.f32 %v2732, %v2748
    %v2756 = vadd.f32 %v2733, %v2748
    %v2757 = vadd.f32 %v2734, %v2748
    %v2758 = vadd.f32 %v2735, %v2748
    %v2759 = vadd.f32 %v2736, %v2748
    %v2760 = vadd.f32 %v2737, %v2748
    %v2761 = vadd.f32 %v2738, %v2748
    %v2762 = vadd.f32 %v2739, %v2748
    %v2763 = vadd.f32 %v2740, %v2748
    %v2764 = vadd.f32 %v2741, %v2748
    %v2765 = vadd.f32 %v2742, %v2748
    %v2766 = vpack.c.bf16 %v2750, %v2750
    %v2767 = vpack.c.bf16 %v2751, %v2751
    %v2768 = vpack.c.bf16 %v2752, %v2752
    %v2769 = vpack.c.bf16 %v2753, %v2753
    %v2770 = vpack.c.bf16 %v2754, %v2754
    %v2771 = vpack.c.bf16 %v2755, %v2755
    %v2772 = vpack.c.bf16 %v2756, %v2756
    %v2773 = vpack.c.bf16 %v2757, %v2757
    %v2774 = vpack.c.bf16 %v2758, %v2758
    %v2775 = vpack.c.bf16 %v2759, %v2759
    %v2776 = vpack.c.bf16 %v2760, %v2760
    %v2777 = vpack.c.bf16 %v2761, %v2761
    %v2778 = vpack.c.bf16 %v2762, %v2762
    %v2779 = vpack.c.bf16 %v2763, %v2763
    %v2780 = vpack.c.bf16 %v2764, %v2764
    %v2781 = vpack.c.bf16 %v2765, %v2765
    %2782 = vst [vmem:[%s8] sm:$0xf] %v2766
    %2783 = vst [vmem:[%s8 + $0x4] sm:$0xf] %v2767
    %2784 = vst [vmem:[%s8 + $0x8] sm:$0xf] %v2768
    %2785 = vst [vmem:[%s8 + $0xc] sm:$0xf] %v2769
    %2786 = vst [vmem:[%s8 + $0x10] sm:$0xf] %v2770
    %2787 = vst [vmem:[%s8 + $0x14] sm:$0xf] %v2771
    %2788 = vst [vmem:[%s8 + $0x18] sm:$0xf] %v2772
    %2789 = vst [vmem:[%s8 + $0x1c] sm:$0xf] %v2773
    %2790 = vst [vmem:[%s8 + $0x20] sm:$0xf] %v2774
    %2791 = vst [vmem:[%s8 + $0x24] sm:$0xf] %v2775
    %2792 = vst [vmem:[%s8 + $0x28] sm:$0xf] %v2776
    %2793 = vst [vmem:[%s8 + $0x2c] sm:$0xf] %v2777
    %2794 = vst [vmem:[%s8 + $0x30] sm:$0xf] %v2778
    %2795 = vst [vmem:[%s8 + $0x34] sm:$0xf] %v2779
    %2796 = vst [vmem:[%s8 + $0x38] sm:$0xf] %v2780
    %2797 = vst [vmem:[%s8 + $0x3c] sm:$0xf] %v2781
  $region37: #{resnet_layer.4} parent=0 // pred_fallthru
    _
  // Predicated region
  $region38: #{resnet_layer.4} parent=0 // pred_check
    _
  $region39: #{resnet_layer.4} parent=0 // pred_check_branch
    %2799 = sbr.rel (0) target = $region41
  $region40: #{resnet_layer.4} parent=0 // pred_region
    _
  $region41: #{resnet_layer.4} parent=0 // pred_fallthru
    _
  // Predicated region
  $region42: #{resnet_layer.4} parent=0 // pred_check
    _
  $region43: #{resnet_layer.4} parent=0 // pred_check_branch
    %2801 = sbr.rel (0) target = $region45
  $region44: #{resnet_layer.4} parent=0 // pred_region
    _
  $region45: #{resnet_layer.4} parent=0 // pred_fallthru
    _
  // Predicated region
  $region46: #{resnet_layer.4} parent=0 // pred_check
    _
  $region47: #{resnet_layer.4} parent=0 // pred_check_branch
    %2803 = sbr.rel (0) target = $region49
  $region48: #{resnet_layer.4} parent=0 // pred_region
    _
  $region49: #{resnet_layer.4} parent=0 // pred_fallthru
    _
  // Predicated region
  $region50: #{resnet_layer.4} parent=0 // pred_check
    _
  $region51: #{resnet_layer.4} parent=0 // pred_check_branch
    %2805 = sbr.rel (0) target = $region53
  $region52: #{resnet_layer.4} parent=0 // pred_region
    _
  $region53: #{resnet_layer.4} parent=0 // pred_fallthru
    _

</llo_original>
